<compile_context>
chip_gen: v7x
topology: tpu7x:2x2x1
jax: 0.10.0
libtpu: 0.0.40
codegen_flags: <defaults>
</compile_context>

<pallas_src>
import functools
import numpy as np

import jax
import jax.numpy as jnp
from jax import lax
from jax.experimental import pallas as pl
from jax.experimental.pallas import tpu as pltpu

_UNROLL_MAX_T = 32   # fully unroll the recurrence for short static sequences


def _round_up(x, m):
    return ((x + m - 1) // m) * m


def _vmem_budget_bytes():
    """Generation-dependent VMEM budget: ~100 MiB on 128-MiB chips (v5e/v6e),
    48 MiB on v7x-class chips (64 MiB/TC physical)."""
    try:
        cap = int(pltpu.get_tpu_info().vmem_capacity_bytes)
    except Exception:
        cap = 64 * 1024 * 1024
    if cap >= 96 * 1024 * 1024:
        return 100 * 1024 * 1024
    return 48 * 1024 * 1024


def _lstm_gates_to_hc(gates, c_prev, H):
    # PyTorch gate order: i, f, g, o (gates already include x- and h-projections)
    i = jax.nn.sigmoid(gates[:, 0:H])
    f = jax.nn.sigmoid(gates[:, H:2 * H])
    g = jnp.tanh(gates[:, 2 * H:3 * H])
    o = jax.nn.sigmoid(gates[:, 3 * H:4 * H])
    c_new = f * c_prev + i * g
    h_new = o * jnp.tanh(c_new)
    return h_new, c_new


def _bilstm_stack_kernel(lens_ref, x_ref, *refs, num_layers, hidden, seq_len):
    """Whole BiLSTM stack + relu + classifier for one batch block.

    lens_ref : (1, TB, 1) int32  per-sequence lengths (0 for padded rows)
    x_ref    : (1, T*TB, Din) bf16, rows ordered time-major (row = t*TB + b)
    per layer: wxf (Din_l,4H), wxb (Din_l,4H), whf (H,4H), whb (H,4H)   [bf16]
               bf (1,4H), bb (1,4H)                                    [f32]
    then     : cls_w (2H, Cp) bf16, cls_b (1, Cp) f32
    out      : logits (TB, Cp) f32 (lane-padded)
    scratch  : seq (T*TB, 2H) bf16  [fwd lanes 0:H | bwd lanes H:2H],
               gxf/gxb (T*TB, 4H) bf16 hoisted input gates
    """
    H = hidden
    T = seq_len
    TB = lens_ref.shape[1]

    layer_refs = refs[:6 * num_layers]
    (clsw_ref, clsb_ref, logits_ref,
     seq_scr, gxf_scr, gxb_scr) = refs[6 * num_layers:]

    lens = lens_ref[0]                                  # (TB, 1) int32
    zero = jnp.zeros((TB, H), jnp.float32)

    unrolled = T <= _UNROLL_MAX_T
    # per-timestep validity masks, hoisted out of the layer loop (identical
    # for every layer -> computed exactly once per batch block)
    step_masks = [lens > t for t in range(T)] if unrolled else None

    for layer in range(num_layers):
        (wxf_ref, wxb_ref, whf_ref, whb_ref,
         bf_ref, bb_ref) = layer_refs[6 * layer:6 * layer + 6]
        is_last = layer == num_layers - 1

        # ---- hoisted input projection: one large matmul per direction ----
        if layer == 0:
            xin = x_ref[0]                              # (T*TB, Din) bf16
        else:
            xin = seq_scr[...]                          # (T*TB, 2H) bf16, K = 2H
        gxf = jnp.dot(xin, wxf_ref[...],
                      preferred_element_type=jnp.float32) + bf_ref[...]
        gxb = jnp.dot(xin, wxb_ref[...],
                      preferred_element_type=jnp.float32) + bb_ref[...]
        gxf_scr[...] = gxf.astype(jnp.bfloat16)
        gxb_scr[...] = gxb.astype(jnp.bfloat16)

        whf = whf_ref[...]                              # (H, 4H) bf16
        whb = whb_ref[...]

        # ---- serial recurrence; fwd and bwd interleaved (independent work) ----
        def one_step(carry, off_f, off_b, mf, mb, is_last=is_last):
            hf, cf, hb, cb = carry
            gf = gxf_scr[pl.ds(off_f, TB)].astype(jnp.float32) + jnp.dot(
                hf.astype(jnp.bfloat16), whf, preferred_element_type=jnp.float32)
            gb = gxb_scr[pl.ds(off_b, TB)].astype(jnp.float32) + jnp.dot(
                hb.astype(jnp.bfloat16), whb, preferred_element_type=jnp.float32)
            hf_new, cf_new = _lstm_gates_to_hc(gf, cf, H)
            hb_new, cb_new = _lstm_gates_to_hc(gb, cb, H)

            if not is_last:
                # zero output at padded positions (packed-sequence semantics);
                # fwd -> lanes 0:H, bwd -> lanes H:2H of the merged scratch
                seq_scr[pl.ds(off_f, TB), 0:H] = (
                    jnp.where(mf, hf_new, 0.0).astype(jnp.bfloat16))
                seq_scr[pl.ds(off_b, TB), H:2 * H] = (
                    jnp.where(mb, hb_new, 0.0).astype(jnp.bfloat16))

            # hold state past each sequence's own end
            hf = jnp.where(mf, hf_new, hf)
            cf = jnp.where(mf, cf_new, cf)
            hb = jnp.where(mb, hb_new, hb)
            cb = jnp.where(mb, cb_new, cb)
            return hf, cf, hb, cb

        carry = (zero, zero, zero, zero)
        if unrolled:
            for t in range(T):      # full unroll: static offsets + scheduler visibility
                tb = T - 1 - t
                carry = one_step(carry, t * TB, tb * TB,
                                 step_masks[t], step_masks[tb])
        else:
            def body(t, carry):
                tb = T - 1 - t
                return one_step(carry,
                                pl.multiple_of(t * TB, TB),
                                pl.multiple_of(tb * TB, TB),
                                lens > t, lens > tb)
            carry = lax.fori_loop(0, T, body, carry, unroll=2)
        hf_fin = carry[0]

        if is_last:
            # out[:, -1] == padded output at t = T-1.
            # forward half: rows with len == T were updated at t = T-1, so the
            # held state equals that step's output; shorter rows are padding -> 0.
            of_last = jnp.where(lens > T - 1, hf_fin, 0.0)
            # backward half at t = T-1 is the FIRST backward step (zero initial
            # state assumed): recompute it directly from the hoisted gates.
            hb0, _ = _lstm_gates_to_hc(
                gxb_scr[pl.ds((T - 1) * TB, TB)].astype(jnp.float32), zero, H)
            ob_last = jnp.where(lens > T - 1, hb0, 0.0)

            # fused relu + classifier, lane-padded output
            of_r = jnp.maximum(of_last, 0.0).astype(jnp.bfloat16)
            ob_r = jnp.maximum(ob_last, 0.0).astype(jnp.bfloat16)
            logits_ref[...] = (
                jnp.dot(of_r, clsw_ref[0:H, :], preferred_element_type=jnp.float32)
                + jnp.dot(ob_r, clsw_ref[H:2 * H, :], preferred_element_type=jnp.float32)
                + clsb_ref[...])


# ------------------------------ JAX wrapper -----------------------------------

def base_bilstm_forward(params, xw, xp, xdt, data_len, batch_block=None):
    """data_len is a concrete host-side array of lengths (as in PyTorch)."""
    B, _ = xw.shape
    # embeddings (gathers are plain JAX glue); dropout layers are identity (eval)
    embW = params["emb1"][xw]
    embP = params["emb2"][xp]
    embDT = params["emb3"][xdt]
    embs = jnp.concatenate([embW, embP, embDT], axis=-1)            # (B, T, D) f32

    # pack/pad_packed semantics: truncate to max(data_len); masking in-kernel
    lens_np = np.asarray(data_len).astype(np.int32)
    T = int(lens_np.max())
    x_tbd = jnp.transpose(embs[:, :T], (1, 0, 2))                   # (T, B, D)

    H = params["lstm"][0]["whf"].shape[0]
    Din = x_tbd.shape[-1]
    C = params["cls_w"].shape[1]
    Cp = _round_up(C, 128)                                          # lane-dense logits

    vmem_limit = _vmem_budget_bytes()

    # static weight bytes (bf16 matmul weights, f32 biases), double-buffered
    w_bytes = 0
    for lw in params["lstm"]:
        w_bytes += (lw["wif"].size + lw["wib"].size
                    + lw["whf"].size + lw["whb"].size) * 2
        w_bytes += (lw["bf"].size + lw["bb"].size) * 4
    w_bytes += 2 * H * Cp * 2 + Cp * 4
    w_bytes *= 2

    def _fits(tb):
        rows = T * tb
        use = w_bytes
        use += 2 * rows * 4 * H * 2          # gxf + gxb scratches (bf16)
        use += rows * 2 * H * 2              # merged seq scratch (bf16)
        use += 2 * rows * Din * 2            # double-buffered x block (bf16)
        use += 2 * tb * 4                    # lengths block
        use += 2 * tb * Cp * 4               # logits block
        return use + (4 << 20) <= vmem_limit

    # ---- batch tile: as large as MXU/VMEM allow, multiple of 16 ----
    if batch_block is None:
        TB = 256
        while TB > 16 and not _fits(TB):
            TB //= 2
        TB = max(16, min(TB, _round_up(B, 16)))
    else:
        TB = batch_block
    assert TB % 8 == 0, "batch tile must be a multiple of 8 (sublane alignment)"

    B_pad = _round_up(B, TB)
    nb = B_pad // TB

    if B_pad != B:
        # pad with zero embeddings + length-0 sequences (outputs sliced off)
        x_tbd = jnp.pad(x_tbd, ((0, 0), (0, B_pad - B), (0, 0)))
        lens_full = np.zeros((B_pad,), np.int32)
        lens_full[:B] = lens_np
    else:
        lens_full = lens_np

    # rows inside a batch block are time-major: row = t*TB + local_b
    x_blk = (x_tbd.reshape(T, nb, TB, Din)
             .transpose(1, 0, 2, 3)
             .reshape(nb, T * TB, Din)
             .astype(jnp.bfloat16))
    lens_blk = jnp.asarray(lens_full).reshape(nb, TB, 1)

    def full_spec(arr):
        nd = arr.ndim
        return pl.BlockSpec(arr.shape, lambda b, _n=nd: (0,) * _n)

    layer_args = []
    in_specs = [
        pl.BlockSpec((1, TB, 1), lambda b: (b, 0, 0)),              # lengths
        pl.BlockSpec((1, T * TB, Din), lambda b: (b, 0, 0)),        # embeddings
    ]
    for lw in params["lstm"]:
        args = [lw["wif"].astype(jnp.bfloat16),
                lw["wib"].astype(jnp.bfloat16),
                lw["whf"].astype(jnp.bfloat16),
                lw["whb"].astype(jnp.bfloat16),
                lw["bf"], lw["bb"]]
        layer_args += args
        in_specs += [full_spec(a) for a in args]

    cls_w_pad = (jnp.zeros((2 * H, Cp), jnp.float32)
                 .at[:, :C].set(params["cls_w"])).astype(jnp.bfloat16)
    cls_b_pad = jnp.zeros((1, Cp), jnp.float32).at[:, :C].set(
        params["cls_b"].reshape(1, C))
    layer_args += [cls_w_pad, cls_b_pad]
    in_specs += [full_spec(cls_w_pad), full_spec(cls_b_pad)]

    kernel = functools.partial(_bilstm_stack_kernel,
                               num_layers=len(params["lstm"]),
                               hidden=H, seq_len=T)

    logits_pad = pl.pallas_call(
        kernel,
        out_shape=jax.ShapeDtypeStruct((B_pad, Cp), jnp.float32),
        grid=(nb,),
        in_specs=in_specs,
        out_specs=pl.BlockSpec((TB, Cp), lambda b: (b, 0)),
        scratch_shapes=[
            pltpu.VMEM((T * TB, 2 * H), jnp.bfloat16),   # merged fwd|bwd layer outputs
            pltpu.VMEM((T * TB, 4 * H), jnp.bfloat16),   # hoisted fwd input gates
            pltpu.VMEM((T * TB, 4 * H), jnp.bfloat16),   # hoisted bwd input gates
        ],
        compiler_params=pltpu.CompilerParams(
            dimension_semantics=("parallel",),           # megacore batch sharding
            vmem_limit_bytes=vmem_limit,                 # generation-dependent budget
        ),
    )(lens_blk, x_blk, *layer_args)

    return logits_pad[:B, :C]


# ------------------------------ parameter init --------------------------------

def init_params(key, *, num_classes, word_vocab_size, pos_size, drug_type_size,
                num_lstm_layers, d1, d2, d3, hidden_dim):
    D = d1 + d2 + d3
    H = hidden_dim
    keys = iter(jax.random.split(key, 3 + 6 * num_lstm_layers + 2))

    def emb(k, n, d):
        t = jax.random.normal(k, (n, d), jnp.float32)
        return t.at[0].set(0.0)                         # padding_idx = 0

    params = {
        "emb1": emb(next(keys), word_vocab_size, d1),
        "emb2": emb(next(keys), pos_size, d2),
        "emb3": emb(next(keys), drug_type_size, d3),
        "lstm": [],
    }

    k_lstm = 1.0 / np.sqrt(H)

    def u(k, shape, bound):
        return jax.random.uniform(k, shape, jnp.float32, -bound, bound)

    for layer in range(num_lstm_layers):
        din = D if layer == 0 else 2 * H
        params["lstm"].append({
            "wif": u(next(keys), (din, 4 * H), k_lstm),   # weight_ih_l{k}.T
            "whf": u(next(keys), (H, 4 * H), k_lstm),     # weight_hh_l{k}.T
            "bf":  u(next(keys), (1, 4 * H), k_lstm),     # bias_ih + bias_hh
            "wib": u(next(keys), (din, 4 * H), k_lstm),   # reverse direction
            "whb": u(next(keys), (H, 4 * H), k_lstm),
            "bb":  u(next(keys), (1, 4 * H), k_lstm),
        })

    k_cls = 1.0 / np.sqrt(2 * H)
    params["cls_w"] = jax.random.uniform(next(keys), (2 * H, num_classes),
                                         jnp.float32, -k_cls, k_cls)
    params["cls_b"] = jax.random.uniform(next(keys), (num_classes,),
                                         jnp.float32, -k_cls, k_cls)
    return params


# ----------------------------------- main --------------------------------------

if __name__ == "__main__":
    num_classes = 5
    word_vocab_size, pos_size, drug_type_size = 100, 20, 10
    num_lstm_layers = 2
    d1, d2, d3 = 16, 8, 8          # embedding dims -> D = 32
    hidden_dim = 128               # H = 128 (lane-dense), bidirectional -> 2H = 256
    B, T = 2, 8

    key = jax.random.PRNGKey(0)
    k_p, k_w, k_pz, k_dt = jax.random.split(key, 4)

    params = init_params(k_p, num_classes=num_classes,
                         word_vocab_size=word_vocab_size, pos_size=pos_size,
                         drug_type_size=drug_type_size,
                         num_lstm_layers=num_lstm_layers,
                         d1=d1, d2=d2, d3=d3, hidden_dim=hidden_dim)

    data_len = np.array([8, 5], dtype=np.int32)     # host-side lengths (max == T)
    valid = (np.arange(T)[None, :] < data_len[:, None])
    valid_j = jnp.asarray(valid)

    xw = jax.random.randint(k_w, (B, T), 1, word_vocab_size, jnp.int32)
    xp = jax.random.randint(k_pz, (B, T), 1, pos_size, jnp.int32)
    xdt = jax.random.randint(k_dt, (B, T), 1, drug_type_size, jnp.int32)
    # padding token (id 0) past each sequence's length
    xw = jnp.where(valid_j, xw, 0)
    xp = jnp.where(valid_j, xp, 0)
    xdt = jnp.where(valid_j, xdt, 0)

    out = base_bilstm_forward(params, xw, xp, xdt, data_len)
    out = jax.block_until_ready(out)
    assert out.shape == (B, num_classes) and out.dtype == jnp.float32
    assert bool(jnp.all(jnp.isfinite(out)))
    print("KERNEL_OK")
</pallas_src>

<mosaic_0001>
module attributes {stable_mosaic.version = 11 : i64} {
  func.func @_bilstm_stack_kernel(%arg0: i32, %arg1: memref<1x16x1xi32, #tpu.memory_space<vmem>>, %arg2: memref<1x128x32xbf16, #tpu.memory_space<vmem>>, %arg3: memref<32x512xbf16, #tpu.memory_space<vmem>>, %arg4: memref<32x512xbf16, #tpu.memory_space<vmem>>, %arg5: memref<128x512xbf16, #tpu.memory_space<vmem>>, %arg6: memref<128x512xbf16, #tpu.memory_space<vmem>>, %arg7: memref<1x512xf32, #tpu.memory_space<vmem>>, %arg8: memref<1x512xf32, #tpu.memory_space<vmem>>, %arg9: memref<256x512xbf16, #tpu.memory_space<vmem>>, %arg10: memref<256x512xbf16, #tpu.memory_space<vmem>>, %arg11: memref<128x512xbf16, #tpu.memory_space<vmem>>, %arg12: memref<128x512xbf16, #tpu.memory_space<vmem>>, %arg13: memref<1x512xf32, #tpu.memory_space<vmem>>, %arg14: memref<1x512xf32, #tpu.memory_space<vmem>>, %arg15: memref<256x128xbf16, #tpu.memory_space<vmem>>, %arg16: memref<1x128xf32, #tpu.memory_space<vmem>>, %arg17: memref<16x128xf32, #tpu.memory_space<vmem>>, %arg18: memref<128x256xbf16, #tpu.memory_space<vmem>>, %arg19: memref<128x512xbf16, #tpu.memory_space<vmem>>, %arg20: memref<128x512xbf16, #tpu.memory_space<vmem>>) attributes {dimension_semantics = [#tpu.dimension_semantics<parallel>], iteration_bounds = array<i64: 1>, scalar_prefetch = 0 : i64, scratch_operands = 3 : i64, tpu.core_type = #tpu.core_type<tc>, window_params = [{transform_indices = @transform_0, window_bounds = array<i64: 1, 16, 1>}, {transform_indices = @transform_1, window_bounds = array<i64: 1, 128, 32>}, {pipeline_mode = #tpu.pipeline_mode<synchronous>, transform_indices = @transform_2, window_bounds = array<i64: 32, 512>}, {pipeline_mode = #tpu.pipeline_mode<synchronous>, transform_indices = @transform_3, window_bounds = array<i64: 32, 512>}, {pipeline_mode = #tpu.pipeline_mode<synchronous>, transform_indices = @transform_4, window_bounds = array<i64: 128, 512>}, {pipeline_mode = #tpu.pipeline_mode<synchronous>, transform_indices = @transform_5, window_bounds = array<i64: 128, 512>}, {pipeline_mode = #tpu.pipeline_mode<synchronous>, transform_indices = @transform_6, window_bounds = array<i64: 1, 512>}, {pipeline_mode = #tpu.pipeline_mode<synchronous>, transform_indices = @transform_7, window_bounds = array<i64: 1, 512>}, {pipeline_mode = #tpu.pipeline_mode<synchronous>, transform_indices = @transform_8, window_bounds = array<i64: 256, 512>}, {pipeline_mode = #tpu.pipeline_mode<synchronous>, transform_indices = @transform_9, window_bounds = array<i64: 256, 512>}, {pipeline_mode = #tpu.pipeline_mode<synchronous>, transform_indices = @transform_10, window_bounds = array<i64: 128, 512>}, {pipeline_mode = #tpu.pipeline_mode<synchronous>, transform_indices = @transform_11, window_bounds = array<i64: 128, 512>}, {pipeline_mode = #tpu.pipeline_mode<synchronous>, transform_indices = @transform_12, window_bounds = array<i64: 1, 512>}, {pipeline_mode = #tpu.pipeline_mode<synchronous>, transform_indices = @transform_13, window_bounds = array<i64: 1, 512>}, {pipeline_mode = #tpu.pipeline_mode<synchronous>, transform_indices = @transform_14, window_bounds = array<i64: 256, 128>}, {pipeline_mode = #tpu.pipeline_mode<synchronous>, transform_indices = @transform_15, window_bounds = array<i64: 1, 128>}, {transform_indices = @transform_16, window_bounds = array<i64: 16, 128>}]} {
    %c0 = arith.constant 0 : index
    %c0_0 = arith.constant 0 : index
    %c0_1 = arith.constant 0 : index
    %0 = vector.load %arg1[%c0, %c0_0, %c0_1] : memref<1x16x1xi32, #tpu.memory_space<vmem>>, vector<1x16x1xi32>
    %1 = vector.shape_cast %0 : vector<1x16x1xi32> to vector<16x1xi32>
    %cst = arith.constant 0.000000e+00 : f32
    %2 = vector.broadcast %cst : f32 to vector<16x128xf32>
    %c0_i32 = arith.constant 0 : i32
    %3 = vector.broadcast %c0_i32 : i32 to vector<16x1xi32>
    %4 = arith.cmpi sgt, %1, %3 : vector<16x1xi32>
    %c1_i32 = arith.constant 1 : i32
    %5 = vector.broadcast %c1_i32 : i32 to vector<16x1xi32>
    %6 = arith.cmpi sgt, %1, %5 : vector<16x1xi32>
    %c2_i32 = arith.constant 2 : i32
    %7 = vector.broadcast %c2_i32 : i32 to vector<16x1xi32>
    %8 = arith.cmpi sgt, %1, %7 : vector<16x1xi32>
    %c3_i32 = arith.constant 3 : i32
    %9 = vector.broadcast %c3_i32 : i32 to vector<16x1xi32>
    %10 = arith.cmpi sgt, %1, %9 : vector<16x1xi32>
    %c4_i32 = arith.constant 4 : i32
    %11 = vector.broadcast %c4_i32 : i32 to vector<16x1xi32>
    %12 = arith.cmpi sgt, %1, %11 : vector<16x1xi32>
    %c5_i32 = arith.constant 5 : i32
    %13 = vector.broadcast %c5_i32 : i32 to vector<16x1xi32>
    %14 = arith.cmpi sgt, %1, %13 : vector<16x1xi32>
    %c6_i32 = arith.constant 6 : i32
    %15 = vector.broadcast %c6_i32 : i32 to vector<16x1xi32>
    %16 = arith.cmpi sgt, %1, %15 : vector<16x1xi32>
    %c7_i32 = arith.constant 7 : i32
    %17 = vector.broadcast %c7_i32 : i32 to vector<16x1xi32>
    %18 = arith.cmpi sgt, %1, %17 : vector<16x1xi32>
    %c0_2 = arith.constant 0 : index
    %c0_3 = arith.constant 0 : index
    %c0_4 = arith.constant 0 : index
    %19 = vector.load %arg2[%c0_2, %c0_3, %c0_4] : memref<1x128x32xbf16, #tpu.memory_space<vmem>>, vector<1x128x32xbf16>
    %20 = vector.shape_cast %19 : vector<1x128x32xbf16> to vector<128x32xbf16>
    %c0_5 = arith.constant 0 : index
    %c0_6 = arith.constant 0 : index
    %21 = vector.load %arg3[%c0_5, %c0_6] : memref<32x512xbf16, #tpu.memory_space<vmem>>, vector<32x512xbf16>
    %cst_7 = arith.constant dense<0.000000e+00> : vector<128x512xf32>
    %22 = tpu.matmul %20, %21, %cst_7 {dimension_numbers = #tpu.dot_dimension_numbers<[1], [0], [0], [1], [0, 0, 1, 1], [], []>} : vector<128x32xbf16>, vector<32x512xbf16>, vector<128x512xf32> -> vector<128x512xf32>
    %c0_8 = arith.constant 0 : index
    %c0_9 = arith.constant 0 : index
    %23 = vector.load %arg7[%c0_8, %c0_9] : memref<1x512xf32, #tpu.memory_space<vmem>>, vector<1x512xf32>
    %24 = vector.broadcast %23 : vector<1x512xf32> to vector<128x512xf32>
    %25 = arith.addf %22, %24 : vector<128x512xf32>
    %c0_10 = arith.constant 0 : index
    %c0_11 = arith.constant 0 : index
    %26 = vector.load %arg4[%c0_10, %c0_11] : memref<32x512xbf16, #tpu.memory_space<vmem>>, vector<32x512xbf16>
    %cst_12 = arith.constant dense<0.000000e+00> : vector<128x512xf32>
    %27 = tpu.matmul %20, %26, %cst_12 {dimension_numbers = #tpu.dot_dimension_numbers<[1], [0], [0], [1], [0, 0, 1, 1], [], []>} : vector<128x32xbf16>, vector<32x512xbf16>, vector<128x512xf32> -> vector<128x512xf32>
    %c0_13 = arith.constant 0 : index
    %c0_14 = arith.constant 0 : index
    %28 = vector.load %arg8[%c0_13, %c0_14] : memref<1x512xf32, #tpu.memory_space<vmem>>, vector<1x512xf32>
    %29 = vector.broadcast %28 : vector<1x512xf32> to vector<128x512xf32>
    %30 = arith.addf %27, %29 : vector<128x512xf32>
    %31 = arith.truncf %25 : vector<128x512xf32> to vector<128x512xbf16>
    %c0_15 = arith.constant 0 : index
    %c0_16 = arith.constant 0 : index
    %32 = vector.load %arg19[%c0_15, %c0_16] : memref<128x512xbf16, #tpu.memory_space<vmem>>, vector<128x512xbf16>
    tpu.vector_store %arg19[%c0_15, %c0_16], %31 {strides = array<i32>} : memref<128x512xbf16, #tpu.memory_space<vmem>>, vector<128x512xbf16>,
    %33 = arith.truncf %30 : vector<128x512xf32> to vector<128x512xbf16>
    %c0_17 = arith.constant 0 : index
    %c0_18 = arith.constant 0 : index
    %34 = vector.load %arg20[%c0_17, %c0_18] : memref<128x512xbf16, #tpu.memory_space<vmem>>, vector<128x512xbf16>
    tpu.vector_store %arg20[%c0_17, %c0_18], %33 {strides = array<i32>} : memref<128x512xbf16, #tpu.memory_space<vmem>>, vector<128x512xbf16>,
    %c0_19 = arith.constant 0 : index
    %c0_20 = arith.constant 0 : index
    %35 = vector.load %arg5[%c0_19, %c0_20] : memref<128x512xbf16, #tpu.memory_space<vmem>>, vector<128x512xbf16>
    %c0_21 = arith.constant 0 : index
    %c0_22 = arith.constant 0 : index
    %36 = vector.load %arg6[%c0_21, %c0_22] : memref<128x512xbf16, #tpu.memory_space<vmem>>, vector<128x512xbf16>
    %c0_23 = arith.constant 0 : index
    %c0_24 = arith.constant 0 : index
    %37 = vector.load %arg19[%c0_23, %c0_24] : memref<128x512xbf16, #tpu.memory_space<vmem>>, vector<16x512xbf16>
    %38 = arith.extf %37 : vector<16x512xbf16> to vector<16x512xf32>
    %39 = arith.truncf %2 : vector<16x128xf32> to vector<16x128xbf16>
    %cst_25 = arith.constant dense<0.000000e+00> : vector<16x512xf32>
    %40 = tpu.matmul %39, %35, %cst_25 {dimension_numbers = #tpu.dot_dimension_numbers<[1], [0], [0], [1], [0, 0, 1, 1], [], []>} : vector<16x128xbf16>, vector<128x512xbf16>, vector<16x512xf32> -> vector<16x512xf32>
    %41 = arith.addf %38, %40 : vector<16x512xf32>
    %c112 = arith.constant 112 : index
    %c0_26 = arith.constant 0 : index
    %42 = vector.load %arg20[%c112, %c0_26] : memref<128x512xbf16, #tpu.memory_space<vmem>>, vector<16x512xbf16>
    %43 = arith.extf %42 : vector<16x512xbf16> to vector<16x512xf32>
    %44 = arith.truncf %2 : vector<16x128xf32> to vector<16x128xbf16>
    %cst_27 = arith.constant dense<0.000000e+00> : vector<16x512xf32>
    %45 = tpu.matmul %44, %36, %cst_27 {dimension_numbers = #tpu.dot_dimension_numbers<[1], [0], [0], [1], [0, 0, 1, 1], [], []>} : vector<16x128xbf16>, vector<128x512xbf16>, vector<16x512xf32> -> vector<16x512xf32>
    %46 = arith.addf %43, %45 : vector<16x512xf32>
    %47 = vector.extract_strided_slice %41 {offsets = [0, 0], sizes = [16, 128], strides = [1, 1]} : vector<16x512xf32> to vector<16x128xf32>
    %48 = arith.negf %47 : vector<16x128xf32>
    %49 = math.exp %48 : vector<16x128xf32>
    %cst_28 = arith.constant 1.000000e+00 : f32
    %50 = vector.broadcast %cst_28 : f32 to vector<16x128xf32>
    %51 = arith.addf %50, %49 : vector<16x128xf32>
    %52 = arith.divf %50, %51 : vector<16x128xf32>
    %53 = vector.extract_strided_slice %41 {offsets = [0, 128], sizes = [16, 128], strides = [1, 1]} : vector<16x512xf32> to vector<16x128xf32>
    %54 = arith.negf %53 : vector<16x128xf32>
    %55 = math.exp %54 : vector<16x128xf32>
    %cst_29 = arith.constant 1.000000e+00 : f32
    %56 = vector.broadcast %cst_29 : f32 to vector<16x128xf32>
    %57 = arith.addf %56, %55 : vector<16x128xf32>
    %58 = arith.divf %56, %57 : vector<16x128xf32>
    %59 = vector.extract_strided_slice %41 {offsets = [0, 256], sizes = [16, 128], strides = [1, 1]} : vector<16x512xf32> to vector<16x128xf32>
    %60 = math.tanh %59 : vector<16x128xf32>
    %61 = vector.extract_strided_slice %41 {offsets = [0, 384], sizes = [16, 128], strides = [1, 1]} : vector<16x512xf32> to vector<16x128xf32>
    %62 = arith.negf %61 : vector<16x128xf32>
    %63 = math.exp %62 : vector<16x128xf32>
    %cst_30 = arith.constant 1.000000e+00 : f32
    %64 = vector.broadcast %cst_30 : f32 to vector<16x128xf32>
    %65 = arith.addf %64, %63 : vector<16x128xf32>
    %66 = arith.divf %64, %65 : vector<16x128xf32>
    %67 = arith.mulf %58, %2 : vector<16x128xf32>
    %68 = arith.mulf %52, %60 : vector<16x128xf32>
    %69 = arith.addf %67, %68 : vector<16x128xf32>
    %70 = math.tanh %69 : vector<16x128xf32>
    %71 = arith.mulf %66, %70 : vector<16x128xf32>
    %72 = vector.extract_strided_slice %46 {offsets = [0, 0], sizes = [16, 128], strides = [1, 1]} : vector<16x512xf32> to vector<16x128xf32>
    %73 = arith.negf %72 : vector<16x128xf32>
    %74 = math.exp %73 : vector<16x128xf32>
    %cst_31 = arith.constant 1.000000e+00 : f32
    %75 = vector.broadcast %cst_31 : f32 to vector<16x128xf32>
    %76 = arith.addf %75, %74 : vector<16x128xf32>
    %77 = arith.divf %75, %76 : vector<16x128xf32>
    %78 = vector.extract_strided_slice %46 {offsets = [0, 128], sizes = [16, 128], strides = [1, 1]} : vector<16x512xf32> to vector<16x128xf32>
    %79 = arith.negf %78 : vector<16x128xf32>
    %80 = math.exp %79 : vector<16x128xf32>
    %cst_32 = arith.constant 1.000000e+00 : f32
    %81 = vector.broadcast %cst_32 : f32 to vector<16x128xf32>
    %82 = arith.addf %81, %80 : vector<16x128xf32>
    %83 = arith.divf %81, %82 : vector<16x128xf32>
    %84 = vector.extract_strided_slice %46 {offsets = [0, 256], sizes = [16, 128], strides = [1, 1]} : vector<16x512xf32> to vector<16x128xf32>
    %85 = math.tanh %84 : vector<16x128xf32>
    %86 = vector.extract_strided_slice %46 {offsets = [0, 384], sizes = [16, 128], strides = [1, 1]} : vector<16x512xf32> to vector<16x128xf32>
    %87 = arith.negf %86 : vector<16x128xf32>
    %88 = math.exp %87 : vector<16x128xf32>
    %cst_33 = arith.constant 1.000000e+00 : f32
    %89 = vector.broadcast %cst_33 : f32 to vector<16x128xf32>
    %90 = arith.addf %89, %88 : vector<16x128xf32>
    %91 = arith.divf %89, %90 : vector<16x128xf32>
    %92 = arith.mulf %83, %2 : vector<16x128xf32>
    %93 = arith.mulf %77, %85 : vector<16x128xf32>
    %94 = arith.addf %92, %93 : vector<16x128xf32>
    %95 = math.tanh %94 : vector<16x128xf32>
    %96 = arith.mulf %91, %95 : vector<16x128xf32>
    %cst_34 = arith.constant 0.000000e+00 : f32
    %97 = vector.shape_cast %4 : vector<16x1xi1> to vector<16x1xi1>
    %98 = vector.broadcast %97 : vector<16x1xi1> to vector<16x128xi1>
    %99 = vector.broadcast %cst_34 : f32 to vector<16x128xf32>
    %100 = arith.select %98, %71, %99 : vector<16x128xi1>, vector<16x128xf32>
    %101 = arith.truncf %100 : vector<16x128xf32> to vector<16x128xbf16>
    %c0_35 = arith.constant 0 : index
    %c0_36 = arith.constant 0 : index
    %102 = vector.load %arg18[%c0_35, %c0_36] : memref<128x256xbf16, #tpu.memory_space<vmem>>, vector<16x128xbf16>
    tpu.vector_store %arg18[%c0_35, %c0_36], %101 {strides = array<i32>} : memref<128x256xbf16, #tpu.memory_space<vmem>>, vector<16x128xbf16>,
    %cst_37 = arith.constant 0.000000e+00 : f32
    %103 = vector.shape_cast %18 : vector<16x1xi1> to vector<16x1xi1>
    %104 = vector.broadcast %103 : vector<16x1xi1> to vector<16x128xi1>
    %105 = vector.broadcast %cst_37 : f32 to vector<16x128xf32>
    %106 = arith.select %104, %96, %105 : vector<16x128xi1>, vector<16x128xf32>
    %107 = arith.truncf %106 : vector<16x128xf32> to vector<16x128xbf16>
    %c112_38 = arith.constant 112 : index
    %c128 = arith.constant 128 : index
    %108 = vector.load %arg18[%c112_38, %c128] : memref<128x256xbf16, #tpu.memory_space<vmem>>, vector<16x128xbf16>
    tpu.vector_store %arg18[%c112_38, %c128], %107 {strides = array<i32>} : memref<128x256xbf16, #tpu.memory_space<vmem>>, vector<16x128xbf16>,
    %109 = vector.shape_cast %4 : vector<16x1xi1> to vector<16x1xi1>
    %110 = vector.broadcast %109 : vector<16x1xi1> to vector<16x128xi1>
    %111 = arith.select %110, %71, %2 : vector<16x128xi1>, vector<16x128xf32>
    %112 = vector.shape_cast %4 : vector<16x1xi1> to vector<16x1xi1>
    %113 = vector.broadcast %112 : vector<16x1xi1> to vector<16x128xi1>
    %114 = arith.select %113, %69, %2 : vector<16x128xi1>, vector<16x128xf32>
    %115 = vector.shape_cast %18 : vector<16x1xi1> to vector<16x1xi1>
    %116 = vector.broadcast %115 : vector<16x1xi1> to vector<16x128xi1>
    %117 = arith.select %116, %96, %2 : vector<16x128xi1>, vector<16x128xf32>
    %118 = vector.shape_cast %18 : vector<16x1xi1> to vector<16x1xi1>
    %119 = vector.broadcast %118 : vector<16x1xi1> to vector<16x128xi1>
    %120 = arith.select %119, %94, %2 : vector<16x128xi1>, vector<16x128xf32>
    %c16 = arith.constant 16 : index
    %c0_39 = arith.constant 0 : index
    %121 = vector.load %arg19[%c16, %c0_39] : memref<128x512xbf16, #tpu.memory_space<vmem>>, vector<16x512xbf16>
    %122 = arith.extf %121 : vector<16x512xbf16> to vector<16x512xf32>
    %123 = arith.truncf %111 : vector<16x128xf32> to vector<16x128xbf16>
    %cst_40 = arith.constant dense<0.000000e+00> : vector<16x512xf32>
    %124 = tpu.matmul %123, %35, %cst_40 {dimension_numbers = #tpu.dot_dimension_numbers<[1], [0], [0], [1], [0, 0, 1, 1], [], []>} : vector<16x128xbf16>, vector<128x512xbf16>, vector<16x512xf32> -> vector<16x512xf32>
    %125 = arith.addf %122, %124 : vector<16x512xf32>
    %c96 = arith.constant 96 : index
    %c0_41 = arith.constant 0 : index
    %126 = vector.load %arg20[%c96, %c0_41] : memref<128x512xbf16, #tpu.memory_space<vmem>>, vector<16x512xbf16>
    %127 = arith.extf %126 : vector<16x512xbf16> to vector<16x512xf32>
    %128 = arith.truncf %117 : vector<16x128xf32> to vector<16x128xbf16>
    %cst_42 = arith.constant dense<0.000000e+00> : vector<16x512xf32>
    %129 = tpu.matmul %128, %36, %cst_42 {dimension_numbers = #tpu.dot_dimension_numbers<[1], [0], [0], [1], [0, 0, 1, 1], [], []>} : vector<16x128xbf16>, vector<128x512xbf16>, vector<16x512xf32> -> vector<16x512xf32>
    %130 = arith.addf %127, %129 : vector<16x512xf32>
    %131 = vector.extract_strided_slice %125 {offsets = [0, 0], sizes = [16, 128], strides = [1, 1]} : vector<16x512xf32> to vector<16x128xf32>
    %132 = arith.negf %131 : vector<16x128xf32>
    %133 = math.exp %132 : vector<16x128xf32>
    %cst_43 = arith.constant 1.000000e+00 : f32
    %134 = vector.broadcast %cst_43 : f32 to vector<16x128xf32>
    %135 = arith.addf %134, %133 : vector<16x128xf32>
    %136 = arith.divf %134, %135 : vector<16x128xf32>
    %137 = vector.extract_strided_slice %125 {offsets = [0, 128], sizes = [16, 128], strides = [1, 1]} : vector<16x512xf32> to vector<16x128xf32>
    %138 = arith.negf %137 : vector<16x128xf32>
    %139 = math.exp %138 : vector<16x128xf32>
    %cst_44 = arith.constant 1.000000e+00 : f32
    %140 = vector.broadcast %cst_44 : f32 to vector<16x128xf32>
    %141 = arith.addf %140, %139 : vector<16x128xf32>
    %142 = arith.divf %140, %141 : vector<16x128xf32>
    %143 = vector.extract_strided_slice %125 {offsets = [0, 256], sizes = [16, 128], strides = [1, 1]} : vector<16x512xf32> to vector<16x128xf32>
    %144 = math.tanh %143 : vector<16x128xf32>
    %145 = vector.extract_strided_slice %125 {offsets = [0, 384], sizes = [16, 128], strides = [1, 1]} : vector<16x512xf32> to vector<16x128xf32>
    %146 = arith.negf %145 : vector<16x128xf32>
    %147 = math.exp %146 : vector<16x128xf32>
    %cst_45 = arith.constant 1.000000e+00 : f32
    %148 = vector.broadcast %cst_45 : f32 to vector<16x128xf32>
    %149 = arith.addf %148, %147 : vector<16x128xf32>
    %150 = arith.divf %148, %149 : vector<16x128xf32>
    %151 = arith.mulf %142, %114 : vector<16x128xf32>
    %152 = arith.mulf %136, %144 : vector<16x128xf32>
    %153 = arith.addf %151, %152 : vector<16x128xf32>
    %154 = math.tanh %153 : vector<16x128xf32>
    %155 = arith.mulf %150, %154 : vector<16x128xf32>
    %156 = vector.extract_strided_slice %130 {offsets = [0, 0], sizes = [16, 128], strides = [1, 1]} : vector<16x512xf32> to vector<16x128xf32>
    %157 = arith.negf %156 : vector<16x128xf32>
    %158 = math.exp %157 : vector<16x128xf32>
    %cst_46 = arith.constant 1.000000e+00 : f32
    %159 = vector.broadcast %cst_46 : f32 to vector<16x128xf32>
    %160 = arith.addf %159, %158 : vector<16x128xf32>
    %161 = arith.divf %159, %160 : vector<16x128xf32>
    %162 = vector.extract_strided_slice %130 {offsets = [0, 128], sizes = [16, 128], strides = [1, 1]} : vector<16x512xf32> to vector<16x128xf32>
    %163 = arith.negf %162 : vector<16x128xf32>
    %164 = math.exp %163 : vector<16x128xf32>
    %cst_47 = arith.constant 1.000000e+00 : f32
    %165 = vector.broadcast %cst_47 : f32 to vector<16x128xf32>
    %166 = arith.addf %165, %164 : vector<16x128xf32>
    %167 = arith.divf %165, %166 : vector<16x128xf32>
    %168 = vector.extract_strided_slice %130 {offsets = [0, 256], sizes = [16, 128], strides = [1, 1]} : vector<16x512xf32> to vector<16x128xf32>
    %169 = math.tanh %168 : vector<16x128xf32>
    %170 = vector.extract_strided_slice %130 {offsets = [0, 384], sizes = [16, 128], strides = [1, 1]} : vector<16x512xf32> to vector<16x128xf32>
    %171 = arith.negf %170 : vector<16x128xf32>
    %172 = math.exp %171 : vector<16x128xf32>
    %cst_48 = arith.constant 1.000000e+00 : f32
    %173 = vector.broadcast %cst_48 : f32 to vector<16x128xf32>
    %174 = arith.addf %173, %172 : vector<16x128xf32>
    %175 = arith.divf %173, %174 : vector<16x128xf32>
    %176 = arith.mulf %167, %120 : vector<16x128xf32>
    %177 = arith.mulf %161, %169 : vector<16x128xf32>
    %178 = arith.addf %176, %177 : vector<16x128xf32>
    %179 = math.tanh %178 : vector<16x128xf32>
    %180 = arith.mulf %175, %179 : vector<16x128xf32>
    %cst_49 = arith.constant 0.000000e+00 : f32
    %181 = vector.shape_cast %6 : vector<16x1xi1> to vector<16x1xi1>
    %182 = vector.broadcast %181 : vector<16x1xi1> to vector<16x128xi1>
    %183 = vector.broadcast %cst_49 : f32 to vector<16x128xf32>
    %184 = arith.select %182, %155, %183 : vector<16x128xi1>, vector<16x128xf32>
    %185 = arith.truncf %184 : vector<16x128xf32> to vector<16x128xbf16>
    %c16_50 = arith.constant 16 : index
    %c0_51 = arith.constant 0 : index
    %186 = vector.load %arg18[%c16_50, %c0_51] : memref<128x256xbf16, #tpu.memory_space<vmem>>, vector<16x128xbf16>
    tpu.vector_store %arg18[%c16_50, %c0_51], %185 {strides = array<i32>} : memref<128x256xbf16, #tpu.memory_space<vmem>>, vector<16x128xbf16>,
    %cst_52 = arith.constant 0.000000e+00 : f32
    %187 = vector.shape_cast %16 : vector<16x1xi1> to vector<16x1xi1>
    %188 = vector.broadcast %187 : vector<16x1xi1> to vector<16x128xi1>
    %189 = vector.broadcast %cst_52 : f32 to vector<16x128xf32>
    %190 = arith.select %188, %180, %189 : vector<16x128xi1>, vector<16x128xf32>
    %191 = arith.truncf %190 : vector<16x128xf32> to vector<16x128xbf16>
    %c96_53 = arith.constant 96 : index
    %c128_54 = arith.constant 128 : index
    %192 = vector.load %arg18[%c96_53, %c128_54] : memref<128x256xbf16, #tpu.memory_space<vmem>>, vector<16x128xbf16>
    tpu.vector_store %arg18[%c96_53, %c128_54], %191 {strides = array<i32>} : memref<128x256xbf16, #tpu.memory_space<vmem>>, vector<16x128xbf16>,
    %193 = vector.shape_cast %6 : vector<16x1xi1> to vector<16x1xi1>
    %194 = vector.broadcast %193 : vector<16x1xi1> to vector<16x128xi1>
    %195 = arith.select %194, %155, %111 : vector<16x128xi1>, vector<16x128xf32>
    %196 = vector.shape_cast %6 : vector<16x1xi1> to vector<16x1xi1>
    %197 = vector.broadcast %196 : vector<16x1xi1> to vector<16x128xi1>
    %198 = arith.select %197, %153, %114 : vector<16x128xi1>, vector<16x128xf32>
    %199 = vector.shape_cast %16 : vector<16x1xi1> to vector<16x1xi1>
    %200 = vector.broadcast %199 : vector<16x1xi1> to vector<16x128xi1>
    %201 = arith.select %200, %180, %117 : vector<16x128xi1>, vector<16x128xf32>
    %202 = vector.shape_cast %16 : vector<16x1xi1> to vector<16x1xi1>
    %203 = vector.broadcast %202 : vector<16x1xi1> to vector<16x128xi1>
    %204 = arith.select %203, %178, %120 : vector<16x128xi1>, vector<16x128xf32>
    %c32 = arith.constant 32 : index
    %c0_55 = arith.constant 0 : index
    %205 = vector.load %arg19[%c32, %c0_55] : memref<128x512xbf16, #tpu.memory_space<vmem>>, vector<16x512xbf16>
    %206 = arith.extf %205 : vector<16x512xbf16> to vector<16x512xf32>
    %207 = arith.truncf %195 : vector<16x128xf32> to vector<16x128xbf16>
    %cst_56 = arith.constant dense<0.000000e+00> : vector<16x512xf32>
    %208 = tpu.matmul %207, %35, %cst_56 {dimension_numbers = #tpu.dot_dimension_numbers<[1], [0], [0], [1], [0, 0, 1, 1], [], []>} : vector<16x128xbf16>, vector<128x512xbf16>, vector<16x512xf32> -> vector<16x512xf32>
    %209 = arith.addf %206, %208 : vector<16x512xf32>
    %c80 = arith.constant 80 : index
    %c0_57 = arith.constant 0 : index
    %210 = vector.load %arg20[%c80, %c0_57] : memref<128x512xbf16, #tpu.memory_space<vmem>>, vector<16x512xbf16>
    %211 = arith.extf %210 : vector<16x512xbf16> to vector<16x512xf32>
    %212 = arith.truncf %201 : vector<16x128xf32> to vector<16x128xbf16>
    %cst_58 = arith.constant dense<0.000000e+00> : vector<16x512xf32>
    %213 = tpu.matmul %212, %36, %cst_58 {dimension_numbers = #tpu.dot_dimension_numbers<[1], [0], [0], [1], [0, 0, 1, 1], [], []>} : vector<16x128xbf16>, vector<128x512xbf16>, vector<16x512xf32> -> vector<16x512xf32>
    %214 = arith.addf %211, %213 : vector<16x512xf32>
    %215 = vector.extract_strided_slice %209 {offsets = [0, 0], sizes = [16, 128], strides = [1, 1]} : vector<16x512xf32> to vector<16x128xf32>
    %216 = arith.negf %215 : vector<16x128xf32>
    %217 = math.exp %216 : vector<16x128xf32>
    %cst_59 = arith.constant 1.000000e+00 : f32
    %218 = vector.broadcast %cst_59 : f32 to vector<16x128xf32>
    %219 = arith.addf %218, %217 : vector<16x128xf32>
    %220 = arith.divf %218, %219 : vector<16x128xf32>
    %221 = vector.extract_strided_slice %209 {offsets = [0, 128], sizes = [16, 128], strides = [1, 1]} : vector<16x512xf32> to vector<16x128xf32>
    %222 = arith.negf %221 : vector<16x128xf32>
    %223 = math.exp %222 : vector<16x128xf32>
    %cst_60 = arith.constant 1.000000e+00 : f32
    %224 = vector.broadcast %cst_60 : f32 to vector<16x128xf32>
    %225 = arith.addf %224, %223 : vector<16x128xf32>
    %226 = arith.divf %224, %225 : vector<16x128xf32>
    %227 = vector.extract_strided_slice %209 {offsets = [0, 256], sizes = [16, 128], strides = [1, 1]} : vector<16x512xf32> to vector<16x128xf32>
    %228 = math.tanh %227 : vector<16x128xf32>
    %229 = vector.extract_strided_slice %209 {offsets = [0, 384], sizes = [16, 128], strides = [1, 1]} : vector<16x512xf32> to vector<16x128xf32>
    %230 = arith.negf %229 : vector<16x128xf32>
    %231 = math.exp %230 : vector<16x128xf32>
    %cst_61 = arith.constant 1.000000e+00 : f32
    %232 = vector.broadcast %cst_61 : f32 to vector<16x128xf32>
    %233 = arith.addf %232, %231 : vector<16x128xf32>
    %234 = arith.divf %232, %233 : vector<16x128xf32>
    %235 = arith.mulf %226, %198 : vector<16x128xf32>
    %236 = arith.mulf %220, %228 : vector<16x128xf32>
    %237 = arith.addf %235, %236 : vector<16x128xf32>
    %238 = math.tanh %237 : vector<16x128xf32>
    %239 = arith.mulf %234, %238 : vector<16x128xf32>
    %240 = vector.extract_strided_slice %214 {offsets = [0, 0], sizes = [16, 128], strides = [1, 1]} : vector<16x512xf32> to vector<16x128xf32>
    %241 = arith.negf %240 : vector<16x128xf32>
    %242 = math.exp %241 : vector<16x128xf32>
    %cst_62 = arith.constant 1.000000e+00 : f32
    %243 = vector.broadcast %cst_62 : f32 to vector<16x128xf32>
    %244 = arith.addf %243, %242 : vector<16x128xf32>
    %245 = arith.divf %243, %244 : vector<16x128xf32>
    %246 = vector.extract_strided_slice %214 {offsets = [0, 128], sizes = [16, 128], strides = [1, 1]} : vector<16x512xf32> to vector<16x128xf32>
    %247 = arith.negf %246 : vector<16x128xf32>
    %248 = math.exp %247 : vector<16x128xf32>
    %cst_63 = arith.constant 1.000000e+00 : f32
    %249 = vector.broadcast %cst_63 : f32 to vector<16x128xf32>
    %250 = arith.addf %249, %248 : vector<16x128xf32>
    %251 = arith.divf %249, %250 : vector<16x128xf32>
    %252 = vector.extract_strided_slice %214 {offsets = [0, 256], sizes = [16, 128], strides = [1, 1]} : vector<16x512xf32> to vector<16x128xf32>
    %253 = math.tanh %252 : vector<16x128xf32>
    %254 = vector.extract_strided_slice %214 {offsets = [0, 384], sizes = [16, 128], strides = [1, 1]} : vector<16x512xf32> to vector<16x128xf32>
    %255 = arith.negf %254 : vector<16x128xf32>
    %256 = math.exp %255 : vector<16x128xf32>
    %cst_64 = arith.constant 1.000000e+00 : f32
    %257 = vector.broadcast %cst_64 : f32 to vector<16x128xf32>
    %258 = arith.addf %257, %256 : vector<16x128xf32>
    %259 = arith.divf %257, %258 : vector<16x128xf32>
    %260 = arith.mulf %251, %204 : vector<16x128xf32>
    %261 = arith.mulf %245, %253 : vector<16x128xf32>
    %262 = arith.addf %260, %261 : vector<16x128xf32>
    %263 = math.tanh %262 : vector<16x128xf32>
    %264 = arith.mulf %259, %263 : vector<16x128xf32>
    %cst_65 = arith.constant 0.000000e+00 : f32
    %265 = vector.shape_cast %8 : vector<16x1xi1> to vector<16x1xi1>
    %266 = vector.broadcast %265 : vector<16x1xi1> to vector<16x128xi1>
    %267 = vector.broadcast %cst_65 : f32 to vector<16x128xf32>
    %268 = arith.select %266, %239, %267 : vector<16x128xi1>, vector<16x128xf32>
    %269 = arith.truncf %268 : vector<16x128xf32> to vector<16x128xbf16>
    %c32_66 = arith.constant 32 : index
    %c0_67 = arith.constant 0 : index
    %270 = vector.load %arg18[%c32_66, %c0_67] : memref<128x256xbf16, #tpu.memory_space<vmem>>, vector<16x128xbf16>
    tpu.vector_store %arg18[%c32_66, %c0_67], %269 {strides = array<i32>} : memref<128x256xbf16, #tpu.memory_space<vmem>>, vector<16x128xbf16>,
    %cst_68 = arith.constant 0.000000e+00 : f32
    %271 = vector.shape_cast %14 : vector<16x1xi1> to vector<16x1xi1>
    %272 = vector.broadcast %271 : vector<16x1xi1> to vector<16x128xi1>
    %273 = vector.broadcast %cst_68 : f32 to vector<16x128xf32>
    %274 = arith.select %272, %264, %273 : vector<16x128xi1>, vector<16x128xf32>
    %275 = arith.truncf %274 : vector<16x128xf32> to vector<16x128xbf16>
    %c80_69 = arith.constant 80 : index
    %c128_70 = arith.constant 128 : index
    %276 = vector.load %arg18[%c80_69, %c128_70] : memref<128x256xbf16, #tpu.memory_space<vmem>>, vector<16x128xbf16>
    tpu.vector_store %arg18[%c80_69, %c128_70], %275 {strides = array<i32>} : memref<128x256xbf16, #tpu.memory_space<vmem>>, vector<16x128xbf16>,
    %277 = vector.shape_cast %8 : vector<16x1xi1> to vector<16x1xi1>
    %278 = vector.broadcast %277 : vector<16x1xi1> to vector<16x128xi1>
    %279 = arith.select %278, %239, %195 : vector<16x128xi1>, vector<16x128xf32>
    %280 = vector.shape_cast %8 : vector<16x1xi1> to vector<16x1xi1>
    %281 = vector.broadcast %280 : vector<16x1xi1> to vector<16x128xi1>
    %282 = arith.select %281, %237, %198 : vector<16x128xi1>, vector<16x128xf32>
    %283 = vector.shape_cast %14 : vector<16x1xi1> to vector<16x1xi1>
    %284 = vector.broadcast %283 : vector<16x1xi1> to vector<16x128xi1>
    %285 = arith.select %284, %264, %201 : vector<16x128xi1>, vector<16x128xf32>
    %286 = vector.shape_cast %14 : vector<16x1xi1> to vector<16x1xi1>
    %287 = vector.broadcast %286 : vector<16x1xi1> to vector<16x128xi1>
    %288 = arith.select %287, %262, %204 : vector<16x128xi1>, vector<16x128xf32>
    %c48 = arith.constant 48 : index
    %c0_71 = arith.constant 0 : index
    %289 = vector.load %arg19[%c48, %c0_71] : memref<128x512xbf16, #tpu.memory_space<vmem>>, vector<16x512xbf16>
    %290 = arith.extf %289 : vector<16x512xbf16> to vector<16x512xf32>
    %291 = arith.truncf %279 : vector<16x128xf32> to vector<16x128xbf16>
    %cst_72 = arith.constant dense<0.000000e+00> : vector<16x512xf32>
    %292 = tpu.matmul %291, %35, %cst_72 {dimension_numbers = #tpu.dot_dimension_numbers<[1], [0], [0], [1], [0, 0, 1, 1], [], []>} : vector<16x128xbf16>, vector<128x512xbf16>, vector<16x512xf32> -> vector<16x512xf32>
    %293 = arith.addf %290, %292 : vector<16x512xf32>
    %c64 = arith.constant 64 : index
    %c0_73 = arith.constant 0 : index
    %294 = vector.load %arg20[%c64, %c0_73] : memref<128x512xbf16, #tpu.memory_space<vmem>>, vector<16x512xbf16>
    %295 = arith.extf %294 : vector<16x512xbf16> to vector<16x512xf32>
    %296 = arith.truncf %285 : vector<16x128xf32> to vector<16x128xbf16>
    %cst_74 = arith.constant dense<0.000000e+00> : vector<16x512xf32>
    %297 = tpu.matmul %296, %36, %cst_74 {dimension_numbers = #tpu.dot_dimension_numbers<[1], [0], [0], [1], [0, 0, 1, 1], [], []>} : vector<16x128xbf16>, vector<128x512xbf16>, vector<16x512xf32> -> vector<16x512xf32>
    %298 = arith.addf %295, %297 : vector<16x512xf32>
    %299 = vector.extract_strided_slice %293 {offsets = [0, 0], sizes = [16, 128], strides = [1, 1]} : vector<16x512xf32> to vector<16x128xf32>
    %300 = arith.negf %299 : vector<16x128xf32>
    %301 = math.exp %300 : vector<16x128xf32>
    %cst_75 = arith.constant 1.000000e+00 : f32
    %302 = vector.broadcast %cst_75 : f32 to vector<16x128xf32>
    %303 = arith.addf %302, %301 : vector<16x128xf32>
    %304 = arith.divf %302, %303 : vector<16x128xf32>
    %305 = vector.extract_strided_slice %293 {offsets = [0, 128], sizes = [16, 128], strides = [1, 1]} : vector<16x512xf32> to vector<16x128xf32>
    %306 = arith.negf %305 : vector<16x128xf32>
    %307 = math.exp %306 : vector<16x128xf32>
    %cst_76 = arith.constant 1.000000e+00 : f32
    %308 = vector.broadcast %cst_76 : f32 to vector<16x128xf32>
    %309 = arith.addf %308, %307 : vector<16x128xf32>
    %310 = arith.divf %308, %309 : vector<16x128xf32>
    %311 = vector.extract_strided_slice %293 {offsets = [0, 256], sizes = [16, 128], strides = [1, 1]} : vector<16x512xf32> to vector<16x128xf32>
    %312 = math.tanh %311 : vector<16x128xf32>
    %313 = vector.extract_strided_slice %293 {offsets = [0, 384], sizes = [16, 128], strides = [1, 1]} : vector<16x512xf32> to vector<16x128xf32>
    %314 = arith.negf %313 : vector<16x128xf32>
    %315 = math.exp %314 : vector<16x128xf32>
    %cst_77 = arith.constant 1.000000e+00 : f32
    %316 = vector.broadcast %cst_77 : f32 to vector<16x128xf32>
    %317 = arith.addf %316, %315 : vector<16x128xf32>
    %318 = arith.divf %316, %317 : vector<16x128xf32>
    %319 = arith.mulf %310, %282 : vector<16x128xf32>
    %320 = arith.mulf %304, %312 : vector<16x128xf32>
    %321 = arith.addf %319, %320 : vector<16x128xf32>
    %322 = math.tanh %321 : vector<16x128xf32>
    %323 = arith.mulf %318, %322 : vector<16x128xf32>
    %324 = vector.extract_strided_slice %298 {offsets = [0, 0], sizes = [16, 128], strides = [1, 1]} : vector<16x512xf32> to vector<16x128xf32>
    %325 = arith.negf %324 : vector<16x128xf32>
    %326 = math.exp %325 : vector<16x128xf32>
    %cst_78 = arith.constant 1.000000e+00 : f32
    %327 = vector.broadcast %cst_78 : f32 to vector<16x128xf32>
    %328 = arith.addf %327, %326 : vector<16x128xf32>
    %329 = arith.divf %327, %328 : vector<16x128xf32>
    %330 = vector.extract_strided_slice %298 {offsets = [0, 128], sizes = [16, 128], strides = [1, 1]} : vector<16x512xf32> to vector<16x128xf32>
    %331 = arith.negf %330 : vector<16x128xf32>
    %332 = math.exp %331 : vector<16x128xf32>
    %cst_79 = arith.constant 1.000000e+00 : f32
    %333 = vector.broadcast %cst_79 : f32 to vector<16x128xf32>
    %334 = arith.addf %333, %332 : vector<16x128xf32>
    %335 = arith.divf %333, %334 : vector<16x128xf32>
    %336 = vector.extract_strided_slice %298 {offsets = [0, 256], sizes = [16, 128], strides = [1, 1]} : vector<16x512xf32> to vector<16x128xf32>
    %337 = math.tanh %336 : vector<16x128xf32>
    %338 = vector.extract_strided_slice %298 {offsets = [0, 384], sizes = [16, 128], strides = [1, 1]} : vector<16x512xf32> to vector<16x128xf32>
    %339 = arith.negf %338 : vector<16x128xf32>
    %340 = math.exp %339 : vector<16x128xf32>
    %cst_80 = arith.constant 1.000000e+00 : f32
    %341 = vector.broadcast %cst_80 : f32 to vector<16x128xf32>
    %342 = arith.addf %341, %340 : vector<16x128xf32>
    %343 = arith.divf %341, %342 : vector<16x128xf32>
    %344 = arith.mulf %335, %288 : vector<16x128xf32>
    %345 = arith.mulf %329, %337 : vector<16x128xf32>
    %346 = arith.addf %344, %345 : vector<16x128xf32>
    %347 = math.tanh %346 : vector<16x128xf32>
    %348 = arith.mulf %343, %347 : vector<16x128xf32>
    %cst_81 = arith.constant 0.000000e+00 : f32
    %349 = vector.shape_cast %10 : vector<16x1xi1> to vector<16x1xi1>
    %350 = vector.broadcast %349 : vector<16x1xi1> to vector<16x128xi1>
    %351 = vector.broadcast %cst_81 : f32 to vector<16x128xf32>
    %352 = arith.select %350, %323, %351 : vector<16x128xi1>, vector<16x128xf32>
    %353 = arith.truncf %352 : vector<16x128xf32> to vector<16x128xbf16>
    %c48_82 = arith.constant 48 : index
    %c0_83 = arith.constant 0 : index
    %354 = vector.load %arg18[%c48_82, %c0_83] : memref<128x256xbf16, #tpu.memory_space<vmem>>, vector<16x128xbf16>
    tpu.vector_store %arg18[%c48_82, %c0_83], %353 {strides = array<i32>} : memref<128x256xbf16, #tpu.memory_space<vmem>>, vector<16x128xbf16>,
    %cst_84 = arith.constant 0.000000e+00 : f32
    %355 = vector.shape_cast %12 : vector<16x1xi1> to vector<16x1xi1>
    %356 = vector.broadcast %355 : vector<16x1xi1> to vector<16x128xi1>
    %357 = vector.broadcast %cst_84 : f32 to vector<16x128xf32>
    %358 = arith.select %356, %348, %357 : vector<16x128xi1>, vector<16x128xf32>
    %359 = arith.truncf %358 : vector<16x128xf32> to vector<16x128xbf16>
    %c64_85 = arith.constant 64 : index
    %c128_86 = arith.constant 128 : index
    %360 = vector.load %arg18[%c64_85, %c128_86] : memref<128x256xbf16, #tpu.memory_space<vmem>>, vector<16x128xbf16>
    tpu.vector_store %arg18[%c64_85, %c128_86], %359 {strides = array<i32>} : memref<128x256xbf16, #tpu.memory_space<vmem>>, vector<16x128xbf16>,
    %361 = vector.shape_cast %10 : vector<16x1xi1> to vector<16x1xi1>
    %362 = vector.broadcast %361 : vector<16x1xi1> to vector<16x128xi1>
    %363 = arith.select %362, %323, %279 : vector<16x128xi1>, vector<16x128xf32>
    %364 = vector.shape_cast %10 : vector<16x1xi1> to vector<16x1xi1>
    %365 = vector.broadcast %364 : vector<16x1xi1> to vector<16x128xi1>
    %366 = arith.select %365, %321, %282 : vector<16x128xi1>, vector<16x128xf32>
    %367 = vector.shape_cast %12 : vector<16x1xi1> to vector<16x1xi1>
    %368 = vector.broadcast %367 : vector<16x1xi1> to vector<16x128xi1>
    %369 = arith.select %368, %348, %285 : vector<16x128xi1>, vector<16x128xf32>
    %370 = vector.shape_cast %12 : vector<16x1xi1> to vector<16x1xi1>
    %371 = vector.broadcast %370 : vector<16x1xi1> to vector<16x128xi1>
    %372 = arith.select %371, %346, %288 : vector<16x128xi1>, vector<16x128xf32>
    %c64_87 = arith.constant 64 : index
    %c0_88 = arith.constant 0 : index
    %373 = vector.load %arg19[%c64_87, %c0_88] : memref<128x512xbf16, #tpu.memory_space<vmem>>, vector<16x512xbf16>
    %374 = arith.extf %373 : vector<16x512xbf16> to vector<16x512xf32>
    %375 = arith.truncf %363 : vector<16x128xf32> to vector<16x128xbf16>
    %cst_89 = arith.constant dense<0.000000e+00> : vector<16x512xf32>
    %376 = tpu.matmul %375, %35, %cst_89 {dimension_numbers = #tpu.dot_dimension_numbers<[1], [0], [0], [1], [0, 0, 1, 1], [], []>} : vector<16x128xbf16>, vector<128x512xbf16>, vector<16x512xf32> -> vector<16x512xf32>
    %377 = arith.addf %374, %376 : vector<16x512xf32>
    %c48_90 = arith.constant 48 : index
    %c0_91 = arith.constant 0 : index
    %378 = vector.load %arg20[%c48_90, %c0_91] : memref<128x512xbf16, #tpu.memory_space<vmem>>, vector<16x512xbf16>
    %379 = arith.extf %378 : vector<16x512xbf16> to vector<16x512xf32>
    %380 = arith.truncf %369 : vector<16x128xf32> to vector<16x128xbf16>
    %cst_92 = arith.constant dense<0.000000e+00> : vector<16x512xf32>
    %381 = tpu.matmul %380, %36, %cst_92 {dimension_numbers = #tpu.dot_dimension_numbers<[1], [0], [0], [1], [0, 0, 1, 1], [], []>} : vector<16x128xbf16>, vector<128x512xbf16>, vector<16x512xf32> -> vector<16x512xf32>
    %382 = arith.addf %379, %381 : vector<16x512xf32>
    %383 = vector.extract_strided_slice %377 {offsets = [0, 0], sizes = [16, 128], strides = [1, 1]} : vector<16x512xf32> to vector<16x128xf32>
    %384 = arith.negf %383 : vector<16x128xf32>
    %385 = math.exp %384 : vector<16x128xf32>
    %cst_93 = arith.constant 1.000000e+00 : f32
    %386 = vector.broadcast %cst_93 : f32 to vector<16x128xf32>
    %387 = arith.addf %386, %385 : vector<16x128xf32>
    %388 = arith.divf %386, %387 : vector<16x128xf32>
    %389 = vector.extract_strided_slice %377 {offsets = [0, 128], sizes = [16, 128], strides = [1, 1]} : vector<16x512xf32> to vector<16x128xf32>
    %390 = arith.negf %389 : vector<16x128xf32>
    %391 = math.exp %390 : vector<16x128xf32>
    %cst_94 = arith.constant 1.000000e+00 : f32
    %392 = vector.broadcast %cst_94 : f32 to vector<16x128xf32>
    %393 = arith.addf %392, %391 : vector<16x128xf32>
    %394 = arith.divf %392, %393 : vector<16x128xf32>
    %395 = vector.extract_strided_slice %377 {offsets = [0, 256], sizes = [16, 128], strides = [1, 1]} : vector<16x512xf32> to vector<16x128xf32>
    %396 = math.tanh %395 : vector<16x128xf32>
    %397 = vector.extract_strided_slice %377 {offsets = [0, 384], sizes = [16, 128], strides = [1, 1]} : vector<16x512xf32> to vector<16x128xf32>
    %398 = arith.negf %397 : vector<16x128xf32>
    %399 = math.exp %398 : vector<16x128xf32>
    %cst_95 = arith.constant 1.000000e+00 : f32
    %400 = vector.broadcast %cst_95 : f32 to vector<16x128xf32>
    %401 = arith.addf %400, %399 : vector<16x128xf32>
    %402 = arith.divf %400, %401 : vector<16x128xf32>
    %403 = arith.mulf %394, %366 : vector<16x128xf32>
    %404 = arith.mulf %388, %396 : vector<16x128xf32>
    %405 = arith.addf %403, %404 : vector<16x128xf32>
    %406 = math.tanh %405 : vector<16x128xf32>
    %407 = arith.mulf %402, %406 : vector<16x128xf32>
    %408 = vector.extract_strided_slice %382 {offsets = [0, 0], sizes = [16, 128], strides = [1, 1]} : vector<16x512xf32> to vector<16x128xf32>
    %409 = arith.negf %408 : vector<16x128xf32>
    %410 = math.exp %409 : vector<16x128xf32>
    %cst_96 = arith.constant 1.000000e+00 : f32
    %411 = vector.broadcast %cst_96 : f32 to vector<16x128xf32>
    %412 = arith.addf %411, %410 : vector<16x128xf32>
    %413 = arith.divf %411, %412 : vector<16x128xf32>
    %414 = vector.extract_strided_slice %382 {offsets = [0, 128], sizes = [16, 128], strides = [1, 1]} : vector<16x512xf32> to vector<16x128xf32>
    %415 = arith.negf %414 : vector<16x128xf32>
    %416 = math.exp %415 : vector<16x128xf32>
    %cst_97 = arith.constant 1.000000e+00 : f32
    %417 = vector.broadcast %cst_97 : f32 to vector<16x128xf32>
    %418 = arith.addf %417, %416 : vector<16x128xf32>
    %419 = arith.divf %417, %418 : vector<16x128xf32>
    %420 = vector.extract_strided_slice %382 {offsets = [0, 256], sizes = [16, 128], strides = [1, 1]} : vector<16x512xf32> to vector<16x128xf32>
    %421 = math.tanh %420 : vector<16x128xf32>
    %422 = vector.extract_strided_slice %382 {offsets = [0, 384], sizes = [16, 128], strides = [1, 1]} : vector<16x512xf32> to vector<16x128xf32>
    %423 = arith.negf %422 : vector<16x128xf32>
    %424 = math.exp %423 : vector<16x128xf32>
    %cst_98 = arith.constant 1.000000e+00 : f32
    %425 = vector.broadcast %cst_98 : f32 to vector<16x128xf32>
    %426 = arith.addf %425, %424 : vector<16x128xf32>
    %427 = arith.divf %425, %426 : vector<16x128xf32>
    %428 = arith.mulf %419, %372 : vector<16x128xf32>
    %429 = arith.mulf %413, %421 : vector<16x128xf32>
    %430 = arith.addf %428, %429 : vector<16x128xf32>
    %431 = math.tanh %430 : vector<16x128xf32>
    %432 = arith.mulf %427, %431 : vector<16x128xf32>
    %cst_99 = arith.constant 0.000000e+00 : f32
    %433 = vector.shape_cast %12 : vector<16x1xi1> to vector<16x1xi1>
    %434 = vector.broadcast %433 : vector<16x1xi1> to vector<16x128xi1>
    %435 = vector.broadcast %cst_99 : f32 to vector<16x128xf32>
    %436 = arith.select %434, %407, %435 : vector<16x128xi1>, vector<16x128xf32>
    %437 = arith.truncf %436 : vector<16x128xf32> to vector<16x128xbf16>
    %c64_100 = arith.constant 64 : index
    %c0_101 = arith.constant 0 : index
    %438 = vector.load %arg18[%c64_100, %c0_101] : memref<128x256xbf16, #tpu.memory_space<vmem>>, vector<16x128xbf16>
    tpu.vector_store %arg18[%c64_100, %c0_101], %437 {strides = array<i32>} : memref<128x256xbf16, #tpu.memory_space<vmem>>, vector<16x128xbf16>,
    %cst_102 = arith.constant 0.000000e+00 : f32
    %439 = vector.shape_cast %10 : vector<16x1xi1> to vector<16x1xi1>
    %440 = vector.broadcast %439 : vector<16x1xi1> to vector<16x128xi1>
    %441 = vector.broadcast %cst_102 : f32 to vector<16x128xf32>
    %442 = arith.select %440, %432, %441 : vector<16x128xi1>, vector<16x128xf32>
    %443 = arith.truncf %442 : vector<16x128xf32> to vector<16x128xbf16>
    %c48_103 = arith.constant 48 : index
    %c128_104 = arith.constant 128 : index
    %444 = vector.load %arg18[%c48_103, %c128_104] : memref<128x256xbf16, #tpu.memory_space<vmem>>, vector<16x128xbf16>
    tpu.vector_store %arg18[%c48_103, %c128_104], %443 {strides = array<i32>} : memref<128x256xbf16, #tpu.memory_space<vmem>>, vector<16x128xbf16>,
    %445 = vector.shape_cast %12 : vector<16x1xi1> to vector<16x1xi1>
    %446 = vector.broadcast %445 : vector<16x1xi1> to vector<16x128xi1>
    %447 = arith.select %446, %407, %363 : vector<16x128xi1>, vector<16x128xf32>
    %448 = vector.shape_cast %12 : vector<16x1xi1> to vector<16x1xi1>
    %449 = vector.broadcast %448 : vector<16x1xi1> to vector<16x128xi1>
    %450 = arith.select %449, %405, %366 : vector<16x128xi1>, vector<16x128xf32>
    %451 = vector.shape_cast %10 : vector<16x1xi1> to vector<16x1xi1>
    %452 = vector.broadcast %451 : vector<16x1xi1> to vector<16x128xi1>
    %453 = arith.select %452, %432, %369 : vector<16x128xi1>, vector<16x128xf32>
    %454 = vector.shape_cast %10 : vector<16x1xi1> to vector<16x1xi1>
    %455 = vector.broadcast %454 : vector<16x1xi1> to vector<16x128xi1>
    %456 = arith.select %455, %430, %372 : vector<16x128xi1>, vector<16x128xf32>
    %c80_105 = arith.constant 80 : index
    %c0_106 = arith.constant 0 : index
    %457 = vector.load %arg19[%c80_105, %c0_106] : memref<128x512xbf16, #tpu.memory_space<vmem>>, vector<16x512xbf16>
    %458 = arith.extf %457 : vector<16x512xbf16> to vector<16x512xf32>
    %459 = arith.truncf %447 : vector<16x128xf32> to vector<16x128xbf16>
    %cst_107 = arith.constant dense<0.000000e+00> : vector<16x512xf32>
    %460 = tpu.matmul %459, %35, %cst_107 {dimension_numbers = #tpu.dot_dimension_numbers<[1], [0], [0], [1], [0, 0, 1, 1], [], []>} : vector<16x128xbf16>, vector<128x512xbf16>, vector<16x512xf32> -> vector<16x512xf32>
    %461 = arith.addf %458, %460 : vector<16x512xf32>
    %c32_108 = arith.constant 32 : index
    %c0_109 = arith.constant 0 : index
    %462 = vector.load %arg20[%c32_108, %c0_109] : memref<128x512xbf16, #tpu.memory_space<vmem>>, vector<16x512xbf16>
    %463 = arith.extf %462 : vector<16x512xbf16> to vector<16x512xf32>
    %464 = arith.truncf %453 : vector<16x128xf32> to vector<16x128xbf16>
    %cst_110 = arith.constant dense<0.000000e+00> : vector<16x512xf32>
    %465 = tpu.matmul %464, %36, %cst_110 {dimension_numbers = #tpu.dot_dimension_numbers<[1], [0], [0], [1], [0, 0, 1, 1], [], []>} : vector<16x128xbf16>, vector<128x512xbf16>, vector<16x512xf32> -> vector<16x512xf32>
    %466 = arith.addf %463, %465 : vector<16x512xf32>
    %467 = vector.extract_strided_slice %461 {offsets = [0, 0], sizes = [16, 128], strides = [1, 1]} : vector<16x512xf32> to vector<16x128xf32>
    %468 = arith.negf %467 : vector<16x128xf32>
    %469 = math.exp %468 : vector<16x128xf32>
    %cst_111 = arith.constant 1.000000e+00 : f32
    %470 = vector.broadcast %cst_111 : f32 to vector<16x128xf32>
    %471 = arith.addf %470, %469 : vector<16x128xf32>
    %472 = arith.divf %470, %471 : vector<16x128xf32>
    %473 = vector.extract_strided_slice %461 {offsets = [0, 128], sizes = [16, 128], strides = [1, 1]} : vector<16x512xf32> to vector<16x128xf32>
    %474 = arith.negf %473 : vector<16x128xf32>
    %475 = math.exp %474 : vector<16x128xf32>
    %cst_112 = arith.constant 1.000000e+00 : f32
    %476 = vector.broadcast %cst_112 : f32 to vector<16x128xf32>
    %477 = arith.addf %476, %475 : vector<16x128xf32>
    %478 = arith.divf %476, %477 : vector<16x128xf32>
    %479 = vector.extract_strided_slice %461 {offsets = [0, 256], sizes = [16, 128], strides = [1, 1]} : vector<16x512xf32> to vector<16x128xf32>
    %480 = math.tanh %479 : vector<16x128xf32>
    %481 = vector.extract_strided_slice %461 {offsets = [0, 384], sizes = [16, 128], strides = [1, 1]} : vector<16x512xf32> to vector<16x128xf32>
    %482 = arith.negf %481 : vector<16x128xf32>
    %483 = math.exp %482 : vector<16x128xf32>
    %cst_113 = arith.constant 1.000000e+00 : f32
    %484 = vector.broadcast %cst_113 : f32 to vector<16x128xf32>
    %485 = arith.addf %484, %483 : vector<16x128xf32>
    %486 = arith.divf %484, %485 : vector<16x128xf32>
    %487 = arith.mulf %478, %450 : vector<16x128xf32>
    %488 = arith.mulf %472, %480 : vector<16x128xf32>
    %489 = arith.addf %487, %488 : vector<16x128xf32>
    %490 = math.tanh %489 : vector<16x128xf32>
    %491 = arith.mulf %486, %490 : vector<16x128xf32>
    %492 = vector.extract_strided_slice %466 {offsets = [0, 0], sizes = [16, 128], strides = [1, 1]} : vector<16x512xf32> to vector<16x128xf32>
    %493 = arith.negf %492 : vector<16x128xf32>
    %494 = math.exp %493 : vector<16x128xf32>
    %cst_114 = arith.constant 1.000000e+00 : f32
    %495 = vector.broadcast %cst_114 : f32 to vector<16x128xf32>
    %496 = arith.addf %495, %494 : vector<16x128xf32>
    %497 = arith.divf %495, %496 : vector<16x128xf32>
    %498 = vector.extract_strided_slice %466 {offsets = [0, 128], sizes = [16, 128], strides = [1, 1]} : vector<16x512xf32> to vector<16x128xf32>
    %499 = arith.negf %498 : vector<16x128xf32>
    %500 = math.exp %499 : vector<16x128xf32>
    %cst_115 = arith.constant 1.000000e+00 : f32
    %501 = vector.broadcast %cst_115 : f32 to vector<16x128xf32>
    %502 = arith.addf %501, %500 : vector<16x128xf32>
    %503 = arith.divf %501, %502 : vector<16x128xf32>
    %504 = vector.extract_strided_slice %466 {offsets = [0, 256], sizes = [16, 128], strides = [1, 1]} : vector<16x512xf32> to vector<16x128xf32>
    %505 = math.tanh %504 : vector<16x128xf32>
    %506 = vector.extract_strided_slice %466 {offsets = [0, 384], sizes = [16, 128], strides = [1, 1]} : vector<16x512xf32> to vector<16x128xf32>
    %507 = arith.negf %506 : vector<16x128xf32>
    %508 = math.exp %507 : vector<16x128xf32>
    %cst_116 = arith.constant 1.000000e+00 : f32
    %509 = vector.broadcast %cst_116 : f32 to vector<16x128xf32>
    %510 = arith.addf %509, %508 : vector<16x128xf32>
    %511 = arith.divf %509, %510 : vector<16x128xf32>
    %512 = arith.mulf %503, %456 : vector<16x128xf32>
    %513 = arith.mulf %497, %505 : vector<16x128xf32>
    %514 = arith.addf %512, %513 : vector<16x128xf32>
    %515 = math.tanh %514 : vector<16x128xf32>
    %516 = arith.mulf %511, %515 : vector<16x128xf32>
    %cst_117 = arith.constant 0.000000e+00 : f32
    %517 = vector.shape_cast %14 : vector<16x1xi1> to vector<16x1xi1>
    %518 = vector.broadcast %517 : vector<16x1xi1> to vector<16x128xi1>
    %519 = vector.broadcast %cst_117 : f32 to vector<16x128xf32>
    %520 = arith.select %518, %491, %519 : vector<16x128xi1>, vector<16x128xf32>
    %521 = arith.truncf %520 : vector<16x128xf32> to vector<16x128xbf16>
    %c80_118 = arith.constant 80 : index
    %c0_119 = arith.constant 0 : index
    %522 = vector.load %arg18[%c80_118, %c0_119] : memref<128x256xbf16, #tpu.memory_space<vmem>>, vector<16x128xbf16>
    tpu.vector_store %arg18[%c80_118, %c0_119], %521 {strides = array<i32>} : memref<128x256xbf16, #tpu.memory_space<vmem>>, vector<16x128xbf16>,
    %cst_120 = arith.constant 0.000000e+00 : f32
    %523 = vector.shape_cast %8 : vector<16x1xi1> to vector<16x1xi1>
    %524 = vector.broadcast %523 : vector<16x1xi1> to vector<16x128xi1>
    %525 = vector.broadcast %cst_120 : f32 to vector<16x128xf32>
    %526 = arith.select %524, %516, %525 : vector<16x128xi1>, vector<16x128xf32>
    %527 = arith.truncf %526 : vector<16x128xf32> to vector<16x128xbf16>
    %c32_121 = arith.constant 32 : index
    %c128_122 = arith.constant 128 : index
    %528 = vector.load %arg18[%c32_121, %c128_122] : memref<128x256xbf16, #tpu.memory_space<vmem>>, vector<16x128xbf16>
    tpu.vector_store %arg18[%c32_121, %c128_122], %527 {strides = array<i32>} : memref<128x256xbf16, #tpu.memory_space<vmem>>, vector<16x128xbf16>,
    %529 = vector.shape_cast %14 : vector<16x1xi1> to vector<16x1xi1>
    %530 = vector.broadcast %529 : vector<16x1xi1> to vector<16x128xi1>
    %531 = arith.select %530, %491, %447 : vector<16x128xi1>, vector<16x128xf32>
    %532 = vector.shape_cast %14 : vector<16x1xi1> to vector<16x1xi1>
    %533 = vector.broadcast %532 : vector<16x1xi1> to vector<16x128xi1>
    %534 = arith.select %533, %489, %450 : vector<16x128xi1>, vector<16x128xf32>
    %535 = vector.shape_cast %8 : vector<16x1xi1> to vector<16x1xi1>
    %536 = vector.broadcast %535 : vector<16x1xi1> to vector<16x128xi1>
    %537 = arith.select %536, %516, %453 : vector<16x128xi1>, vector<16x128xf32>
    %538 = vector.shape_cast %8 : vector<16x1xi1> to vector<16x1xi1>
    %539 = vector.broadcast %538 : vector<16x1xi1> to vector<16x128xi1>
    %540 = arith.select %539, %514, %456 : vector<16x128xi1>, vector<16x128xf32>
    %c96_123 = arith.constant 96 : index
    %c0_124 = arith.constant 0 : index
    %541 = vector.load %arg19[%c96_123, %c0_124] : memref<128x512xbf16, #tpu.memory_space<vmem>>, vector<16x512xbf16>
    %542 = arith.extf %541 : vector<16x512xbf16> to vector<16x512xf32>
    %543 = arith.truncf %531 : vector<16x128xf32> to vector<16x128xbf16>
    %cst_125 = arith.constant dense<0.000000e+00> : vector<16x512xf32>
    %544 = tpu.matmul %543, %35, %cst_125 {dimension_numbers = #tpu.dot_dimension_numbers<[1], [0], [0], [1], [0, 0, 1, 1], [], []>} : vector<16x128xbf16>, vector<128x512xbf16>, vector<16x512xf32> -> vector<16x512xf32>
    %545 = arith.addf %542, %544 : vector<16x512xf32>
    %c16_126 = arith.constant 16 : index
    %c0_127 = arith.constant 0 : index
    %546 = vector.load %arg20[%c16_126, %c0_127] : memref<128x512xbf16, #tpu.memory_space<vmem>>, vector<16x512xbf16>
    %547 = arith.extf %546 : vector<16x512xbf16> to vector<16x512xf32>
    %548 = arith.truncf %537 : vector<16x128xf32> to vector<16x128xbf16>
    %cst_128 = arith.constant dense<0.000000e+00> : vector<16x512xf32>
    %549 = tpu.matmul %548, %36, %cst_128 {dimension_numbers = #tpu.dot_dimension_numbers<[1], [0], [0], [1], [0, 0, 1, 1], [], []>} : vector<16x128xbf16>, vector<128x512xbf16>, vector<16x512xf32> -> vector<16x512xf32>
    %550 = arith.addf %547, %549 : vector<16x512xf32>
    %551 = vector.extract_strided_slice %545 {offsets = [0, 0], sizes = [16, 128], strides = [1, 1]} : vector<16x512xf32> to vector<16x128xf32>
    %552 = arith.negf %551 : vector<16x128xf32>
    %553 = math.exp %552 : vector<16x128xf32>
    %cst_129 = arith.constant 1.000000e+00 : f32
    %554 = vector.broadcast %cst_129 : f32 to vector<16x128xf32>
    %555 = arith.addf %554, %553 : vector<16x128xf32>
    %556 = arith.divf %554, %555 : vector<16x128xf32>
    %557 = vector.extract_strided_slice %545 {offsets = [0, 128], sizes = [16, 128], strides = [1, 1]} : vector<16x512xf32> to vector<16x128xf32>
    %558 = arith.negf %557 : vector<16x128xf32>
    %559 = math.exp %558 : vector<16x128xf32>
    %cst_130 = arith.constant 1.000000e+00 : f32
    %560 = vector.broadcast %cst_130 : f32 to vector<16x128xf32>
    %561 = arith.addf %560, %559 : vector<16x128xf32>
    %562 = arith.divf %560, %561 : vector<16x128xf32>
    %563 = vector.extract_strided_slice %545 {offsets = [0, 256], sizes = [16, 128], strides = [1, 1]} : vector<16x512xf32> to vector<16x128xf32>
    %564 = math.tanh %563 : vector<16x128xf32>
    %565 = vector.extract_strided_slice %545 {offsets = [0, 384], sizes = [16, 128], strides = [1, 1]} : vector<16x512xf32> to vector<16x128xf32>
    %566 = arith.negf %565 : vector<16x128xf32>
    %567 = math.exp %566 : vector<16x128xf32>
    %cst_131 = arith.constant 1.000000e+00 : f32
    %568 = vector.broadcast %cst_131 : f32 to vector<16x128xf32>
    %569 = arith.addf %568, %567 : vector<16x128xf32>
    %570 = arith.divf %568, %569 : vector<16x128xf32>
    %571 = arith.mulf %562, %534 : vector<16x128xf32>
    %572 = arith.mulf %556, %564 : vector<16x128xf32>
    %573 = arith.addf %571, %572 : vector<16x128xf32>
    %574 = math.tanh %573 : vector<16x128xf32>
    %575 = arith.mulf %570, %574 : vector<16x128xf32>
    %576 = vector.extract_strided_slice %550 {offsets = [0, 0], sizes = [16, 128], strides = [1, 1]} : vector<16x512xf32> to vector<16x128xf32>
    %577 = arith.negf %576 : vector<16x128xf32>
    %578 = math.exp %577 : vector<16x128xf32>
    %cst_132 = arith.constant 1.000000e+00 : f32
    %579 = vector.broadcast %cst_132 : f32 to vector<16x128xf32>
    %580 = arith.addf %579, %578 : vector<16x128xf32>
    %581 = arith.divf %579, %580 : vector<16x128xf32>
    %582 = vector.extract_strided_slice %550 {offsets = [0, 128], sizes = [16, 128], strides = [1, 1]} : vector<16x512xf32> to vector<16x128xf32>
    %583 = arith.negf %582 : vector<16x128xf32>
    %584 = math.exp %583 : vector<16x128xf32>
    %cst_133 = arith.constant 1.000000e+00 : f32
    %585 = vector.broadcast %cst_133 : f32 to vector<16x128xf32>
    %586 = arith.addf %585, %584 : vector<16x128xf32>
    %587 = arith.divf %585, %586 : vector<16x128xf32>
    %588 = vector.extract_strided_slice %550 {offsets = [0, 256], sizes = [16, 128], strides = [1, 1]} : vector<16x512xf32> to vector<16x128xf32>
    %589 = math.tanh %588 : vector<16x128xf32>
    %590 = vector.extract_strided_slice %550 {offsets = [0, 384], sizes = [16, 128], strides = [1, 1]} : vector<16x512xf32> to vector<16x128xf32>
    %591 = arith.negf %590 : vector<16x128xf32>
    %592 = math.exp %591 : vector<16x128xf32>
    %cst_134 = arith.constant 1.000000e+00 : f32
    %593 = vector.broadcast %cst_134 : f32 to vector<16x128xf32>
    %594 = arith.addf %593, %592 : vector<16x128xf32>
    %595 = arith.divf %593, %594 : vector<16x128xf32>
    %596 = arith.mulf %587, %540 : vector<16x128xf32>
    %597 = arith.mulf %581, %589 : vector<16x128xf32>
    %598 = arith.addf %596, %597 : vector<16x128xf32>
    %599 = math.tanh %598 : vector<16x128xf32>
    %600 = arith.mulf %595, %599 : vector<16x128xf32>
    %cst_135 = arith.constant 0.000000e+00 : f32
    %601 = vector.shape_cast %16 : vector<16x1xi1> to vector<16x1xi1>
    %602 = vector.broadcast %601 : vector<16x1xi1> to vector<16x128xi1>
    %603 = vector.broadcast %cst_135 : f32 to vector<16x128xf32>
    %604 = arith.select %602, %575, %603 : vector<16x128xi1>, vector<16x128xf32>
    %605 = arith.truncf %604 : vector<16x128xf32> to vector<16x128xbf16>
    %c96_136 = arith.constant 96 : index
    %c0_137 = arith.constant 0 : index
    %606 = vector.load %arg18[%c96_136, %c0_137] : memref<128x256xbf16, #tpu.memory_space<vmem>>, vector<16x128xbf16>
    tpu.vector_store %arg18[%c96_136, %c0_137], %605 {strides = array<i32>} : memref<128x256xbf16, #tpu.memory_space<vmem>>, vector<16x128xbf16>,
    %cst_138 = arith.constant 0.000000e+00 : f32
    %607 = vector.shape_cast %6 : vector<16x1xi1> to vector<16x1xi1>
    %608 = vector.broadcast %607 : vector<16x1xi1> to vector<16x128xi1>
    %609 = vector.broadcast %cst_138 : f32 to vector<16x128xf32>
    %610 = arith.select %608, %600, %609 : vector<16x128xi1>, vector<16x128xf32>
    %611 = arith.truncf %610 : vector<16x128xf32> to vector<16x128xbf16>
    %c16_139 = arith.constant 16 : index
    %c128_140 = arith.constant 128 : index
    %612 = vector.load %arg18[%c16_139, %c128_140] : memref<128x256xbf16, #tpu.memory_space<vmem>>, vector<16x128xbf16>
    tpu.vector_store %arg18[%c16_139, %c128_140], %611 {strides = array<i32>} : memref<128x256xbf16, #tpu.memory_space<vmem>>, vector<16x128xbf16>,
    %613 = vector.shape_cast %16 : vector<16x1xi1> to vector<16x1xi1>
    %614 = vector.broadcast %613 : vector<16x1xi1> to vector<16x128xi1>
    %615 = arith.select %614, %575, %531 : vector<16x128xi1>, vector<16x128xf32>
    %616 = vector.shape_cast %16 : vector<16x1xi1> to vector<16x1xi1>
    %617 = vector.broadcast %616 : vector<16x1xi1> to vector<16x128xi1>
    %618 = arith.select %617, %573, %534 : vector<16x128xi1>, vector<16x128xf32>
    %619 = vector.shape_cast %6 : vector<16x1xi1> to vector<16x1xi1>
    %620 = vector.broadcast %619 : vector<16x1xi1> to vector<16x128xi1>
    %621 = arith.select %620, %600, %537 : vector<16x128xi1>, vector<16x128xf32>
    %622 = vector.shape_cast %6 : vector<16x1xi1> to vector<16x1xi1>
    %623 = vector.broadcast %622 : vector<16x1xi1> to vector<16x128xi1>
    %624 = arith.select %623, %598, %540 : vector<16x128xi1>, vector<16x128xf32>
    %c112_141 = arith.constant 112 : index
    %c0_142 = arith.constant 0 : index
    %625 = vector.load %arg19[%c112_141, %c0_142] : memref<128x512xbf16, #tpu.memory_space<vmem>>, vector<16x512xbf16>
    %626 = arith.extf %625 : vector<16x512xbf16> to vector<16x512xf32>
    %627 = arith.truncf %615 : vector<16x128xf32> to vector<16x128xbf16>
    %cst_143 = arith.constant dense<0.000000e+00> : vector<16x512xf32>
    %628 = tpu.matmul %627, %35, %cst_143 {dimension_numbers = #tpu.dot_dimension_numbers<[1], [0], [0], [1], [0, 0, 1, 1], [], []>} : vector<16x128xbf16>, vector<128x512xbf16>, vector<16x512xf32> -> vector<16x512xf32>
    %629 = arith.addf %626, %628 : vector<16x512xf32>
    %c0_144 = arith.constant 0 : index
    %c0_145 = arith.constant 0 : index
    %630 = vector.load %arg20[%c0_144, %c0_145] : memref<128x512xbf16, #tpu.memory_space<vmem>>, vector<16x512xbf16>
    %631 = arith.extf %630 : vector<16x512xbf16> to vector<16x512xf32>
    %632 = arith.truncf %621 : vector<16x128xf32> to vector<16x128xbf16>
    %cst_146 = arith.constant dense<0.000000e+00> : vector<16x512xf32>
    %633 = tpu.matmul %632, %36, %cst_146 {dimension_numbers = #tpu.dot_dimension_numbers<[1], [0], [0], [1], [0, 0, 1, 1], [], []>} : vector<16x128xbf16>, vector<128x512xbf16>, vector<16x512xf32> -> vector<16x512xf32>
    %634 = arith.addf %631, %633 : vector<16x512xf32>
    %635 = vector.extract_strided_slice %629 {offsets = [0, 0], sizes = [16, 128], strides = [1, 1]} : vector<16x512xf32> to vector<16x128xf32>
    %636 = arith.negf %635 : vector<16x128xf32>
    %637 = math.exp %636 : vector<16x128xf32>
    %cst_147 = arith.constant 1.000000e+00 : f32
    %638 = vector.broadcast %cst_147 : f32 to vector<16x128xf32>
    %639 = arith.addf %638, %637 : vector<16x128xf32>
    %640 = arith.divf %638, %639 : vector<16x128xf32>
    %641 = vector.extract_strided_slice %629 {offsets = [0, 128], sizes = [16, 128], strides = [1, 1]} : vector<16x512xf32> to vector<16x128xf32>
    %642 = arith.negf %641 : vector<16x128xf32>
    %643 = math.exp %642 : vector<16x128xf32>
    %cst_148 = arith.constant 1.000000e+00 : f32
    %644 = vector.broadcast %cst_148 : f32 to vector<16x128xf32>
    %645 = arith.addf %644, %643 : vector<16x128xf32>
    %646 = arith.divf %644, %645 : vector<16x128xf32>
    %647 = vector.extract_strided_slice %629 {offsets = [0, 256], sizes = [16, 128], strides = [1, 1]} : vector<16x512xf32> to vector<16x128xf32>
    %648 = math.tanh %647 : vector<16x128xf32>
    %649 = vector.extract_strided_slice %629 {offsets = [0, 384], sizes = [16, 128], strides = [1, 1]} : vector<16x512xf32> to vector<16x128xf32>
    %650 = arith.negf %649 : vector<16x128xf32>
    %651 = math.exp %650 : vector<16x128xf32>
    %cst_149 = arith.constant 1.000000e+00 : f32
    %652 = vector.broadcast %cst_149 : f32 to vector<16x128xf32>
    %653 = arith.addf %652, %651 : vector<16x128xf32>
    %654 = arith.divf %652, %653 : vector<16x128xf32>
    %655 = arith.mulf %646, %618 : vector<16x128xf32>
    %656 = arith.mulf %640, %648 : vector<16x128xf32>
    %657 = arith.addf %655, %656 : vector<16x128xf32>
    %658 = math.tanh %657 : vector<16x128xf32>
    %659 = arith.mulf %654, %658 : vector<16x128xf32>
    %660 = vector.extract_strided_slice %634 {offsets = [0, 0], sizes = [16, 128], strides = [1, 1]} : vector<16x512xf32> to vector<16x128xf32>
    %661 = arith.negf %660 : vector<16x128xf32>
    %662 = math.exp %661 : vector<16x128xf32>
    %cst_150 = arith.constant 1.000000e+00 : f32
    %663 = vector.broadcast %cst_150 : f32 to vector<16x128xf32>
    %664 = arith.addf %663, %662 : vector<16x128xf32>
    %665 = arith.divf %663, %664 : vector<16x128xf32>
    %666 = vector.extract_strided_slice %634 {offsets = [0, 128], sizes = [16, 128], strides = [1, 1]} : vector<16x512xf32> to vector<16x128xf32>
    %667 = arith.negf %666 : vector<16x128xf32>
    %668 = math.exp %667 : vector<16x128xf32>
    %cst_151 = arith.constant 1.000000e+00 : f32
    %669 = vector.broadcast %cst_151 : f32 to vector<16x128xf32>
    %670 = arith.addf %669, %668 : vector<16x128xf32>
    %671 = arith.divf %669, %670 : vector<16x128xf32>
    %672 = vector.extract_strided_slice %634 {offsets = [0, 256], sizes = [16, 128], strides = [1, 1]} : vector<16x512xf32> to vector<16x128xf32>
    %673 = math.tanh %672 : vector<16x128xf32>
    %674 = vector.extract_strided_slice %634 {offsets = [0, 384], sizes = [16, 128], strides = [1, 1]} : vector<16x512xf32> to vector<16x128xf32>
    %675 = arith.negf %674 : vector<16x128xf32>
    %676 = math.exp %675 : vector<16x128xf32>
    %cst_152 = arith.constant 1.000000e+00 : f32
    %677 = vector.broadcast %cst_152 : f32 to vector<16x128xf32>
    %678 = arith.addf %677, %676 : vector<16x128xf32>
    %679 = arith.divf %677, %678 : vector<16x128xf32>
    %680 = arith.mulf %671, %624 : vector<16x128xf32>
    %681 = arith.mulf %665, %673 : vector<16x128xf32>
    %682 = arith.addf %680, %681 : vector<16x128xf32>
    %683 = math.tanh %682 : vector<16x128xf32>
    %684 = arith.mulf %679, %683 : vector<16x128xf32>
    %cst_153 = arith.constant 0.000000e+00 : f32
    %685 = vector.shape_cast %18 : vector<16x1xi1> to vector<16x1xi1>
    %686 = vector.broadcast %685 : vector<16x1xi1> to vector<16x128xi1>
    %687 = vector.broadcast %cst_153 : f32 to vector<16x128xf32>
    %688 = arith.select %686, %659, %687 : vector<16x128xi1>, vector<16x128xf32>
    %689 = arith.truncf %688 : vector<16x128xf32> to vector<16x128xbf16>
    %c112_154 = arith.constant 112 : index
    %c0_155 = arith.constant 0 : index
    %690 = vector.load %arg18[%c112_154, %c0_155] : memref<128x256xbf16, #tpu.memory_space<vmem>>, vector<16x128xbf16>
    tpu.vector_store %arg18[%c112_154, %c0_155], %689 {strides = array<i32>} : memref<128x256xbf16, #tpu.memory_space<vmem>>, vector<16x128xbf16>,
    %cst_156 = arith.constant 0.000000e+00 : f32
    %691 = vector.shape_cast %4 : vector<16x1xi1> to vector<16x1xi1>
    %692 = vector.broadcast %691 : vector<16x1xi1> to vector<16x128xi1>
    %693 = vector.broadcast %cst_156 : f32 to vector<16x128xf32>
    %694 = arith.select %692, %684, %693 : vector<16x128xi1>, vector<16x128xf32>
    %695 = arith.truncf %694 : vector<16x128xf32> to vector<16x128xbf16>
    %c0_157 = arith.constant 0 : index
    %c128_158 = arith.constant 128 : index
    %696 = vector.load %arg18[%c0_157, %c128_158] : memref<128x256xbf16, #tpu.memory_space<vmem>>, vector<16x128xbf16>
    tpu.vector_store %arg18[%c0_157, %c128_158], %695 {strides = array<i32>} : memref<128x256xbf16, #tpu.memory_space<vmem>>, vector<16x128xbf16>,
    %c0_159 = arith.constant 0 : index
    %c0_160 = arith.constant 0 : index
    %697 = vector.load %arg18[%c0_159, %c0_160] : memref<128x256xbf16, #tpu.memory_space<vmem>>, vector<128x256xbf16>
    %c0_161 = arith.constant 0 : index
    %c0_162 = arith.constant 0 : index
    %698 = vector.load %arg9[%c0_161, %c0_162] : memref<256x512xbf16, #tpu.memory_space<vmem>>, vector<256x512xbf16>
    %cst_163 = arith.constant dense<0.000000e+00> : vector<128x512xf32>
    %699 = tpu.matmul %697, %698, %cst_163 {dimension_numbers = #tpu.dot_dimension_numbers<[1], [0], [0], [1], [0, 0, 1, 1], [], []>} : vector<128x256xbf16>, vector<256x512xbf16>, vector<128x512xf32> -> vector<128x512xf32>
    %c0_164 = arith.constant 0 : index
    %c0_165 = arith.constant 0 : index
    %700 = vector.load %arg13[%c0_164, %c0_165] : memref<1x512xf32, #tpu.memory_space<vmem>>, vector<1x512xf32>
    %701 = vector.broadcast %700 : vector<1x512xf32> to vector<128x512xf32>
    %702 = arith.addf %699, %701 : vector<128x512xf32>
    %c0_166 = arith.constant 0 : index
    %c0_167 = arith.constant 0 : index
    %703 = vector.load %arg10[%c0_166, %c0_167] : memref<256x512xbf16, #tpu.memory_space<vmem>>, vector<256x512xbf16>
    %cst_168 = arith.constant dense<0.000000e+00> : vector<128x512xf32>
    %704 = tpu.matmul %697, %703, %cst_168 {dimension_numbers = #tpu.dot_dimension_numbers<[1], [0], [0], [1], [0, 0, 1, 1], [], []>} : vector<128x256xbf16>, vector<256x512xbf16>, vector<128x512xf32> -> vector<128x512xf32>
    %c0_169 = arith.constant 0 : index
    %c0_170 = arith.constant 0 : index
    %705 = vector.load %arg14[%c0_169, %c0_170] : memref<1x512xf32, #tpu.memory_space<vmem>>, vector<1x512xf32>
    %706 = vector.broadcast %705 : vector<1x512xf32> to vector<128x512xf32>
    %707 = arith.addf %704, %706 : vector<128x512xf32>
    %708 = arith.truncf %702 : vector<128x512xf32> to vector<128x512xbf16>
    %c0_171 = arith.constant 0 : index
    %c0_172 = arith.constant 0 : index
    %709 = vector.load %arg19[%c0_171, %c0_172] : memref<128x512xbf16, #tpu.memory_space<vmem>>, vector<128x512xbf16>
    tpu.vector_store %arg19[%c0_171, %c0_172], %708 {strides = array<i32>} : memref<128x512xbf16, #tpu.memory_space<vmem>>, vector<128x512xbf16>,
    %710 = arith.truncf %707 : vector<128x512xf32> to vector<128x512xbf16>
    %c0_173 = arith.constant 0 : index
    %c0_174 = arith.constant 0 : index
    %711 = vector.load %arg20[%c0_173, %c0_174] : memref<128x512xbf16, #tpu.memory_space<vmem>>, vector<128x512xbf16>
    tpu.vector_store %arg20[%c0_173, %c0_174], %710 {strides = array<i32>} : memref<128x512xbf16, #tpu.memory_space<vmem>>, vector<128x512xbf16>,
    %c0_175 = arith.constant 0 : index
    %c0_176 = arith.constant 0 : index
    %712 = vector.load %arg11[%c0_175, %c0_176] : memref<128x512xbf16, #tpu.memory_space<vmem>>, vector<128x512xbf16>
    %c0_177 = arith.constant 0 : index
    %c0_178 = arith.constant 0 : index
    %713 = vector.load %arg19[%c0_177, %c0_178] : memref<128x512xbf16, #tpu.memory_space<vmem>>, vector<16x512xbf16>
    %714 = arith.extf %713 : vector<16x512xbf16> to vector<16x512xf32>
    %715 = arith.truncf %2 : vector<16x128xf32> to vector<16x128xbf16>
    %cst_179 = arith.constant dense<0.000000e+00> : vector<16x512xf32>
    %716 = tpu.matmul %715, %712, %cst_179 {dimension_numbers = #tpu.dot_dimension_numbers<[1], [0], [0], [1], [0, 0, 1, 1], [], []>} : vector<16x128xbf16>, vector<128x512xbf16>, vector<16x512xf32> -> vector<16x512xf32>
    %717 = arith.addf %714, %716 : vector<16x512xf32>
    %718 = vector.extract_strided_slice %717 {offsets = [0, 0], sizes = [16, 128], strides = [1, 1]} : vector<16x512xf32> to vector<16x128xf32>
    %719 = arith.negf %718 : vector<16x128xf32>
    %720 = math.exp %719 : vector<16x128xf32>
    %cst_180 = arith.constant 1.000000e+00 : f32
    %721 = vector.broadcast %cst_180 : f32 to vector<16x128xf32>
    %722 = arith.addf %721, %720 : vector<16x128xf32>
    %723 = arith.divf %721, %722 : vector<16x128xf32>
    %724 = vector.extract_strided_slice %717 {offsets = [0, 128], sizes = [16, 128], strides = [1, 1]} : vector<16x512xf32> to vector<16x128xf32>
    %725 = arith.negf %724 : vector<16x128xf32>
    %726 = math.exp %725 : vector<16x128xf32>
    %cst_181 = arith.constant 1.000000e+00 : f32
    %727 = vector.broadcast %cst_181 : f32 to vector<16x128xf32>
    %728 = arith.addf %727, %726 : vector<16x128xf32>
    %729 = arith.divf %727, %728 : vector<16x128xf32>
    %730 = vector.extract_strided_slice %717 {offsets = [0, 256], sizes = [16, 128], strides = [1, 1]} : vector<16x512xf32> to vector<16x128xf32>
    %731 = math.tanh %730 : vector<16x128xf32>
    %732 = vector.extract_strided_slice %717 {offsets = [0, 384], sizes = [16, 128], strides = [1, 1]} : vector<16x512xf32> to vector<16x128xf32>
    %733 = arith.negf %732 : vector<16x128xf32>
    %734 = math.exp %733 : vector<16x128xf32>
    %cst_182 = arith.constant 1.000000e+00 : f32
    %735 = vector.broadcast %cst_182 : f32 to vector<16x128xf32>
    %736 = arith.addf %735, %734 : vector<16x128xf32>
    %737 = arith.divf %735, %736 : vector<16x128xf32>
    %738 = arith.mulf %729, %2 : vector<16x128xf32>
    %739 = arith.mulf %723, %731 : vector<16x128xf32>
    %740 = arith.addf %738, %739 : vector<16x128xf32>
    %741 = math.tanh %740 : vector<16x128xf32>
    %742 = arith.mulf %737, %741 : vector<16x128xf32>
    %743 = vector.shape_cast %4 : vector<16x1xi1> to vector<16x1xi1>
    %744 = vector.broadcast %743 : vector<16x1xi1> to vector<16x128xi1>
    %745 = arith.select %744, %742, %2 : vector<16x128xi1>, vector<16x128xf32>
    %746 = vector.shape_cast %4 : vector<16x1xi1> to vector<16x1xi1>
    %747 = vector.broadcast %746 : vector<16x1xi1> to vector<16x128xi1>
    %748 = arith.select %747, %740, %2 : vector<16x128xi1>, vector<16x128xf32>
    %c16_183 = arith.constant 16 : index
    %c0_184 = arith.constant 0 : index
    %749 = vector.load %arg19[%c16_183, %c0_184] : memref<128x512xbf16, #tpu.memory_space<vmem>>, vector<16x512xbf16>
    %750 = arith.extf %749 : vector<16x512xbf16> to vector<16x512xf32>
    %751 = arith.truncf %745 : vector<16x128xf32> to vector<16x128xbf16>
    %cst_185 = arith.constant dense<0.000000e+00> : vector<16x512xf32>
    %752 = tpu.matmul %751, %712, %cst_185 {dimension_numbers = #tpu.dot_dimension_numbers<[1], [0], [0], [1], [0, 0, 1, 1], [], []>} : vector<16x128xbf16>, vector<128x512xbf16>, vector<16x512xf32> -> vector<16x512xf32>
    %753 = arith.addf %750, %752 : vector<16x512xf32>
    %754 = vector.extract_strided_slice %753 {offsets = [0, 0], sizes = [16, 128], strides = [1, 1]} : vector<16x512xf32> to vector<16x128xf32>
    %755 = arith.negf %754 : vector<16x128xf32>
    %756 = math.exp %755 : vector<16x128xf32>
    %cst_186 = arith.constant 1.000000e+00 : f32
    %757 = vector.broadcast %cst_186 : f32 to vector<16x128xf32>
    %758 = arith.addf %757, %756 : vector<16x128xf32>
    %759 = arith.divf %757, %758 : vector<16x128xf32>
    %760 = vector.extract_strided_slice %753 {offsets = [0, 128], sizes = [16, 128], strides = [1, 1]} : vector<16x512xf32> to vector<16x128xf32>
    %761 = arith.negf %760 : vector<16x128xf32>
    %762 = math.exp %761 : vector<16x128xf32>
    %cst_187 = arith.constant 1.000000e+00 : f32
    %763 = vector.broadcast %cst_187 : f32 to vector<16x128xf32>
    %764 = arith.addf %763, %762 : vector<16x128xf32>
    %765 = arith.divf %763, %764 : vector<16x128xf32>
    %766 = vector.extract_strided_slice %753 {offsets = [0, 256], sizes = [16, 128], strides = [1, 1]} : vector<16x512xf32> to vector<16x128xf32>
    %767 = math.tanh %766 : vector<16x128xf32>
    %768 = vector.extract_strided_slice %753 {offsets = [0, 384], sizes = [16, 128], strides = [1, 1]} : vector<16x512xf32> to vector<16x128xf32>
    %769 = arith.negf %768 : vector<16x128xf32>
    %770 = math.exp %769 : vector<16x128xf32>
    %cst_188 = arith.constant 1.000000e+00 : f32
    %771 = vector.broadcast %cst_188 : f32 to vector<16x128xf32>
    %772 = arith.addf %771, %770 : vector<16x128xf32>
    %773 = arith.divf %771, %772 : vector<16x128xf32>
    %774 = arith.mulf %765, %748 : vector<16x128xf32>
    %775 = arith.mulf %759, %767 : vector<16x128xf32>
    %776 = arith.addf %774, %775 : vector<16x128xf32>
    %777 = math.tanh %776 : vector<16x128xf32>
    %778 = arith.mulf %773, %777 : vector<16x128xf32>
    %779 = vector.shape_cast %6 : vector<16x1xi1> to vector<16x1xi1>
    %780 = vector.broadcast %779 : vector<16x1xi1> to vector<16x128xi1>
    %781 = arith.select %780, %778, %745 : vector<16x128xi1>, vector<16x128xf32>
    %782 = vector.shape_cast %6 : vector<16x1xi1> to vector<16x1xi1>
    %783 = vector.broadcast %782 : vector<16x1xi1> to vector<16x128xi1>
    %784 = arith.select %783, %776, %748 : vector<16x128xi1>, vector<16x128xf32>
    %c32_189 = arith.constant 32 : index
    %c0_190 = arith.constant 0 : index
    %785 = vector.load %arg19[%c32_189, %c0_190] : memref<128x512xbf16, #tpu.memory_space<vmem>>, vector<16x512xbf16>
    %786 = arith.extf %785 : vector<16x512xbf16> to vector<16x512xf32>
    %787 = arith.truncf %781 : vector<16x128xf32> to vector<16x128xbf16>
    %cst_191 = arith.constant dense<0.000000e+00> : vector<16x512xf32>
    %788 = tpu.matmul %787, %712, %cst_191 {dimension_numbers = #tpu.dot_dimension_numbers<[1], [0], [0], [1], [0, 0, 1, 1], [], []>} : vector<16x128xbf16>, vector<128x512xbf16>, vector<16x512xf32> -> vector<16x512xf32>
    %789 = arith.addf %786, %788 : vector<16x512xf32>
    %790 = vector.extract_strided_slice %789 {offsets = [0, 0], sizes = [16, 128], strides = [1, 1]} : vector<16x512xf32> to vector<16x128xf32>
    %791 = arith.negf %790 : vector<16x128xf32>
    %792 = math.exp %791 : vector<16x128xf32>
    %cst_192 = arith.constant 1.000000e+00 : f32
    %793 = vector.broadcast %cst_192 : f32 to vector<16x128xf32>
    %794 = arith.addf %793, %792 : vector<16x128xf32>
    %795 = arith.divf %793, %794 : vector<16x128xf32>
    %796 = vector.extract_strided_slice %789 {offsets = [0, 128], sizes = [16, 128], strides = [1, 1]} : vector<16x512xf32> to vector<16x128xf32>
    %797 = arith.negf %796 : vector<16x128xf32>
    %798 = math.exp %797 : vector<16x128xf32>
    %cst_193 = arith.constant 1.000000e+00 : f32
    %799 = vector.broadcast %cst_193 : f32 to vector<16x128xf32>
    %800 = arith.addf %799, %798 : vector<16x128xf32>
    %801 = arith.divf %799, %800 : vector<16x128xf32>
    %802 = vector.extract_strided_slice %789 {offsets = [0, 256], sizes = [16, 128], strides = [1, 1]} : vector<16x512xf32> to vector<16x128xf32>
    %803 = math.tanh %802 : vector<16x128xf32>
    %804 = vector.extract_strided_slice %789 {offsets = [0, 384], sizes = [16, 128], strides = [1, 1]} : vector<16x512xf32> to vector<16x128xf32>
    %805 = arith.negf %804 : vector<16x128xf32>
    %806 = math.exp %805 : vector<16x128xf32>
    %cst_194 = arith.constant 1.000000e+00 : f32
    %807 = vector.broadcast %cst_194 : f32 to vector<16x128xf32>
    %808 = arith.addf %807, %806 : vector<16x128xf32>
    %809 = arith.divf %807, %808 : vector<16x128xf32>
    %810 = arith.mulf %801, %784 : vector<16x128xf32>
    %811 = arith.mulf %795, %803 : vector<16x128xf32>
    %812 = arith.addf %810, %811 : vector<16x128xf32>
    %813 = math.tanh %812 : vector<16x128xf32>
    %814 = arith.mulf %809, %813 : vector<16x128xf32>
    %815 = vector.shape_cast %8 : vector<16x1xi1> to vector<16x1xi1>
    %816 = vector.broadcast %815 : vector<16x1xi1> to vector<16x128xi1>
    %817 = arith.select %816, %814, %781 : vector<16x128xi1>, vector<16x128xf32>
    %818 = vector.shape_cast %8 : vector<16x1xi1> to vector<16x1xi1>
    %819 = vector.broadcast %818 : vector<16x1xi1> to vector<16x128xi1>
    %820 = arith.select %819, %812, %784 : vector<16x128xi1>, vector<16x128xf32>
    %c48_195 = arith.constant 48 : index
    %c0_196 = arith.constant 0 : index
    %821 = vector.load %arg19[%c48_195, %c0_196] : memref<128x512xbf16, #tpu.memory_space<vmem>>, vector<16x512xbf16>
    %822 = arith.extf %821 : vector<16x512xbf16> to vector<16x512xf32>
    %823 = arith.truncf %817 : vector<16x128xf32> to vector<16x128xbf16>
    %cst_197 = arith.constant dense<0.000000e+00> : vector<16x512xf32>
    %824 = tpu.matmul %823, %712, %cst_197 {dimension_numbers = #tpu.dot_dimension_numbers<[1], [0], [0], [1], [0, 0, 1, 1], [], []>} : vector<16x128xbf16>, vector<128x512xbf16>, vector<16x512xf32> -> vector<16x512xf32>
    %825 = arith.addf %822, %824 : vector<16x512xf32>
    %826 = vector.extract_strided_slice %825 {offsets = [0, 0], sizes = [16, 128], strides = [1, 1]} : vector<16x512xf32> to vector<16x128xf32>
    %827 = arith.negf %826 : vector<16x128xf32>
    %828 = math.exp %827 : vector<16x128xf32>
    %cst_198 = arith.constant 1.000000e+00 : f32
    %829 = vector.broadcast %cst_198 : f32 to vector<16x128xf32>
    %830 = arith.addf %829, %828 : vector<16x128xf32>
    %831 = arith.divf %829, %830 : vector<16x128xf32>
    %832 = vector.extract_strided_slice %825 {offsets = [0, 128], sizes = [16, 128], strides = [1, 1]} : vector<16x512xf32> to vector<16x128xf32>
    %833 = arith.negf %832 : vector<16x128xf32>
    %834 = math.exp %833 : vector<16x128xf32>
    %cst_199 = arith.constant 1.000000e+00 : f32
    %835 = vector.broadcast %cst_199 : f32 to vector<16x128xf32>
    %836 = arith.addf %835, %834 : vector<16x128xf32>
    %837 = arith.divf %835, %836 : vector<16x128xf32>
    %838 = vector.extract_strided_slice %825 {offsets = [0, 256], sizes = [16, 128], strides = [1, 1]} : vector<16x512xf32> to vector<16x128xf32>
    %839 = math.tanh %838 : vector<16x128xf32>
    %840 = vector.extract_strided_slice %825 {offsets = [0, 384], sizes = [16, 128], strides = [1, 1]} : vector<16x512xf32> to vector<16x128xf32>
    %841 = arith.negf %840 : vector<16x128xf32>
    %842 = math.exp %841 : vector<16x128xf32>
    %cst_200 = arith.constant 1.000000e+00 : f32
    %843 = vector.broadcast %cst_200 : f32 to vector<16x128xf32>
    %844 = arith.addf %843, %842 : vector<16x128xf32>
    %845 = arith.divf %843, %844 : vector<16x128xf32>
    %846 = arith.mulf %837, %820 : vector<16x128xf32>
    %847 = arith.mulf %831, %839 : vector<16x128xf32>
    %848 = arith.addf %846, %847 : vector<16x128xf32>
    %849 = math.tanh %848 : vector<16x128xf32>
    %850 = arith.mulf %845, %849 : vector<16x128xf32>
    %851 = vector.shape_cast %10 : vector<16x1xi1> to vector<16x1xi1>
    %852 = vector.broadcast %851 : vector<16x1xi1> to vector<16x128xi1>
    %853 = arith.select %852, %850, %817 : vector<16x128xi1>, vector<16x128xf32>
    %854 = vector.shape_cast %10 : vector<16x1xi1> to vector<16x1xi1>
    %855 = vector.broadcast %854 : vector<16x1xi1> to vector<16x128xi1>
    %856 = arith.select %855, %848, %820 : vector<16x128xi1>, vector<16x128xf32>
    %c64_201 = arith.constant 64 : index
    %c0_202 = arith.constant 0 : index
    %857 = vector.load %arg19[%c64_201, %c0_202] : memref<128x512xbf16, #tpu.memory_space<vmem>>, vector<16x512xbf16>
    %858 = arith.extf %857 : vector<16x512xbf16> to vector<16x512xf32>
    %859 = arith.truncf %853 : vector<16x128xf32> to vector<16x128xbf16>
    %cst_203 = arith.constant dense<0.000000e+00> : vector<16x512xf32>
    %860 = tpu.matmul %859, %712, %cst_203 {dimension_numbers = #tpu.dot_dimension_numbers<[1], [0], [0], [1], [0, 0, 1, 1], [], []>} : vector<16x128xbf16>, vector<128x512xbf16>, vector<16x512xf32> -> vector<16x512xf32>
    %861 = arith.addf %858, %860 : vector<16x512xf32>
    %862 = vector.extract_strided_slice %861 {offsets = [0, 0], sizes = [16, 128], strides = [1, 1]} : vector<16x512xf32> to vector<16x128xf32>
    %863 = arith.negf %862 : vector<16x128xf32>
    %864 = math.exp %863 : vector<16x128xf32>
    %cst_204 = arith.constant 1.000000e+00 : f32
    %865 = vector.broadcast %cst_204 : f32 to vector<16x128xf32>
    %866 = arith.addf %865, %864 : vector<16x128xf32>
    %867 = arith.divf %865, %866 : vector<16x128xf32>
    %868 = vector.extract_strided_slice %861 {offsets = [0, 128], sizes = [16, 128], strides = [1, 1]} : vector<16x512xf32> to vector<16x128xf32>
    %869 = arith.negf %868 : vector<16x128xf32>
    %870 = math.exp %869 : vector<16x128xf32>
    %cst_205 = arith.constant 1.000000e+00 : f32
    %871 = vector.broadcast %cst_205 : f32 to vector<16x128xf32>
    %872 = arith.addf %871, %870 : vector<16x128xf32>
    %873 = arith.divf %871, %872 : vector<16x128xf32>
    %874 = vector.extract_strided_slice %861 {offsets = [0, 256], sizes = [16, 128], strides = [1, 1]} : vector<16x512xf32> to vector<16x128xf32>
    %875 = math.tanh %874 : vector<16x128xf32>
    %876 = vector.extract_strided_slice %861 {offsets = [0, 384], sizes = [16, 128], strides = [1, 1]} : vector<16x512xf32> to vector<16x128xf32>
    %877 = arith.negf %876 : vector<16x128xf32>
    %878 = math.exp %877 : vector<16x128xf32>
    %cst_206 = arith.constant 1.000000e+00 : f32
    %879 = vector.broadcast %cst_206 : f32 to vector<16x128xf32>
    %880 = arith.addf %879, %878 : vector<16x128xf32>
    %881 = arith.divf %879, %880 : vector<16x128xf32>
    %882 = arith.mulf %873, %856 : vector<16x128xf32>
    %883 = arith.mulf %867, %875 : vector<16x128xf32>
    %884 = arith.addf %882, %883 : vector<16x128xf32>
    %885 = math.tanh %884 : vector<16x128xf32>
    %886 = arith.mulf %881, %885 : vector<16x128xf32>
    %887 = vector.shape_cast %12 : vector<16x1xi1> to vector<16x1xi1>
    %888 = vector.broadcast %887 : vector<16x1xi1> to vector<16x128xi1>
    %889 = arith.select %888, %886, %853 : vector<16x128xi1>, vector<16x128xf32>
    %890 = vector.shape_cast %12 : vector<16x1xi1> to vector<16x1xi1>
    %891 = vector.broadcast %890 : vector<16x1xi1> to vector<16x128xi1>
    %892 = arith.select %891, %884, %856 : vector<16x128xi1>, vector<16x128xf32>
    %c80_207 = arith.constant 80 : index
    %c0_208 = arith.constant 0 : index
    %893 = vector.load %arg19[%c80_207, %c0_208] : memref<128x512xbf16, #tpu.memory_space<vmem>>, vector<16x512xbf16>
    %894 = arith.extf %893 : vector<16x512xbf16> to vector<16x512xf32>
    %895 = arith.truncf %889 : vector<16x128xf32> to vector<16x128xbf16>
    %cst_209 = arith.constant dense<0.000000e+00> : vector<16x512xf32>
    %896 = tpu.matmul %895, %712, %cst_209 {dimension_numbers = #tpu.dot_dimension_numbers<[1], [0], [0], [1], [0, 0, 1, 1], [], []>} : vector<16x128xbf16>, vector<128x512xbf16>, vector<16x512xf32> -> vector<16x512xf32>
    %897 = arith.addf %894, %896 : vector<16x512xf32>
    %898 = vector.extract_strided_slice %897 {offsets = [0, 0], sizes = [16, 128], strides = [1, 1]} : vector<16x512xf32> to vector<16x128xf32>
    %899 = arith.negf %898 : vector<16x128xf32>
    %900 = math.exp %899 : vector<16x128xf32>
    %cst_210 = arith.constant 1.000000e+00 : f32
    %901 = vector.broadcast %cst_210 : f32 to vector<16x128xf32>
    %902 = arith.addf %901, %900 : vector<16x128xf32>
    %903 = arith.divf %901, %902 : vector<16x128xf32>
    %904 = vector.extract_strided_slice %897 {offsets = [0, 128], sizes = [16, 128], strides = [1, 1]} : vector<16x512xf32> to vector<16x128xf32>
    %905 = arith.negf %904 : vector<16x128xf32>
    %906 = math.exp %905 : vector<16x128xf32>
    %cst_211 = arith.constant 1.000000e+00 : f32
    %907 = vector.broadcast %cst_211 : f32 to vector<16x128xf32>
    %908 = arith.addf %907, %906 : vector<16x128xf32>
    %909 = arith.divf %907, %908 : vector<16x128xf32>
    %910 = vector.extract_strided_slice %897 {offsets = [0, 256], sizes = [16, 128], strides = [1, 1]} : vector<16x512xf32> to vector<16x128xf32>
    %911 = math.tanh %910 : vector<16x128xf32>
    %912 = vector.extract_strided_slice %897 {offsets = [0, 384], sizes = [16, 128], strides = [1, 1]} : vector<16x512xf32> to vector<16x128xf32>
    %913 = arith.negf %912 : vector<16x128xf32>
    %914 = math.exp %913 : vector<16x128xf32>
    %cst_212 = arith.constant 1.000000e+00 : f32
    %915 = vector.broadcast %cst_212 : f32 to vector<16x128xf32>
    %916 = arith.addf %915, %914 : vector<16x128xf32>
    %917 = arith.divf %915, %916 : vector<16x128xf32>
    %918 = arith.mulf %909, %892 : vector<16x128xf32>
    %919 = arith.mulf %903, %911 : vector<16x128xf32>
    %920 = arith.addf %918, %919 : vector<16x128xf32>
    %921 = math.tanh %920 : vector<16x128xf32>
    %922 = arith.mulf %917, %921 : vector<16x128xf32>
    %923 = vector.shape_cast %14 : vector<16x1xi1> to vector<16x1xi1>
    %924 = vector.broadcast %923 : vector<16x1xi1> to vector<16x128xi1>
    %925 = arith.select %924, %922, %889 : vector<16x128xi1>, vector<16x128xf32>
    %926 = vector.shape_cast %14 : vector<16x1xi1> to vector<16x1xi1>
    %927 = vector.broadcast %926 : vector<16x1xi1> to vector<16x128xi1>
    %928 = arith.select %927, %920, %892 : vector<16x128xi1>, vector<16x128xf32>
    %c96_213 = arith.constant 96 : index
    %c0_214 = arith.constant 0 : index
    %929 = vector.load %arg19[%c96_213, %c0_214] : memref<128x512xbf16, #tpu.memory_space<vmem>>, vector<16x512xbf16>
    %930 = arith.extf %929 : vector<16x512xbf16> to vector<16x512xf32>
    %931 = arith.truncf %925 : vector<16x128xf32> to vector<16x128xbf16>
    %cst_215 = arith.constant dense<0.000000e+00> : vector<16x512xf32>
    %932 = tpu.matmul %931, %712, %cst_215 {dimension_numbers = #tpu.dot_dimension_numbers<[1], [0], [0], [1], [0, 0, 1, 1], [], []>} : vector<16x128xbf16>, vector<128x512xbf16>, vector<16x512xf32> -> vector<16x512xf32>
    %933 = arith.addf %930, %932 : vector<16x512xf32>
    %934 = vector.extract_strided_slice %933 {offsets = [0, 0], sizes = [16, 128], strides = [1, 1]} : vector<16x512xf32> to vector<16x128xf32>
    %935 = arith.negf %934 : vector<16x128xf32>
    %936 = math.exp %935 : vector<16x128xf32>
    %cst_216 = arith.constant 1.000000e+00 : f32
    %937 = vector.broadcast %cst_216 : f32 to vector<16x128xf32>
    %938 = arith.addf %937, %936 : vector<16x128xf32>
    %939 = arith.divf %937, %938 : vector<16x128xf32>
    %940 = vector.extract_strided_slice %933 {offsets = [0, 128], sizes = [16, 128], strides = [1, 1]} : vector<16x512xf32> to vector<16x128xf32>
    %941 = arith.negf %940 : vector<16x128xf32>
    %942 = math.exp %941 : vector<16x128xf32>
    %cst_217 = arith.constant 1.000000e+00 : f32
    %943 = vector.broadcast %cst_217 : f32 to vector<16x128xf32>
    %944 = arith.addf %943, %942 : vector<16x128xf32>
    %945 = arith.divf %943, %944 : vector<16x128xf32>
    %946 = vector.extract_strided_slice %933 {offsets = [0, 256], sizes = [16, 128], strides = [1, 1]} : vector<16x512xf32> to vector<16x128xf32>
    %947 = math.tanh %946 : vector<16x128xf32>
    %948 = vector.extract_strided_slice %933 {offsets = [0, 384], sizes = [16, 128], strides = [1, 1]} : vector<16x512xf32> to vector<16x128xf32>
    %949 = arith.negf %948 : vector<16x128xf32>
    %950 = math.exp %949 : vector<16x128xf32>
    %cst_218 = arith.constant 1.000000e+00 : f32
    %951 = vector.broadcast %cst_218 : f32 to vector<16x128xf32>
    %952 = arith.addf %951, %950 : vector<16x128xf32>
    %953 = arith.divf %951, %952 : vector<16x128xf32>
    %954 = arith.mulf %945, %928 : vector<16x128xf32>
    %955 = arith.mulf %939, %947 : vector<16x128xf32>
    %956 = arith.addf %954, %955 : vector<16x128xf32>
    %957 = math.tanh %956 : vector<16x128xf32>
    %958 = arith.mulf %953, %957 : vector<16x128xf32>
    %959 = vector.shape_cast %16 : vector<16x1xi1> to vector<16x1xi1>
    %960 = vector.broadcast %959 : vector<16x1xi1> to vector<16x128xi1>
    %961 = arith.select %960, %958, %925 : vector<16x128xi1>, vector<16x128xf32>
    %962 = vector.shape_cast %16 : vector<16x1xi1> to vector<16x1xi1>
    %963 = vector.broadcast %962 : vector<16x1xi1> to vector<16x128xi1>
    %964 = arith.select %963, %956, %928 : vector<16x128xi1>, vector<16x128xf32>
    %c112_219 = arith.constant 112 : index
    %c0_220 = arith.constant 0 : index
    %965 = vector.load %arg19[%c112_219, %c0_220] : memref<128x512xbf16, #tpu.memory_space<vmem>>, vector<16x512xbf16>
    %966 = arith.extf %965 : vector<16x512xbf16> to vector<16x512xf32>
    %967 = arith.truncf %961 : vector<16x128xf32> to vector<16x128xbf16>
    %cst_221 = arith.constant dense<0.000000e+00> : vector<16x512xf32>
    %968 = tpu.matmul %967, %712, %cst_221 {dimension_numbers = #tpu.dot_dimension_numbers<[1], [0], [0], [1], [0, 0, 1, 1], [], []>} : vector<16x128xbf16>, vector<128x512xbf16>, vector<16x512xf32> -> vector<16x512xf32>
    %969 = arith.addf %966, %968 : vector<16x512xf32>
    %970 = vector.extract_strided_slice %969 {offsets = [0, 0], sizes = [16, 128], strides = [1, 1]} : vector<16x512xf32> to vector<16x128xf32>
    %971 = arith.negf %970 : vector<16x128xf32>
    %972 = math.exp %971 : vector<16x128xf32>
    %cst_222 = arith.constant 1.000000e+00 : f32
    %973 = vector.broadcast %cst_222 : f32 to vector<16x128xf32>
    %974 = arith.addf %973, %972 : vector<16x128xf32>
    %975 = arith.divf %973, %974 : vector<16x128xf32>
    %976 = vector.extract_strided_slice %969 {offsets = [0, 128], sizes = [16, 128], strides = [1, 1]} : vector<16x512xf32> to vector<16x128xf32>
    %977 = arith.negf %976 : vector<16x128xf32>
    %978 = math.exp %977 : vector<16x128xf32>
    %cst_223 = arith.constant 1.000000e+00 : f32
    %979 = vector.broadcast %cst_223 : f32 to vector<16x128xf32>
    %980 = arith.addf %979, %978 : vector<16x128xf32>
    %981 = arith.divf %979, %980 : vector<16x128xf32>
    %982 = vector.extract_strided_slice %969 {offsets = [0, 256], sizes = [16, 128], strides = [1, 1]} : vector<16x512xf32> to vector<16x128xf32>
    %983 = math.tanh %982 : vector<16x128xf32>
    %984 = vector.extract_strided_slice %969 {offsets = [0, 384], sizes = [16, 128], strides = [1, 1]} : vector<16x512xf32> to vector<16x128xf32>
    %985 = arith.negf %984 : vector<16x128xf32>
    %986 = math.exp %985 : vector<16x128xf32>
    %cst_224 = arith.constant 1.000000e+00 : f32
    %987 = vector.broadcast %cst_224 : f32 to vector<16x128xf32>
    %988 = arith.addf %987, %986 : vector<16x128xf32>
    %989 = arith.divf %987, %988 : vector<16x128xf32>
    %990 = arith.mulf %981, %964 : vector<16x128xf32>
    %991 = arith.mulf %975, %983 : vector<16x128xf32>
    %992 = arith.addf %990, %991 : vector<16x128xf32>
    %993 = math.tanh %992 : vector<16x128xf32>
    %994 = arith.mulf %989, %993 : vector<16x128xf32>
    %995 = vector.shape_cast %18 : vector<16x1xi1> to vector<16x1xi1>
    %996 = vector.broadcast %995 : vector<16x1xi1> to vector<16x128xi1>
    %997 = arith.select %996, %994, %961 : vector<16x128xi1>, vector<16x128xf32>
    %c7_i32_225 = arith.constant 7 : i32
    %998 = vector.broadcast %c7_i32_225 : i32 to vector<16x1xi32>
    %999 = arith.cmpi sgt, %1, %998 : vector<16x1xi32>
    %cst_226 = arith.constant 0.000000e+00 : f32
    %1000 = vector.shape_cast %999 : vector<16x1xi1> to vector<16x1xi1>
    %1001 = vector.broadcast %1000 : vector<16x1xi1> to vector<16x128xi1>
    %1002 = vector.broadcast %cst_226 : f32 to vector<16x128xf32>
    %1003 = arith.select %1001, %997, %1002 : vector<16x128xi1>, vector<16x128xf32>
    %c112_227 = arith.constant 112 : index
    %c0_228 = arith.constant 0 : index
    %1004 = vector.load %arg20[%c112_227, %c0_228] : memref<128x512xbf16, #tpu.memory_space<vmem>>, vector<16x512xbf16>
    %1005 = arith.extf %1004 : vector<16x512xbf16> to vector<16x512xf32>
    %1006 = vector.extract_strided_slice %1005 {offsets = [0, 0], sizes = [16, 128], strides = [1, 1]} : vector<16x512xf32> to vector<16x128xf32>
    %1007 = arith.negf %1006 : vector<16x128xf32>
    %1008 = math.exp %1007 : vector<16x128xf32>
    %cst_229 = arith.constant 1.000000e+00 : f32
    %1009 = vector.broadcast %cst_229 : f32 to vector<16x128xf32>
    %1010 = arith.addf %1009, %1008 : vector<16x128xf32>
    %1011 = arith.divf %1009, %1010 : vector<16x128xf32>
    %1012 = vector.extract_strided_slice %1005 {offsets = [0, 128], sizes = [16, 128], strides = [1, 1]} : vector<16x512xf32> to vector<16x128xf32>
    %1013 = arith.negf %1012 : vector<16x128xf32>
    %1014 = math.exp %1013 : vector<16x128xf32>
    %cst_230 = arith.constant 1.000000e+00 : f32
    %1015 = vector.broadcast %cst_230 : f32 to vector<16x128xf32>
    %1016 = arith.addf %1015, %1014 : vector<16x128xf32>
    %1017 = arith.divf %1015, %1016 : vector<16x128xf32>
    %1018 = vector.extract_strided_slice %1005 {offsets = [0, 256], sizes = [16, 128], strides = [1, 1]} : vector<16x512xf32> to vector<16x128xf32>
    %1019 = math.tanh %1018 : vector<16x128xf32>
    %1020 = vector.extract_strided_slice %1005 {offsets = [0, 384], sizes = [16, 128], strides = [1, 1]} : vector<16x512xf32> to vector<16x128xf32>
    %1021 = arith.negf %1020 : vector<16x128xf32>
    %1022 = math.exp %1021 : vector<16x128xf32>
    %cst_231 = arith.constant 1.000000e+00 : f32
    %1023 = vector.broadcast %cst_231 : f32 to vector<16x128xf32>
    %1024 = arith.addf %1023, %1022 : vector<16x128xf32>
    %1025 = arith.divf %1023, %1024 : vector<16x128xf32>
    %1026 = arith.mulf %1017, %2 : vector<16x128xf32>
    %1027 = arith.mulf %1011, %1019 : vector<16x128xf32>
    %1028 = arith.addf %1026, %1027 : vector<16x128xf32>
    %1029 = math.tanh %1028 : vector<16x128xf32>
    %1030 = arith.mulf %1025, %1029 : vector<16x128xf32>
    %c7_i32_232 = arith.constant 7 : i32
    %1031 = vector.broadcast %c7_i32_232 : i32 to vector<16x1xi32>
    %1032 = arith.cmpi sgt, %1, %1031 : vector<16x1xi32>
    %cst_233 = arith.constant 0.000000e+00 : f32
    %1033 = vector.shape_cast %1032 : vector<16x1xi1> to vector<16x1xi1>
    %1034 = vector.broadcast %1033 : vector<16x1xi1> to vector<16x128xi1>
    %1035 = vector.broadcast %cst_233 : f32 to vector<16x128xf32>
    %1036 = arith.select %1034, %1030, %1035 : vector<16x128xi1>, vector<16x128xf32>
    %cst_234 = arith.constant 0.000000e+00 : f32
    %1037 = vector.broadcast %cst_234 : f32 to vector<16x128xf32>
    %1038 = arith.maximumf %1003, %1037 : vector<16x128xf32>
    %1039 = arith.truncf %1038 : vector<16x128xf32> to vector<16x128xbf16>
    %cst_235 = arith.constant 0.000000e+00 : f32
    %1040 = vector.broadcast %cst_235 : f32 to vector<16x128xf32>
    %1041 = arith.maximumf %1036, %1040 : vector<16x128xf32>
    %1042 = arith.truncf %1041 : vector<16x128xf32> to vector<16x128xbf16>
    %c0_236 = arith.constant 0 : index
    %c0_237 = arith.constant 0 : index
    %1043 = vector.load %arg15[%c0_236, %c0_237] : memref<256x128xbf16, #tpu.memory_space<vmem>>, vector<128x128xbf16>
    %cst_238 = arith.constant dense<0.000000e+00> : vector<16x128xf32>
    %1044 = tpu.matmul %1039, %1043, %cst_238 {dimension_numbers = #tpu.dot_dimension_numbers<[1], [0], [0], [1], [0, 0, 1, 1], [], []>} : vector<16x128xbf16>, vector<128x128xbf16>, vector<16x128xf32> -> vector<16x128xf32>
    %c128_239 = arith.constant 128 : index
    %c0_240 = arith.constant 0 : index
    %1045 = vector.load %arg15[%c128_239, %c0_240] : memref<256x128xbf16, #tpu.memory_space<vmem>>, vector<128x128xbf16>
    %cst_241 = arith.constant dense<0.000000e+00> : vector<16x128xf32>
    %1046 = tpu.matmul %1042, %1045, %cst_241 {dimension_numbers = #tpu.dot_dimension_numbers<[1], [0], [0], [1], [0, 0, 1, 1], [], []>} : vector<16x128xbf16>, vector<128x128xbf16>, vector<16x128xf32> -> vector<16x128xf32>
    %1047 = arith.addf %1044, %1046 : vector<16x128xf32>
    %c0_242 = arith.constant 0 : index
    %c0_243 = arith.constant 0 : index
    %1048 = vector.load %arg16[%c0_242, %c0_243] : memref<1x128xf32, #tpu.memory_space<vmem>>, vector<1x128xf32>
    %1049 = vector.broadcast %1048 : vector<1x128xf32> to vector<16x128xf32>
    %1050 = arith.addf %1047, %1049 : vector<16x128xf32>
    %c0_244 = arith.constant 0 : index
    %c0_245 = arith.constant 0 : index
    %1051 = vector.load %arg17[%c0_244, %c0_245] : memref<16x128xf32, #tpu.memory_space<vmem>>, vector<16x128xf32>
    tpu.vector_store %arg17[%c0_244, %c0_245], %1050 {strides = array<i32>} : memref<16x128xf32, #tpu.memory_space<vmem>>, vector<16x128xf32>,
    return
  }
  func.func @transform_0(%arg0: i32) -> (i32, i32, i32) {
    %c0_i32 = arith.constant 0 : i32
    %c0_i32_0 = arith.constant 0 : i32
    %c0_i32_1 = arith.constant 0 : i32
    return %arg0, %c0_i32, %c0_i32_0 : i32, i32, i32
  }
  func.func @transform_1(%arg0: i32) -> (i32, i32, i32) {
    %c0_i32 = arith.constant 0 : i32
    %c0_i32_0 = arith.constant 0 : i32
    %c0_i32_1 = arith.constant 0 : i32
    return %arg0, %c0_i32, %c0_i32_0 : i32, i32, i32
  }
  func.func @transform_2(%arg0: i32) -> (i32, i32) {
    %c0_i32 = arith.constant 0 : i32
    %c0_i32_0 = arith.constant 0 : i32
    %c0_i32_1 = arith.constant 0 : i32
    return %c0_i32, %c0_i32_0 : i32, i32
  }
  func.func @transform_3(%arg0: i32) -> (i32, i32) {
    %c0_i32 = arith.constant 0 : i32
    %c0_i32_0 = arith.constant 0 : i32
    %c0_i32_1 = arith.constant 0 : i32
    return %c0_i32, %c0_i32_0 : i32, i32
  }
  func.func @transform_4(%arg0: i32) -> (i32, i32) {
    %c0_i32 = arith.constant 0 : i32
    %c0_i32_0 = arith.constant 0 : i32
    %c0_i32_1 = arith.constant 0 : i32
    return %c0_i32, %c0_i32_0 : i32, i32
  }
  func.func @transform_5(%arg0: i32) -> (i32, i32) {
    %c0_i32 = arith.constant 0 : i32
    %c0_i32_0 = arith.constant 0 : i32
    %c0_i32_1 = arith.constant 0 : i32
    return %c0_i32, %c0_i32_0 : i32, i32
  }
  func.func @transform_6(%arg0: i32) -> (i32, i32) {
    %c0_i32 = arith.constant 0 : i32
    %c0_i32_0 = arith.constant 0 : i32
    %c0_i32_1 = arith.constant 0 : i32
    return %c0_i32, %c0_i32_0 : i32, i32
  }
  func.func @transform_7(%arg0: i32) -> (i32, i32) {
    %c0_i32 = arith.constant 0 : i32
    %c0_i32_0 = arith.constant 0 : i32
    %c0_i32_1 = arith.constant 0 : i32
    return %c0_i32, %c0_i32_0 : i32, i32
  }
  func.func @transform_8(%arg0: i32) -> (i32, i32) {
    %c0_i32 = arith.constant 0 : i32
    %c0_i32_0 = arith.constant 0 : i32
    %c0_i32_1 = arith.constant 0 : i32
    return %c0_i32, %c0_i32_0 : i32, i32
  }
  func.func @transform_9(%arg0: i32) -> (i32, i32) {
    %c0_i32 = arith.constant 0 : i32
    %c0_i32_0 = arith.constant 0 : i32
    %c0_i32_1 = arith.constant 0 : i32
    return %c0_i32, %c0_i32_0 : i32, i32
  }
  func.func @transform_10(%arg0: i32) -> (i32, i32) {
    %c0_i32 = arith.constant 0 : i32
    %c0_i32_0 = arith.constant 0 : i32
    %c0_i32_1 = arith.constant 0 : i32
    return %c0_i32, %c0_i32_0 : i32, i32
  }
  func.func @transform_11(%arg0: i32) -> (i32, i32) {
    %c0_i32 = arith.constant 0 : i32
    %c0_i32_0 = arith.constant 0 : i32
    %c0_i32_1 = arith.constant 0 : i32
    return %c0_i32, %c0_i32_0 : i32, i32
  }
  func.func @transform_12(%arg0: i32) -> (i32, i32) {
    %c0_i32 = arith.constant 0 : i32
    %c0_i32_0 = arith.constant 0 : i32
    %c0_i32_1 = arith.constant 0 : i32
    return %c0_i32, %c0_i32_0 : i32, i32
  }
  func.func @transform_13(%arg0: i32) -> (i32, i32) {
    %c0_i32 = arith.constant 0 : i32
    %c0_i32_0 = arith.constant 0 : i32
    %c0_i32_1 = arith.constant 0 : i32
    return %c0_i32, %c0_i32_0 : i32, i32
  }
  func.func @transform_14(%arg0: i32) -> (i32, i32) {
    %c0_i32 = arith.constant 0 : i32
    %c0_i32_0 = arith.constant 0 : i32
    %c0_i32_1 = arith.constant 0 : i32
    return %c0_i32, %c0_i32_0 : i32, i32
  }
  func.func @transform_15(%arg0: i32) -> (i32, i32) {
    %c0_i32 = arith.constant 0 : i32
    %c0_i32_0 = arith.constant 0 : i32
    %c0_i32_1 = arith.constant 0 : i32
    return %c0_i32, %c0_i32_0 : i32, i32
  }
  func.func @transform_16(%arg0: i32) -> (i32, i32) {
    %c0_i32 = arith.constant 0 : i32
    %c0_i32_0 = arith.constant 0 : i32
    return %arg0, %c0_i32 : i32, i32
  }
}

</mosaic_0001>

<llo_original>
// kernel: tpu_custom_call.1
$region0: #{tpu_custom_call.1}
  #allocation0 [shape = 'u32[]', space=smem, size = 0x4, offset = 0x4, fixed_abs, tag = 'smem constant byte address 0x4 - core index']
  #allocation1 [shape = 'u32[144,128]{1,0:T(1,128)}', space=vmem, size = 0x12000, scoped, tag = 'internal scratch']
  #allocation2 [shape = 'bf16[128,256]{1,0:T(16,128)(2,1)}', space=vmem, size = 0x10000, scoped, tag = 'scratch operand']
  #allocation3 [shape = 'bf16[128,512]{1,0:T(16,128)(2,1)}', space=vmem, size = 0x20000, scoped, tag = 'scratch operand']
  #allocation4 [shape = 'bf16[128,512]{1,0:T(16,128)(2,1)}', space=vmem, size = 0x20000, scoped, tag = 'scratch operand']
  %s0 = inlined_call_operand.vmem [shape: s32[1,16,1], index: 0, kind: input, shape index: {}]
  %s1 = inlined_call_operand.vmem [shape: bf16[1,128,32], index: 1, kind: input, shape index: {}]
  %s2 = inlined_call_operand.hbm [shape: bf16[32,512], index: 2, kind: input, shape index: {}]
  %s3 = inlined_call_operand.hbm [shape: bf16[32,512], index: 3, kind: input, shape index: {}]
  %s4 = inlined_call_operand.hbm [shape: bf16[128,512], index: 4, kind: input, shape index: {}]
  %s5 = inlined_call_operand.hbm [shape: bf16[128,512], index: 5, kind: input, shape index: {}]
  %s6 = inlined_call_operand.vmem [shape: f32[1,512], index: 6, kind: input, shape index: {}]
  %s7 = inlined_call_operand.vmem [shape: f32[1,512], index: 7, kind: input, shape index: {}]
  %s8 = inlined_call_operand.hbm [shape: bf16[256,512], index: 8, kind: input, shape index: {}]
  %s9 = inlined_call_operand.hbm [shape: bf16[256,512], index: 9, kind: input, shape index: {}]
  %s10 = inlined_call_operand.hbm [shape: bf16[128,512], index: 10, kind: input, shape index: {}]
  %s11 = inlined_call_operand.hbm [shape: bf16[128,512], index: 11, kind: input, shape index: {}]
  %s12 = inlined_call_operand.vmem [shape: f32[1,512], index: 12, kind: input, shape index: {}]
  %s13 = inlined_call_operand.vmem [shape: f32[1,512], index: 13, kind: input, shape index: {}]
  %s14 = inlined_call_operand.vmem [shape: bf16[256,128], index: 14, kind: input, shape index: {}]
  %s15 = inlined_call_operand.vmem [shape: f32[1,128], index: 15, kind: input, shape index: {}]
  %s16 = inlined_call_operand.hbm [shape: f32[16,128], index: 16, kind: output, shape index: {}]
  %s17 = sld [smem:[#allocation0]]
  $region106: #{tpu_custom_call.1} parent=0
    _
  %s19 = ssub.s32 1, %s17
  %s20 = scalar_select 0, %s19, %s17
  $region1: #{tpu_custom_call.1} parent=0
    #allocation5 [shape = 'u8[32768]{0}', space=vmem, size = 0x8000, scoped, tag = 'input window, operand 2, single buffered']
    #allocation6 [shape = 's32[1]{0}', space=sflag, size = 0x4, scoped, tag = 'scoped memory for tpu_custom_call.1']
    #allocation7 [shape = 's32[1]{0}', space=sflag, size = 0x4, scoped, tag = 'scoped memory for tpu_custom_call.1']
    #allocation8 [shape = 'u8[32768]{0}', space=vmem, size = 0x8000, scoped, tag = 'input window, operand 3, single buffered']
    #allocation9 [shape = 's32[1]{0}', space=sflag, size = 0x4, scoped, tag = 'scoped memory for tpu_custom_call.1']
    #allocation10 [shape = 'u8[131072]{0}', space=vmem, size = 0x20000, scoped, tag = 'input window, operand 4, single buffered']
    #allocation11 [shape = 'u8[131072]{0}', space=vmem, size = 0x20000, scoped, tag = 'input window, operand 5, single buffered']
    #allocation12 [shape = 's32[1]{0}', space=sflag, size = 0x4, scoped, tag = 'scoped memory for tpu_custom_call.1']
    #allocation13 [shape = 'u8[262144]{0}', space=vmem, size = 0x40000, scoped, tag = 'input window, operand 8, single buffered']
    #allocation14 [shape = 'u8[262144]{0}', space=vmem, size = 0x40000, scoped, tag = 'input window, operand 9, single buffered']
    #allocation15 [shape = 's32[1]{0}', space=sflag, size = 0x4, scoped, tag = 'scoped memory for tpu_custom_call.1']
    #allocation16 [shape = 'u8[131072]{0}', space=vmem, size = 0x20000, scoped, tag = 'input window, operand 10, single buffered']
    #allocation17 [shape = 'u8[131072]{0}', space=vmem, size = 0x20000, scoped, tag = 'input window, operand 11, single buffered']
    #allocation18 [shape = 's32[1]{0}', space=sflag, size = 0x4, scoped, tag = 'scoped memory for tpu_custom_call.1']
    #allocation19 [shape = 'u8[8192]{0}', space=vmem, size = 0x2000, scoped, tag = 'output window, operand 0, single buffered']
    %21 = vsyncpa [#allocation6], 0
    %22 = vsyncpa [#allocation9], 0
    %23 = vsyncpa [#allocation12], 0
    %24 = vsyncpa [#allocation15], 0
    %25 = vsyncpa [#allocation18], 0
    %26 = vsyncpa [#allocation7], 0
    // Predicated region
    $region2: #{tpu_custom_call.1} parent=1 // pred_check
      _
    $region3: #{tpu_custom_call.1} parent=1 // pred_check_branch
      %28 = sbr.rel (0) target = $region5
    $region4: #{tpu_custom_call.1} parent=1 // pred_region
      _
    $region5: #{tpu_custom_call.1} parent=1 // pred_fallthru
      _
    // Predicated region
    $region6: #{tpu_custom_call.1} parent=1 // pred_check
      _
    $region7: #{tpu_custom_call.1} parent=1 // pred_check_branch
      %30 = sbr.rel (0) target = $region9
    $region8: #{tpu_custom_call.1} parent=1 // pred_region
      _
    $region9: #{tpu_custom_call.1} parent=1 // pred_fallthru
      _
    // Predicated region
    $region10: #{tpu_custom_call.1} parent=1 // pred_check
      _
    $region11: #{tpu_custom_call.1} parent=1 // pred_check_branch
      %32 = sbr.rel (0) target = $region13
    $region12: #{tpu_custom_call.1} parent=1 // pred_region
      %s34 = ssub.s32 1024, 1024
      %35 = vsyncadd [#allocation6], %s34
      %s36 = sshll.u32 [#allocation5], 4
      %s37 = int_to_ptr.vmem [resolvable:$true] %s36
      %42 = dma.hbm_to_vmem [thread:$0]  %s2, 1024, %s37, [#allocation6], 256, 256, 16
    $region13: #{tpu_custom_call.1} parent=1 // pred_fallthru
      _
    // Predicated region
    $region14: #{tpu_custom_call.1} parent=1 // pred_check
      _
    $region15: #{tpu_custom_call.1} parent=1 // pred_check_branch
      %44 = sbr.rel (0) target = $region17
    $region16: #{tpu_custom_call.1} parent=1 // pred_region
      %s46 = ssub.s32 1024, 1024
      %47 = vsyncadd [#allocation9], %s46
      %s48 = sshll.u32 [#allocation8], 4
      %s49 = int_to_ptr.vmem [resolvable:$true] %s48
      %54 = dma.hbm_to_vmem [thread:$0]  %s3, 1024, %s49, [#allocation9], 256, 256, 16
    $region17: #{tpu_custom_call.1} parent=1 // pred_fallthru
      _
    // Predicated region
    $region18: #{tpu_custom_call.1} parent=1 // pred_check
      _
    $region19: #{tpu_custom_call.1} parent=1 // pred_check_branch
      %56 = sbr.rel (0) target = $region21
    $region20: #{tpu_custom_call.1} parent=1 // pred_region
      %s58 = ssub.s32 4096, 4096
      %59 = vsyncadd [#allocation9], %s58
      %s60 = sshll.u32 [#allocation10], 4
      %s61 = int_to_ptr.vmem [resolvable:$true] %s60
      %66 = dma.hbm_to_vmem [thread:$0]  %s4, 4096, %s61, [#allocation9], 256, 256, 16
    $region21: #{tpu_custom_call.1} parent=1 // pred_fallthru
      _
    // Predicated region
    $region22: #{tpu_custom_call.1} parent=1 // pred_check
      _
    $region23: #{tpu_custom_call.1} parent=1 // pred_check_branch
      %68 = sbr.rel (0) target = $region25
    $region24: #{tpu_custom_call.1} parent=1 // pred_region
      %s70 = ssub.s32 4096, 4096
      %71 = vsyncadd [#allocation12], %s70
      %s72 = sshll.u32 [#allocation11], 4
      %s73 = int_to_ptr.vmem [resolvable:$true] %s72
      %78 = dma.hbm_to_vmem [thread:$0]  %s5, 4096, %s73, [#allocation12], 256, 256, 16
    $region25: #{tpu_custom_call.1} parent=1 // pred_fallthru
      _
    // Predicated region
    $region26: #{tpu_custom_call.1} parent=1 // pred_check
      _
    $region27: #{tpu_custom_call.1} parent=1 // pred_check_branch
      %80 = sbr.rel (0) target = $region29
    $region28: #{tpu_custom_call.1} parent=1 // pred_region
      _
    $region29: #{tpu_custom_call.1} parent=1 // pred_fallthru
      _
    // Predicated region
    $region30: #{tpu_custom_call.1} parent=1 // pred_check
      _
    $region31: #{tpu_custom_call.1} parent=1 // pred_check_branch
      %82 = sbr.rel (0) target = $region33
    $region32: #{tpu_custom_call.1} parent=1 // pred_region
      _
    $region33: #{tpu_custom_call.1} parent=1 // pred_fallthru
      _
    // Predicated region
    $region34: #{tpu_custom_call.1} parent=1 // pred_check
      _
    $region35: #{tpu_custom_call.1} parent=1 // pred_check_branch
      %84 = sbr.rel (0) target = $region37
    $region36: #{tpu_custom_call.1} parent=1 // pred_region
      %s86 = ssub.s32 8192, 8192
      %87 = vsyncadd [#allocation12], %s86
      %s88 = sshll.u32 [#allocation13], 4
      %s89 = int_to_ptr.vmem [resolvable:$true] %s88
      %94 = dma.hbm_to_vmem [thread:$0]  %s8, 8192, %s89, [#allocation12], 256, 256, 16
    $region37: #{tpu_custom_call.1} parent=1 // pred_fallthru
      _
    // Predicated region
    $region38: #{tpu_custom_call.1} parent=1 // pred_check
      _
    $region39: #{tpu_custom_call.1} parent=1 // pred_check_branch
      %96 = sbr.rel (0) target = $region41
    $region40: #{tpu_custom_call.1} parent=1 // pred_region
      %s98 = ssub.s32 8192, 8192
      %99 = vsyncadd [#allocation15], %s98
      %s100 = sshll.u32 [#allocation14], 4
      %s101 = int_to_ptr.vmem [resolvable:$true] %s100
      %106 = dma.hbm_to_vmem [thread:$0]  %s9, 8192, %s101, [#allocation15], 256, 256, 16
    $region41: #{tpu_custom_call.1} parent=1 // pred_fallthru
      _
    // Predicated region
    $region42: #{tpu_custom_call.1} parent=1 // pred_check
      _
    $region43: #{tpu_custom_call.1} parent=1 // pred_check_branch
      %108 = sbr.rel (0) target = $region45
    $region44: #{tpu_custom_call.1} parent=1 // pred_region
      %s110 = ssub.s32 4096, 4096
      %111 = vsyncadd [#allocation15], %s110
      %s112 = sshll.u32 [#allocation16], 4
      %s113 = int_to_ptr.vmem [resolvable:$true] %s112
      %118 = dma.hbm_to_vmem [thread:$0]  %s10, 4096, %s113, [#allocation15], 256, 256, 16
    $region45: #{tpu_custom_call.1} parent=1 // pred_fallthru
      _
    // Predicated region
    $region46: #{tpu_custom_call.1} parent=1 // pred_check
      _
    $region47: #{tpu_custom_call.1} parent=1 // pred_check_branch
      %120 = sbr.rel (0) target = $region49
    $region48: #{tpu_custom_call.1} parent=1 // pred_region
      %s122 = ssub.s32 4096, 4096
      %123 = vsyncadd [#allocation18], %s122
      %s124 = sshll.u32 [#allocation17], 4
      %s125 = int_to_ptr.vmem [resolvable:$true] %s124
      %130 = dma.hbm_to_vmem [thread:$0]  %s11, 4096, %s125, [#allocation18], 256, 256, 16
    $region49: #{tpu_custom_call.1} parent=1 // pred_fallthru
      _
    // Predicated region
    $region50: #{tpu_custom_call.1} parent=1 // pred_check
      _
    $region51: #{tpu_custom_call.1} parent=1 // pred_check_branch
      %132 = sbr.rel (0) target = $region53
    $region52: #{tpu_custom_call.1} parent=1 // pred_region
      _
    $region53: #{tpu_custom_call.1} parent=1 // pred_fallthru
      _
    // Predicated region
    $region54: #{tpu_custom_call.1} parent=1 // pred_check
      _
    $region55: #{tpu_custom_call.1} parent=1 // pred_check_branch
      %134 = sbr.rel (0) target = $region57
    $region56: #{tpu_custom_call.1} parent=1 // pred_region
      _
    $region57: #{tpu_custom_call.1} parent=1 // pred_fallthru
      _
    // Predicated region
    $region58: #{tpu_custom_call.1} parent=1 // pred_check
      _
    $region59: #{tpu_custom_call.1} parent=1 // pred_check_branch
      %136 = sbr.rel (0) target = $region61
    $region60: #{tpu_custom_call.1} parent=1 // pred_region
      _
    $region61: #{tpu_custom_call.1} parent=1 // pred_fallthru
      _
    // Predicated region
    $region62: #{tpu_custom_call.1} parent=1 // pred_check
      _
    $region63: #{tpu_custom_call.1} parent=1 // pred_check_branch
      %138 = sbr.rel (0) target = $region65
    $region64: #{tpu_custom_call.1} parent=1 // pred_region
      _
    $region65: #{tpu_custom_call.1} parent=1 // pred_fallthru
      _
    // Predicated region
    $region66: #{tpu_custom_call.1} parent=1 // pred_check
      _
    $region67: #{tpu_custom_call.1} parent=1 // pred_check_branch
      %140 = sbr.rel (0) target = $region69
    $region68: #{tpu_custom_call.1} parent=1 // pred_region
      %141 = dma.done [#allocation6], 1024
    $region69: #{tpu_custom_call.1} parent=1 // pred_fallthru
      _
    // Predicated region
    $region70: #{tpu_custom_call.1} parent=1 // pred_check
      _
    $region71: #{tpu_custom_call.1} parent=1 // pred_check_branch
      %143 = sbr.rel (0) target = $region73
    $region72: #{tpu_custom_call.1} parent=1 // pred_region
      %144 = dma.done [#allocation9], 1024
    $region73: #{tpu_custom_call.1} parent=1 // pred_fallthru
      _
    // Predicated region
    $region74: #{tpu_custom_call.1} parent=1 // pred_check
      _
    $region75: #{tpu_custom_call.1} parent=1 // pred_check_branch
      %146 = sbr.rel (0) target = $region77
    $region76: #{tpu_custom_call.1} parent=1 // pred_region
      %147 = dma.done [#allocation9], 4096
    $region77: #{tpu_custom_call.1} parent=1 // pred_fallthru
      _
    // Predicated region
    $region78: #{tpu_custom_call.1} parent=1 // pred_check
      _
    $region79: #{tpu_custom_call.1} parent=1 // pred_check_branch
      %149 = sbr.rel (0) target = $region81
    $region80: #{tpu_custom_call.1} parent=1 // pred_region
      %150 = dma.done [#allocation12], 4096
    $region81: #{tpu_custom_call.1} parent=1 // pred_fallthru
      _
    // Predicated region
    $region82: #{tpu_custom_call.1} parent=1 // pred_check
      _
    $region83: #{tpu_custom_call.1} parent=1 // pred_check_branch
      %152 = sbr.rel (0) target = $region85
    $region84: #{tpu_custom_call.1} parent=1 // pred_region
      %153 = dma.done [#allocation12], 8192
    $region85: #{tpu_custom_call.1} parent=1 // pred_fallthru
      _
    // Predicated region
    $region86: #{tpu_custom_call.1} parent=1 // pred_check
      _
    $region87: #{tpu_custom_call.1} parent=1 // pred_check_branch
      %155 = sbr.rel (0) target = $region89
    $region88: #{tpu_custom_call.1} parent=1 // pred_region
      %156 = dma.done [#allocation15], 8192
    $region89: #{tpu_custom_call.1} parent=1 // pred_fallthru
      _
    // Predicated region
    $region90: #{tpu_custom_call.1} parent=1 // pred_check
      _
    $region91: #{tpu_custom_call.1} parent=1 // pred_check_branch
      %158 = sbr.rel (0) target = $region93
    $region92: #{tpu_custom_call.1} parent=1 // pred_region
      %159 = dma.done [#allocation15], 4096
    $region93: #{tpu_custom_call.1} parent=1 // pred_fallthru
      _
    // Predicated region
    $region94: #{tpu_custom_call.1} parent=1 // pred_check
      _
    $region95: #{tpu_custom_call.1} parent=1 // pred_check_branch
      %161 = sbr.rel (0) target = $region97
    $region96: #{tpu_custom_call.1} parent=1 // pred_region
      %162 = dma.done [#allocation18], 4096
    $region97: #{tpu_custom_call.1} parent=1 // pred_fallthru
      _
    %v164 = vld [vmem:[%s0] sm:$0xff]
    %v165 = vld [vmem:[%s0 + $0x8] sm:$0xff]
    %vm166 = vcmp.gt.s32.totalorder %v164, 0
    %vm167 = vcmp.gt.s32.totalorder %v165, 0
    %vm168 = vcmp.gt.s32.totalorder %v164, 1
    %vm169 = vcmp.gt.s32.totalorder %v165, 1
    %vm170 = vcmp.gt.s32.totalorder %v164, 2
    %vm171 = vcmp.gt.s32.totalorder %v165, 2
    %vm172 = vcmp.gt.s32.totalorder %v164, 3
    %vm173 = vcmp.gt.s32.totalorder %v165, 3
    %vm174 = vcmp.gt.s32.totalorder %v164, 4
    %vm175 = vcmp.gt.s32.totalorder %v165, 4
    %vm176 = vcmp.gt.s32.totalorder %v164, 5
    %vm177 = vcmp.gt.s32.totalorder %v165, 5
    %vm178 = vcmp.gt.s32.totalorder %v164, 6
    %vm179 = vcmp.gt.s32.totalorder %v165, 6
    %vm180 = vcmp.gt.s32.totalorder %v164, 7
    %vm181 = vcmp.gt.s32.totalorder %v165, 7
    %v182 = vld [vmem:[%s1] sm:$0xf]
    %v183 = vld [vmem:[%s1 + $0x4] sm:$0xf]
    %v184 = vld [vmem:[%s1 + $0x8] sm:$0xf]
    %v185 = vld [vmem:[%s1 + $0xc] sm:$0xf]
    %v186 = vld [vmem:[%s1 + $0x10] sm:$0xf]
    %v187 = vld [vmem:[%s1 + $0x14] sm:$0xf]
    %v188 = vld [vmem:[%s1 + $0x18] sm:$0xf]
    %v189 = vld [vmem:[%s1 + $0x1c] sm:$0xf]
    %v190 = vld [vmem:[%s1 + $0x20] sm:$0xf]
    %v191 = vld [vmem:[%s1 + $0x24] sm:$0xf]
    %v192 = vld [vmem:[%s1 + $0x28] sm:$0xf]
    %v193 = vld [vmem:[%s1 + $0x2c] sm:$0xf]
    %v194 = vld [vmem:[%s1 + $0x30] sm:$0xf]
    %v195 = vld [vmem:[%s1 + $0x34] sm:$0xf]
    %v196 = vld [vmem:[%s1 + $0x38] sm:$0xf]
    %v197 = vld [vmem:[%s1 + $0x3c] sm:$0xf]
    %v198 = vld [vmem:[#allocation5] sm:$0xff]
    %v199 = vld [vmem:[#allocation5 + $0x8] sm:$0xff]
    %v200 = vld [vmem:[#allocation5 + $0x10] sm:$0xff]
    %v201 = vld [vmem:[#allocation5 + $0x18] sm:$0xff]
    %v202 = vld [vmem:[#allocation5 + $0x20] sm:$0xff]
    %v203 = vld [vmem:[#allocation5 + $0x28] sm:$0xff]
    %v204 = vld [vmem:[#allocation5 + $0x30] sm:$0xff]
    %v205 = vld [vmem:[#allocation5 + $0x38] sm:$0xff]
    %v206 = vld [vmem:[%s6] sm:$0xf]
    %v208 = vlaneseq
    %v209 = vshrl.u32 %v208, 7
    %v210 = vsub.s32 0, %v209
    %v211 = vrot.slane %v206, %v210
    %v212 = vlaneseq
    %v213 = vshrl.u32 %v212, 7
    %v214 = vsub.s32 1, %v213
    %v215 = vrot.slane %v206, %v214
    %v216 = vlaneseq
    %v217 = vshrl.u32 %v216, 7
    %v218 = vsub.s32 2, %v217
    %v219 = vrot.slane %v206, %v218
    %v220 = vlaneseq
    %v221 = vshrl.u32 %v220, 7
    %v222 = vsub.s32 3, %v221
    %v223 = vrot.slane %v206, %v222
    %v244 = vunpack.c.l.b16 %v182
    %v245 = vunpack.c.l.b16 %v183
    %v246 = vunpack.c.l.b16 %v184
    %v247 = vunpack.c.l.b16 %v185
    %v248 = vunpack.c.l.b16 %v186
    %v249 = vunpack.c.l.b16 %v187
    %v250 = vunpack.c.l.b16 %v188
    %v251 = vunpack.c.l.b16 %v189
    %v252 = vunpack.c.l.b16 %v190
    %v253 = vunpack.c.l.b16 %v191
    %v254 = vunpack.c.l.b16 %v192
    %v255 = vunpack.c.l.b16 %v193
    %v256 = vunpack.c.l.b16 %v194
    %v257 = vunpack.c.l.b16 %v195
    %v258 = vunpack.c.l.b16 %v196
    %v259 = vunpack.c.l.b16 %v197
    %v260 = vpack.c.b16 %v245, %v244
    %v261 = vpack.c.b16 %v247, %v246
    %v262 = vpack.c.b16 %v249, %v248
    %v263 = vpack.c.b16 %v251, %v250
    %v264 = vpack.c.b16 %v253, %v252
    %v265 = vpack.c.b16 %v255, %v254
    %v266 = vpack.c.b16 %v257, %v256
    %v267 = vpack.c.b16 %v259, %v258
    %v276 = vunpack.c.l.b16 %v198
    %v277 = vunpack.c.h.b16 %v198
    %v278 = vunpack.c.l.b16 %v199
    %v279 = vunpack.c.h.b16 %v199
    %v280 = vunpack.c.l.b16 %v200
    %v281 = vunpack.c.h.b16 %v200
    %v282 = vunpack.c.l.b16 %v201
    %v283 = vunpack.c.h.b16 %v201
    %v284 = vunpack.c.l.b16 %v202
    %v285 = vunpack.c.h.b16 %v202
    %v286 = vunpack.c.l.b16 %v203
    %v287 = vunpack.c.h.b16 %v203
    %v288 = vunpack.c.l.b16 %v204
    %v289 = vunpack.c.h.b16 %v204
    %v290 = vunpack.c.l.b16 %v205
    %v291 = vunpack.c.h.b16 %v205
    %v292 = vpack.c.b16 %v280, %v276
    %v293 = vpack.c.b16 %v281, %v277
    %v294 = vpack.c.b16 %v282, %v278
    %v295 = vpack.c.b16 %v283, %v279
    %v296 = vpack.c.b16 %v288, %v284
    %v297 = vpack.c.b16 %v289, %v285
    %v298 = vpack.c.b16 %v290, %v286
    %v299 = vpack.c.b16 %v291, %v287
    %vm308 = vcmask 261120
    %v310 = vsel %vm308, %v260, 0
    %v313 = vsel %vm308, %v261, 0
    %v316 = vsel %vm308, %v262, 0
    %v319 = vsel %vm308, %v263, 0
    %v322 = vsel %vm308, %v264, 0
    %v325 = vsel %vm308, %v265, 0
    %v328 = vsel %vm308, %v266, 0
    %v331 = vsel %vm308, %v267, 0
    %333 = vmatprep.subr.bf16.mxu0 %v293
    %334 = vmatpush1.bf16.msra.mxu0 %v292
    %335 = vmatprep.subr.bf16.mxu0 %v297
    %336 = vmatpush1.bf16.msra.mxu0 %v296
    %337 = vmatprep.subr.bf16.mxu0 0
    %338 = vmatpush1.bf16.msra.mxu0 0
    %339 = vmatprep.subr.bf16.mxu0 0
    %340 = vmatpush1.bf16.msra.mxu0 0
    %341 = vmatprep.subr.bf16.mxu0 0
    %342 = vmatpush1.bf16.msra.mxu0 0
    %343 = vmatprep.subr.bf16.mxu0 0
    %344 = vmatpush1.bf16.msra.mxu0 0
    %345 = vmatprep.subr.bf16.mxu0 0
    %346 = vmatpush1.bf16.msra.mxu0 0
    %347 = vmatprep.subr.bf16.mxu0 0
    %348 = vmatpush1.bf16.msra.mxu0 0
    %349 = vmatprep.subr.bf16.mxu0 0
    %350 = vmatpush1.bf16.msra.mxu0 0
    %351 = vmatprep.subr.bf16.mxu0 0
    %352 = vmatpush1.bf16.msra.mxu0 0
    %353 = vmatprep.subr.bf16.mxu0 0
    %354 = vmatpush1.bf16.msra.mxu0 0
    %355 = vmatprep.subr.bf16.mxu0 0
    %356 = vmatpush1.bf16.msra.mxu0 0
    %357 = vmatprep.subr.bf16.mxu0 0
    %358 = vmatpush1.bf16.msra.mxu0 0
    %359 = vmatprep.subr.bf16.mxu0 0
    %360 = vmatpush1.bf16.msra.mxu0 0
    %361 = vmatprep.subr.bf16.mxu0 0
    %362 = vmatpush1.bf16.msra.mxu0 0
    %363 = vmatprep.subr.bf16.mxu0 0
    %364 = vmatpush1.bf16.msra.mxu0 0
    %365 = vmatprep.mubr.bf16.mxu0 0
    %366 = vmatmul.mubr.bf16.gmra.mrb[0].mxu0 %v310
    %v367 = vpop.f32.mrb[0].mxu0
    %v368 = vadd.f32 %v211, %v367
    %v369 = vpop.f32.mrb[0].mxu0
    %v370 = vadd.f32 %v215, %v369
    %v371 = vpop.f32.mrb[0].mxu0
    %v372 = vadd.f32 %v211, %v371
    %v373 = vpop.f32.mrb[0].mxu0
    %v374 = vadd.f32 %v215, %v373
    %375 = vmatprep.mubr.bf16.mxu0 0
    %376 = vmatmul.mubr.bf16.gmra.mrb[0].mxu0 %v313
    %v377 = vpop.f32.mrb[0].mxu0
    %v378 = vadd.f32 %v211, %v377
    %v379 = vpop.f32.mrb[0].mxu0
    %v380 = vadd.f32 %v215, %v379
    %v381 = vpop.f32.mrb[0].mxu0
    %v382 = vadd.f32 %v211, %v381
    %v383 = vpop.f32.mrb[0].mxu0
    %v384 = vadd.f32 %v215, %v383
    %385 = vmatprep.mubr.bf16.mxu0 0
    %386 = vmatmul.mubr.bf16.gmra.mrb[0].mxu0 %v316
    %v387 = vpop.f32.mrb[0].mxu0
    %v388 = vadd.f32 %v211, %v387
    %v389 = vpop.f32.mrb[0].mxu0
    %v390 = vadd.f32 %v215, %v389
    %v391 = vpop.f32.mrb[0].mxu0
    %v392 = vadd.f32 %v211, %v391
    %v393 = vpop.f32.mrb[0].mxu0
    %v394 = vadd.f32 %v215, %v393
    %395 = vmatprep.mubr.bf16.mxu0 0
    %396 = vmatmul.mubr.bf16.gmra.mrb[0].mxu0 %v319
    %v397 = vpop.f32.mrb[0].mxu0
    %v398 = vadd.f32 %v211, %v397
    %v399 = vpop.f32.mrb[0].mxu0
    %v400 = vadd.f32 %v215, %v399
    %v401 = vpop.f32.mrb[0].mxu0
    %v402 = vadd.f32 %v211, %v401
    %v403 = vpop.f32.mrb[0].mxu0
    %v404 = vadd.f32 %v215, %v403
    %405 = vmatprep.mubr.bf16.mxu0 0
    %406 = vmatmul.mubr.bf16.gmra.mrb[0].mxu0 %v322
    %v407 = vpop.f32.mrb[0].mxu0
    %v408 = vadd.f32 %v211, %v407
    %v409 = vpop.f32.mrb[0].mxu0
    %v410 = vadd.f32 %v215, %v409
    %v411 = vpop.f32.mrb[0].mxu0
    %v412 = vadd.f32 %v211, %v411
    %v413 = vpop.f32.mrb[0].mxu0
    %v414 = vadd.f32 %v215, %v413
    %415 = vmatprep.mubr.bf16.mxu0 0
    %416 = vmatmul.mubr.bf16.gmra.mrb[0].mxu0 %v325
    %v417 = vpop.f32.mrb[0].mxu0
    %v418 = vadd.f32 %v211, %v417
    %v419 = vpop.f32.mrb[0].mxu0
    %v420 = vadd.f32 %v215, %v419
    %v421 = vpop.f32.mrb[0].mxu0
    %v422 = vadd.f32 %v211, %v421
    %v423 = vpop.f32.mrb[0].mxu0
    %v424 = vadd.f32 %v215, %v423
    %425 = vmatprep.mubr.bf16.mxu0 0
    %426 = vmatmul.mubr.bf16.gmra.mrb[0].mxu0 %v328
    %v427 = vpop.f32.mrb[0].mxu0
    %v428 = vadd.f32 %v211, %v427
    %v429 = vpop.f32.mrb[0].mxu0
    %v430 = vadd.f32 %v215, %v429
    %v431 = vpop.f32.mrb[0].mxu0
    %v432 = vadd.f32 %v211, %v431
    %v433 = vpop.f32.mrb[0].mxu0
    %v434 = vadd.f32 %v215, %v433
    %435 = vmatprep.mubr.bf16.mxu0 0
    %436 = vmatmul.mubr.bf16.gmra.mrb[0].mxu0 %v331
    %v437 = vpop.f32.mrb[0].mxu0
    %v438 = vadd.f32 %v211, %v437
    %v439 = vpop.f32.mrb[0].mxu0
    %v440 = vadd.f32 %v215, %v439
    %v441 = vpop.f32.mrb[0].mxu0
    %v442 = vadd.f32 %v211, %v441
    %v443 = vpop.f32.mrb[0].mxu0
    %v444 = vadd.f32 %v215, %v443
    %445 = vdwg.mxu0
    %446 = vmatprep.subr.bf16.mxu0 %v295
    %447 = vmatpush1.bf16.msra.mxu0 %v294
    %448 = vmatprep.subr.bf16.mxu0 %v299
    %449 = vmatpush1.bf16.msra.mxu0 %v298
    %450 = vmatprep.subr.bf16.mxu0 0
    %451 = vmatpush1.bf16.msra.mxu0 0
    %452 = vmatprep.subr.bf16.mxu0 0
    %453 = vmatpush1.bf16.msra.mxu0 0
    %454 = vmatprep.subr.bf16.mxu0 0
    %455 = vmatpush1.bf16.msra.mxu0 0
    %456 = vmatprep.subr.bf16.mxu0 0
    %457 = vmatpush1.bf16.msra.mxu0 0
    %458 = vmatprep.subr.bf16.mxu0 0
    %459 = vmatpush1.bf16.msra.mxu0 0
    %460 = vmatprep.subr.bf16.mxu0 0
    %461 = vmatpush1.bf16.msra.mxu0 0
    %462 = vmatprep.subr.bf16.mxu0 0
    %463 = vmatpush1.bf16.msra.mxu0 0
    %464 = vmatprep.subr.bf16.mxu0 0
    %465 = vmatpush1.bf16.msra.mxu0 0
    %466 = vmatprep.subr.bf16.mxu0 0
    %467 = vmatpush1.bf16.msra.mxu0 0
    %468 = vmatprep.subr.bf16.mxu0 0
    %469 = vmatpush1.bf16.msra.mxu0 0
    %470 = vmatprep.subr.bf16.mxu0 0
    %471 = vmatpush1.bf16.msra.mxu0 0
    %472 = vmatprep.subr.bf16.mxu0 0
    %473 = vmatpush1.bf16.msra.mxu0 0
    %474 = vmatprep.subr.bf16.mxu0 0
    %475 = vmatpush1.bf16.msra.mxu0 0
    %476 = vmatprep.subr.bf16.mxu0 0
    %477 = vmatpush1.bf16.msra.mxu0 0
    %478 = vmatprep.mubr.bf16.mxu0 0
    %479 = vmatmul.mubr.bf16.gmra.mrb[0].mxu0 %v310
    %v480 = vpop.f32.mrb[0].mxu0
    %v481 = vadd.f32 %v219, %v480
    %v482 = vpop.f32.mrb[0].mxu0
    %v483 = vadd.f32 %v223, %v482
    %v484 = vpop.f32.mrb[0].mxu0
    %v485 = vadd.f32 %v219, %v484
    %v486 = vpop.f32.mrb[0].mxu0
    %v487 = vadd.f32 %v223, %v486
    %488 = vmatprep.mubr.bf16.mxu0 0
    %489 = vmatmul.mubr.bf16.gmra.mrb[0].mxu0 %v313
    %v490 = vpop.f32.mrb[0].mxu0
    %v491 = vadd.f32 %v219, %v490
    %v492 = vpop.f32.mrb[0].mxu0
    %v493 = vadd.f32 %v223, %v492
    %v494 = vpop.f32.mrb[0].mxu0
    %v495 = vadd.f32 %v219, %v494
    %v496 = vpop.f32.mrb[0].mxu0
    %v497 = vadd.f32 %v223, %v496
    %498 = vmatprep.mubr.bf16.mxu0 0
    %499 = vmatmul.mubr.bf16.gmra.mrb[0].mxu0 %v316
    %v500 = vpop.f32.mrb[0].mxu0
    %v501 = vadd.f32 %v219, %v500
    %v502 = vpop.f32.mrb[0].mxu0
    %v503 = vadd.f32 %v223, %v502
    %v504 = vpop.f32.mrb[0].mxu0
    %v505 = vadd.f32 %v219, %v504
    %v506 = vpop.f32.mrb[0].mxu0
    %v507 = vadd.f32 %v223, %v506
    %508 = vmatprep.mubr.bf16.mxu0 0
    %509 = vmatmul.mubr.bf16.gmra.mrb[0].mxu0 %v319
    %v510 = vpop.f32.mrb[0].mxu0
    %v511 = vadd.f32 %v219, %v510
    %v512 = vpop.f32.mrb[0].mxu0
    %v513 = vadd.f32 %v223, %v512
    %v514 = vpop.f32.mrb[0].mxu0
    %v515 = vadd.f32 %v219, %v514
    %v516 = vpop.f32.mrb[0].mxu0
    %v517 = vadd.f32 %v223, %v516
    %518 = vmatprep.mubr.bf16.mxu0 0
    %519 = vmatmul.mubr.bf16.gmra.mrb[0].mxu0 %v322
    %v520 = vpop.f32.mrb[0].mxu0
    %v521 = vadd.f32 %v219, %v520
    %v522 = vpop.f32.mrb[0].mxu0
    %v523 = vadd.f32 %v223, %v522
    %v524 = vpop.f32.mrb[0].mxu0
    %v525 = vadd.f32 %v219, %v524
    %v526 = vpop.f32.mrb[0].mxu0
    %v527 = vadd.f32 %v223, %v526
    %528 = vmatprep.mubr.bf16.mxu0 0
    %529 = vmatmul.mubr.bf16.gmra.mrb[0].mxu0 %v325
    %v530 = vpop.f32.mrb[0].mxu0
    %v531 = vadd.f32 %v219, %v530
    %v532 = vpop.f32.mrb[0].mxu0
    %v533 = vadd.f32 %v223, %v532
    %v534 = vpop.f32.mrb[0].mxu0
    %v535 = vadd.f32 %v219, %v534
    %v536 = vpop.f32.mrb[0].mxu0
    %v537 = vadd.f32 %v223, %v536
    %538 = vmatprep.mubr.bf16.mxu0 0
    %539 = vmatmul.mubr.bf16.gmra.mrb[0].mxu0 %v328
    %v540 = vpop.f32.mrb[0].mxu0
    %v541 = vadd.f32 %v219, %v540
    %v542 = vpop.f32.mrb[0].mxu0
    %v543 = vadd.f32 %v223, %v542
    %v544 = vpop.f32.mrb[0].mxu0
    %v545 = vadd.f32 %v219, %v544
    %v546 = vpop.f32.mrb[0].mxu0
    %v547 = vadd.f32 %v223, %v546
    %548 = vmatprep.mubr.bf16.mxu0 0
    %549 = vmatmul.mubr.bf16.gmra.mrb[0].mxu0 %v331
    %v550 = vpop.f32.mrb[0].mxu0
    %v551 = vadd.f32 %v219, %v550
    %v552 = vpop.f32.mrb[0].mxu0
    %v553 = vadd.f32 %v223, %v552
    %v554 = vpop.f32.mrb[0].mxu0
    %v555 = vadd.f32 %v219, %v554
    %v556 = vpop.f32.mrb[0].mxu0
    %v557 = vadd.f32 %v223, %v556
    %558 = vdwg.mxu0
    %v559 = vld [vmem:[#allocation8] sm:$0xff]
    %v560 = vld [vmem:[#allocation8 + $0x8] sm:$0xff]
    %v561 = vld [vmem:[#allocation8 + $0x10] sm:$0xff]
    %v562 = vld [vmem:[#allocation8 + $0x18] sm:$0xff]
    %v563 = vld [vmem:[#allocation8 + $0x20] sm:$0xff]
    %v564 = vld [vmem:[#allocation8 + $0x28] sm:$0xff]
    %v565 = vld [vmem:[#allocation8 + $0x30] sm:$0xff]
    %v566 = vld [vmem:[#allocation8 + $0x38] sm:$0xff]
    %v567 = vld [vmem:[%s7] sm:$0xf]
    %v569 = vlaneseq
    %v570 = vshrl.u32 %v569, 7
    %v571 = vsub.s32 0, %v570
    %v572 = vrot.slane %v567, %v571
    %v573 = vlaneseq
    %v574 = vshrl.u32 %v573, 7
    %v575 = vsub.s32 1, %v574
    %v576 = vrot.slane %v567, %v575
    %v577 = vlaneseq
    %v578 = vshrl.u32 %v577, 7
    %v579 = vsub.s32 2, %v578
    %v580 = vrot.slane %v567, %v579
    %v581 = vlaneseq
    %v582 = vshrl.u32 %v581, 7
    %v583 = vsub.s32 3, %v582
    %v584 = vrot.slane %v567, %v583
    %v597 = vunpack.c.l.b16 %v559
    %v598 = vunpack.c.h.b16 %v559
    %v599 = vunpack.c.l.b16 %v560
    %v600 = vunpack.c.h.b16 %v560
    %v601 = vunpack.c.l.b16 %v561
    %v602 = vunpack.c.h.b16 %v561
    %v603 = vunpack.c.l.b16 %v562
    %v604 = vunpack.c.h.b16 %v562
    %v605 = vunpack.c.l.b16 %v563
    %v606 = vunpack.c.h.b16 %v563
    %v607 = vunpack.c.l.b16 %v564
    %v608 = vunpack.c.h.b16 %v564
    %v609 = vunpack.c.l.b16 %v565
    %v610 = vunpack.c.h.b16 %v565
    %v611 = vunpack.c.l.b16 %v566
    %v612 = vunpack.c.h.b16 %v566
    %v613 = vpack.c.b16 %v601, %v597
    %v614 = vpack.c.b16 %v602, %v598
    %v615 = vpack.c.b16 %v603, %v599
    %v616 = vpack.c.b16 %v604, %v600
    %v617 = vpack.c.b16 %v609, %v605
    %v618 = vpack.c.b16 %v610, %v606
    %v619 = vpack.c.b16 %v611, %v607
    %v620 = vpack.c.b16 %v612, %v608
    %629 = vmatprep.subr.bf16.mxu0 %v614
    %630 = vmatpush1.bf16.msra.mxu0 %v613
    %631 = vmatprep.subr.bf16.mxu0 %v618
    %632 = vmatpush1.bf16.msra.mxu0 %v617
    %633 = vmatprep.subr.bf16.mxu0 0
    %634 = vmatpush1.bf16.msra.mxu0 0
    %635 = vmatprep.subr.bf16.mxu0 0
    %636 = vmatpush1.bf16.msra.mxu0 0
    %637 = vmatprep.subr.bf16.mxu0 0
    %638 = vmatpush1.bf16.msra.mxu0 0
    %639 = vmatprep.subr.bf16.mxu0 0
    %640 = vmatpush1.bf16.msra.mxu0 0
    %641 = vmatprep.subr.bf16.mxu0 0
    %642 = vmatpush1.bf16.msra.mxu0 0
    %643 = vmatprep.subr.bf16.mxu0 0
    %644 = vmatpush1.bf16.msra.mxu0 0
    %645 = vmatprep.subr.bf16.mxu0 0
    %646 = vmatpush1.bf16.msra.mxu0 0
    %647 = vmatprep.subr.bf16.mxu0 0
    %648 = vmatpush1.bf16.msra.mxu0 0
    %649 = vmatprep.subr.bf16.mxu0 0
    %650 = vmatpush1.bf16.msra.mxu0 0
    %651 = vmatprep.subr.bf16.mxu0 0
    %652 = vmatpush1.bf16.msra.mxu0 0
    %653 = vmatprep.subr.bf16.mxu0 0
    %654 = vmatpush1.bf16.msra.mxu0 0
    %655 = vmatprep.subr.bf16.mxu0 0
    %656 = vmatpush1.bf16.msra.mxu0 0
    %657 = vmatprep.subr.bf16.mxu0 0
    %658 = vmatpush1.bf16.msra.mxu0 0
    %659 = vmatprep.subr.bf16.mxu0 0
    %660 = vmatpush1.bf16.msra.mxu0 0
    %661 = vmatprep.mubr.bf16.mxu0 0
    %662 = vmatmul.mubr.bf16.gmra.mrb[0].mxu0 %v310
    %v663 = vpop.f32.mrb[0].mxu0
    %v664 = vadd.f32 %v572, %v663
    %v665 = vpop.f32.mrb[0].mxu0
    %v666 = vadd.f32 %v576, %v665
    %v667 = vpop.f32.mrb[0].mxu0
    %v668 = vadd.f32 %v572, %v667
    %v669 = vpop.f32.mrb[0].mxu0
    %v670 = vadd.f32 %v576, %v669
    %671 = vmatprep.mubr.bf16.mxu0 0
    %672 = vmatmul.mubr.bf16.gmra.mrb[0].mxu0 %v313
    %v673 = vpop.f32.mrb[0].mxu0
    %v674 = vadd.f32 %v572, %v673
    %v675 = vpop.f32.mrb[0].mxu0
    %v676 = vadd.f32 %v576, %v675
    %v677 = vpop.f32.mrb[0].mxu0
    %v678 = vadd.f32 %v572, %v677
    %v679 = vpop.f32.mrb[0].mxu0
    %v680 = vadd.f32 %v576, %v679
    %681 = vmatprep.mubr.bf16.mxu0 0
    %682 = vmatmul.mubr.bf16.gmra.mrb[0].mxu0 %v316
    %v683 = vpop.f32.mrb[0].mxu0
    %v684 = vadd.f32 %v572, %v683
    %v685 = vpop.f32.mrb[0].mxu0
    %v686 = vadd.f32 %v576, %v685
    %v687 = vpop.f32.mrb[0].mxu0
    %v688 = vadd.f32 %v572, %v687
    %v689 = vpop.f32.mrb[0].mxu0
    %v690 = vadd.f32 %v576, %v689
    %691 = vmatprep.mubr.bf16.mxu0 0
    %692 = vmatmul.mubr.bf16.gmra.mrb[0].mxu0 %v319
    %v693 = vpop.f32.mrb[0].mxu0
    %v694 = vadd.f32 %v572, %v693
    %v695 = vpop.f32.mrb[0].mxu0
    %v696 = vadd.f32 %v576, %v695
    %v697 = vpop.f32.mrb[0].mxu0
    %v698 = vadd.f32 %v572, %v697
    %v699 = vpop.f32.mrb[0].mxu0
    %v700 = vadd.f32 %v576, %v699
    %701 = vmatprep.mubr.bf16.mxu0 0
    %702 = vmatmul.mubr.bf16.gmra.mrb[0].mxu0 %v322
    %v703 = vpop.f32.mrb[0].mxu0
    %v704 = vadd.f32 %v572, %v703
    %v705 = vpop.f32.mrb[0].mxu0
    %v706 = vadd.f32 %v576, %v705
    %v707 = vpop.f32.mrb[0].mxu0
    %v708 = vadd.f32 %v572, %v707
    %v709 = vpop.f32.mrb[0].mxu0
    %v710 = vadd.f32 %v576, %v709
    %711 = vmatprep.mubr.bf16.mxu0 0
    %712 = vmatmul.mubr.bf16.gmra.mrb[0].mxu0 %v325
    %v713 = vpop.f32.mrb[0].mxu0
    %v714 = vadd.f32 %v572, %v713
    %v715 = vpop.f32.mrb[0].mxu0
    %v716 = vadd.f32 %v576, %v715
    %v717 = vpop.f32.mrb[0].mxu0
    %v718 = vadd.f32 %v572, %v717
    %v719 = vpop.f32.mrb[0].mxu0
    %v720 = vadd.f32 %v576, %v719
    %721 = vmatprep.mubr.bf16.mxu0 0
    %722 = vmatmul.mubr.bf16.gmra.mrb[0].mxu0 %v328
    %v723 = vpop.f32.mrb[0].mxu0
    %v724 = vadd.f32 %v572, %v723
    %v725 = vpop.f32.mrb[0].mxu0
    %v726 = vadd.f32 %v576, %v725
    %v727 = vpop.f32.mrb[0].mxu0
    %v728 = vadd.f32 %v572, %v727
    %v729 = vpop.f32.mrb[0].mxu0
    %v730 = vadd.f32 %v576, %v729
    %731 = vmatprep.mubr.bf16.mxu0 0
    %732 = vmatmul.mubr.bf16.gmra.mrb[0].mxu0 %v331
    %v733 = vpop.f32.mrb[0].mxu0
    %v734 = vadd.f32 %v572, %v733
    %v735 = vpop.f32.mrb[0].mxu0
    %v736 = vadd.f32 %v576, %v735
    %v737 = vpop.f32.mrb[0].mxu0
    %v738 = vadd.f32 %v572, %v737
    %v739 = vpop.f32.mrb[0].mxu0
    %v740 = vadd.f32 %v576, %v739
    %741 = vdwg.mxu0
    %742 = vmatprep.subr.bf16.mxu0 %v616
    %743 = vmatpush1.bf16.msra.mxu0 %v615
    %744 = vmatprep.subr.bf16.mxu0 %v620
    %745 = vmatpush1.bf16.msra.mxu0 %v619
    %746 = vmatprep.subr.bf16.mxu0 0
    %747 = vmatpush1.bf16.msra.mxu0 0
    %748 = vmatprep.subr.bf16.mxu0 0
    %749 = vmatpush1.bf16.msra.mxu0 0
    %750 = vmatprep.subr.bf16.mxu0 0
    %751 = vmatpush1.bf16.msra.mxu0 0
    %752 = vmatprep.subr.bf16.mxu0 0
    %753 = vmatpush1.bf16.msra.mxu0 0
    %754 = vmatprep.subr.bf16.mxu0 0
    %755 = vmatpush1.bf16.msra.mxu0 0
    %756 = vmatprep.subr.bf16.mxu0 0
    %757 = vmatpush1.bf16.msra.mxu0 0
    %758 = vmatprep.subr.bf16.mxu0 0
    %759 = vmatpush1.bf16.msra.mxu0 0
    %760 = vmatprep.subr.bf16.mxu0 0
    %761 = vmatpush1.bf16.msra.mxu0 0
    %762 = vmatprep.subr.bf16.mxu0 0
    %763 = vmatpush1.bf16.msra.mxu0 0
    %764 = vmatprep.subr.bf16.mxu0 0
    %765 = vmatpush1.bf16.msra.mxu0 0
    %766 = vmatprep.subr.bf16.mxu0 0
    %767 = vmatpush1.bf16.msra.mxu0 0
    %768 = vmatprep.subr.bf16.mxu0 0
    %769 = vmatpush1.bf16.msra.mxu0 0
    %770 = vmatprep.subr.bf16.mxu0 0
    %771 = vmatpush1.bf16.msra.mxu0 0
    %772 = vmatprep.subr.bf16.mxu0 0
    %773 = vmatpush1.bf16.msra.mxu0 0
    %774 = vmatprep.mubr.bf16.mxu0 0
    %775 = vmatmul.mubr.bf16.gmra.mrb[0].mxu0 %v310
    %v776 = vpop.f32.mrb[0].mxu0
    %v777 = vadd.f32 %v580, %v776
    %v778 = vpop.f32.mrb[0].mxu0
    %v779 = vadd.f32 %v584, %v778
    %v780 = vpop.f32.mrb[0].mxu0
    %v781 = vadd.f32 %v580, %v780
    %v782 = vpop.f32.mrb[0].mxu0
    %v783 = vadd.f32 %v584, %v782
    %784 = vmatprep.mubr.bf16.mxu0 0
    %785 = vmatmul.mubr.bf16.gmra.mrb[0].mxu0 %v313
    %v786 = vpop.f32.mrb[0].mxu0
    %v787 = vadd.f32 %v580, %v786
    %v788 = vpop.f32.mrb[0].mxu0
    %v789 = vadd.f32 %v584, %v788
    %v790 = vpop.f32.mrb[0].mxu0
    %v791 = vadd.f32 %v580, %v790
    %v792 = vpop.f32.mrb[0].mxu0
    %v793 = vadd.f32 %v584, %v792
    %794 = vmatprep.mubr.bf16.mxu0 0
    %795 = vmatmul.mubr.bf16.gmra.mrb[0].mxu0 %v316
    %v796 = vpop.f32.mrb[0].mxu0
    %v797 = vadd.f32 %v580, %v796
    %v798 = vpop.f32.mrb[0].mxu0
    %v799 = vadd.f32 %v584, %v798
    %v800 = vpop.f32.mrb[0].mxu0
    %v801 = vadd.f32 %v580, %v800
    %v802 = vpop.f32.mrb[0].mxu0
    %v803 = vadd.f32 %v584, %v802
    %804 = vmatprep.mubr.bf16.mxu0 0
    %805 = vmatmul.mubr.bf16.gmra.mrb[0].mxu0 %v319
    %v806 = vpop.f32.mrb[0].mxu0
    %v807 = vadd.f32 %v580, %v806
    %v808 = vpop.f32.mrb[0].mxu0
    %v809 = vadd.f32 %v584, %v808
    %v810 = vpop.f32.mrb[0].mxu0
    %v811 = vadd.f32 %v580, %v810
    %v812 = vpop.f32.mrb[0].mxu0
    %v813 = vadd.f32 %v584, %v812
    %814 = vmatprep.mubr.bf16.mxu0 0
    %815 = vmatmul.mubr.bf16.gmra.mrb[0].mxu0 %v322
    %v816 = vpop.f32.mrb[0].mxu0
    %v817 = vadd.f32 %v580, %v816
    %v818 = vpop.f32.mrb[0].mxu0
    %v819 = vadd.f32 %v584, %v818
    %v820 = vpop.f32.mrb[0].mxu0
    %v821 = vadd.f32 %v580, %v820
    %v822 = vpop.f32.mrb[0].mxu0
    %v823 = vadd.f32 %v584, %v822
    %824 = vmatprep.mubr.bf16.mxu0 0
    %825 = vmatmul.mubr.bf16.gmra.mrb[0].mxu0 %v325
    %v826 = vpop.f32.mrb[0].mxu0
    %v827 = vadd.f32 %v580, %v826
    %v828 = vpop.f32.mrb[0].mxu0
    %v829 = vadd.f32 %v584, %v828
    %v830 = vpop.f32.mrb[0].mxu0
    %v831 = vadd.f32 %v580, %v830
    %v832 = vpop.f32.mrb[0].mxu0
    %v833 = vadd.f32 %v584, %v832
    %834 = vmatprep.mubr.bf16.mxu0 0
    %835 = vmatmul.mubr.bf16.gmra.mrb[0].mxu0 %v328
    %v836 = vpop.f32.mrb[0].mxu0
    %v837 = vadd.f32 %v580, %v836
    %v838 = vpop.f32.mrb[0].mxu0
    %v839 = vadd.f32 %v584, %v838
    %v840 = vpop.f32.mrb[0].mxu0
    %v841 = vadd.f32 %v580, %v840
    %v842 = vpop.f32.mrb[0].mxu0
    %v843 = vadd.f32 %v584, %v842
    %844 = vmatprep.mubr.bf16.mxu0 0
    %845 = vmatmul.mubr.bf16.gmra.mrb[0].mxu0 %v331
    %v846 = vpop.f32.mrb[0].mxu0
    %v847 = vadd.f32 %v580, %v846
    %v848 = vpop.f32.mrb[0].mxu0
    %v849 = vadd.f32 %v584, %v848
    %v850 = vpop.f32.mrb[0].mxu0
    %v851 = vadd.f32 %v580, %v850
    %v852 = vpop.f32.mrb[0].mxu0
    %v853 = vadd.f32 %v584, %v852
    %854 = vdwg.mxu0
    %v855 = vpack.c.bf16 %v372, %v368
    %v856 = vpack.c.bf16 %v374, %v370
    %v857 = vpack.c.bf16 %v485, %v481
    %v858 = vpack.c.bf16 %v487, %v483
    %v859 = vpack.c.bf16 %v382, %v378
    %v860 = vpack.c.bf16 %v384, %v380
    %v861 = vpack.c.bf16 %v495, %v491
    %v862 = vpack.c.bf16 %v497, %v493
    %v863 = vpack.c.bf16 %v392, %v388
    %v864 = vpack.c.bf16 %v394, %v390
    %v865 = vpack.c.bf16 %v505, %v501
    %v866 = vpack.c.bf16 %v507, %v503
    %v867 = vpack.c.bf16 %v402, %v398
    %v868 = vpack.c.bf16 %v404, %v400
    %v869 = vpack.c.bf16 %v515, %v511
    %v870 = vpack.c.bf16 %v517, %v513
    %v871 = vpack.c.bf16 %v412, %v408
    %v872 = vpack.c.bf16 %v414, %v410
    %v873 = vpack.c.bf16 %v525, %v521
    %v874 = vpack.c.bf16 %v527, %v523
    %v875 = vpack.c.bf16 %v422, %v418
    %v876 = vpack.c.bf16 %v424, %v420
    %v877 = vpack.c.bf16 %v535, %v531
    %v878 = vpack.c.bf16 %v537, %v533
    %v879 = vpack.c.bf16 %v432, %v428
    %v880 = vpack.c.bf16 %v434, %v430
    %v881 = vpack.c.bf16 %v545, %v541
    %v882 = vpack.c.bf16 %v547, %v543
    %v883 = vpack.c.bf16 %v442, %v438
    %v884 = vpack.c.bf16 %v444, %v440
    %v885 = vpack.c.bf16 %v555, %v551
    %v886 = vpack.c.bf16 %v557, %v553
    %887 = vst [vmem:[#allocation3] sm:$0xff] %v855
    %888 = vst [vmem:[#allocation3 + $0x8] sm:$0xff] %v856
    %889 = vst [vmem:[#allocation3 + $0x10] sm:$0xff] %v857
    %890 = vst [vmem:[#allocation3 + $0x18] sm:$0xff] %v858
    %891 = vst [vmem:[#allocation3 + $0x20] sm:$0xff] %v859
    %892 = vst [vmem:[#allocation3 + $0x28] sm:$0xff] %v860
    %893 = vst [vmem:[#allocation3 + $0x30] sm:$0xff] %v861
    %894 = vst [vmem:[#allocation3 + $0x38] sm:$0xff] %v862
    %895 = vst [vmem:[#allocation3 + $0x40] sm:$0xff] %v863
    %896 = vst [vmem:[#allocation3 + $0x48] sm:$0xff] %v864
    %897 = vst [vmem:[#allocation3 + $0x50] sm:$0xff] %v865
    %898 = vst [vmem:[#allocation3 + $0x58] sm:$0xff] %v866
    %899 = vst [vmem:[#allocation3 + $0x60] sm:$0xff] %v867
    %900 = vst [vmem:[#allocation3 + $0x68] sm:$0xff] %v868
    %901 = vst [vmem:[#allocation3 + $0x70] sm:$0xff] %v869
    %902 = vst [vmem:[#allocation3 + $0x78] sm:$0xff] %v870
    %903 = vst [vmem:[#allocation3 + $0x80] sm:$0xff] %v871
    %904 = vst [vmem:[#allocation3 + $0x88] sm:$0xff] %v872
    %905 = vst [vmem:[#allocation3 + $0x90] sm:$0xff] %v873
    %906 = vst [vmem:[#allocation3 + $0x98] sm:$0xff] %v874
    %907 = vst [vmem:[#allocation3 + $0xa0] sm:$0xff] %v875
    %908 = vst [vmem:[#allocation3 + $0xa8] sm:$0xff] %v876
    %909 = vst [vmem:[#allocation3 + $0xb0] sm:$0xff] %v877
    %910 = vst [vmem:[#allocation3 + $0xb8] sm:$0xff] %v878
    %911 = vst [vmem:[#allocation3 + $0xc0] sm:$0xff] %v879
    %912 = vst [vmem:[#allocation3 + $0xc8] sm:$0xff] %v880
    %913 = vst [vmem:[#allocation3 + $0xd0] sm:$0xff] %v881
    %914 = vst [vmem:[#allocation3 + $0xd8] sm:$0xff] %v882
    %915 = vst [vmem:[#allocation3 + $0xe0] sm:$0xff] %v883
    %916 = vst [vmem:[#allocation3 + $0xe8] sm:$0xff] %v884
    %917 = vst [vmem:[#allocation3 + $0xf0] sm:$0xff] %v885
    %918 = vst [vmem:[#allocation3 + $0xf8] sm:$0xff] %v886
    %v919 = vpack.c.bf16 %v668, %v664
    %v920 = vpack.c.bf16 %v670, %v666
    %v921 = vpack.c.bf16 %v781, %v777
    %v922 = vpack.c.bf16 %v783, %v779
    %v923 = vpack.c.bf16 %v678, %v674
    %v924 = vpack.c.bf16 %v680, %v676
    %v925 = vpack.c.bf16 %v791, %v787
    %v926 = vpack.c.bf16 %v793, %v789
    %v927 = vpack.c.bf16 %v688, %v684
    %v928 = vpack.c.bf16 %v690, %v686
    %v929 = vpack.c.bf16 %v801, %v797
    %v930 = vpack.c.bf16 %v803, %v799
    %v931 = vpack.c.bf16 %v698, %v694
    %v932 = vpack.c.bf16 %v700, %v696
    %v933 = vpack.c.bf16 %v811, %v807
    %v934 = vpack.c.bf16 %v813, %v809
    %v935 = vpack.c.bf16 %v708, %v704
    %v936 = vpack.c.bf16 %v710, %v706
    %v937 = vpack.c.bf16 %v821, %v817
    %v938 = vpack.c.bf16 %v823, %v819
    %v939 = vpack.c.bf16 %v718, %v714
    %v940 = vpack.c.bf16 %v720, %v716
    %v941 = vpack.c.bf16 %v831, %v827
    %v942 = vpack.c.bf16 %v833, %v829
    %v943 = vpack.c.bf16 %v728, %v724
    %v944 = vpack.c.bf16 %v730, %v726
    %v945 = vpack.c.bf16 %v841, %v837
    %v946 = vpack.c.bf16 %v843, %v839
    %v947 = vpack.c.bf16 %v738, %v734
    %v948 = vpack.c.bf16 %v740, %v736
    %v949 = vpack.c.bf16 %v851, %v847
    %v950 = vpack.c.bf16 %v853, %v849
    %951 = vst [vmem:[#allocation4] sm:$0xff] %v919
    %952 = vst [vmem:[#allocation4 + $0x8] sm:$0xff] %v920
    %953 = vst [vmem:[#allocation4 + $0x10] sm:$0xff] %v921
    %954 = vst [vmem:[#allocation4 + $0x18] sm:$0xff] %v922
    %955 = vst [vmem:[#allocation4 + $0x20] sm:$0xff] %v923
    %956 = vst [vmem:[#allocation4 + $0x28] sm:$0xff] %v924
    %957 = vst [vmem:[#allocation4 + $0x30] sm:$0xff] %v925
    %958 = vst [vmem:[#allocation4 + $0x38] sm:$0xff] %v926
    %959 = vst [vmem:[#allocation4 + $0x40] sm:$0xff] %v927
    %960 = vst [vmem:[#allocation4 + $0x48] sm:$0xff] %v928
    %961 = vst [vmem:[#allocation4 + $0x50] sm:$0xff] %v929
    %962 = vst [vmem:[#allocation4 + $0x58] sm:$0xff] %v930
    %963 = vst [vmem:[#allocation4 + $0x60] sm:$0xff] %v931
    %964 = vst [vmem:[#allocation4 + $0x68] sm:$0xff] %v932
    %965 = vst [vmem:[#allocation4 + $0x70] sm:$0xff] %v933
    %966 = vst [vmem:[#allocation4 + $0x78] sm:$0xff] %v934
    %967 = vst [vmem:[#allocation4 + $0x80] sm:$0xff] %v935
    %968 = vst [vmem:[#allocation4 + $0x88] sm:$0xff] %v936
    %969 = vst [vmem:[#allocation4 + $0x90] sm:$0xff] %v937
    %970 = vst [vmem:[#allocation4 + $0x98] sm:$0xff] %v938
    %971 = vst [vmem:[#allocation4 + $0xa0] sm:$0xff] %v939
    %972 = vst [vmem:[#allocation4 + $0xa8] sm:$0xff] %v940
    %973 = vst [vmem:[#allocation4 + $0xb0] sm:$0xff] %v941
    %974 = vst [vmem:[#allocation4 + $0xb8] sm:$0xff] %v942
    %975 = vst [vmem:[#allocation4 + $0xc0] sm:$0xff] %v943
    %976 = vst [vmem:[#allocation4 + $0xc8] sm:$0xff] %v944
    %977 = vst [vmem:[#allocation4 + $0xd0] sm:$0xff] %v945
    %978 = vst [vmem:[#allocation4 + $0xd8] sm:$0xff] %v946
    %979 = vst [vmem:[#allocation4 + $0xe0] sm:$0xff] %v947
    %980 = vst [vmem:[#allocation4 + $0xe8] sm:$0xff] %v948
    %981 = vst [vmem:[#allocation4 + $0xf0] sm:$0xff] %v949
    %982 = vst [vmem:[#allocation4 + $0xf8] sm:$0xff] %v950
    %v983 = vld [vmem:[#allocation10] sm:$0xff]
    %v984 = vld [vmem:[#allocation10 + $0x8] sm:$0xff]
    %v985 = vld [vmem:[#allocation10 + $0x10] sm:$0xff]
    %v986 = vld [vmem:[#allocation10 + $0x18] sm:$0xff]
    %v987 = vld [vmem:[#allocation10 + $0x20] sm:$0xff]
    %v988 = vld [vmem:[#allocation10 + $0x28] sm:$0xff]
    %v989 = vld [vmem:[#allocation10 + $0x30] sm:$0xff]
    %v990 = vld [vmem:[#allocation10 + $0x38] sm:$0xff]
    %v991 = vld [vmem:[#allocation10 + $0x40] sm:$0xff]
    %v992 = vld [vmem:[#allocation10 + $0x48] sm:$0xff]
    %v993 = vld [vmem:[#allocation10 + $0x50] sm:$0xff]
    %v994 = vld [vmem:[#allocation10 + $0x58] sm:$0xff]
    %v995 = vld [vmem:[#allocation10 + $0x60] sm:$0xff]
    %v996 = vld [vmem:[#allocation10 + $0x68] sm:$0xff]
    %v997 = vld [vmem:[#allocation10 + $0x70] sm:$0xff]
    %v998 = vld [vmem:[#allocation10 + $0x78] sm:$0xff]
    %v999 = vld [vmem:[#allocation10 + $0x80] sm:$0xff]
    %v1000 = vld [vmem:[#allocation10 + $0x88] sm:$0xff]
    %v1001 = vld [vmem:[#allocation10 + $0x90] sm:$0xff]
    %v1002 = vld [vmem:[#allocation10 + $0x98] sm:$0xff]
    %v1003 = vld [vmem:[#allocation10 + $0xa0] sm:$0xff]
    %v1004 = vld [vmem:[#allocation10 + $0xa8] sm:$0xff]
    %v1005 = vld [vmem:[#allocation10 + $0xb0] sm:$0xff]
    %v1006 = vld [vmem:[#allocation10 + $0xb8] sm:$0xff]
    %v1007 = vld [vmem:[#allocation10 + $0xc0] sm:$0xff]
    %v1008 = vld [vmem:[#allocation10 + $0xc8] sm:$0xff]
    %v1009 = vld [vmem:[#allocation10 + $0xd0] sm:$0xff]
    %v1010 = vld [vmem:[#allocation10 + $0xd8] sm:$0xff]
    %v1011 = vld [vmem:[#allocation10 + $0xe0] sm:$0xff]
    %v1012 = vld [vmem:[#allocation10 + $0xe8] sm:$0xff]
    %v1013 = vld [vmem:[#allocation10 + $0xf0] sm:$0xff]
    %v1014 = vld [vmem:[#allocation10 + $0xf8] sm:$0xff]
    %v1015 = vld [vmem:[#allocation11] sm:$0xff]
    %v1016 = vld [vmem:[#allocation11 + $0x8] sm:$0xff]
    %v1017 = vld [vmem:[#allocation11 + $0x10] sm:$0xff]
    %v1018 = vld [vmem:[#allocation11 + $0x18] sm:$0xff]
    %v1019 = vld [vmem:[#allocation11 + $0x20] sm:$0xff]
    %v1020 = vld [vmem:[#allocation11 + $0x28] sm:$0xff]
    %v1021 = vld [vmem:[#allocation11 + $0x30] sm:$0xff]
    %v1022 = vld [vmem:[#allocation11 + $0x38] sm:$0xff]
    %v1023 = vld [vmem:[#allocation11 + $0x40] sm:$0xff]
    %v1024 = vld [vmem:[#allocation11 + $0x48] sm:$0xff]
    %v1025 = vld [vmem:[#allocation11 + $0x50] sm:$0xff]
    %v1026 = vld [vmem:[#allocation11 + $0x58] sm:$0xff]
    %v1027 = vld [vmem:[#allocation11 + $0x60] sm:$0xff]
    %v1028 = vld [vmem:[#allocation11 + $0x68] sm:$0xff]
    %v1029 = vld [vmem:[#allocation11 + $0x70] sm:$0xff]
    %v1030 = vld [vmem:[#allocation11 + $0x78] sm:$0xff]
    %v1031 = vld [vmem:[#allocation11 + $0x80] sm:$0xff]
    %v1032 = vld [vmem:[#allocation11 + $0x88] sm:$0xff]
    %v1033 = vld [vmem:[#allocation11 + $0x90] sm:$0xff]
    %v1034 = vld [vmem:[#allocation11 + $0x98] sm:$0xff]
    %v1035 = vld [vmem:[#allocation11 + $0xa0] sm:$0xff]
    %v1036 = vld [vmem:[#allocation11 + $0xa8] sm:$0xff]
    %v1037 = vld [vmem:[#allocation11 + $0xb0] sm:$0xff]
    %v1038 = vld [vmem:[#allocation11 + $0xb8] sm:$0xff]
    %v1039 = vld [vmem:[#allocation11 + $0xc0] sm:$0xff]
    %v1040 = vld [vmem:[#allocation11 + $0xc8] sm:$0xff]
    %v1041 = vld [vmem:[#allocation11 + $0xd0] sm:$0xff]
    %v1042 = vld [vmem:[#allocation11 + $0xd8] sm:$0xff]
    %v1043 = vld [vmem:[#allocation11 + $0xe0] sm:$0xff]
    %v1044 = vld [vmem:[#allocation11 + $0xe8] sm:$0xff]
    %v1045 = vld [vmem:[#allocation11 + $0xf0] sm:$0xff]
    %v1046 = vld [vmem:[#allocation11 + $0xf8] sm:$0xff]
    %v1047 = vld [vmem:[#allocation3] sm:$0xff]
    %v1048 = vld [vmem:[#allocation3 + $0x8] sm:$0xff]
    %v1049 = vld [vmem:[#allocation3 + $0x10] sm:$0xff]
    %v1050 = vld [vmem:[#allocation3 + $0x18] sm:$0xff]
    %v1051 = vunpack.c.l.bf16 %v1047
    %v1052 = vunpack.c.l.bf16 %v1048
    %v1053 = vunpack.c.l.bf16 %v1049
    %v1054 = vunpack.c.l.bf16 %v1050
    %v1055 = vunpack.c.h.bf16 %v1047
    %v1056 = vunpack.c.h.bf16 %v1048
    %v1057 = vunpack.c.h.bf16 %v1049
    %v1058 = vunpack.c.h.bf16 %v1050
    %v1091 = vunpack.c.l.b16 %v983
    %v1092 = vunpack.c.h.b16 %v983
    %v1093 = vunpack.c.l.b16 %v984
    %v1094 = vunpack.c.h.b16 %v984
    %v1095 = vunpack.c.l.b16 %v985
    %v1096 = vunpack.c.h.b16 %v985
    %v1097 = vunpack.c.l.b16 %v986
    %v1098 = vunpack.c.h.b16 %v986
    %v1099 = vunpack.c.l.b16 %v987
    %v1100 = vunpack.c.h.b16 %v987
    %v1101 = vunpack.c.l.b16 %v988
    %v1102 = vunpack.c.h.b16 %v988
    %v1103 = vunpack.c.l.b16 %v989
    %v1104 = vunpack.c.h.b16 %v989
    %v1105 = vunpack.c.l.b16 %v990
    %v1106 = vunpack.c.h.b16 %v990
    %v1107 = vunpack.c.l.b16 %v991
    %v1108 = vunpack.c.h.b16 %v991
    %v1109 = vunpack.c.l.b16 %v992
    %v1110 = vunpack.c.h.b16 %v992
    %v1111 = vunpack.c.l.b16 %v993
    %v1112 = vunpack.c.h.b16 %v993
    %v1113 = vunpack.c.l.b16 %v994
    %v1114 = vunpack.c.h.b16 %v994
    %v1115 = vunpack.c.l.b16 %v995
    %v1116 = vunpack.c.h.b16 %v995
    %v1117 = vunpack.c.l.b16 %v996
    %v1118 = vunpack.c.h.b16 %v996
    %v1119 = vunpack.c.l.b16 %v997
    %v1120 = vunpack.c.h.b16 %v997
    %v1121 = vunpack.c.l.b16 %v998
    %v1122 = vunpack.c.h.b16 %v998
    %v1123 = vunpack.c.l.b16 %v999
    %v1124 = vunpack.c.h.b16 %v999
    %v1125 = vunpack.c.l.b16 %v1000
    %v1126 = vunpack.c.h.b16 %v1000
    %v1127 = vunpack.c.l.b16 %v1001
    %v1128 = vunpack.c.h.b16 %v1001
    %v1129 = vunpack.c.l.b16 %v1002
    %v1130 = vunpack.c.h.b16 %v1002
    %v1131 = vunpack.c.l.b16 %v1003
    %v1132 = vunpack.c.h.b16 %v1003
    %v1133 = vunpack.c.l.b16 %v1004
    %v1134 = vunpack.c.h.b16 %v1004
    %v1135 = vunpack.c.l.b16 %v1005
    %v1136 = vunpack.c.h.b16 %v1005
    %v1137 = vunpack.c.l.b16 %v1006
    %v1138 = vunpack.c.h.b16 %v1006
    %v1139 = vunpack.c.l.b16 %v1007
    %v1140 = vunpack.c.h.b16 %v1007
    %v1141 = vunpack.c.l.b16 %v1008
    %v1142 = vunpack.c.h.b16 %v1008
    %v1143 = vunpack.c.l.b16 %v1009
    %v1144 = vunpack.c.h.b16 %v1009
    %v1145 = vunpack.c.l.b16 %v1010
    %v1146 = vunpack.c.h.b16 %v1010
    %v1147 = vunpack.c.l.b16 %v1011
    %v1148 = vunpack.c.h.b16 %v1011
    %v1149 = vunpack.c.l.b16 %v1012
    %v1150 = vunpack.c.h.b16 %v1012
    %v1151 = vunpack.c.l.b16 %v1013
    %v1152 = vunpack.c.h.b16 %v1013
    %v1153 = vunpack.c.l.b16 %v1014
    %v1154 = vunpack.c.h.b16 %v1014
    %v1155 = vpack.c.b16 %v1095, %v1091
    %v1156 = vpack.c.b16 %v1096, %v1092
    %v1157 = vpack.c.b16 %v1097, %v1093
    %v1158 = vpack.c.b16 %v1098, %v1094
    %v1159 = vpack.c.b16 %v1103, %v1099
    %v1160 = vpack.c.b16 %v1104, %v1100
    %v1161 = vpack.c.b16 %v1105, %v1101
    %v1162 = vpack.c.b16 %v1106, %v1102
    %v1163 = vpack.c.b16 %v1111, %v1107
    %v1164 = vpack.c.b16 %v1112, %v1108
    %v1165 = vpack.c.b16 %v1113, %v1109
    %v1166 = vpack.c.b16 %v1114, %v1110
    %v1167 = vpack.c.b16 %v1119, %v1115
    %v1168 = vpack.c.b16 %v1120, %v1116
    %v1169 = vpack.c.b16 %v1121, %v1117
    %v1170 = vpack.c.b16 %v1122, %v1118
    %v1171 = vpack.c.b16 %v1127, %v1123
    %v1172 = vpack.c.b16 %v1128, %v1124
    %v1173 = vpack.c.b16 %v1129, %v1125
    %v1174 = vpack.c.b16 %v1130, %v1126
    %v1175 = vpack.c.b16 %v1135, %v1131
    %v1176 = vpack.c.b16 %v1136, %v1132
    %v1177 = vpack.c.b16 %v1137, %v1133
    %v1178 = vpack.c.b16 %v1138, %v1134
    %v1179 = vpack.c.b16 %v1143, %v1139
    %v1180 = vpack.c.b16 %v1144, %v1140
    %v1181 = vpack.c.b16 %v1145, %v1141
    %v1182 = vpack.c.b16 %v1146, %v1142
    %v1183 = vpack.c.b16 %v1151, %v1147
    %v1184 = vpack.c.b16 %v1152, %v1148
    %v1185 = vpack.c.b16 %v1153, %v1149
    %v1186 = vpack.c.b16 %v1154, %v1150
    %1219 = vmatprep.subr.bf16.mxu0 %v1156
    %1220 = vmatpush1.bf16.msra.mxu0 %v1155
    %1221 = vmatprep.subr.bf16.mxu0 %v1160
    %1222 = vmatpush1.bf16.msra.mxu0 %v1159
    %1223 = vmatprep.subr.bf16.mxu0 %v1164
    %1224 = vmatpush1.bf16.msra.mxu0 %v1163
    %1225 = vmatprep.subr.bf16.mxu0 %v1168
    %1226 = vmatpush1.bf16.msra.mxu0 %v1167
    %1227 = vmatprep.subr.bf16.mxu0 %v1172
    %1228 = vmatpush1.bf16.msra.mxu0 %v1171
    %1229 = vmatprep.subr.bf16.mxu0 %v1176
    %1230 = vmatpush1.bf16.msra.mxu0 %v1175
    %1231 = vmatprep.subr.bf16.mxu0 %v1180
    %1232 = vmatpush1.bf16.msra.mxu0 %v1179
    %1233 = vmatprep.subr.bf16.mxu0 %v1184
    %1234 = vmatpush1.bf16.msra.mxu0 %v1183
    %1235 = vmatprep.subr.bf16.mxu0 0
    %1236 = vmatpush1.bf16.msra.mxu0 0
    %1237 = vmatprep.subr.bf16.mxu0 0
    %1238 = vmatpush1.bf16.msra.mxu0 0
    %1239 = vmatprep.subr.bf16.mxu0 0
    %1240 = vmatpush1.bf16.msra.mxu0 0
    %1241 = vmatprep.subr.bf16.mxu0 0
    %1242 = vmatpush1.bf16.msra.mxu0 0
    %1243 = vmatprep.subr.bf16.mxu0 0
    %1244 = vmatpush1.bf16.msra.mxu0 0
    %1245 = vmatprep.subr.bf16.mxu0 0
    %1246 = vmatpush1.bf16.msra.mxu0 0
    %1247 = vmatprep.subr.bf16.mxu0 0
    %1248 = vmatpush1.bf16.msra.mxu0 0
    %1249 = vmatprep.subr.bf16.mxu0 0
    %1250 = vmatpush1.bf16.msra.mxu0 0
    %1251 = vmatprep.mubr.bf16.mxu0 0
    %1252 = vmatmul.mubr.bf16.gmra.mrb[0].mxu0 0
    %v1253 = vpop.f32.mrb[0].mxu0
    %v1254 = vadd.f32 0.0, %v1253
    %v1255 = vpop.f32.mrb[0].mxu0
    %v1256 = vadd.f32 0.0, %v1255
    %v1257 = vpop.f32.mrb[0].mxu0
    %v1258 = vadd.f32 0.0, %v1257
    %v1259 = vpop.f32.mrb[0].mxu0
    %v1260 = vadd.f32 0.0, %v1259
    %1261 = vdwg.mxu0
    %1262 = vmatprep.subr.bf16.mxu0 %v1158
    %1263 = vmatpush1.bf16.msra.mxu0 %v1157
    %1264 = vmatprep.subr.bf16.mxu0 %v1162
    %1265 = vmatpush1.bf16.msra.mxu0 %v1161
    %1266 = vmatprep.subr.bf16.mxu0 %v1166
    %1267 = vmatpush1.bf16.msra.mxu0 %v1165
    %1268 = vmatprep.subr.bf16.mxu0 %v1170
    %1269 = vmatpush1.bf16.msra.mxu0 %v1169
    %1270 = vmatprep.subr.bf16.mxu0 %v1174
    %1271 = vmatpush1.bf16.msra.mxu0 %v1173
    %1272 = vmatprep.subr.bf16.mxu0 %v1178
    %1273 = vmatpush1.bf16.msra.mxu0 %v1177
    %1274 = vmatprep.subr.bf16.mxu0 %v1182
    %1275 = vmatpush1.bf16.msra.mxu0 %v1181
    %1276 = vmatprep.subr.bf16.mxu0 %v1186
    %1277 = vmatpush1.bf16.msra.mxu0 %v1185
    %1278 = vmatprep.subr.bf16.mxu0 0
    %1279 = vmatpush1.bf16.msra.mxu0 0
    %1280 = vmatprep.subr.bf16.mxu0 0
    %1281 = vmatpush1.bf16.msra.mxu0 0
    %1282 = vmatprep.subr.bf16.mxu0 0
    %1283 = vmatpush1.bf16.msra.mxu0 0
    %1284 = vmatprep.subr.bf16.mxu0 0
    %1285 = vmatpush1.bf16.msra.mxu0 0
    %1286 = vmatprep.subr.bf16.mxu0 0
    %1287 = vmatpush1.bf16.msra.mxu0 0
    %1288 = vmatprep.subr.bf16.mxu0 0
    %1289 = vmatpush1.bf16.msra.mxu0 0
    %1290 = vmatprep.subr.bf16.mxu0 0
    %1291 = vmatpush1.bf16.msra.mxu0 0
    %1292 = vmatprep.subr.bf16.mxu0 0
    %1293 = vmatpush1.bf16.msra.mxu0 0
    %1294 = vmatprep.mubr.bf16.mxu0 0
    %1295 = vmatmul.mubr.bf16.gmra.mrb[0].mxu0 0
    %v1296 = vpop.f32.mrb[0].mxu0
    %v1297 = vadd.f32 0.0, %v1296
    %v1298 = vpop.f32.mrb[0].mxu0
    %v1299 = vadd.f32 0.0, %v1298
    %v1300 = vpop.f32.mrb[0].mxu0
    %v1301 = vadd.f32 0.0, %v1300
    %v1302 = vpop.f32.mrb[0].mxu0
    %v1303 = vadd.f32 0.0, %v1302
    %1304 = vdwg.mxu0
    %v1305 = vadd.f32 %v1051, %v1254
    %v1306 = vadd.f32 %v1052, %v1256
    %v1307 = vadd.f32 %v1053, %v1297
    %v1308 = vadd.f32 %v1054, %v1299
    %v1309 = vadd.f32 %v1055, %v1258
    %v1310 = vadd.f32 %v1056, %v1260
    %v1311 = vadd.f32 %v1057, %v1301
    %v1312 = vadd.f32 %v1058, %v1303
    %v1313 = vld [vmem:[#allocation4 + $0xe0] sm:$0xff]
    %v1314 = vld [vmem:[#allocation4 + $0xe8] sm:$0xff]
    %v1315 = vld [vmem:[#allocation4 + $0xf0] sm:$0xff]
    %v1316 = vld [vmem:[#allocation4 + $0xf8] sm:$0xff]
    %v1317 = vunpack.c.l.bf16 %v1313
    %v1318 = vunpack.c.l.bf16 %v1314
    %v1319 = vunpack.c.l.bf16 %v1315
    %v1320 = vunpack.c.l.bf16 %v1316
    %v1321 = vunpack.c.h.bf16 %v1313
    %v1322 = vunpack.c.h.bf16 %v1314
    %v1323 = vunpack.c.h.bf16 %v1315
    %v1324 = vunpack.c.h.bf16 %v1316
    %v1357 = vunpack.c.l.b16 %v1015
    %v1358 = vunpack.c.h.b16 %v1015
    %v1359 = vunpack.c.l.b16 %v1016
    %v1360 = vunpack.c.h.b16 %v1016
    %v1361 = vunpack.c.l.b16 %v1017
    %v1362 = vunpack.c.h.b16 %v1017
    %v1363 = vunpack.c.l.b16 %v1018
    %v1364 = vunpack.c.h.b16 %v1018
    %v1365 = vunpack.c.l.b16 %v1019
    %v1366 = vunpack.c.h.b16 %v1019
    %v1367 = vunpack.c.l.b16 %v1020
    %v1368 = vunpack.c.h.b16 %v1020
    %v1369 = vunpack.c.l.b16 %v1021
    %v1370 = vunpack.c.h.b16 %v1021
    %v1371 = vunpack.c.l.b16 %v1022
    %v1372 = vunpack.c.h.b16 %v1022
    %v1373 = vunpack.c.l.b16 %v1023
    %v1374 = vunpack.c.h.b16 %v1023
    %v1375 = vunpack.c.l.b16 %v1024
    %v1376 = vunpack.c.h.b16 %v1024
    %v1377 = vunpack.c.l.b16 %v1025
    %v1378 = vunpack.c.h.b16 %v1025
    %v1379 = vunpack.c.l.b16 %v1026
    %v1380 = vunpack.c.h.b16 %v1026
    %v1381 = vunpack.c.l.b16 %v1027
    %v1382 = vunpack.c.h.b16 %v1027
    %v1383 = vunpack.c.l.b16 %v1028
    %v1384 = vunpack.c.h.b16 %v1028
    %v1385 = vunpack.c.l.b16 %v1029
    %v1386 = vunpack.c.h.b16 %v1029
    %v1387 = vunpack.c.l.b16 %v1030
    %v1388 = vunpack.c.h.b16 %v1030
    %v1389 = vunpack.c.l.b16 %v1031
    %v1390 = vunpack.c.h.b16 %v1031
    %v1391 = vunpack.c.l.b16 %v1032
    %v1392 = vunpack.c.h.b16 %v1032
    %v1393 = vunpack.c.l.b16 %v1033
    %v1394 = vunpack.c.h.b16 %v1033
    %v1395 = vunpack.c.l.b16 %v1034
    %v1396 = vunpack.c.h.b16 %v1034
    %v1397 = vunpack.c.l.b16 %v1035
    %v1398 = vunpack.c.h.b16 %v1035
    %v1399 = vunpack.c.l.b16 %v1036
    %v1400 = vunpack.c.h.b16 %v1036
    %v1401 = vunpack.c.l.b16 %v1037
    %v1402 = vunpack.c.h.b16 %v1037
    %v1403 = vunpack.c.l.b16 %v1038
    %v1404 = vunpack.c.h.b16 %v1038
    %v1405 = vunpack.c.l.b16 %v1039
    %v1406 = vunpack.c.h.b16 %v1039
    %v1407 = vunpack.c.l.b16 %v1040
    %v1408 = vunpack.c.h.b16 %v1040
    %v1409 = vunpack.c.l.b16 %v1041
    %v1410 = vunpack.c.h.b16 %v1041
    %v1411 = vunpack.c.l.b16 %v1042
    %v1412 = vunpack.c.h.b16 %v1042
    %v1413 = vunpack.c.l.b16 %v1043
    %v1414 = vunpack.c.h.b16 %v1043
    %v1415 = vunpack.c.l.b16 %v1044
    %v1416 = vunpack.c.h.b16 %v1044
    %v1417 = vunpack.c.l.b16 %v1045
    %v1418 = vunpack.c.h.b16 %v1045
    %v1419 = vunpack.c.l.b16 %v1046
    %v1420 = vunpack.c.h.b16 %v1046
    %v1421 = vpack.c.b16 %v1361, %v1357
    %v1422 = vpack.c.b16 %v1362, %v1358
    %v1423 = vpack.c.b16 %v1363, %v1359
    %v1424 = vpack.c.b16 %v1364, %v1360
    %v1425 = vpack.c.b16 %v1369, %v1365
    %v1426 = vpack.c.b16 %v1370, %v1366
    %v1427 = vpack.c.b16 %v1371, %v1367
    %v1428 = vpack.c.b16 %v1372, %v1368
    %v1429 = vpack.c.b16 %v1377, %v1373
    %v1430 = vpack.c.b16 %v1378, %v1374
    %v1431 = vpack.c.b16 %v1379, %v1375
    %v1432 = vpack.c.b16 %v1380, %v1376
    %v1433 = vpack.c.b16 %v1385, %v1381
    %v1434 = vpack.c.b16 %v1386, %v1382
    %v1435 = vpack.c.b16 %v1387, %v1383
    %v1436 = vpack.c.b16 %v1388, %v1384
    %v1437 = vpack.c.b16 %v1393, %v1389
    %v1438 = vpack.c.b16 %v1394, %v1390
    %v1439 = vpack.c.b16 %v1395, %v1391
    %v1440 = vpack.c.b16 %v1396, %v1392
    %v1441 = vpack.c.b16 %v1401, %v1397
    %v1442 = vpack.c.b16 %v1402, %v1398
    %v1443 = vpack.c.b16 %v1403, %v1399
    %v1444 = vpack.c.b16 %v1404, %v1400
    %v1445 = vpack.c.b16 %v1409, %v1405
    %v1446 = vpack.c.b16 %v1410, %v1406
    %v1447 = vpack.c.b16 %v1411, %v1407
    %v1448 = vpack.c.b16 %v1412, %v1408
    %v1449 = vpack.c.b16 %v1417, %v1413
    %v1450 = vpack.c.b16 %v1418, %v1414
    %v1451 = vpack.c.b16 %v1419, %v1415
    %v1452 = vpack.c.b16 %v1420, %v1416
    %1485 = vmatprep.subr.bf16.mxu0 %v1422
    %1486 = vmatpush1.bf16.msra.mxu0 %v1421
    %1487 = vmatprep.subr.bf16.mxu0 %v1426
    %1488 = vmatpush1.bf16.msra.mxu0 %v1425
    %1489 = vmatprep.subr.bf16.mxu0 %v1430
    %1490 = vmatpush1.bf16.msra.mxu0 %v1429
    %1491 = vmatprep.subr.bf16.mxu0 %v1434
    %1492 = vmatpush1.bf16.msra.mxu0 %v1433
    %1493 = vmatprep.subr.bf16.mxu0 %v1438
    %1494 = vmatpush1.bf16.msra.mxu0 %v1437
    %1495 = vmatprep.subr.bf16.mxu0 %v1442
    %1496 = vmatpush1.bf16.msra.mxu0 %v1441
    %1497 = vmatprep.subr.bf16.mxu0 %v1446
    %1498 = vmatpush1.bf16.msra.mxu0 %v1445
    %1499 = vmatprep.subr.bf16.mxu0 %v1450
    %1500 = vmatpush1.bf16.msra.mxu0 %v1449
    %1501 = vmatprep.subr.bf16.mxu0 0
    %1502 = vmatpush1.bf16.msra.mxu0 0
    %1503 = vmatprep.subr.bf16.mxu0 0
    %1504 = vmatpush1.bf16.msra.mxu0 0
    %1505 = vmatprep.subr.bf16.mxu0 0
    %1506 = vmatpush1.bf16.msra.mxu0 0
    %1507 = vmatprep.subr.bf16.mxu0 0
    %1508 = vmatpush1.bf16.msra.mxu0 0
    %1509 = vmatprep.subr.bf16.mxu0 0
    %1510 = vmatpush1.bf16.msra.mxu0 0
    %1511 = vmatprep.subr.bf16.mxu0 0
    %1512 = vmatpush1.bf16.msra.mxu0 0
    %1513 = vmatprep.subr.bf16.mxu0 0
    %1514 = vmatpush1.bf16.msra.mxu0 0
    %1515 = vmatprep.subr.bf16.mxu0 0
    %1516 = vmatpush1.bf16.msra.mxu0 0
    %1517 = vmatprep.mubr.bf16.mxu0 0
    %1518 = vmatmul.mubr.bf16.gmra.mrb[0].mxu0 0
    %v1519 = vpop.f32.mrb[0].mxu0
    %v1520 = vadd.f32 0.0, %v1519
    %v1521 = vpop.f32.mrb[0].mxu0
    %v1522 = vadd.f32 0.0, %v1521
    %v1523 = vpop.f32.mrb[0].mxu0
    %v1524 = vadd.f32 0.0, %v1523
    %v1525 = vpop.f32.mrb[0].mxu0
    %v1526 = vadd.f32 0.0, %v1525
    %1527 = vdwg.mxu0
    %1528 = vmatprep.subr.bf16.mxu0 %v1424
    %1529 = vmatpush1.bf16.msra.mxu0 %v1423
    %1530 = vmatprep.subr.bf16.mxu0 %v1428
    %1531 = vmatpush1.bf16.msra.mxu0 %v1427
    %1532 = vmatprep.subr.bf16.mxu0 %v1432
    %1533 = vmatpush1.bf16.msra.mxu0 %v1431
    %1534 = vmatprep.subr.bf16.mxu0 %v1436
    %1535 = vmatpush1.bf16.msra.mxu0 %v1435
    %1536 = vmatprep.subr.bf16.mxu0 %v1440
    %1537 = vmatpush1.bf16.msra.mxu0 %v1439
    %1538 = vmatprep.subr.bf16.mxu0 %v1444
    %1539 = vmatpush1.bf16.msra.mxu0 %v1443
    %1540 = vmatprep.subr.bf16.mxu0 %v1448
    %1541 = vmatpush1.bf16.msra.mxu0 %v1447
    %1542 = vmatprep.subr.bf16.mxu0 %v1452
    %1543 = vmatpush1.bf16.msra.mxu0 %v1451
    %1544 = vmatprep.subr.bf16.mxu0 0
    %1545 = vmatpush1.bf16.msra.mxu0 0
    %1546 = vmatprep.subr.bf16.mxu0 0
    %1547 = vmatpush1.bf16.msra.mxu0 0
    %1548 = vmatprep.subr.bf16.mxu0 0
    %1549 = vmatpush1.bf16.msra.mxu0 0
    %1550 = vmatprep.subr.bf16.mxu0 0
    %1551 = vmatpush1.bf16.msra.mxu0 0
    %1552 = vmatprep.subr.bf16.mxu0 0
    %1553 = vmatpush1.bf16.msra.mxu0 0
    %1554 = vmatprep.subr.bf16.mxu0 0
    %1555 = vmatpush1.bf16.msra.mxu0 0
    %1556 = vmatprep.subr.bf16.mxu0 0
    %1557 = vmatpush1.bf16.msra.mxu0 0
    %1558 = vmatprep.subr.bf16.mxu0 0
    %1559 = vmatpush1.bf16.msra.mxu0 0
    %1560 = vmatprep.mubr.bf16.mxu0 0
    %1561 = vmatmul.mubr.bf16.gmra.mrb[0].mxu0 0
    %v1562 = vpop.f32.mrb[0].mxu0
    %v1563 = vadd.f32 0.0, %v1562
    %v1564 = vpop.f32.mrb[0].mxu0
    %v1565 = vadd.f32 0.0, %v1564
    %v1566 = vpop.f32.mrb[0].mxu0
    %v1567 = vadd.f32 0.0, %v1566
    %v1568 = vpop.f32.mrb[0].mxu0
    %v1569 = vadd.f32 0.0, %v1568
    %1570 = vdwg.mxu0
    %v1571 = vadd.f32 %v1317, %v1520
    %v1572 = vadd.f32 %v1318, %v1522
    %v1573 = vadd.f32 %v1319, %v1563
    %v1574 = vadd.f32 %v1320, %v1565
    %v1575 = vadd.f32 %v1321, %v1524
    %v1576 = vadd.f32 %v1322, %v1526
    %v1577 = vadd.f32 %v1323, %v1567
    %v1578 = vadd.f32 %v1324, %v1569
    %v1579 = vxor.u32 %v1305, 2147483648
    %v1580 = vxor.u32 %v1309, 2147483648
    %v1581 = vmul.f32 %v1579, 1.442695
    %v1582 = vpow.pop %v1581
    %v1583 = vmul.f32 %v1580, 1.442695
    %v1584 = vpow.pop %v1583
    %v1585 = vadd.f32 %v1582, 1.0
    %v1586 = vadd.f32 %v1584, 1.0
    %v1587 = vrcp.pop %v1585
    %v1588 = vmul.f32 1.0, %v1587
    %v1589 = vrcp.pop %v1586
    %v1590 = vmul.f32 1.0, %v1589
    %v1591 = vxor.u32 %v1306, 2147483648
    %v1592 = vxor.u32 %v1310, 2147483648
    %v1593 = vmul.f32 %v1591, 1.442695
    %v1594 = vpow.pop %v1593
    %v1595 = vmul.f32 %v1592, 1.442695
    %v1596 = vpow.pop %v1595
    %v1597 = vadd.f32 %v1594, 1.0
    %v1598 = vadd.f32 %v1596, 1.0
    %v1599 = vrcp.pop %v1597
    %v1600 = vmul.f32 1.0, %v1599
    %v1601 = vrcp.pop %v1598
    %v1602 = vmul.f32 1.0, %v1601
    %v1603 = vtanh.pop %v1307
    %v1604 = vtanh.pop %v1311
    %v1605 = vxor.u32 %v1308, 2147483648
    %v1606 = vxor.u32 %v1312, 2147483648
    %v1607 = vmul.f32 %v1605, 1.442695
    %v1608 = vpow.pop %v1607
    %v1609 = vmul.f32 %v1606, 1.442695
    %v1610 = vpow.pop %v1609
    %v1611 = vadd.f32 %v1608, 1.0
    %v1612 = vadd.f32 %v1610, 1.0
    %v1613 = vrcp.pop %v1611
    %v1614 = vmul.f32 1.0, %v1613
    %v1615 = vrcp.pop %v1612
    %v1616 = vmul.f32 1.0, %v1615
    %v1617 = vmul.f32 %v1600, 0.0
    %v1618 = vmul.f32 %v1602, 0.0
    %v1619 = vmul.f32 %v1588, %v1603
    %v1620 = vmul.f32 %v1590, %v1604
    %v1621 = vadd.f32 %v1617, %v1619
    %v1622 = vadd.f32 %v1618, %v1620
    %v1623 = vtanh.pop %v1621
    %v1624 = vtanh.pop %v1622
    %v1625 = vmul.f32 %v1614, %v1623
    %v1626 = vmul.f32 %v1616, %v1624
    %v1627 = vxor.u32 %v1571, 2147483648
    %v1628 = vxor.u32 %v1575, 2147483648
    %v1629 = vmul.f32 %v1627, 1.442695
    %v1630 = vpow.pop %v1629
    %v1631 = vmul.f32 %v1628, 1.442695
    %v1632 = vpow.pop %v1631
    %v1633 = vadd.f32 %v1630, 1.0
    %v1634 = vadd.f32 %v1632, 1.0
    %v1635 = vrcp.pop %v1633
    %v1636 = vmul.f32 1.0, %v1635
    %v1637 = vrcp.pop %v1634
    %v1638 = vmul.f32 1.0, %v1637
    %v1639 = vxor.u32 %v1572, 2147483648
    %v1640 = vxor.u32 %v1576, 2147483648
    %v1641 = vmul.f32 %v1639, 1.442695
    %v1642 = vpow.pop %v1641
    %v1643 = vmul.f32 %v1640, 1.442695
    %v1644 = vpow.pop %v1643
    %v1645 = vadd.f32 %v1642, 1.0
    %v1646 = vadd.f32 %v1644, 1.0
    %v1647 = vrcp.pop %v1645
    %v1648 = vmul.f32 1.0, %v1647
    %v1649 = vrcp.pop %v1646
    %v1650 = vmul.f32 1.0, %v1649
    %v1651 = vtanh.pop %v1573
    %v1652 = vtanh.pop %v1577
    %v1653 = vxor.u32 %v1574, 2147483648
    %v1654 = vxor.u32 %v1578, 2147483648
    %v1655 = vmul.f32 %v1653, 1.442695
    %v1656 = vpow.pop %v1655
    %v1657 = vmul.f32 %v1654, 1.442695
    %v1658 = vpow.pop %v1657
    %v1659 = vadd.f32 %v1656, 1.0
    %v1660 = vadd.f32 %v1658, 1.0
    %v1661 = vrcp.pop %v1659
    %v1662 = vmul.f32 1.0, %v1661
    %v1663 = vrcp.pop %v1660
    %v1664 = vmul.f32 1.0, %v1663
    %v1665 = vmul.f32 %v1648, 0.0
    %v1666 = vmul.f32 %v1650, 0.0
    %v1667 = vmul.f32 %v1636, %v1651
    %v1668 = vmul.f32 %v1638, %v1652
    %v1669 = vadd.f32 %v1665, %v1667
    %v1670 = vadd.f32 %v1666, %v1668
    %v1671 = vtanh.pop %v1669
    %v1672 = vtanh.pop %v1670
    %v1673 = vmul.f32 %v1662, %v1671
    %v1674 = vmul.f32 %v1664, %v1672
    %v1675 = vsel %vm166, 1, 0
    %v1676 = vsel %vm167, 1, 0
    %1677 = vset.pattern.permute.xlu0 0
    %1678 = vperm.xlu0 %1677, %v1675
    %v1679 = vpop.permute.xlu0 %1678
    %1680 = vset.pattern.permute.xlu0 0
    %1681 = vperm.xlu0 %1680, %v1676
    %v1682 = vpop.permute.xlu0 %1681
    %vm1683 = vcmp.eq.s32.totalorder %v1679, 1
    %vm1684 = vcmp.eq.s32.totalorder %v1682, 1
    %v1685 = vsel %vm1683, %v1625, 0.0
    %v1686 = vsel %vm1684, %v1626, 0.0
    %v1687 = vpack.c.bf16 %v1686, %v1685
    %1688 = vst [vmem:[#allocation2] sm:$0xff] %v1687
    %v1689 = vsel %vm180, 1, 0
    %v1690 = vsel %vm181, 1, 0
    %1691 = vset.pattern.permute.xlu0 0
    %1692 = vperm.xlu0 %1691, %v1689
    %v1693 = vpop.permute.xlu0 %1692
    %1694 = vset.pattern.permute.xlu0 0
    %1695 = vperm.xlu0 %1694, %v1690
    %v1696 = vpop.permute.xlu0 %1695
    %vm1697 = vcmp.eq.s32.totalorder %v1693, 1
    %vm1698 = vcmp.eq.s32.totalorder %v1696, 1
    %v1699 = vsel %vm1697, %v1673, 0.0
    %v1700 = vsel %vm1698, %v1674, 0.0
    %v1701 = vpack.c.bf16 %v1700, %v1699
    %1702 = vst [vmem:[#allocation2 + $0x78] sm:$0xff] %v1701
    %v1703 = vsel %vm1683, %v1621, 0.0
    %v1704 = vsel %vm1684, %v1622, 0.0
    %v1705 = vsel %vm1697, %v1669, 0.0
    %v1706 = vsel %vm1698, %v1670, 0.0
    %v1707 = vld [vmem:[#allocation3 + $0x20] sm:$0xff]
    %v1708 = vld [vmem:[#allocation3 + $0x28] sm:$0xff]
    %v1709 = vld [vmem:[#allocation3 + $0x30] sm:$0xff]
    %v1710 = vld [vmem:[#allocation3 + $0x38] sm:$0xff]
    %v1711 = vunpack.c.l.bf16 %v1707
    %v1712 = vunpack.c.l.bf16 %v1708
    %v1713 = vunpack.c.l.bf16 %v1709
    %v1714 = vunpack.c.l.bf16 %v1710
    %v1715 = vunpack.c.h.bf16 %v1707
    %v1716 = vunpack.c.h.bf16 %v1708
    %v1717 = vunpack.c.h.bf16 %v1709
    %v1718 = vunpack.c.h.bf16 %v1710
    %1719 = vmatprep.subr.bf16.mxu0 %v1156
    %1720 = vmatpush1.bf16.msra.mxu0 %v1155
    %1721 = vmatprep.subr.bf16.mxu0 %v1160
    %1722 = vmatpush1.bf16.msra.mxu0 %v1159
    %1723 = vmatprep.subr.bf16.mxu0 %v1164
    %1724 = vmatpush1.bf16.msra.mxu0 %v1163
    %1725 = vmatprep.subr.bf16.mxu0 %v1168
    %1726 = vmatpush1.bf16.msra.mxu0 %v1167
    %1727 = vmatprep.subr.bf16.mxu0 %v1172
    %1728 = vmatpush1.bf16.msra.mxu0 %v1171
    %1729 = vmatprep.subr.bf16.mxu0 %v1176
    %1730 = vmatpush1.bf16.msra.mxu0 %v1175
    %1731 = vmatprep.subr.bf16.mxu0 %v1180
    %1732 = vmatpush1.bf16.msra.mxu0 %v1179
    %1733 = vmatprep.subr.bf16.mxu0 %v1184
    %1734 = vmatpush1.bf16.msra.mxu0 %v1183
    %1735 = vmatprep.subr.bf16.mxu0 0
    %1736 = vmatpush1.bf16.msra.mxu0 0
    %1737 = vmatprep.subr.bf16.mxu0 0
    %1738 = vmatpush1.bf16.msra.mxu0 0
    %1739 = vmatprep.subr.bf16.mxu0 0
    %1740 = vmatpush1.bf16.msra.mxu0 0
    %1741 = vmatprep.subr.bf16.mxu0 0
    %1742 = vmatpush1.bf16.msra.mxu0 0
    %1743 = vmatprep.subr.bf16.mxu0 0
    %1744 = vmatpush1.bf16.msra.mxu0 0
    %1745 = vmatprep.subr.bf16.mxu0 0
    %1746 = vmatpush1.bf16.msra.mxu0 0
    %1747 = vmatprep.subr.bf16.mxu0 0
    %1748 = vmatpush1.bf16.msra.mxu0 0
    %1749 = vmatprep.subr.bf16.mxu0 0
    %1750 = vmatpush1.bf16.msra.mxu0 0
    %1751 = vmatprep.mubr.bf16.mxu0 0
    %1752 = vmatmul.mubr.bf16.gmra.mrb[0].mxu0 %v1687
    %v1753 = vpop.f32.mrb[0].mxu0
    %v1754 = vadd.f32 0.0, %v1753
    %v1755 = vpop.f32.mrb[0].mxu0
    %v1756 = vadd.f32 0.0, %v1755
    %v1757 = vpop.f32.mrb[0].mxu0
    %v1758 = vadd.f32 0.0, %v1757
    %v1759 = vpop.f32.mrb[0].mxu0
    %v1760 = vadd.f32 0.0, %v1759
    %1761 = vdwg.mxu0
    %1762 = vmatprep.subr.bf16.mxu0 %v1158
    %1763 = vmatpush1.bf16.msra.mxu0 %v1157
    %1764 = vmatprep.subr.bf16.mxu0 %v1162
    %1765 = vmatpush1.bf16.msra.mxu0 %v1161
    %1766 = vmatprep.subr.bf16.mxu0 %v1166
    %1767 = vmatpush1.bf16.msra.mxu0 %v1165
    %1768 = vmatprep.subr.bf16.mxu0 %v1170
    %1769 = vmatpush1.bf16.msra.mxu0 %v1169
    %1770 = vmatprep.subr.bf16.mxu0 %v1174
    %1771 = vmatpush1.bf16.msra.mxu0 %v1173
    %1772 = vmatprep.subr.bf16.mxu0 %v1178
    %1773 = vmatpush1.bf16.msra.mxu0 %v1177
    %1774 = vmatprep.subr.bf16.mxu0 %v1182
    %1775 = vmatpush1.bf16.msra.mxu0 %v1181
    %1776 = vmatprep.subr.bf16.mxu0 %v1186
    %1777 = vmatpush1.bf16.msra.mxu0 %v1185
    %1778 = vmatprep.subr.bf16.mxu0 0
    %1779 = vmatpush1.bf16.msra.mxu0 0
    %1780 = vmatprep.subr.bf16.mxu0 0
    %1781 = vmatpush1.bf16.msra.mxu0 0
    %1782 = vmatprep.subr.bf16.mxu0 0
    %1783 = vmatpush1.bf16.msra.mxu0 0
    %1784 = vmatprep.subr.bf16.mxu0 0
    %1785 = vmatpush1.bf16.msra.mxu0 0
    %1786 = vmatprep.subr.bf16.mxu0 0
    %1787 = vmatpush1.bf16.msra.mxu0 0
    %1788 = vmatprep.subr.bf16.mxu0 0
    %1789 = vmatpush1.bf16.msra.mxu0 0
    %1790 = vmatprep.subr.bf16.mxu0 0
    %1791 = vmatpush1.bf16.msra.mxu0 0
    %1792 = vmatprep.subr.bf16.mxu0 0
    %1793 = vmatpush1.bf16.msra.mxu0 0
    %1794 = vmatprep.mubr.bf16.mxu0 0
    %1795 = vmatmul.mubr.bf16.gmra.mrb[0].mxu0 %v1687
    %v1796 = vpop.f32.mrb[0].mxu0
    %v1797 = vadd.f32 0.0, %v1796
    %v1798 = vpop.f32.mrb[0].mxu0
    %v1799 = vadd.f32 0.0, %v1798
    %v1800 = vpop.f32.mrb[0].mxu0
    %v1801 = vadd.f32 0.0, %v1800
    %v1802 = vpop.f32.mrb[0].mxu0
    %v1803 = vadd.f32 0.0, %v1802
    %1804 = vdwg.mxu0
    %v1805 = vadd.f32 %v1711, %v1754
    %v1806 = vadd.f32 %v1712, %v1756
    %v1807 = vadd.f32 %v1713, %v1797
    %v1808 = vadd.f32 %v1714, %v1799
    %v1809 = vadd.f32 %v1715, %v1758
    %v1810 = vadd.f32 %v1716, %v1760
    %v1811 = vadd.f32 %v1717, %v1801
    %v1812 = vadd.f32 %v1718, %v1803
    %v1813 = vld [vmem:[#allocation4 + $0xc0] sm:$0xff]
    %v1814 = vld [vmem:[#allocation4 + $0xc8] sm:$0xff]
    %v1815 = vld [vmem:[#allocation4 + $0xd0] sm:$0xff]
    %v1816 = vld [vmem:[#allocation4 + $0xd8] sm:$0xff]
    %v1817 = vunpack.c.l.bf16 %v1813
    %v1818 = vunpack.c.l.bf16 %v1814
    %v1819 = vunpack.c.l.bf16 %v1815
    %v1820 = vunpack.c.l.bf16 %v1816
    %v1821 = vunpack.c.h.bf16 %v1813
    %v1822 = vunpack.c.h.bf16 %v1814
    %v1823 = vunpack.c.h.bf16 %v1815
    %v1824 = vunpack.c.h.bf16 %v1816
    %1825 = vmatprep.subr.bf16.mxu0 %v1422
    %1826 = vmatpush1.bf16.msra.mxu0 %v1421
    %1827 = vmatprep.subr.bf16.mxu0 %v1426
    %1828 = vmatpush1.bf16.msra.mxu0 %v1425
    %1829 = vmatprep.subr.bf16.mxu0 %v1430
    %1830 = vmatpush1.bf16.msra.mxu0 %v1429
    %1831 = vmatprep.subr.bf16.mxu0 %v1434
    %1832 = vmatpush1.bf16.msra.mxu0 %v1433
    %1833 = vmatprep.subr.bf16.mxu0 %v1438
    %1834 = vmatpush1.bf16.msra.mxu0 %v1437
    %1835 = vmatprep.subr.bf16.mxu0 %v1442
    %1836 = vmatpush1.bf16.msra.mxu0 %v1441
    %1837 = vmatprep.subr.bf16.mxu0 %v1446
    %1838 = vmatpush1.bf16.msra.mxu0 %v1445
    %1839 = vmatprep.subr.bf16.mxu0 %v1450
    %1840 = vmatpush1.bf16.msra.mxu0 %v1449
    %1841 = vmatprep.subr.bf16.mxu0 0
    %1842 = vmatpush1.bf16.msra.mxu0 0
    %1843 = vmatprep.subr.bf16.mxu0 0
    %1844 = vmatpush1.bf16.msra.mxu0 0
    %1845 = vmatprep.subr.bf16.mxu0 0
    %1846 = vmatpush1.bf16.msra.mxu0 0
    %1847 = vmatprep.subr.bf16.mxu0 0
    %1848 = vmatpush1.bf16.msra.mxu0 0
    %1849 = vmatprep.subr.bf16.mxu0 0
    %1850 = vmatpush1.bf16.msra.mxu0 0
    %1851 = vmatprep.subr.bf16.mxu0 0
    %1852 = vmatpush1.bf16.msra.mxu0 0
    %1853 = vmatprep.subr.bf16.mxu0 0
    %1854 = vmatpush1.bf16.msra.mxu0 0
    %1855 = vmatprep.subr.bf16.mxu0 0
    %1856 = vmatpush1.bf16.msra.mxu0 0
    %1857 = vmatprep.mubr.bf16.mxu0 0
    %1858 = vmatmul.mubr.bf16.gmra.mrb[0].mxu0 %v1701
    %v1859 = vpop.f32.mrb[0].mxu0
    %v1860 = vadd.f32 0.0, %v1859
    %v1861 = vpop.f32.mrb[0].mxu0
    %v1862 = vadd.f32 0.0, %v1861
    %v1863 = vpop.f32.mrb[0].mxu0
    %v1864 = vadd.f32 0.0, %v1863
    %v1865 = vpop.f32.mrb[0].mxu0
    %v1866 = vadd.f32 0.0, %v1865
    %1867 = vdwg.mxu0
    %1868 = vmatprep.subr.bf16.mxu0 %v1424
    %1869 = vmatpush1.bf16.msra.mxu0 %v1423
    %1870 = vmatprep.subr.bf16.mxu0 %v1428
    %1871 = vmatpush1.bf16.msra.mxu0 %v1427
    %1872 = vmatprep.subr.bf16.mxu0 %v1432
    %1873 = vmatpush1.bf16.msra.mxu0 %v1431
    %1874 = vmatprep.subr.bf16.mxu0 %v1436
    %1875 = vmatpush1.bf16.msra.mxu0 %v1435
    %1876 = vmatprep.subr.bf16.mxu0 %v1440
    %1877 = vmatpush1.bf16.msra.mxu0 %v1439
    %1878 = vmatprep.subr.bf16.mxu0 %v1444
    %1879 = vmatpush1.bf16.msra.mxu0 %v1443
    %1880 = vmatprep.subr.bf16.mxu0 %v1448
    %1881 = vmatpush1.bf16.msra.mxu0 %v1447
    %1882 = vmatprep.subr.bf16.mxu0 %v1452
    %1883 = vmatpush1.bf16.msra.mxu0 %v1451
    %1884 = vmatprep.subr.bf16.mxu0 0
    %1885 = vmatpush1.bf16.msra.mxu0 0
    %1886 = vmatprep.subr.bf16.mxu0 0
    %1887 = vmatpush1.bf16.msra.mxu0 0
    %1888 = vmatprep.subr.bf16.mxu0 0
    %1889 = vmatpush1.bf16.msra.mxu0 0
    %1890 = vmatprep.subr.bf16.mxu0 0
    %1891 = vmatpush1.bf16.msra.mxu0 0
    %1892 = vmatprep.subr.bf16.mxu0 0
    %1893 = vmatpush1.bf16.msra.mxu0 0
    %1894 = vmatprep.subr.bf16.mxu0 0
    %1895 = vmatpush1.bf16.msra.mxu0 0
    %1896 = vmatprep.subr.bf16.mxu0 0
    %1897 = vmatpush1.bf16.msra.mxu0 0
    %1898 = vmatprep.subr.bf16.mxu0 0
    %1899 = vmatpush1.bf16.msra.mxu0 0
    %1900 = vmatprep.mubr.bf16.mxu0 0
    %1901 = vmatmul.mubr.bf16.gmra.mrb[0].mxu0 %v1701
    %v1902 = vpop.f32.mrb[0].mxu0
    %v1903 = vadd.f32 0.0, %v1902
    %v1904 = vpop.f32.mrb[0].mxu0
    %v1905 = vadd.f32 0.0, %v1904
    %v1906 = vpop.f32.mrb[0].mxu0
    %v1907 = vadd.f32 0.0, %v1906
    %v1908 = vpop.f32.mrb[0].mxu0
    %v1909 = vadd.f32 0.0, %v1908
    %1910 = vdwg.mxu0
    %v1911 = vadd.f32 %v1817, %v1860
    %v1912 = vadd.f32 %v1818, %v1862
    %v1913 = vadd.f32 %v1819, %v1903
    %v1914 = vadd.f32 %v1820, %v1905
    %v1915 = vadd.f32 %v1821, %v1864
    %v1916 = vadd.f32 %v1822, %v1866
    %v1917 = vadd.f32 %v1823, %v1907
    %v1918 = vadd.f32 %v1824, %v1909
    %v1919 = vxor.u32 %v1805, 2147483648
    %v1920 = vxor.u32 %v1809, 2147483648
    %v1921 = vmul.f32 %v1919, 1.442695
    %v1922 = vpow.pop %v1921
    %v1923 = vmul.f32 %v1920, 1.442695
    %v1924 = vpow.pop %v1923
    %v1925 = vadd.f32 %v1922, 1.0
    %v1926 = vadd.f32 %v1924, 1.0
    %v1927 = vrcp.pop %v1925
    %v1928 = vmul.f32 1.0, %v1927
    %v1929 = vrcp.pop %v1926
    %v1930 = vmul.f32 1.0, %v1929
    %v1931 = vxor.u32 %v1806, 2147483648
    %v1932 = vxor.u32 %v1810, 2147483648
    %v1933 = vmul.f32 %v1931, 1.442695
    %v1934 = vpow.pop %v1933
    %v1935 = vmul.f32 %v1932, 1.442695
    %v1936 = vpow.pop %v1935
    %v1937 = vadd.f32 %v1934, 1.0
    %v1938 = vadd.f32 %v1936, 1.0
    %v1939 = vrcp.pop %v1937
    %v1940 = vmul.f32 1.0, %v1939
    %v1941 = vrcp.pop %v1938
    %v1942 = vmul.f32 1.0, %v1941
    %v1943 = vtanh.pop %v1807
    %v1944 = vtanh.pop %v1811
    %v1945 = vxor.u32 %v1808, 2147483648
    %v1946 = vxor.u32 %v1812, 2147483648
    %v1947 = vmul.f32 %v1945, 1.442695
    %v1948 = vpow.pop %v1947
    %v1949 = vmul.f32 %v1946, 1.442695
    %v1950 = vpow.pop %v1949
    %v1951 = vadd.f32 %v1948, 1.0
    %v1952 = vadd.f32 %v1950, 1.0
    %v1953 = vrcp.pop %v1951
    %v1954 = vmul.f32 1.0, %v1953
    %v1955 = vrcp.pop %v1952
    %v1956 = vmul.f32 1.0, %v1955
    %v1957 = vmul.f32 %v1940, %v1703
    %v1958 = vmul.f32 %v1942, %v1704
    %v1959 = vmul.f32 %v1928, %v1943
    %v1960 = vmul.f32 %v1930, %v1944
    %v1961 = vadd.f32 %v1957, %v1959
    %v1962 = vadd.f32 %v1958, %v1960
    %v1963 = vtanh.pop %v1961
    %v1964 = vtanh.pop %v1962
    %v1965 = vmul.f32 %v1954, %v1963
    %v1966 = vmul.f32 %v1956, %v1964
    %v1967 = vxor.u32 %v1911, 2147483648
    %v1968 = vxor.u32 %v1915, 2147483648
    %v1969 = vmul.f32 %v1967, 1.442695
    %v1970 = vpow.pop %v1969
    %v1971 = vmul.f32 %v1968, 1.442695
    %v1972 = vpow.pop %v1971
    %v1973 = vadd.f32 %v1970, 1.0
    %v1974 = vadd.f32 %v1972, 1.0
    %v1975 = vrcp.pop %v1973
    %v1976 = vmul.f32 1.0, %v1975
    %v1977 = vrcp.pop %v1974
    %v1978 = vmul.f32 1.0, %v1977
    %v1979 = vxor.u32 %v1912, 2147483648
    %v1980 = vxor.u32 %v1916, 2147483648
    %v1981 = vmul.f32 %v1979, 1.442695
    %v1982 = vpow.pop %v1981
    %v1983 = vmul.f32 %v1980, 1.442695
    %v1984 = vpow.pop %v1983
    %v1985 = vadd.f32 %v1982, 1.0
    %v1986 = vadd.f32 %v1984, 1.0
    %v1987 = vrcp.pop %v1985
    %v1988 = vmul.f32 1.0, %v1987
    %v1989 = vrcp.pop %v1986
    %v1990 = vmul.f32 1.0, %v1989
    %v1991 = vtanh.pop %v1913
    %v1992 = vtanh.pop %v1917
    %v1993 = vxor.u32 %v1914, 2147483648
    %v1994 = vxor.u32 %v1918, 2147483648
    %v1995 = vmul.f32 %v1993, 1.442695
    %v1996 = vpow.pop %v1995
    %v1997 = vmul.f32 %v1994, 1.442695
    %v1998 = vpow.pop %v1997
    %v1999 = vadd.f32 %v1996, 1.0
    %v2000 = vadd.f32 %v1998, 1.0
    %v2001 = vrcp.pop %v1999
    %v2002 = vmul.f32 1.0, %v2001
    %v2003 = vrcp.pop %v2000
    %v2004 = vmul.f32 1.0, %v2003
    %v2005 = vmul.f32 %v1988, %v1705
    %v2006 = vmul.f32 %v1990, %v1706
    %v2007 = vmul.f32 %v1976, %v1991
    %v2008 = vmul.f32 %v1978, %v1992
    %v2009 = vadd.f32 %v2005, %v2007
    %v2010 = vadd.f32 %v2006, %v2008
    %v2011 = vtanh.pop %v2009
    %v2012 = vtanh.pop %v2010
    %v2013 = vmul.f32 %v2002, %v2011
    %v2014 = vmul.f32 %v2004, %v2012
    %v2015 = vsel %vm168, 1, 0
    %v2016 = vsel %vm169, 1, 0
    %2017 = vset.pattern.permute.xlu0 0
    %2018 = vperm.xlu0 %2017, %v2015
    %v2019 = vpop.permute.xlu0 %2018
    %2020 = vset.pattern.permute.xlu0 0
    %2021 = vperm.xlu0 %2020, %v2016
    %v2022 = vpop.permute.xlu0 %2021
    %vm2023 = vcmp.eq.s32.totalorder %v2019, 1
    %vm2024 = vcmp.eq.s32.totalorder %v2022, 1
    %v2025 = vsel %vm2023, %v1965, 0.0
    %v2026 = vsel %vm2024, %v1966, 0.0
    %v2027 = vpack.c.bf16 %v2026, %v2025
    %2028 = vst [vmem:[#allocation2 + $0x10] sm:$0xff] %v2027
    %v2029 = vsel %vm178, 1, 0
    %v2030 = vsel %vm179, 1, 0
    %2031 = vset.pattern.permute.xlu0 0
    %2032 = vperm.xlu0 %2031, %v2029
    %v2033 = vpop.permute.xlu0 %2032
    %2034 = vset.pattern.permute.xlu0 0
    %2035 = vperm.xlu0 %2034, %v2030
    %v2036 = vpop.permute.xlu0 %2035
    %vm2037 = vcmp.eq.s32.totalorder %v2033, 1
    %vm2038 = vcmp.eq.s32.totalorder %v2036, 1
    %v2039 = vsel %vm2037, %v2013, 0.0
    %v2040 = vsel %vm2038, %v2014, 0.0
    %v2041 = vpack.c.bf16 %v2040, %v2039
    %2042 = vst [vmem:[#allocation2 + $0x68] sm:$0xff] %v2041
    %v2043 = vsel %vm2023, %v1965, %v1685
    %v2044 = vsel %vm2024, %v1966, %v1686
    %v2045 = vsel %vm2023, %v1961, %v1703
    %v2046 = vsel %vm2024, %v1962, %v1704
    %v2047 = vsel %vm2037, %v2013, %v1699
    %v2048 = vsel %vm2038, %v2014, %v1700
    %v2049 = vsel %vm2037, %v2009, %v1705
    %v2050 = vsel %vm2038, %v2010, %v1706
    %v2051 = vld [vmem:[#allocation3 + $0x40] sm:$0xff]
    %v2052 = vld [vmem:[#allocation3 + $0x48] sm:$0xff]
    %v2053 = vld [vmem:[#allocation3 + $0x50] sm:$0xff]
    %v2054 = vld [vmem:[#allocation3 + $0x58] sm:$0xff]
    %v2055 = vunpack.c.l.bf16 %v2051
    %v2056 = vunpack.c.l.bf16 %v2052
    %v2057 = vunpack.c.l.bf16 %v2053
    %v2058 = vunpack.c.l.bf16 %v2054
    %v2059 = vunpack.c.h.bf16 %v2051
    %v2060 = vunpack.c.h.bf16 %v2052
    %v2061 = vunpack.c.h.bf16 %v2053
    %v2062 = vunpack.c.h.bf16 %v2054
    %v2063 = vpack.c.bf16 %v2044, %v2043
    %2064 = vmatprep.subr.bf16.mxu0 %v1156
    %2065 = vmatpush1.bf16.msra.mxu0 %v1155
    %2066 = vmatprep.subr.bf16.mxu0 %v1160
    %2067 = vmatpush1.bf16.msra.mxu0 %v1159
    %2068 = vmatprep.subr.bf16.mxu0 %v1164
    %2069 = vmatpush1.bf16.msra.mxu0 %v1163
    %2070 = vmatprep.subr.bf16.mxu0 %v1168
    %2071 = vmatpush1.bf16.msra.mxu0 %v1167
    %2072 = vmatprep.subr.bf16.mxu0 %v1172
    %2073 = vmatpush1.bf16.msra.mxu0 %v1171
    %2074 = vmatprep.subr.bf16.mxu0 %v1176
    %2075 = vmatpush1.bf16.msra.mxu0 %v1175
    %2076 = vmatprep.subr.bf16.mxu0 %v1180
    %2077 = vmatpush1.bf16.msra.mxu0 %v1179
    %2078 = vmatprep.subr.bf16.mxu0 %v1184
    %2079 = vmatpush1.bf16.msra.mxu0 %v1183
    %2080 = vmatprep.subr.bf16.mxu0 0
    %2081 = vmatpush1.bf16.msra.mxu0 0
    %2082 = vmatprep.subr.bf16.mxu0 0
    %2083 = vmatpush1.bf16.msra.mxu0 0
    %2084 = vmatprep.subr.bf16.mxu0 0
    %2085 = vmatpush1.bf16.msra.mxu0 0
    %2086 = vmatprep.subr.bf16.mxu0 0
    %2087 = vmatpush1.bf16.msra.mxu0 0
    %2088 = vmatprep.subr.bf16.mxu0 0
    %2089 = vmatpush1.bf16.msra.mxu0 0
    %2090 = vmatprep.subr.bf16.mxu0 0
    %2091 = vmatpush1.bf16.msra.mxu0 0
    %2092 = vmatprep.subr.bf16.mxu0 0
    %2093 = vmatpush1.bf16.msra.mxu0 0
    %2094 = vmatprep.subr.bf16.mxu0 0
    %2095 = vmatpush1.bf16.msra.mxu0 0
    %2096 = vmatprep.mubr.bf16.mxu0 0
    %2097 = vmatmul.mubr.bf16.gmra.mrb[0].mxu0 %v2063
    %v2098 = vpop.f32.mrb[0].mxu0
    %v2099 = vadd.f32 0.0, %v2098
    %v2100 = vpop.f32.mrb[0].mxu0
    %v2101 = vadd.f32 0.0, %v2100
    %v2102 = vpop.f32.mrb[0].mxu0
    %v2103 = vadd.f32 0.0, %v2102
    %v2104 = vpop.f32.mrb[0].mxu0
    %v2105 = vadd.f32 0.0, %v2104
    %2106 = vdwg.mxu0
    %2107 = vmatprep.subr.bf16.mxu0 %v1158
    %2108 = vmatpush1.bf16.msra.mxu0 %v1157
    %2109 = vmatprep.subr.bf16.mxu0 %v1162
    %2110 = vmatpush1.bf16.msra.mxu0 %v1161
    %2111 = vmatprep.subr.bf16.mxu0 %v1166
    %2112 = vmatpush1.bf16.msra.mxu0 %v1165
    %2113 = vmatprep.subr.bf16.mxu0 %v1170
    %2114 = vmatpush1.bf16.msra.mxu0 %v1169
    %2115 = vmatprep.subr.bf16.mxu0 %v1174
    %2116 = vmatpush1.bf16.msra.mxu0 %v1173
    %2117 = vmatprep.subr.bf16.mxu0 %v1178
    %2118 = vmatpush1.bf16.msra.mxu0 %v1177
    %2119 = vmatprep.subr.bf16.mxu0 %v1182
    %2120 = vmatpush1.bf16.msra.mxu0 %v1181
    %2121 = vmatprep.subr.bf16.mxu0 %v1186
    %2122 = vmatpush1.bf16.msra.mxu0 %v1185
    %2123 = vmatprep.subr.bf16.mxu0 0
    %2124 = vmatpush1.bf16.msra.mxu0 0
    %2125 = vmatprep.subr.bf16.mxu0 0
    %2126 = vmatpush1.bf16.msra.mxu0 0
    %2127 = vmatprep.subr.bf16.mxu0 0
    %2128 = vmatpush1.bf16.msra.mxu0 0
    %2129 = vmatprep.subr.bf16.mxu0 0
    %2130 = vmatpush1.bf16.msra.mxu0 0
    %2131 = vmatprep.subr.bf16.mxu0 0
    %2132 = vmatpush1.bf16.msra.mxu0 0
    %2133 = vmatprep.subr.bf16.mxu0 0
    %2134 = vmatpush1.bf16.msra.mxu0 0
    %2135 = vmatprep.subr.bf16.mxu0 0
    %2136 = vmatpush1.bf16.msra.mxu0 0
    %2137 = vmatprep.subr.bf16.mxu0 0
    %2138 = vmatpush1.bf16.msra.mxu0 0
    %2139 = vmatprep.mubr.bf16.mxu0 0
    %2140 = vmatmul.mubr.bf16.gmra.mrb[0].mxu0 %v2063
    %v2141 = vpop.f32.mrb[0].mxu0
    %v2142 = vadd.f32 0.0, %v2141
    %v2143 = vpop.f32.mrb[0].mxu0
    %v2144 = vadd.f32 0.0, %v2143
    %v2145 = vpop.f32.mrb[0].mxu0
    %v2146 = vadd.f32 0.0, %v2145
    %v2147 = vpop.f32.mrb[0].mxu0
    %v2148 = vadd.f32 0.0, %v2147
    %2149 = vdwg.mxu0
    %v2150 = vadd.f32 %v2055, %v2099
    %v2151 = vadd.f32 %v2056, %v2101
    %v2152 = vadd.f32 %v2057, %v2142
    %v2153 = vadd.f32 %v2058, %v2144
    %v2154 = vadd.f32 %v2059, %v2103
    %v2155 = vadd.f32 %v2060, %v2105
    %v2156 = vadd.f32 %v2061, %v2146
    %v2157 = vadd.f32 %v2062, %v2148
    %v2158 = vld [vmem:[#allocation4 + $0xa0] sm:$0xff]
    %v2159 = vld [vmem:[#allocation4 + $0xa8] sm:$0xff]
    %v2160 = vld [vmem:[#allocation4 + $0xb0] sm:$0xff]
    %v2161 = vld [vmem:[#allocation4 + $0xb8] sm:$0xff]
    %v2162 = vunpack.c.l.bf16 %v2158
    %v2163 = vunpack.c.l.bf16 %v2159
    %v2164 = vunpack.c.l.bf16 %v2160
    %v2165 = vunpack.c.l.bf16 %v2161
    %v2166 = vunpack.c.h.bf16 %v2158
    %v2167 = vunpack.c.h.bf16 %v2159
    %v2168 = vunpack.c.h.bf16 %v2160
    %v2169 = vunpack.c.h.bf16 %v2161
    %v2170 = vpack.c.bf16 %v2048, %v2047
    %2171 = vmatprep.subr.bf16.mxu0 %v1422
    %2172 = vmatpush1.bf16.msra.mxu0 %v1421
    %2173 = vmatprep.subr.bf16.mxu0 %v1426
    %2174 = vmatpush1.bf16.msra.mxu0 %v1425
    %2175 = vmatprep.subr.bf16.mxu0 %v1430
    %2176 = vmatpush1.bf16.msra.mxu0 %v1429
    %2177 = vmatprep.subr.bf16.mxu0 %v1434
    %2178 = vmatpush1.bf16.msra.mxu0 %v1433
    %2179 = vmatprep.subr.bf16.mxu0 %v1438
    %2180 = vmatpush1.bf16.msra.mxu0 %v1437
    %2181 = vmatprep.subr.bf16.mxu0 %v1442
    %2182 = vmatpush1.bf16.msra.mxu0 %v1441
    %2183 = vmatprep.subr.bf16.mxu0 %v1446
    %2184 = vmatpush1.bf16.msra.mxu0 %v1445
    %2185 = vmatprep.subr.bf16.mxu0 %v1450
    %2186 = vmatpush1.bf16.msra.mxu0 %v1449
    %2187 = vmatprep.subr.bf16.mxu0 0
    %2188 = vmatpush1.bf16.msra.mxu0 0
    %2189 = vmatprep.subr.bf16.mxu0 0
    %2190 = vmatpush1.bf16.msra.mxu0 0
    %2191 = vmatprep.subr.bf16.mxu0 0
    %2192 = vmatpush1.bf16.msra.mxu0 0
    %2193 = vmatprep.subr.bf16.mxu0 0
    %2194 = vmatpush1.bf16.msra.mxu0 0
    %2195 = vmatprep.subr.bf16.mxu0 0
    %2196 = vmatpush1.bf16.msra.mxu0 0
    %2197 = vmatprep.subr.bf16.mxu0 0
    %2198 = vmatpush1.bf16.msra.mxu0 0
    %2199 = vmatprep.subr.bf16.mxu0 0
    %2200 = vmatpush1.bf16.msra.mxu0 0
    %2201 = vmatprep.subr.bf16.mxu0 0
    %2202 = vmatpush1.bf16.msra.mxu0 0
    %2203 = vmatprep.mubr.bf16.mxu0 0
    %2204 = vmatmul.mubr.bf16.gmra.mrb[0].mxu0 %v2170
    %v2205 = vpop.f32.mrb[0].mxu0
    %v2206 = vadd.f32 0.0, %v2205
    %v2207 = vpop.f32.mrb[0].mxu0
    %v2208 = vadd.f32 0.0, %v2207
    %v2209 = vpop.f32.mrb[0].mxu0
    %v2210 = vadd.f32 0.0, %v2209
    %v2211 = vpop.f32.mrb[0].mxu0
    %v2212 = vadd.f32 0.0, %v2211
    %2213 = vdwg.mxu0
    %2214 = vmatprep.subr.bf16.mxu0 %v1424
    %2215 = vmatpush1.bf16.msra.mxu0 %v1423
    %2216 = vmatprep.subr.bf16.mxu0 %v1428
    %2217 = vmatpush1.bf16.msra.mxu0 %v1427
    %2218 = vmatprep.subr.bf16.mxu0 %v1432
    %2219 = vmatpush1.bf16.msra.mxu0 %v1431
    %2220 = vmatprep.subr.bf16.mxu0 %v1436
    %2221 = vmatpush1.bf16.msra.mxu0 %v1435
    %2222 = vmatprep.subr.bf16.mxu0 %v1440
    %2223 = vmatpush1.bf16.msra.mxu0 %v1439
    %2224 = vmatprep.subr.bf16.mxu0 %v1444
    %2225 = vmatpush1.bf16.msra.mxu0 %v1443
    %2226 = vmatprep.subr.bf16.mxu0 %v1448
    %2227 = vmatpush1.bf16.msra.mxu0 %v1447
    %2228 = vmatprep.subr.bf16.mxu0 %v1452
    %2229 = vmatpush1.bf16.msra.mxu0 %v1451
    %2230 = vmatprep.subr.bf16.mxu0 0
    %2231 = vmatpush1.bf16.msra.mxu0 0
    %2232 = vmatprep.subr.bf16.mxu0 0
    %2233 = vmatpush1.bf16.msra.mxu0 0
    %2234 = vmatprep.subr.bf16.mxu0 0
    %2235 = vmatpush1.bf16.msra.mxu0 0
    %2236 = vmatprep.subr.bf16.mxu0 0
    %2237 = vmatpush1.bf16.msra.mxu0 0
    %2238 = vmatprep.subr.bf16.mxu0 0
    %2239 = vmatpush1.bf16.msra.mxu0 0
    %2240 = vmatprep.subr.bf16.mxu0 0
    %2241 = vmatpush1.bf16.msra.mxu0 0
    %2242 = vmatprep.subr.bf16.mxu0 0
    %2243 = vmatpush1.bf16.msra.mxu0 0
    %2244 = vmatprep.subr.bf16.mxu0 0
    %2245 = vmatpush1.bf16.msra.mxu0 0
    %2246 = vmatprep.mubr.bf16.mxu0 0
    %2247 = vmatmul.mubr.bf16.gmra.mrb[0].mxu0 %v2170
    %v2248 = vpop.f32.mrb[0].mxu0
    %v2249 = vadd.f32 0.0, %v2248
    %v2250 = vpop.f32.mrb[0].mxu0
    %v2251 = vadd.f32 0.0, %v2250
    %v2252 = vpop.f32.mrb[0].mxu0
    %v2253 = vadd.f32 0.0, %v2252
    %v2254 = vpop.f32.mrb[0].mxu0
    %v2255 = vadd.f32 0.0, %v2254
    %2256 = vdwg.mxu0
    %v2257 = vadd.f32 %v2162, %v2206
    %v2258 = vadd.f32 %v2163, %v2208
    %v2259 = vadd.f32 %v2164, %v2249
    %v2260 = vadd.f32 %v2165, %v2251
    %v2261 = vadd.f32 %v2166, %v2210
    %v2262 = vadd.f32 %v2167, %v2212
    %v2263 = vadd.f32 %v2168, %v2253
    %v2264 = vadd.f32 %v2169, %v2255
    %v2265 = vxor.u32 %v2150, 2147483648
    %v2266 = vxor.u32 %v2154, 2147483648
    %v2267 = vmul.f32 %v2265, 1.442695
    %v2268 = vpow.pop %v2267
    %v2269 = vmul.f32 %v2266, 1.442695
    %v2270 = vpow.pop %v2269
    %v2271 = vadd.f32 %v2268, 1.0
    %v2272 = vadd.f32 %v2270, 1.0
    %v2273 = vrcp.pop %v2271
    %v2274 = vmul.f32 1.0, %v2273
    %v2275 = vrcp.pop %v2272
    %v2276 = vmul.f32 1.0, %v2275
    %v2277 = vxor.u32 %v2151, 2147483648
    %v2278 = vxor.u32 %v2155, 2147483648
    %v2279 = vmul.f32 %v2277, 1.442695
    %v2280 = vpow.pop %v2279
    %v2281 = vmul.f32 %v2278, 1.442695
    %v2282 = vpow.pop %v2281
    %v2283 = vadd.f32 %v2280, 1.0
    %v2284 = vadd.f32 %v2282, 1.0
    %v2285 = vrcp.pop %v2283
    %v2286 = vmul.f32 1.0, %v2285
    %v2287 = vrcp.pop %v2284
    %v2288 = vmul.f32 1.0, %v2287
    %v2289 = vtanh.pop %v2152
    %v2290 = vtanh.pop %v2156
    %v2291 = vxor.u32 %v2153, 2147483648
    %v2292 = vxor.u32 %v2157, 2147483648
    %v2293 = vmul.f32 %v2291, 1.442695
    %v2294 = vpow.pop %v2293
    %v2295 = vmul.f32 %v2292, 1.442695
    %v2296 = vpow.pop %v2295
    %v2297 = vadd.f32 %v2294, 1.0
    %v2298 = vadd.f32 %v2296, 1.0
    %v2299 = vrcp.pop %v2297
    %v2300 = vmul.f32 1.0, %v2299
    %v2301 = vrcp.pop %v2298
    %v2302 = vmul.f32 1.0, %v2301
    %v2303 = vmul.f32 %v2286, %v2045
    %v2304 = vmul.f32 %v2288, %v2046
    %v2305 = vmul.f32 %v2274, %v2289
    %v2306 = vmul.f32 %v2276, %v2290
    %v2307 = vadd.f32 %v2303, %v2305
    %v2308 = vadd.f32 %v2304, %v2306
    %v2309 = vtanh.pop %v2307
    %v2310 = vtanh.pop %v2308
    %v2311 = vmul.f32 %v2300, %v2309
    %v2312 = vmul.f32 %v2302, %v2310
    %v2313 = vxor.u32 %v2257, 2147483648
    %v2314 = vxor.u32 %v2261, 2147483648
    %v2315 = vmul.f32 %v2313, 1.442695
    %v2316 = vpow.pop %v2315
    %v2317 = vmul.f32 %v2314, 1.442695
    %v2318 = vpow.pop %v2317
    %v2319 = vadd.f32 %v2316, 1.0
    %v2320 = vadd.f32 %v2318, 1.0
    %v2321 = vrcp.pop %v2319
    %v2322 = vmul.f32 1.0, %v2321
    %v2323 = vrcp.pop %v2320
    %v2324 = vmul.f32 1.0, %v2323
    %v2325 = vxor.u32 %v2258, 2147483648
    %v2326 = vxor.u32 %v2262, 2147483648
    %v2327 = vmul.f32 %v2325, 1.442695
    %v2328 = vpow.pop %v2327
    %v2329 = vmul.f32 %v2326, 1.442695
    %v2330 = vpow.pop %v2329
    %v2331 = vadd.f32 %v2328, 1.0
    %v2332 = vadd.f32 %v2330, 1.0
    %v2333 = vrcp.pop %v2331
    %v2334 = vmul.f32 1.0, %v2333
    %v2335 = vrcp.pop %v2332
    %v2336 = vmul.f32 1.0, %v2335
    %v2337 = vtanh.pop %v2259
    %v2338 = vtanh.pop %v2263
    %v2339 = vxor.u32 %v2260, 2147483648
    %v2340 = vxor.u32 %v2264, 2147483648
    %v2341 = vmul.f32 %v2339, 1.442695
    %v2342 = vpow.pop %v2341
    %v2343 = vmul.f32 %v2340, 1.442695
    %v2344 = vpow.pop %v2343
    %v2345 = vadd.f32 %v2342, 1.0
    %v2346 = vadd.f32 %v2344, 1.0
    %v2347 = vrcp.pop %v2345
    %v2348 = vmul.f32 1.0, %v2347
    %v2349 = vrcp.pop %v2346
    %v2350 = vmul.f32 1.0, %v2349
    %v2351 = vmul.f32 %v2334, %v2049
    %v2352 = vmul.f32 %v2336, %v2050
    %v2353 = vmul.f32 %v2322, %v2337
    %v2354 = vmul.f32 %v2324, %v2338
    %v2355 = vadd.f32 %v2351, %v2353
    %v2356 = vadd.f32 %v2352, %v2354
    %v2357 = vtanh.pop %v2355
    %v2358 = vtanh.pop %v2356
    %v2359 = vmul.f32 %v2348, %v2357
    %v2360 = vmul.f32 %v2350, %v2358
    %v2361 = vsel %vm170, 1, 0
    %v2362 = vsel %vm171, 1, 0
    %2363 = vset.pattern.permute.xlu0 0
    %2364 = vperm.xlu0 %2363, %v2361
    %v2365 = vpop.permute.xlu0 %2364
    %2366 = vset.pattern.permute.xlu0 0
    %2367 = vperm.xlu0 %2366, %v2362
    %v2368 = vpop.permute.xlu0 %2367
    %vm2369 = vcmp.eq.s32.totalorder %v2365, 1
    %vm2370 = vcmp.eq.s32.totalorder %v2368, 1
    %v2371 = vsel %vm2369, %v2311, 0.0
    %v2372 = vsel %vm2370, %v2312, 0.0
    %v2373 = vpack.c.bf16 %v2372, %v2371
    %2374 = vst [vmem:[#allocation2 + $0x20] sm:$0xff] %v2373
    %v2375 = vsel %vm176, 1, 0
    %v2376 = vsel %vm177, 1, 0
    %2377 = vset.pattern.permute.xlu0 0
    %2378 = vperm.xlu0 %2377, %v2375
    %v2379 = vpop.permute.xlu0 %2378
    %2380 = vset.pattern.permute.xlu0 0
    %2381 = vperm.xlu0 %2380, %v2376
    %v2382 = vpop.permute.xlu0 %2381
    %vm2383 = vcmp.eq.s32.totalorder %v2379, 1
    %vm2384 = vcmp.eq.s32.totalorder %v2382, 1
    %v2385 = vsel %vm2383, %v2359, 0.0
    %v2386 = vsel %vm2384, %v2360, 0.0
    %v2387 = vpack.c.bf16 %v2386, %v2385
    %2388 = vst [vmem:[#allocation2 + $0x58] sm:$0xff] %v2387
    %v2389 = vsel %vm2369, %v2311, %v2043
    %v2390 = vsel %vm2370, %v2312, %v2044
    %v2391 = vsel %vm2369, %v2307, %v2045
    %v2392 = vsel %vm2370, %v2308, %v2046
    %v2393 = vsel %vm2383, %v2359, %v2047
    %v2394 = vsel %vm2384, %v2360, %v2048
    %v2395 = vsel %vm2383, %v2355, %v2049
    %v2396 = vsel %vm2384, %v2356, %v2050
    %v2397 = vld [vmem:[#allocation3 + $0x60] sm:$0xff]
    %v2398 = vld [vmem:[#allocation3 + $0x68] sm:$0xff]
    %v2399 = vld [vmem:[#allocation3 + $0x70] sm:$0xff]
    %v2400 = vld [vmem:[#allocation3 + $0x78] sm:$0xff]
    %v2401 = vunpack.c.l.bf16 %v2397
    %v2402 = vunpack.c.l.bf16 %v2398
    %v2403 = vunpack.c.l.bf16 %v2399
    %v2404 = vunpack.c.l.bf16 %v2400
    %v2405 = vunpack.c.h.bf16 %v2397
    %v2406 = vunpack.c.h.bf16 %v2398
    %v2407 = vunpack.c.h.bf16 %v2399
    %v2408 = vunpack.c.h.bf16 %v2400
    %v2409 = vpack.c.bf16 %v2390, %v2389
    %2410 = vmatprep.subr.bf16.mxu0 %v1156
    %2411 = vmatpush1.bf16.msra.mxu0 %v1155
    %2412 = vmatprep.subr.bf16.mxu0 %v1160
    %2413 = vmatpush1.bf16.msra.mxu0 %v1159
    %2414 = vmatprep.subr.bf16.mxu0 %v1164
    %2415 = vmatpush1.bf16.msra.mxu0 %v1163
    %2416 = vmatprep.subr.bf16.mxu0 %v1168
    %2417 = vmatpush1.bf16.msra.mxu0 %v1167
    %2418 = vmatprep.subr.bf16.mxu0 %v1172
    %2419 = vmatpush1.bf16.msra.mxu0 %v1171
    %2420 = vmatprep.subr.bf16.mxu0 %v1176
    %2421 = vmatpush1.bf16.msra.mxu0 %v1175
    %2422 = vmatprep.subr.bf16.mxu0 %v1180
    %2423 = vmatpush1.bf16.msra.mxu0 %v1179
    %2424 = vmatprep.subr.bf16.mxu0 %v1184
    %2425 = vmatpush1.bf16.msra.mxu0 %v1183
    %2426 = vmatprep.subr.bf16.mxu0 0
    %2427 = vmatpush1.bf16.msra.mxu0 0
    %2428 = vmatprep.subr.bf16.mxu0 0
    %2429 = vmatpush1.bf16.msra.mxu0 0
    %2430 = vmatprep.subr.bf16.mxu0 0
    %2431 = vmatpush1.bf16.msra.mxu0 0
    %2432 = vmatprep.subr.bf16.mxu0 0
    %2433 = vmatpush1.bf16.msra.mxu0 0
    %2434 = vmatprep.subr.bf16.mxu0 0
    %2435 = vmatpush1.bf16.msra.mxu0 0
    %2436 = vmatprep.subr.bf16.mxu0 0
    %2437 = vmatpush1.bf16.msra.mxu0 0
    %2438 = vmatprep.subr.bf16.mxu0 0
    %2439 = vmatpush1.bf16.msra.mxu0 0
    %2440 = vmatprep.subr.bf16.mxu0 0
    %2441 = vmatpush1.bf16.msra.mxu0 0
    %2442 = vmatprep.mubr.bf16.mxu0 0
    %2443 = vmatmul.mubr.bf16.gmra.mrb[0].mxu0 %v2409
    %v2444 = vpop.f32.mrb[0].mxu0
    %v2445 = vadd.f32 0.0, %v2444
    %v2446 = vpop.f32.mrb[0].mxu0
    %v2447 = vadd.f32 0.0, %v2446
    %v2448 = vpop.f32.mrb[0].mxu0
    %v2449 = vadd.f32 0.0, %v2448
    %v2450 = vpop.f32.mrb[0].mxu0
    %v2451 = vadd.f32 0.0, %v2450
    %2452 = vdwg.mxu0
    %2453 = vmatprep.subr.bf16.mxu0 %v1158
    %2454 = vmatpush1.bf16.msra.mxu0 %v1157
    %2455 = vmatprep.subr.bf16.mxu0 %v1162
    %2456 = vmatpush1.bf16.msra.mxu0 %v1161
    %2457 = vmatprep.subr.bf16.mxu0 %v1166
    %2458 = vmatpush1.bf16.msra.mxu0 %v1165
    %2459 = vmatprep.subr.bf16.mxu0 %v1170
    %2460 = vmatpush1.bf16.msra.mxu0 %v1169
    %2461 = vmatprep.subr.bf16.mxu0 %v1174
    %2462 = vmatpush1.bf16.msra.mxu0 %v1173
    %2463 = vmatprep.subr.bf16.mxu0 %v1178
    %2464 = vmatpush1.bf16.msra.mxu0 %v1177
    %2465 = vmatprep.subr.bf16.mxu0 %v1182
    %2466 = vmatpush1.bf16.msra.mxu0 %v1181
    %2467 = vmatprep.subr.bf16.mxu0 %v1186
    %2468 = vmatpush1.bf16.msra.mxu0 %v1185
    %2469 = vmatprep.subr.bf16.mxu0 0
    %2470 = vmatpush1.bf16.msra.mxu0 0
    %2471 = vmatprep.subr.bf16.mxu0 0
    %2472 = vmatpush1.bf16.msra.mxu0 0
    %2473 = vmatprep.subr.bf16.mxu0 0
    %2474 = vmatpush1.bf16.msra.mxu0 0
    %2475 = vmatprep.subr.bf16.mxu0 0
    %2476 = vmatpush1.bf16.msra.mxu0 0
    %2477 = vmatprep.subr.bf16.mxu0 0
    %2478 = vmatpush1.bf16.msra.mxu0 0
    %2479 = vmatprep.subr.bf16.mxu0 0
    %2480 = vmatpush1.bf16.msra.mxu0 0
    %2481 = vmatprep.subr.bf16.mxu0 0
    %2482 = vmatpush1.bf16.msra.mxu0 0
    %2483 = vmatprep.subr.bf16.mxu0 0
    %2484 = vmatpush1.bf16.msra.mxu0 0
    %2485 = vmatprep.mubr.bf16.mxu0 0
    %2486 = vmatmul.mubr.bf16.gmra.mrb[0].mxu0 %v2409
    %v2487 = vpop.f32.mrb[0].mxu0
    %v2488 = vadd.f32 0.0, %v2487
    %v2489 = vpop.f32.mrb[0].mxu0
    %v2490 = vadd.f32 0.0, %v2489
    %v2491 = vpop.f32.mrb[0].mxu0
    %v2492 = vadd.f32 0.0, %v2491
    %v2493 = vpop.f32.mrb[0].mxu0
    %v2494 = vadd.f32 0.0, %v2493
    %2495 = vdwg.mxu0
    %v2496 = vadd.f32 %v2401, %v2445
    %v2497 = vadd.f32 %v2402, %v2447
    %v2498 = vadd.f32 %v2403, %v2488
    %v2499 = vadd.f32 %v2404, %v2490
    %v2500 = vadd.f32 %v2405, %v2449
    %v2501 = vadd.f32 %v2406, %v2451
    %v2502 = vadd.f32 %v2407, %v2492
    %v2503 = vadd.f32 %v2408, %v2494
    %v2504 = vld [vmem:[#allocation4 + $0x80] sm:$0xff]
    %v2505 = vld [vmem:[#allocation4 + $0x88] sm:$0xff]
    %v2506 = vld [vmem:[#allocation4 + $0x90] sm:$0xff]
    %v2507 = vld [vmem:[#allocation4 + $0x98] sm:$0xff]
    %v2508 = vunpack.c.l.bf16 %v2504
    %v2509 = vunpack.c.l.bf16 %v2505
    %v2510 = vunpack.c.l.bf16 %v2506
    %v2511 = vunpack.c.l.bf16 %v2507
    %v2512 = vunpack.c.h.bf16 %v2504
    %v2513 = vunpack.c.h.bf16 %v2505
    %v2514 = vunpack.c.h.bf16 %v2506
    %v2515 = vunpack.c.h.bf16 %v2507
    %v2516 = vpack.c.bf16 %v2394, %v2393
    %2517 = vmatprep.subr.bf16.mxu0 %v1422
    %2518 = vmatpush1.bf16.msra.mxu0 %v1421
    %2519 = vmatprep.subr.bf16.mxu0 %v1426
    %2520 = vmatpush1.bf16.msra.mxu0 %v1425
    %2521 = vmatprep.subr.bf16.mxu0 %v1430
    %2522 = vmatpush1.bf16.msra.mxu0 %v1429
    %2523 = vmatprep.subr.bf16.mxu0 %v1434
    %2524 = vmatpush1.bf16.msra.mxu0 %v1433
    %2525 = vmatprep.subr.bf16.mxu0 %v1438
    %2526 = vmatpush1.bf16.msra.mxu0 %v1437
    %2527 = vmatprep.subr.bf16.mxu0 %v1442
    %2528 = vmatpush1.bf16.msra.mxu0 %v1441
    %2529 = vmatprep.subr.bf16.mxu0 %v1446
    %2530 = vmatpush1.bf16.msra.mxu0 %v1445
    %2531 = vmatprep.subr.bf16.mxu0 %v1450
    %2532 = vmatpush1.bf16.msra.mxu0 %v1449
    %2533 = vmatprep.subr.bf16.mxu0 0
    %2534 = vmatpush1.bf16.msra.mxu0 0
    %2535 = vmatprep.subr.bf16.mxu0 0
    %2536 = vmatpush1.bf16.msra.mxu0 0
    %2537 = vmatprep.subr.bf16.mxu0 0
    %2538 = vmatpush1.bf16.msra.mxu0 0
    %2539 = vmatprep.subr.bf16.mxu0 0
    %2540 = vmatpush1.bf16.msra.mxu0 0
    %2541 = vmatprep.subr.bf16.mxu0 0
    %2542 = vmatpush1.bf16.msra.mxu0 0
    %2543 = vmatprep.subr.bf16.mxu0 0
    %2544 = vmatpush1.bf16.msra.mxu0 0
    %2545 = vmatprep.subr.bf16.mxu0 0
    %2546 = vmatpush1.bf16.msra.mxu0 0
    %2547 = vmatprep.subr.bf16.mxu0 0
    %2548 = vmatpush1.bf16.msra.mxu0 0
    %2549 = vmatprep.mubr.bf16.mxu0 0
    %2550 = vmatmul.mubr.bf16.gmra.mrb[0].mxu0 %v2516
    %v2551 = vpop.f32.mrb[0].mxu0
    %v2552 = vadd.f32 0.0, %v2551
    %v2553 = vpop.f32.mrb[0].mxu0
    %v2554 = vadd.f32 0.0, %v2553
    %v2555 = vpop.f32.mrb[0].mxu0
    %v2556 = vadd.f32 0.0, %v2555
    %v2557 = vpop.f32.mrb[0].mxu0
    %v2558 = vadd.f32 0.0, %v2557
    %2559 = vdwg.mxu0
    %2560 = vmatprep.subr.bf16.mxu0 %v1424
    %2561 = vmatpush1.bf16.msra.mxu0 %v1423
    %2562 = vmatprep.subr.bf16.mxu0 %v1428
    %2563 = vmatpush1.bf16.msra.mxu0 %v1427
    %2564 = vmatprep.subr.bf16.mxu0 %v1432
    %2565 = vmatpush1.bf16.msra.mxu0 %v1431
    %2566 = vmatprep.subr.bf16.mxu0 %v1436
    %2567 = vmatpush1.bf16.msra.mxu0 %v1435
    %2568 = vmatprep.subr.bf16.mxu0 %v1440
    %2569 = vmatpush1.bf16.msra.mxu0 %v1439
    %2570 = vmatprep.subr.bf16.mxu0 %v1444
    %2571 = vmatpush1.bf16.msra.mxu0 %v1443
    %2572 = vmatprep.subr.bf16.mxu0 %v1448
    %2573 = vmatpush1.bf16.msra.mxu0 %v1447
    %2574 = vmatprep.subr.bf16.mxu0 %v1452
    %2575 = vmatpush1.bf16.msra.mxu0 %v1451
    %2576 = vmatprep.subr.bf16.mxu0 0
    %2577 = vmatpush1.bf16.msra.mxu0 0
    %2578 = vmatprep.subr.bf16.mxu0 0
    %2579 = vmatpush1.bf16.msra.mxu0 0
    %2580 = vmatprep.subr.bf16.mxu0 0
    %2581 = vmatpush1.bf16.msra.mxu0 0
    %2582 = vmatprep.subr.bf16.mxu0 0
    %2583 = vmatpush1.bf16.msra.mxu0 0
    %2584 = vmatprep.subr.bf16.mxu0 0
    %2585 = vmatpush1.bf16.msra.mxu0 0
    %2586 = vmatprep.subr.bf16.mxu0 0
    %2587 = vmatpush1.bf16.msra.mxu0 0
    %2588 = vmatprep.subr.bf16.mxu0 0
    %2589 = vmatpush1.bf16.msra.mxu0 0
    %2590 = vmatprep.subr.bf16.mxu0 0
    %2591 = vmatpush1.bf16.msra.mxu0 0
    %2592 = vmatprep.mubr.bf16.mxu0 0
    %2593 = vmatmul.mubr.bf16.gmra.mrb[0].mxu0 %v2516
    %v2594 = vpop.f32.mrb[0].mxu0
    %v2595 = vadd.f32 0.0, %v2594
    %v2596 = vpop.f32.mrb[0].mxu0
    %v2597 = vadd.f32 0.0, %v2596
    %v2598 = vpop.f32.mrb[0].mxu0
    %v2599 = vadd.f32 0.0, %v2598
    %v2600 = vpop.f32.mrb[0].mxu0
    %v2601 = vadd.f32 0.0, %v2600
    %2602 = vdwg.mxu0
    %v2603 = vadd.f32 %v2508, %v2552
    %v2604 = vadd.f32 %v2509, %v2554
    %v2605 = vadd.f32 %v2510, %v2595
    %v2606 = vadd.f32 %v2511, %v2597
    %v2607 = vadd.f32 %v2512, %v2556
    %v2608 = vadd.f32 %v2513, %v2558
    %v2609 = vadd.f32 %v2514, %v2599
    %v2610 = vadd.f32 %v2515, %v2601
    %v2611 = vxor.u32 %v2496, 2147483648
    %v2612 = vxor.u32 %v2500, 2147483648
    %v2613 = vmul.f32 %v2611, 1.442695
    %v2614 = vpow.pop %v2613
    %v2615 = vmul.f32 %v2612, 1.442695
    %v2616 = vpow.pop %v2615
    %v2617 = vadd.f32 %v2614, 1.0
    %v2618 = vadd.f32 %v2616, 1.0
    %v2619 = vrcp.pop %v2617
    %v2620 = vmul.f32 1.0, %v2619
    %v2621 = vrcp.pop %v2618
    %v2622 = vmul.f32 1.0, %v2621
    %v2623 = vxor.u32 %v2497, 2147483648
    %v2624 = vxor.u32 %v2501, 2147483648
    %v2625 = vmul.f32 %v2623, 1.442695
    %v2626 = vpow.pop %v2625
    %v2627 = vmul.f32 %v2624, 1.442695
    %v2628 = vpow.pop %v2627
    %v2629 = vadd.f32 %v2626, 1.0
    %v2630 = vadd.f32 %v2628, 1.0
    %v2631 = vrcp.pop %v2629
    %v2632 = vmul.f32 1.0, %v2631
    %v2633 = vrcp.pop %v2630
    %v2634 = vmul.f32 1.0, %v2633
    %v2635 = vtanh.pop %v2498
    %v2636 = vtanh.pop %v2502
    %v2637 = vxor.u32 %v2499, 2147483648
    %v2638 = vxor.u32 %v2503, 2147483648
    %v2639 = vmul.f32 %v2637, 1.442695
    %v2640 = vpow.pop %v2639
    %v2641 = vmul.f32 %v2638, 1.442695
    %v2642 = vpow.pop %v2641
    %v2643 = vadd.f32 %v2640, 1.0
    %v2644 = vadd.f32 %v2642, 1.0
    %v2645 = vrcp.pop %v2643
    %v2646 = vmul.f32 1.0, %v2645
    %v2647 = vrcp.pop %v2644
    %v2648 = vmul.f32 1.0, %v2647
    %v2649 = vmul.f32 %v2632, %v2391
    %v2650 = vmul.f32 %v2634, %v2392
    %v2651 = vmul.f32 %v2620, %v2635
    %v2652 = vmul.f32 %v2622, %v2636
    %v2653 = vadd.f32 %v2649, %v2651
    %v2654 = vadd.f32 %v2650, %v2652
    %v2655 = vtanh.pop %v2653
    %v2656 = vtanh.pop %v2654
    %v2657 = vmul.f32 %v2646, %v2655
    %v2658 = vmul.f32 %v2648, %v2656
    %v2659 = vxor.u32 %v2603, 2147483648
    %v2660 = vxor.u32 %v2607, 2147483648
    %v2661 = vmul.f32 %v2659, 1.442695
    %v2662 = vpow.pop %v2661
    %v2663 = vmul.f32 %v2660, 1.442695
    %v2664 = vpow.pop %v2663
    %v2665 = vadd.f32 %v2662, 1.0
    %v2666 = vadd.f32 %v2664, 1.0
    %v2667 = vrcp.pop %v2665
    %v2668 = vmul.f32 1.0, %v2667
    %v2669 = vrcp.pop %v2666
    %v2670 = vmul.f32 1.0, %v2669
    %v2671 = vxor.u32 %v2604, 2147483648
    %v2672 = vxor.u32 %v2608, 2147483648
    %v2673 = vmul.f32 %v2671, 1.442695
    %v2674 = vpow.pop %v2673
    %v2675 = vmul.f32 %v2672, 1.442695
    %v2676 = vpow.pop %v2675
    %v2677 = vadd.f32 %v2674, 1.0
    %v2678 = vadd.f32 %v2676, 1.0
    %v2679 = vrcp.pop %v2677
    %v2680 = vmul.f32 1.0, %v2679
    %v2681 = vrcp.pop %v2678
    %v2682 = vmul.f32 1.0, %v2681
    %v2683 = vtanh.pop %v2605
    %v2684 = vtanh.pop %v2609
    %v2685 = vxor.u32 %v2606, 2147483648
    %v2686 = vxor.u32 %v2610, 2147483648
    %v2687 = vmul.f32 %v2685, 1.442695
    %v2688 = vpow.pop %v2687
    %v2689 = vmul.f32 %v2686, 1.442695
    %v2690 = vpow.pop %v2689
    %v2691 = vadd.f32 %v2688, 1.0
    %v2692 = vadd.f32 %v2690, 1.0
    %v2693 = vrcp.pop %v2691
    %v2694 = vmul.f32 1.0, %v2693
    %v2695 = vrcp.pop %v2692
    %v2696 = vmul.f32 1.0, %v2695
    %v2697 = vmul.f32 %v2680, %v2395
    %v2698 = vmul.f32 %v2682, %v2396
    %v2699 = vmul.f32 %v2668, %v2683
    %v2700 = vmul.f32 %v2670, %v2684
    %v2701 = vadd.f32 %v2697, %v2699
    %v2702 = vadd.f32 %v2698, %v2700
    %v2703 = vtanh.pop %v2701
    %v2704 = vtanh.pop %v2702
    %v2705 = vmul.f32 %v2694, %v2703
    %v2706 = vmul.f32 %v2696, %v2704
    %v2707 = vsel %vm172, 1, 0
    %v2708 = vsel %vm173, 1, 0
    %2709 = vset.pattern.permute.xlu0 0
    %2710 = vperm.xlu0 %2709, %v2707
    %v2711 = vpop.permute.xlu0 %2710
    %2712 = vset.pattern.permute.xlu0 0
    %2713 = vperm.xlu0 %2712, %v2708
    %v2714 = vpop.permute.xlu0 %2713
    %vm2715 = vcmp.eq.s32.totalorder %v2711, 1
    %vm2716 = vcmp.eq.s32.totalorder %v2714, 1
    %v2717 = vsel %vm2715, %v2657, 0.0
    %v2718 = vsel %vm2716, %v2658, 0.0
    %v2719 = vpack.c.bf16 %v2718, %v2717
    %2720 = vst [vmem:[#allocation2 + $0x30] sm:$0xff] %v2719
    %v2721 = vsel %vm174, 1, 0
    %v2722 = vsel %vm175, 1, 0
    %2723 = vset.pattern.permute.xlu0 0
    %2724 = vperm.xlu0 %2723, %v2721
    %v2725 = vpop.permute.xlu0 %2724
    %2726 = vset.pattern.permute.xlu0 0
    %2727 = vperm.xlu0 %2726, %v2722
    %v2728 = vpop.permute.xlu0 %2727
    %vm2729 = vcmp.eq.s32.totalorder %v2725, 1
    %vm2730 = vcmp.eq.s32.totalorder %v2728, 1
    %v2731 = vsel %vm2729, %v2705, 0.0
    %v2732 = vsel %vm2730, %v2706, 0.0
    %v2733 = vpack.c.bf16 %v2732, %v2731
    %2734 = vst [vmem:[#allocation2 + $0x48] sm:$0xff] %v2733
    %v2735 = vsel %vm2715, %v2657, %v2389
    %v2736 = vsel %vm2716, %v2658, %v2390
    %v2737 = vsel %vm2715, %v2653, %v2391
    %v2738 = vsel %vm2716, %v2654, %v2392
    %v2739 = vsel %vm2729, %v2705, %v2393
    %v2740 = vsel %vm2730, %v2706, %v2394
    %v2741 = vsel %vm2729, %v2701, %v2395
    %v2742 = vsel %vm2730, %v2702, %v2396
    %v2743 = vld [vmem:[#allocation3 + $0x80] sm:$0xff]
    %v2744 = vld [vmem:[#allocation3 + $0x88] sm:$0xff]
    %v2745 = vld [vmem:[#allocation3 + $0x90] sm:$0xff]
    %v2746 = vld [vmem:[#allocation3 + $0x98] sm:$0xff]
    %v2747 = vunpack.c.l.bf16 %v2743
    %v2748 = vunpack.c.l.bf16 %v2744
    %v2749 = vunpack.c.l.bf16 %v2745
    %v2750 = vunpack.c.l.bf16 %v2746
    %v2751 = vunpack.c.h.bf16 %v2743
    %v2752 = vunpack.c.h.bf16 %v2744
    %v2753 = vunpack.c.h.bf16 %v2745
    %v2754 = vunpack.c.h.bf16 %v2746
    %v2755 = vpack.c.bf16 %v2736, %v2735
    %2756 = vmatprep.subr.bf16.mxu0 %v1156
    %2757 = vmatpush1.bf16.msra.mxu0 %v1155
    %2758 = vmatprep.subr.bf16.mxu0 %v1160
    %2759 = vmatpush1.bf16.msra.mxu0 %v1159
    %2760 = vmatprep.subr.bf16.mxu0 %v1164
    %2761 = vmatpush1.bf16.msra.mxu0 %v1163
    %2762 = vmatprep.subr.bf16.mxu0 %v1168
    %2763 = vmatpush1.bf16.msra.mxu0 %v1167
    %2764 = vmatprep.subr.bf16.mxu0 %v1172
    %2765 = vmatpush1.bf16.msra.mxu0 %v1171
    %2766 = vmatprep.subr.bf16.mxu0 %v1176
    %2767 = vmatpush1.bf16.msra.mxu0 %v1175
    %2768 = vmatprep.subr.bf16.mxu0 %v1180
    %2769 = vmatpush1.bf16.msra.mxu0 %v1179
    %2770 = vmatprep.subr.bf16.mxu0 %v1184
    %2771 = vmatpush1.bf16.msra.mxu0 %v1183
    %2772 = vmatprep.subr.bf16.mxu0 0
    %2773 = vmatpush1.bf16.msra.mxu0 0
    %2774 = vmatprep.subr.bf16.mxu0 0
    %2775 = vmatpush1.bf16.msra.mxu0 0
    %2776 = vmatprep.subr.bf16.mxu0 0
    %2777 = vmatpush1.bf16.msra.mxu0 0
    %2778 = vmatprep.subr.bf16.mxu0 0
    %2779 = vmatpush1.bf16.msra.mxu0 0
    %2780 = vmatprep.subr.bf16.mxu0 0
    %2781 = vmatpush1.bf16.msra.mxu0 0
    %2782 = vmatprep.subr.bf16.mxu0 0
    %2783 = vmatpush1.bf16.msra.mxu0 0
    %2784 = vmatprep.subr.bf16.mxu0 0
    %2785 = vmatpush1.bf16.msra.mxu0 0
    %2786 = vmatprep.subr.bf16.mxu0 0
    %2787 = vmatpush1.bf16.msra.mxu0 0
    %2788 = vmatprep.mubr.bf16.mxu0 0
    %2789 = vmatmul.mubr.bf16.gmra.mrb[0].mxu0 %v2755
    %v2790 = vpop.f32.mrb[0].mxu0
    %v2791 = vadd.f32 0.0, %v2790
    %v2792 = vpop.f32.mrb[0].mxu0
    %v2793 = vadd.f32 0.0, %v2792
    %v2794 = vpop.f32.mrb[0].mxu0
    %v2795 = vadd.f32 0.0, %v2794
    %v2796 = vpop.f32.mrb[0].mxu0
    %v2797 = vadd.f32 0.0, %v2796
    %2798 = vdwg.mxu0
    %2799 = vmatprep.subr.bf16.mxu0 %v1158
    %2800 = vmatpush1.bf16.msra.mxu0 %v1157
    %2801 = vmatprep.subr.bf16.mxu0 %v1162
    %2802 = vmatpush1.bf16.msra.mxu0 %v1161
    %2803 = vmatprep.subr.bf16.mxu0 %v1166
    %2804 = vmatpush1.bf16.msra.mxu0 %v1165
    %2805 = vmatprep.subr.bf16.mxu0 %v1170
    %2806 = vmatpush1.bf16.msra.mxu0 %v1169
    %2807 = vmatprep.subr.bf16.mxu0 %v1174
    %2808 = vmatpush1.bf16.msra.mxu0 %v1173
    %2809 = vmatprep.subr.bf16.mxu0 %v1178
    %2810 = vmatpush1.bf16.msra.mxu0 %v1177
    %2811 = vmatprep.subr.bf16.mxu0 %v1182
    %2812 = vmatpush1.bf16.msra.mxu0 %v1181
    %2813 = vmatprep.subr.bf16.mxu0 %v1186
    %2814 = vmatpush1.bf16.msra.mxu0 %v1185
    %2815 = vmatprep.subr.bf16.mxu0 0
    %2816 = vmatpush1.bf16.msra.mxu0 0
    %2817 = vmatprep.subr.bf16.mxu0 0
    %2818 = vmatpush1.bf16.msra.mxu0 0
    %2819 = vmatprep.subr.bf16.mxu0 0
    %2820 = vmatpush1.bf16.msra.mxu0 0
    %2821 = vmatprep.subr.bf16.mxu0 0
    %2822 = vmatpush1.bf16.msra.mxu0 0
    %2823 = vmatprep.subr.bf16.mxu0 0
    %2824 = vmatpush1.bf16.msra.mxu0 0
    %2825 = vmatprep.subr.bf16.mxu0 0
    %2826 = vmatpush1.bf16.msra.mxu0 0
    %2827 = vmatprep.subr.bf16.mxu0 0
    %2828 = vmatpush1.bf16.msra.mxu0 0
    %2829 = vmatprep.subr.bf16.mxu0 0
    %2830 = vmatpush1.bf16.msra.mxu0 0
    %2831 = vmatprep.mubr.bf16.mxu0 0
    %2832 = vmatmul.mubr.bf16.gmra.mrb[0].mxu0 %v2755
    %v2833 = vpop.f32.mrb[0].mxu0
    %v2834 = vadd.f32 0.0, %v2833
    %v2835 = vpop.f32.mrb[0].mxu0
    %v2836 = vadd.f32 0.0, %v2835
    %v2837 = vpop.f32.mrb[0].mxu0
    %v2838 = vadd.f32 0.0, %v2837
    %v2839 = vpop.f32.mrb[0].mxu0
    %v2840 = vadd.f32 0.0, %v2839
    %2841 = vdwg.mxu0
    %v2842 = vadd.f32 %v2747, %v2791
    %v2843 = vadd.f32 %v2748, %v2793
    %v2844 = vadd.f32 %v2749, %v2834
    %v2845 = vadd.f32 %v2750, %v2836
    %v2846 = vadd.f32 %v2751, %v2795
    %v2847 = vadd.f32 %v2752, %v2797
    %v2848 = vadd.f32 %v2753, %v2838
    %v2849 = vadd.f32 %v2754, %v2840
    %v2850 = vld [vmem:[#allocation4 + $0x60] sm:$0xff]
    %v2851 = vld [vmem:[#allocation4 + $0x68] sm:$0xff]
    %v2852 = vld [vmem:[#allocation4 + $0x70] sm:$0xff]
    %v2853 = vld [vmem:[#allocation4 + $0x78] sm:$0xff]
    %v2854 = vunpack.c.l.bf16 %v2850
    %v2855 = vunpack.c.l.bf16 %v2851
    %v2856 = vunpack.c.l.bf16 %v2852
    %v2857 = vunpack.c.l.bf16 %v2853
    %v2858 = vunpack.c.h.bf16 %v2850
    %v2859 = vunpack.c.h.bf16 %v2851
    %v2860 = vunpack.c.h.bf16 %v2852
    %v2861 = vunpack.c.h.bf16 %v2853
    %v2862 = vpack.c.bf16 %v2740, %v2739
    %2863 = vmatprep.subr.bf16.mxu0 %v1422
    %2864 = vmatpush1.bf16.msra.mxu0 %v1421
    %2865 = vmatprep.subr.bf16.mxu0 %v1426
    %2866 = vmatpush1.bf16.msra.mxu0 %v1425
    %2867 = vmatprep.subr.bf16.mxu0 %v1430
    %2868 = vmatpush1.bf16.msra.mxu0 %v1429
    %2869 = vmatprep.subr.bf16.mxu0 %v1434
    %2870 = vmatpush1.bf16.msra.mxu0 %v1433
    %2871 = vmatprep.subr.bf16.mxu0 %v1438
    %2872 = vmatpush1.bf16.msra.mxu0 %v1437
    %2873 = vmatprep.subr.bf16.mxu0 %v1442
    %2874 = vmatpush1.bf16.msra.mxu0 %v1441
    %2875 = vmatprep.subr.bf16.mxu0 %v1446
    %2876 = vmatpush1.bf16.msra.mxu0 %v1445
    %2877 = vmatprep.subr.bf16.mxu0 %v1450
    %2878 = vmatpush1.bf16.msra.mxu0 %v1449
    %2879 = vmatprep.subr.bf16.mxu0 0
    %2880 = vmatpush1.bf16.msra.mxu0 0
    %2881 = vmatprep.subr.bf16.mxu0 0
    %2882 = vmatpush1.bf16.msra.mxu0 0
    %2883 = vmatprep.subr.bf16.mxu0 0
    %2884 = vmatpush1.bf16.msra.mxu0 0
    %2885 = vmatprep.subr.bf16.mxu0 0
    %2886 = vmatpush1.bf16.msra.mxu0 0
    %2887 = vmatprep.subr.bf16.mxu0 0
    %2888 = vmatpush1.bf16.msra.mxu0 0
    %2889 = vmatprep.subr.bf16.mxu0 0
    %2890 = vmatpush1.bf16.msra.mxu0 0
    %2891 = vmatprep.subr.bf16.mxu0 0
    %2892 = vmatpush1.bf16.msra.mxu0 0
    %2893 = vmatprep.subr.bf16.mxu0 0
    %2894 = vmatpush1.bf16.msra.mxu0 0
    %2895 = vmatprep.mubr.bf16.mxu0 0
    %2896 = vmatmul.mubr.bf16.gmra.mrb[0].mxu0 %v2862
    %v2897 = vpop.f32.mrb[0].mxu0
    %v2898 = vadd.f32 0.0, %v2897
    %v2899 = vpop.f32.mrb[0].mxu0
    %v2900 = vadd.f32 0.0, %v2899
    %v2901 = vpop.f32.mrb[0].mxu0
    %v2902 = vadd.f32 0.0, %v2901
    %v2903 = vpop.f32.mrb[0].mxu0
    %v2904 = vadd.f32 0.0, %v2903
    %2905 = vdwg.mxu0
    %2906 = vmatprep.subr.bf16.mxu0 %v1424
    %2907 = vmatpush1.bf16.msra.mxu0 %v1423
    %2908 = vmatprep.subr.bf16.mxu0 %v1428
    %2909 = vmatpush1.bf16.msra.mxu0 %v1427
    %2910 = vmatprep.subr.bf16.mxu0 %v1432
    %2911 = vmatpush1.bf16.msra.mxu0 %v1431
    %2912 = vmatprep.subr.bf16.mxu0 %v1436
    %2913 = vmatpush1.bf16.msra.mxu0 %v1435
    %2914 = vmatprep.subr.bf16.mxu0 %v1440
    %2915 = vmatpush1.bf16.msra.mxu0 %v1439
    %2916 = vmatprep.subr.bf16.mxu0 %v1444
    %2917 = vmatpush1.bf16.msra.mxu0 %v1443
    %2918 = vmatprep.subr.bf16.mxu0 %v1448
    %2919 = vmatpush1.bf16.msra.mxu0 %v1447
    %2920 = vmatprep.subr.bf16.mxu0 %v1452
    %2921 = vmatpush1.bf16.msra.mxu0 %v1451
    %2922 = vmatprep.subr.bf16.mxu0 0
    %2923 = vmatpush1.bf16.msra.mxu0 0
    %2924 = vmatprep.subr.bf16.mxu0 0
    %2925 = vmatpush1.bf16.msra.mxu0 0
    %2926 = vmatprep.subr.bf16.mxu0 0
    %2927 = vmatpush1.bf16.msra.mxu0 0
    %2928 = vmatprep.subr.bf16.mxu0 0
    %2929 = vmatpush1.bf16.msra.mxu0 0
    %2930 = vmatprep.subr.bf16.mxu0 0
    %2931 = vmatpush1.bf16.msra.mxu0 0
    %2932 = vmatprep.subr.bf16.mxu0 0
    %2933 = vmatpush1.bf16.msra.mxu0 0
    %2934 = vmatprep.subr.bf16.mxu0 0
    %2935 = vmatpush1.bf16.msra.mxu0 0
    %2936 = vmatprep.subr.bf16.mxu0 0
    %2937 = vmatpush1.bf16.msra.mxu0 0
    %2938 = vmatprep.mubr.bf16.mxu0 0
    %2939 = vmatmul.mubr.bf16.gmra.mrb[0].mxu0 %v2862
    %v2940 = vpop.f32.mrb[0].mxu0
    %v2941 = vadd.f32 0.0, %v2940
    %v2942 = vpop.f32.mrb[0].mxu0
    %v2943 = vadd.f32 0.0, %v2942
    %v2944 = vpop.f32.mrb[0].mxu0
    %v2945 = vadd.f32 0.0, %v2944
    %v2946 = vpop.f32.mrb[0].mxu0
    %v2947 = vadd.f32 0.0, %v2946
    %2948 = vdwg.mxu0
    %v2949 = vadd.f32 %v2854, %v2898
    %v2950 = vadd.f32 %v2855, %v2900
    %v2951 = vadd.f32 %v2856, %v2941
    %v2952 = vadd.f32 %v2857, %v2943
    %v2953 = vadd.f32 %v2858, %v2902
    %v2954 = vadd.f32 %v2859, %v2904
    %v2955 = vadd.f32 %v2860, %v2945
    %v2956 = vadd.f32 %v2861, %v2947
    %v2957 = vxor.u32 %v2842, 2147483648
    %v2958 = vxor.u32 %v2846, 2147483648
    %v2959 = vmul.f32 %v2957, 1.442695
    %v2960 = vpow.pop %v2959
    %v2961 = vmul.f32 %v2958, 1.442695
    %v2962 = vpow.pop %v2961
    %v2963 = vadd.f32 %v2960, 1.0
    %v2964 = vadd.f32 %v2962, 1.0
    %v2965 = vrcp.pop %v2963
    %v2966 = vmul.f32 1.0, %v2965
    %v2967 = vrcp.pop %v2964
    %v2968 = vmul.f32 1.0, %v2967
    %v2969 = vxor.u32 %v2843, 2147483648
    %v2970 = vxor.u32 %v2847, 2147483648
    %v2971 = vmul.f32 %v2969, 1.442695
    %v2972 = vpow.pop %v2971
    %v2973 = vmul.f32 %v2970, 1.442695
    %v2974 = vpow.pop %v2973
    %v2975 = vadd.f32 %v2972, 1.0
    %v2976 = vadd.f32 %v2974, 1.0
    %v2977 = vrcp.pop %v2975
    %v2978 = vmul.f32 1.0, %v2977
    %v2979 = vrcp.pop %v2976
    %v2980 = vmul.f32 1.0, %v2979
    %v2981 = vtanh.pop %v2844
    %v2982 = vtanh.pop %v2848
    %v2983 = vxor.u32 %v2845, 2147483648
    %v2984 = vxor.u32 %v2849, 2147483648
    %v2985 = vmul.f32 %v2983, 1.442695
    %v2986 = vpow.pop %v2985
    %v2987 = vmul.f32 %v2984, 1.442695
    %v2988 = vpow.pop %v2987
    %v2989 = vadd.f32 %v2986, 1.0
    %v2990 = vadd.f32 %v2988, 1.0
    %v2991 = vrcp.pop %v2989
    %v2992 = vmul.f32 1.0, %v2991
    %v2993 = vrcp.pop %v2990
    %v2994 = vmul.f32 1.0, %v2993
    %v2995 = vmul.f32 %v2978, %v2737
    %v2996 = vmul.f32 %v2980, %v2738
    %v2997 = vmul.f32 %v2966, %v2981
    %v2998 = vmul.f32 %v2968, %v2982
    %v2999 = vadd.f32 %v2995, %v2997
    %v3000 = vadd.f32 %v2996, %v2998
    %v3001 = vtanh.pop %v2999
    %v3002 = vtanh.pop %v3000
    %v3003 = vmul.f32 %v2992, %v3001
    %v3004 = vmul.f32 %v2994, %v3002
    %v3005 = vxor.u32 %v2949, 2147483648
    %v3006 = vxor.u32 %v2953, 2147483648
    %v3007 = vmul.f32 %v3005, 1.442695
    %v3008 = vpow.pop %v3007
    %v3009 = vmul.f32 %v3006, 1.442695
    %v3010 = vpow.pop %v3009
    %v3011 = vadd.f32 %v3008, 1.0
    %v3012 = vadd.f32 %v3010, 1.0
    %v3013 = vrcp.pop %v3011
    %v3014 = vmul.f32 1.0, %v3013
    %v3015 = vrcp.pop %v3012
    %v3016 = vmul.f32 1.0, %v3015
    %v3017 = vxor.u32 %v2950, 2147483648
    %v3018 = vxor.u32 %v2954, 2147483648
    %v3019 = vmul.f32 %v3017, 1.442695
    %v3020 = vpow.pop %v3019
    %v3021 = vmul.f32 %v3018, 1.442695
    %v3022 = vpow.pop %v3021
    %v3023 = vadd.f32 %v3020, 1.0
    %v3024 = vadd.f32 %v3022, 1.0
    %v3025 = vrcp.pop %v3023
    %v3026 = vmul.f32 1.0, %v3025
    %v3027 = vrcp.pop %v3024
    %v3028 = vmul.f32 1.0, %v3027
    %v3029 = vtanh.pop %v2951
    %v3030 = vtanh.pop %v2955
    %v3031 = vxor.u32 %v2952, 2147483648
    %v3032 = vxor.u32 %v2956, 2147483648
    %v3033 = vmul.f32 %v3031, 1.442695
    %v3034 = vpow.pop %v3033
    %v3035 = vmul.f32 %v3032, 1.442695
    %v3036 = vpow.pop %v3035
    %v3037 = vadd.f32 %v3034, 1.0
    %v3038 = vadd.f32 %v3036, 1.0
    %v3039 = vrcp.pop %v3037
    %v3040 = vmul.f32 1.0, %v3039
    %v3041 = vrcp.pop %v3038
    %v3042 = vmul.f32 1.0, %v3041
    %v3043 = vmul.f32 %v3026, %v2741
    %v3044 = vmul.f32 %v3028, %v2742
    %v3045 = vmul.f32 %v3014, %v3029
    %v3046 = vmul.f32 %v3016, %v3030
    %v3047 = vadd.f32 %v3043, %v3045
    %v3048 = vadd.f32 %v3044, %v3046
    %v3049 = vtanh.pop %v3047
    %v3050 = vtanh.pop %v3048
    %v3051 = vmul.f32 %v3040, %v3049
    %v3052 = vmul.f32 %v3042, %v3050
    %v3053 = vsel %vm2729, %v3003, 0.0
    %v3054 = vsel %vm2730, %v3004, 0.0
    %v3055 = vpack.c.bf16 %v3054, %v3053
    %3056 = vst [vmem:[#allocation2 + $0x40] sm:$0xff] %v3055
    %v3057 = vsel %vm2715, %v3051, 0.0
    %v3058 = vsel %vm2716, %v3052, 0.0
    %v3059 = vpack.c.bf16 %v3058, %v3057
    %3060 = vst [vmem:[#allocation2 + $0x38] sm:$0xff] %v3059
    %v3061 = vsel %vm2729, %v3003, %v2735
    %v3062 = vsel %vm2730, %v3004, %v2736
    %v3063 = vsel %vm2729, %v2999, %v2737
    %v3064 = vsel %vm2730, %v3000, %v2738
    %v3065 = vsel %vm2715, %v3051, %v2739
    %v3066 = vsel %vm2716, %v3052, %v2740
    %v3067 = vsel %vm2715, %v3047, %v2741
    %v3068 = vsel %vm2716, %v3048, %v2742
    %v3069 = vld [vmem:[#allocation3 + $0xa0] sm:$0xff]
    %v3070 = vld [vmem:[#allocation3 + $0xa8] sm:$0xff]
    %v3071 = vld [vmem:[#allocation3 + $0xb0] sm:$0xff]
    %v3072 = vld [vmem:[#allocation3 + $0xb8] sm:$0xff]
    %v3073 = vunpack.c.l.bf16 %v3069
    %v3074 = vunpack.c.l.bf16 %v3070
    %v3075 = vunpack.c.l.bf16 %v3071
    %v3076 = vunpack.c.l.bf16 %v3072
    %v3077 = vunpack.c.h.bf16 %v3069
    %v3078 = vunpack.c.h.bf16 %v3070
    %v3079 = vunpack.c.h.bf16 %v3071
    %v3080 = vunpack.c.h.bf16 %v3072
    %v3081 = vpack.c.bf16 %v3062, %v3061
    %3082 = vmatprep.subr.bf16.mxu0 %v1156
    %3083 = vmatpush1.bf16.msra.mxu0 %v1155
    %3084 = vmatprep.subr.bf16.mxu0 %v1160
    %3085 = vmatpush1.bf16.msra.mxu0 %v1159
    %3086 = vmatprep.subr.bf16.mxu0 %v1164
    %3087 = vmatpush1.bf16.msra.mxu0 %v1163
    %3088 = vmatprep.subr.bf16.mxu0 %v1168
    %3089 = vmatpush1.bf16.msra.mxu0 %v1167
    %3090 = vmatprep.subr.bf16.mxu0 %v1172
    %3091 = vmatpush1.bf16.msra.mxu0 %v1171
    %3092 = vmatprep.subr.bf16.mxu0 %v1176
    %3093 = vmatpush1.bf16.msra.mxu0 %v1175
    %3094 = vmatprep.subr.bf16.mxu0 %v1180
    %3095 = vmatpush1.bf16.msra.mxu0 %v1179
    %3096 = vmatprep.subr.bf16.mxu0 %v1184
    %3097 = vmatpush1.bf16.msra.mxu0 %v1183
    %3098 = vmatprep.subr.bf16.mxu0 0
    %3099 = vmatpush1.bf16.msra.mxu0 0
    %3100 = vmatprep.subr.bf16.mxu0 0
    %3101 = vmatpush1.bf16.msra.mxu0 0
    %3102 = vmatprep.subr.bf16.mxu0 0
    %3103 = vmatpush1.bf16.msra.mxu0 0
    %3104 = vmatprep.subr.bf16.mxu0 0
    %3105 = vmatpush1.bf16.msra.mxu0 0
    %3106 = vmatprep.subr.bf16.mxu0 0
    %3107 = vmatpush1.bf16.msra.mxu0 0
    %3108 = vmatprep.subr.bf16.mxu0 0
    %3109 = vmatpush1.bf16.msra.mxu0 0
    %3110 = vmatprep.subr.bf16.mxu0 0
    %3111 = vmatpush1.bf16.msra.mxu0 0
    %3112 = vmatprep.subr.bf16.mxu0 0
    %3113 = vmatpush1.bf16.msra.mxu0 0
    %3114 = vmatprep.mubr.bf16.mxu0 0
    %3115 = vmatmul.mubr.bf16.gmra.mrb[0].mxu0 %v3081
    %v3116 = vpop.f32.mrb[0].mxu0
    %v3117 = vadd.f32 0.0, %v3116
    %v3118 = vpop.f32.mrb[0].mxu0
    %v3119 = vadd.f32 0.0, %v3118
    %v3120 = vpop.f32.mrb[0].mxu0
    %v3121 = vadd.f32 0.0, %v3120
    %v3122 = vpop.f32.mrb[0].mxu0
    %v3123 = vadd.f32 0.0, %v3122
    %3124 = vdwg.mxu0
    %3125 = vmatprep.subr.bf16.mxu0 %v1158
    %3126 = vmatpush1.bf16.msra.mxu0 %v1157
    %3127 = vmatprep.subr.bf16.mxu0 %v1162
    %3128 = vmatpush1.bf16.msra.mxu0 %v1161
    %3129 = vmatprep.subr.bf16.mxu0 %v1166
    %3130 = vmatpush1.bf16.msra.mxu0 %v1165
    %3131 = vmatprep.subr.bf16.mxu0 %v1170
    %3132 = vmatpush1.bf16.msra.mxu0 %v1169
    %3133 = vmatprep.subr.bf16.mxu0 %v1174
    %3134 = vmatpush1.bf16.msra.mxu0 %v1173
    %3135 = vmatprep.subr.bf16.mxu0 %v1178
    %3136 = vmatpush1.bf16.msra.mxu0 %v1177
    %3137 = vmatprep.subr.bf16.mxu0 %v1182
    %3138 = vmatpush1.bf16.msra.mxu0 %v1181
    %3139 = vmatprep.subr.bf16.mxu0 %v1186
    %3140 = vmatpush1.bf16.msra.mxu0 %v1185
    %3141 = vmatprep.subr.bf16.mxu0 0
    %3142 = vmatpush1.bf16.msra.mxu0 0
    %3143 = vmatprep.subr.bf16.mxu0 0
    %3144 = vmatpush1.bf16.msra.mxu0 0
    %3145 = vmatprep.subr.bf16.mxu0 0
    %3146 = vmatpush1.bf16.msra.mxu0 0
    %3147 = vmatprep.subr.bf16.mxu0 0
    %3148 = vmatpush1.bf16.msra.mxu0 0
    %3149 = vmatprep.subr.bf16.mxu0 0
    %3150 = vmatpush1.bf16.msra.mxu0 0
    %3151 = vmatprep.subr.bf16.mxu0 0
    %3152 = vmatpush1.bf16.msra.mxu0 0
    %3153 = vmatprep.subr.bf16.mxu0 0
    %3154 = vmatpush1.bf16.msra.mxu0 0
    %3155 = vmatprep.subr.bf16.mxu0 0
    %3156 = vmatpush1.bf16.msra.mxu0 0
    %3157 = vmatprep.mubr.bf16.mxu0 0
    %3158 = vmatmul.mubr.bf16.gmra.mrb[0].mxu0 %v3081
    %v3159 = vpop.f32.mrb[0].mxu0
    %v3160 = vadd.f32 0.0, %v3159
    %v3161 = vpop.f32.mrb[0].mxu0
    %v3162 = vadd.f32 0.0, %v3161
    %v3163 = vpop.f32.mrb[0].mxu0
    %v3164 = vadd.f32 0.0, %v3163
    %v3165 = vpop.f32.mrb[0].mxu0
    %v3166 = vadd.f32 0.0, %v3165
    %3167 = vdwg.mxu0
    %v3168 = vadd.f32 %v3073, %v3117
    %v3169 = vadd.f32 %v3074, %v3119
    %v3170 = vadd.f32 %v3075, %v3160
    %v3171 = vadd.f32 %v3076, %v3162
    %v3172 = vadd.f32 %v3077, %v3121
    %v3173 = vadd.f32 %v3078, %v3123
    %v3174 = vadd.f32 %v3079, %v3164
    %v3175 = vadd.f32 %v3080, %v3166
    %v3176 = vld [vmem:[#allocation4 + $0x40] sm:$0xff]
    %v3177 = vld [vmem:[#allocation4 + $0x48] sm:$0xff]
    %v3178 = vld [vmem:[#allocation4 + $0x50] sm:$0xff]
    %v3179 = vld [vmem:[#allocation4 + $0x58] sm:$0xff]
    %v3180 = vunpack.c.l.bf16 %v3176
    %v3181 = vunpack.c.l.bf16 %v3177
    %v3182 = vunpack.c.l.bf16 %v3178
    %v3183 = vunpack.c.l.bf16 %v3179
    %v3184 = vunpack.c.h.bf16 %v3176
    %v3185 = vunpack.c.h.bf16 %v3177
    %v3186 = vunpack.c.h.bf16 %v3178
    %v3187 = vunpack.c.h.bf16 %v3179
    %v3188 = vpack.c.bf16 %v3066, %v3065
    %3189 = vmatprep.subr.bf16.mxu0 %v1422
    %3190 = vmatpush1.bf16.msra.mxu0 %v1421
    %3191 = vmatprep.subr.bf16.mxu0 %v1426
    %3192 = vmatpush1.bf16.msra.mxu0 %v1425
    %3193 = vmatprep.subr.bf16.mxu0 %v1430
    %3194 = vmatpush1.bf16.msra.mxu0 %v1429
    %3195 = vmatprep.subr.bf16.mxu0 %v1434
    %3196 = vmatpush1.bf16.msra.mxu0 %v1433
    %3197 = vmatprep.subr.bf16.mxu0 %v1438
    %3198 = vmatpush1.bf16.msra.mxu0 %v1437
    %3199 = vmatprep.subr.bf16.mxu0 %v1442
    %3200 = vmatpush1.bf16.msra.mxu0 %v1441
    %3201 = vmatprep.subr.bf16.mxu0 %v1446
    %3202 = vmatpush1.bf16.msra.mxu0 %v1445
    %3203 = vmatprep.subr.bf16.mxu0 %v1450
    %3204 = vmatpush1.bf16.msra.mxu0 %v1449
    %3205 = vmatprep.subr.bf16.mxu0 0
    %3206 = vmatpush1.bf16.msra.mxu0 0
    %3207 = vmatprep.subr.bf16.mxu0 0
    %3208 = vmatpush1.bf16.msra.mxu0 0
    %3209 = vmatprep.subr.bf16.mxu0 0
    %3210 = vmatpush1.bf16.msra.mxu0 0
    %3211 = vmatprep.subr.bf16.mxu0 0
    %3212 = vmatpush1.bf16.msra.mxu0 0
    %3213 = vmatprep.subr.bf16.mxu0 0
    %3214 = vmatpush1.bf16.msra.mxu0 0
    %3215 = vmatprep.subr.bf16.mxu0 0
    %3216 = vmatpush1.bf16.msra.mxu0 0
    %3217 = vmatprep.subr.bf16.mxu0 0
    %3218 = vmatpush1.bf16.msra.mxu0 0
    %3219 = vmatprep.subr.bf16.mxu0 0
    %3220 = vmatpush1.bf16.msra.mxu0 0
    %3221 = vmatprep.mubr.bf16.mxu0 0
    %3222 = vmatmul.mubr.bf16.gmra.mrb[0].mxu0 %v3188
    %v3223 = vpop.f32.mrb[0].mxu0
    %v3224 = vadd.f32 0.0, %v3223
    %v3225 = vpop.f32.mrb[0].mxu0
    %v3226 = vadd.f32 0.0, %v3225
    %v3227 = vpop.f32.mrb[0].mxu0
    %v3228 = vadd.f32 0.0, %v3227
    %v3229 = vpop.f32.mrb[0].mxu0
    %v3230 = vadd.f32 0.0, %v3229
    %3231 = vdwg.mxu0
    %3232 = vmatprep.subr.bf16.mxu0 %v1424
    %3233 = vmatpush1.bf16.msra.mxu0 %v1423
    %3234 = vmatprep.subr.bf16.mxu0 %v1428
    %3235 = vmatpush1.bf16.msra.mxu0 %v1427
    %3236 = vmatprep.subr.bf16.mxu0 %v1432
    %3237 = vmatpush1.bf16.msra.mxu0 %v1431
    %3238 = vmatprep.subr.bf16.mxu0 %v1436
    %3239 = vmatpush1.bf16.msra.mxu0 %v1435
    %3240 = vmatprep.subr.bf16.mxu0 %v1440
    %3241 = vmatpush1.bf16.msra.mxu0 %v1439
    %3242 = vmatprep.subr.bf16.mxu0 %v1444
    %3243 = vmatpush1.bf16.msra.mxu0 %v1443
    %3244 = vmatprep.subr.bf16.mxu0 %v1448
    %3245 = vmatpush1.bf16.msra.mxu0 %v1447
    %3246 = vmatprep.subr.bf16.mxu0 %v1452
    %3247 = vmatpush1.bf16.msra.mxu0 %v1451
    %3248 = vmatprep.subr.bf16.mxu0 0
    %3249 = vmatpush1.bf16.msra.mxu0 0
    %3250 = vmatprep.subr.bf16.mxu0 0
    %3251 = vmatpush1.bf16.msra.mxu0 0
    %3252 = vmatprep.subr.bf16.mxu0 0
    %3253 = vmatpush1.bf16.msra.mxu0 0
    %3254 = vmatprep.subr.bf16.mxu0 0
    %3255 = vmatpush1.bf16.msra.mxu0 0
    %3256 = vmatprep.subr.bf16.mxu0 0
    %3257 = vmatpush1.bf16.msra.mxu0 0
    %3258 = vmatprep.subr.bf16.mxu0 0
    %3259 = vmatpush1.bf16.msra.mxu0 0
    %3260 = vmatprep.subr.bf16.mxu0 0
    %3261 = vmatpush1.bf16.msra.mxu0 0
    %3262 = vmatprep.subr.bf16.mxu0 0
    %3263 = vmatpush1.bf16.msra.mxu0 0
    %3264 = vmatprep.mubr.bf16.mxu0 0
    %3265 = vmatmul.mubr.bf16.gmra.mrb[0].mxu0 %v3188
    %v3266 = vpop.f32.mrb[0].mxu0
    %v3267 = vadd.f32 0.0, %v3266
    %v3268 = vpop.f32.mrb[0].mxu0
    %v3269 = vadd.f32 0.0, %v3268
    %v3270 = vpop.f32.mrb[0].mxu0
    %v3271 = vadd.f32 0.0, %v3270
    %v3272 = vpop.f32.mrb[0].mxu0
    %v3273 = vadd.f32 0.0, %v3272
    %3274 = vdwg.mxu0
    %v3275 = vadd.f32 %v3180, %v3224
    %v3276 = vadd.f32 %v3181, %v3226
    %v3277 = vadd.f32 %v3182, %v3267
    %v3278 = vadd.f32 %v3183, %v3269
    %v3279 = vadd.f32 %v3184, %v3228
    %v3280 = vadd.f32 %v3185, %v3230
    %v3281 = vadd.f32 %v3186, %v3271
    %v3282 = vadd.f32 %v3187, %v3273
    %v3283 = vxor.u32 %v3168, 2147483648
    %v3284 = vxor.u32 %v3172, 2147483648
    %v3285 = vmul.f32 %v3283, 1.442695
    %v3286 = vpow.pop %v3285
    %v3287 = vmul.f32 %v3284, 1.442695
    %v3288 = vpow.pop %v3287
    %v3289 = vadd.f32 %v3286, 1.0
    %v3290 = vadd.f32 %v3288, 1.0
    %v3291 = vrcp.pop %v3289
    %v3292 = vmul.f32 1.0, %v3291
    %v3293 = vrcp.pop %v3290
    %v3294 = vmul.f32 1.0, %v3293
    %v3295 = vxor.u32 %v3169, 2147483648
    %v3296 = vxor.u32 %v3173, 2147483648
    %v3297 = vmul.f32 %v3295, 1.442695
    %v3298 = vpow.pop %v3297
    %v3299 = vmul.f32 %v3296, 1.442695
    %v3300 = vpow.pop %v3299
    %v3301 = vadd.f32 %v3298, 1.0
    %v3302 = vadd.f32 %v3300, 1.0
    %v3303 = vrcp.pop %v3301
    %v3304 = vmul.f32 1.0, %v3303
    %v3305 = vrcp.pop %v3302
    %v3306 = vmul.f32 1.0, %v3305
    %v3307 = vtanh.pop %v3170
    %v3308 = vtanh.pop %v3174
    %v3309 = vxor.u32 %v3171, 2147483648
    %v3310 = vxor.u32 %v3175, 2147483648
    %v3311 = vmul.f32 %v3309, 1.442695
    %v3312 = vpow.pop %v3311
    %v3313 = vmul.f32 %v3310, 1.442695
    %v3314 = vpow.pop %v3313
    %v3315 = vadd.f32 %v3312, 1.0
    %v3316 = vadd.f32 %v3314, 1.0
    %v3317 = vrcp.pop %v3315
    %v3318 = vmul.f32 1.0, %v3317
    %v3319 = vrcp.pop %v3316
    %v3320 = vmul.f32 1.0, %v3319
    %v3321 = vmul.f32 %v3304, %v3063
    %v3322 = vmul.f32 %v3306, %v3064
    %v3323 = vmul.f32 %v3292, %v3307
    %v3324 = vmul.f32 %v3294, %v3308
    %v3325 = vadd.f32 %v3321, %v3323
    %v3326 = vadd.f32 %v3322, %v3324
    %v3327 = vtanh.pop %v3325
    %v3328 = vtanh.pop %v3326
    %v3329 = vmul.f32 %v3318, %v3327
    %v3330 = vmul.f32 %v3320, %v3328
    %v3331 = vxor.u32 %v3275, 2147483648
    %v3332 = vxor.u32 %v3279, 2147483648
    %v3333 = vmul.f32 %v3331, 1.442695
    %v3334 = vpow.pop %v3333
    %v3335 = vmul.f32 %v3332, 1.442695
    %v3336 = vpow.pop %v3335
    %v3337 = vadd.f32 %v3334, 1.0
    %v3338 = vadd.f32 %v3336, 1.0
    %v3339 = vrcp.pop %v3337
    %v3340 = vmul.f32 1.0, %v3339
    %v3341 = vrcp.pop %v3338
    %v3342 = vmul.f32 1.0, %v3341
    %v3343 = vxor.u32 %v3276, 2147483648
    %v3344 = vxor.u32 %v3280, 2147483648
    %v3345 = vmul.f32 %v3343, 1.442695
    %v3346 = vpow.pop %v3345
    %v3347 = vmul.f32 %v3344, 1.442695
    %v3348 = vpow.pop %v3347
    %v3349 = vadd.f32 %v3346, 1.0
    %v3350 = vadd.f32 %v3348, 1.0
    %v3351 = vrcp.pop %v3349
    %v3352 = vmul.f32 1.0, %v3351
    %v3353 = vrcp.pop %v3350
    %v3354 = vmul.f32 1.0, %v3353
    %v3355 = vtanh.pop %v3277
    %v3356 = vtanh.pop %v3281
    %v3357 = vxor.u32 %v3278, 2147483648
    %v3358 = vxor.u32 %v3282, 2147483648
    %v3359 = vmul.f32 %v3357, 1.442695
    %v3360 = vpow.pop %v3359
    %v3361 = vmul.f32 %v3358, 1.442695
    %v3362 = vpow.pop %v3361
    %v3363 = vadd.f32 %v3360, 1.0
    %v3364 = vadd.f32 %v3362, 1.0
    %v3365 = vrcp.pop %v3363
    %v3366 = vmul.f32 1.0, %v3365
    %v3367 = vrcp.pop %v3364
    %v3368 = vmul.f32 1.0, %v3367
    %v3369 = vmul.f32 %v3352, %v3067
    %v3370 = vmul.f32 %v3354, %v3068
    %v3371 = vmul.f32 %v3340, %v3355
    %v3372 = vmul.f32 %v3342, %v3356
    %v3373 = vadd.f32 %v3369, %v3371
    %v3374 = vadd.f32 %v3370, %v3372
    %v3375 = vtanh.pop %v3373
    %v3376 = vtanh.pop %v3374
    %v3377 = vmul.f32 %v3366, %v3375
    %v3378 = vmul.f32 %v3368, %v3376
    %v3379 = vsel %vm2383, %v3329, 0.0
    %v3380 = vsel %vm2384, %v3330, 0.0
    %v3381 = vpack.c.bf16 %v3380, %v3379
    %3382 = vst [vmem:[#allocation2 + $0x50] sm:$0xff] %v3381
    %v3383 = vsel %vm2369, %v3377, 0.0
    %v3384 = vsel %vm2370, %v3378, 0.0
    %v3385 = vpack.c.bf16 %v3384, %v3383
    %3386 = vst [vmem:[#allocation2 + $0x28] sm:$0xff] %v3385
    %v3387 = vsel %vm2383, %v3329, %v3061
    %v3388 = vsel %vm2384, %v3330, %v3062
    %v3389 = vsel %vm2383, %v3325, %v3063
    %v3390 = vsel %vm2384, %v3326, %v3064
    %v3391 = vsel %vm2369, %v3377, %v3065
    %v3392 = vsel %vm2370, %v3378, %v3066
    %v3393 = vsel %vm2369, %v3373, %v3067
    %v3394 = vsel %vm2370, %v3374, %v3068
    %v3395 = vld [vmem:[#allocation3 + $0xc0] sm:$0xff]
    %v3396 = vld [vmem:[#allocation3 + $0xc8] sm:$0xff]
    %v3397 = vld [vmem:[#allocation3 + $0xd0] sm:$0xff]
    %v3398 = vld [vmem:[#allocation3 + $0xd8] sm:$0xff]
    %v3399 = vunpack.c.l.bf16 %v3395
    %v3400 = vunpack.c.l.bf16 %v3396
    %v3401 = vunpack.c.l.bf16 %v3397
    %v3402 = vunpack.c.l.bf16 %v3398
    %v3403 = vunpack.c.h.bf16 %v3395
    %v3404 = vunpack.c.h.bf16 %v3396
    %v3405 = vunpack.c.h.bf16 %v3397
    %v3406 = vunpack.c.h.bf16 %v3398
    %v3407 = vpack.c.bf16 %v3388, %v3387
    %3408 = vmatprep.subr.bf16.mxu0 %v1156
    %3409 = vmatpush1.bf16.msra.mxu0 %v1155
    %3410 = vmatprep.subr.bf16.mxu0 %v1160
    %3411 = vmatpush1.bf16.msra.mxu0 %v1159
    %3412 = vmatprep.subr.bf16.mxu0 %v1164
    %3413 = vmatpush1.bf16.msra.mxu0 %v1163
    %3414 = vmatprep.subr.bf16.mxu0 %v1168
    %3415 = vmatpush1.bf16.msra.mxu0 %v1167
    %3416 = vmatprep.subr.bf16.mxu0 %v1172
    %3417 = vmatpush1.bf16.msra.mxu0 %v1171
    %3418 = vmatprep.subr.bf16.mxu0 %v1176
    %3419 = vmatpush1.bf16.msra.mxu0 %v1175
    %3420 = vmatprep.subr.bf16.mxu0 %v1180
    %3421 = vmatpush1.bf16.msra.mxu0 %v1179
    %3422 = vmatprep.subr.bf16.mxu0 %v1184
    %3423 = vmatpush1.bf16.msra.mxu0 %v1183
    %3424 = vmatprep.subr.bf16.mxu0 0
    %3425 = vmatpush1.bf16.msra.mxu0 0
    %3426 = vmatprep.subr.bf16.mxu0 0
    %3427 = vmatpush1.bf16.msra.mxu0 0
    %3428 = vmatprep.subr.bf16.mxu0 0
    %3429 = vmatpush1.bf16.msra.mxu0 0
    %3430 = vmatprep.subr.bf16.mxu0 0
    %3431 = vmatpush1.bf16.msra.mxu0 0
    %3432 = vmatprep.subr.bf16.mxu0 0
    %3433 = vmatpush1.bf16.msra.mxu0 0
    %3434 = vmatprep.subr.bf16.mxu0 0
    %3435 = vmatpush1.bf16.msra.mxu0 0
    %3436 = vmatprep.subr.bf16.mxu0 0
    %3437 = vmatpush1.bf16.msra.mxu0 0
    %3438 = vmatprep.subr.bf16.mxu0 0
    %3439 = vmatpush1.bf16.msra.mxu0 0
    %3440 = vmatprep.mubr.bf16.mxu0 0
    %3441 = vmatmul.mubr.bf16.gmra.mrb[0].mxu0 %v3407
    %v3442 = vpop.f32.mrb[0].mxu0
    %v3443 = vadd.f32 0.0, %v3442
    %v3444 = vpop.f32.mrb[0].mxu0
    %v3445 = vadd.f32 0.0, %v3444
    %v3446 = vpop.f32.mrb[0].mxu0
    %v3447 = vadd.f32 0.0, %v3446
    %v3448 = vpop.f32.mrb[0].mxu0
    %v3449 = vadd.f32 0.0, %v3448
    %3450 = vdwg.mxu0
    %3451 = vmatprep.subr.bf16.mxu0 %v1158
    %3452 = vmatpush1.bf16.msra.mxu0 %v1157
    %3453 = vmatprep.subr.bf16.mxu0 %v1162
    %3454 = vmatpush1.bf16.msra.mxu0 %v1161
    %3455 = vmatprep.subr.bf16.mxu0 %v1166
    %3456 = vmatpush1.bf16.msra.mxu0 %v1165
    %3457 = vmatprep.subr.bf16.mxu0 %v1170
    %3458 = vmatpush1.bf16.msra.mxu0 %v1169
    %3459 = vmatprep.subr.bf16.mxu0 %v1174
    %3460 = vmatpush1.bf16.msra.mxu0 %v1173
    %3461 = vmatprep.subr.bf16.mxu0 %v1178
    %3462 = vmatpush1.bf16.msra.mxu0 %v1177
    %3463 = vmatprep.subr.bf16.mxu0 %v1182
    %3464 = vmatpush1.bf16.msra.mxu0 %v1181
    %3465 = vmatprep.subr.bf16.mxu0 %v1186
    %3466 = vmatpush1.bf16.msra.mxu0 %v1185
    %3467 = vmatprep.subr.bf16.mxu0 0
    %3468 = vmatpush1.bf16.msra.mxu0 0
    %3469 = vmatprep.subr.bf16.mxu0 0
    %3470 = vmatpush1.bf16.msra.mxu0 0
    %3471 = vmatprep.subr.bf16.mxu0 0
    %3472 = vmatpush1.bf16.msra.mxu0 0
    %3473 = vmatprep.subr.bf16.mxu0 0
    %3474 = vmatpush1.bf16.msra.mxu0 0
    %3475 = vmatprep.subr.bf16.mxu0 0
    %3476 = vmatpush1.bf16.msra.mxu0 0
    %3477 = vmatprep.subr.bf16.mxu0 0
    %3478 = vmatpush1.bf16.msra.mxu0 0
    %3479 = vmatprep.subr.bf16.mxu0 0
    %3480 = vmatpush1.bf16.msra.mxu0 0
    %3481 = vmatprep.subr.bf16.mxu0 0
    %3482 = vmatpush1.bf16.msra.mxu0 0
    %3483 = vmatprep.mubr.bf16.mxu0 0
    %3484 = vmatmul.mubr.bf16.gmra.mrb[0].mxu0 %v3407
    %v3485 = vpop.f32.mrb[0].mxu0
    %v3486 = vadd.f32 0.0, %v3485
    %v3487 = vpop.f32.mrb[0].mxu0
    %v3488 = vadd.f32 0.0, %v3487
    %v3489 = vpop.f32.mrb[0].mxu0
    %v3490 = vadd.f32 0.0, %v3489
    %v3491 = vpop.f32.mrb[0].mxu0
    %v3492 = vadd.f32 0.0, %v3491
    %3493 = vdwg.mxu0
    %v3494 = vadd.f32 %v3399, %v3443
    %v3495 = vadd.f32 %v3400, %v3445
    %v3496 = vadd.f32 %v3401, %v3486
    %v3497 = vadd.f32 %v3402, %v3488
    %v3498 = vadd.f32 %v3403, %v3447
    %v3499 = vadd.f32 %v3404, %v3449
    %v3500 = vadd.f32 %v3405, %v3490
    %v3501 = vadd.f32 %v3406, %v3492
    %v3502 = vld [vmem:[#allocation4 + $0x20] sm:$0xff]
    %v3503 = vld [vmem:[#allocation4 + $0x28] sm:$0xff]
    %v3504 = vld [vmem:[#allocation4 + $0x30] sm:$0xff]
    %v3505 = vld [vmem:[#allocation4 + $0x38] sm:$0xff]
    %v3506 = vunpack.c.l.bf16 %v3502
    %v3507 = vunpack.c.l.bf16 %v3503
    %v3508 = vunpack.c.l.bf16 %v3504
    %v3509 = vunpack.c.l.bf16 %v3505
    %v3510 = vunpack.c.h.bf16 %v3502
    %v3511 = vunpack.c.h.bf16 %v3503
    %v3512 = vunpack.c.h.bf16 %v3504
    %v3513 = vunpack.c.h.bf16 %v3505
    %v3514 = vpack.c.bf16 %v3392, %v3391
    %3515 = vmatprep.subr.bf16.mxu0 %v1422
    %3516 = vmatpush1.bf16.msra.mxu0 %v1421
    %3517 = vmatprep.subr.bf16.mxu0 %v1426
    %3518 = vmatpush1.bf16.msra.mxu0 %v1425
    %3519 = vmatprep.subr.bf16.mxu0 %v1430
    %3520 = vmatpush1.bf16.msra.mxu0 %v1429
    %3521 = vmatprep.subr.bf16.mxu0 %v1434
    %3522 = vmatpush1.bf16.msra.mxu0 %v1433
    %3523 = vmatprep.subr.bf16.mxu0 %v1438
    %3524 = vmatpush1.bf16.msra.mxu0 %v1437
    %3525 = vmatprep.subr.bf16.mxu0 %v1442
    %3526 = vmatpush1.bf16.msra.mxu0 %v1441
    %3527 = vmatprep.subr.bf16.mxu0 %v1446
    %3528 = vmatpush1.bf16.msra.mxu0 %v1445
    %3529 = vmatprep.subr.bf16.mxu0 %v1450
    %3530 = vmatpush1.bf16.msra.mxu0 %v1449
    %3531 = vmatprep.subr.bf16.mxu0 0
    %3532 = vmatpush1.bf16.msra.mxu0 0
    %3533 = vmatprep.subr.bf16.mxu0 0
    %3534 = vmatpush1.bf16.msra.mxu0 0
    %3535 = vmatprep.subr.bf16.mxu0 0
    %3536 = vmatpush1.bf16.msra.mxu0 0
    %3537 = vmatprep.subr.bf16.mxu0 0
    %3538 = vmatpush1.bf16.msra.mxu0 0
    %3539 = vmatprep.subr.bf16.mxu0 0
    %3540 = vmatpush1.bf16.msra.mxu0 0
    %3541 = vmatprep.subr.bf16.mxu0 0
    %3542 = vmatpush1.bf16.msra.mxu0 0
    %3543 = vmatprep.subr.bf16.mxu0 0
    %3544 = vmatpush1.bf16.msra.mxu0 0
    %3545 = vmatprep.subr.bf16.mxu0 0
    %3546 = vmatpush1.bf16.msra.mxu0 0
    %3547 = vmatprep.mubr.bf16.mxu0 0
    %3548 = vmatmul.mubr.bf16.gmra.mrb[0].mxu0 %v3514
    %v3549 = vpop.f32.mrb[0].mxu0
    %v3550 = vadd.f32 0.0, %v3549
    %v3551 = vpop.f32.mrb[0].mxu0
    %v3552 = vadd.f32 0.0, %v3551
    %v3553 = vpop.f32.mrb[0].mxu0
    %v3554 = vadd.f32 0.0, %v3553
    %v3555 = vpop.f32.mrb[0].mxu0
    %v3556 = vadd.f32 0.0, %v3555
    %3557 = vdwg.mxu0
    %3558 = vmatprep.subr.bf16.mxu0 %v1424
    %3559 = vmatpush1.bf16.msra.mxu0 %v1423
    %3560 = vmatprep.subr.bf16.mxu0 %v1428
    %3561 = vmatpush1.bf16.msra.mxu0 %v1427
    %3562 = vmatprep.subr.bf16.mxu0 %v1432
    %3563 = vmatpush1.bf16.msra.mxu0 %v1431
    %3564 = vmatprep.subr.bf16.mxu0 %v1436
    %3565 = vmatpush1.bf16.msra.mxu0 %v1435
    %3566 = vmatprep.subr.bf16.mxu0 %v1440
    %3567 = vmatpush1.bf16.msra.mxu0 %v1439
    %3568 = vmatprep.subr.bf16.mxu0 %v1444
    %3569 = vmatpush1.bf16.msra.mxu0 %v1443
    %3570 = vmatprep.subr.bf16.mxu0 %v1448
    %3571 = vmatpush1.bf16.msra.mxu0 %v1447
    %3572 = vmatprep.subr.bf16.mxu0 %v1452
    %3573 = vmatpush1.bf16.msra.mxu0 %v1451
    %3574 = vmatprep.subr.bf16.mxu0 0
    %3575 = vmatpush1.bf16.msra.mxu0 0
    %3576 = vmatprep.subr.bf16.mxu0 0
    %3577 = vmatpush1.bf16.msra.mxu0 0
    %3578 = vmatprep.subr.bf16.mxu0 0
    %3579 = vmatpush1.bf16.msra.mxu0 0
    %3580 = vmatprep.subr.bf16.mxu0 0
    %3581 = vmatpush1.bf16.msra.mxu0 0
    %3582 = vmatprep.subr.bf16.mxu0 0
    %3583 = vmatpush1.bf16.msra.mxu0 0
    %3584 = vmatprep.subr.bf16.mxu0 0
    %3585 = vmatpush1.bf16.msra.mxu0 0
    %3586 = vmatprep.subr.bf16.mxu0 0
    %3587 = vmatpush1.bf16.msra.mxu0 0
    %3588 = vmatprep.subr.bf16.mxu0 0
    %3589 = vmatpush1.bf16.msra.mxu0 0
    %3590 = vmatprep.mubr.bf16.mxu0 0
    %3591 = vmatmul.mubr.bf16.gmra.mrb[0].mxu0 %v3514
    %v3592 = vpop.f32.mrb[0].mxu0
    %v3593 = vadd.f32 0.0, %v3592
    %v3594 = vpop.f32.mrb[0].mxu0
    %v3595 = vadd.f32 0.0, %v3594
    %v3596 = vpop.f32.mrb[0].mxu0
    %v3597 = vadd.f32 0.0, %v3596
    %v3598 = vpop.f32.mrb[0].mxu0
    %v3599 = vadd.f32 0.0, %v3598
    %3600 = vdwg.mxu0
    %v3601 = vadd.f32 %v3506, %v3550
    %v3602 = vadd.f32 %v3507, %v3552
    %v3603 = vadd.f32 %v3508, %v3593
    %v3604 = vadd.f32 %v3509, %v3595
    %v3605 = vadd.f32 %v3510, %v3554
    %v3606 = vadd.f32 %v3511, %v3556
    %v3607 = vadd.f32 %v3512, %v3597
    %v3608 = vadd.f32 %v3513, %v3599
    %v3609 = vxor.u32 %v3494, 2147483648
    %v3610 = vxor.u32 %v3498, 2147483648
    %v3611 = vmul.f32 %v3609, 1.442695
    %v3612 = vpow.pop %v3611
    %v3613 = vmul.f32 %v3610, 1.442695
    %v3614 = vpow.pop %v3613
    %v3615 = vadd.f32 %v3612, 1.0
    %v3616 = vadd.f32 %v3614, 1.0
    %v3617 = vrcp.pop %v3615
    %v3618 = vmul.f32 1.0, %v3617
    %v3619 = vrcp.pop %v3616
    %v3620 = vmul.f32 1.0, %v3619
    %v3621 = vxor.u32 %v3495, 2147483648
    %v3622 = vxor.u32 %v3499, 2147483648
    %v3623 = vmul.f32 %v3621, 1.442695
    %v3624 = vpow.pop %v3623
    %v3625 = vmul.f32 %v3622, 1.442695
    %v3626 = vpow.pop %v3625
    %v3627 = vadd.f32 %v3624, 1.0
    %v3628 = vadd.f32 %v3626, 1.0
    %v3629 = vrcp.pop %v3627
    %v3630 = vmul.f32 1.0, %v3629
    %v3631 = vrcp.pop %v3628
    %v3632 = vmul.f32 1.0, %v3631
    %v3633 = vtanh.pop %v3496
    %v3634 = vtanh.pop %v3500
    %v3635 = vxor.u32 %v3497, 2147483648
    %v3636 = vxor.u32 %v3501, 2147483648
    %v3637 = vmul.f32 %v3635, 1.442695
    %v3638 = vpow.pop %v3637
    %v3639 = vmul.f32 %v3636, 1.442695
    %v3640 = vpow.pop %v3639
    %v3641 = vadd.f32 %v3638, 1.0
    %v3642 = vadd.f32 %v3640, 1.0
    %v3643 = vrcp.pop %v3641
    %v3644 = vmul.f32 1.0, %v3643
    %v3645 = vrcp.pop %v3642
    %v3646 = vmul.f32 1.0, %v3645
    %v3647 = vmul.f32 %v3630, %v3389
    %v3648 = vmul.f32 %v3632, %v3390
    %v3649 = vmul.f32 %v3618, %v3633
    %v3650 = vmul.f32 %v3620, %v3634
    %v3651 = vadd.f32 %v3647, %v3649
    %v3652 = vadd.f32 %v3648, %v3650
    %v3653 = vtanh.pop %v3651
    %v3654 = vtanh.pop %v3652
    %v3655 = vmul.f32 %v3644, %v3653
    %v3656 = vmul.f32 %v3646, %v3654
    %v3657 = vxor.u32 %v3601, 2147483648
    %v3658 = vxor.u32 %v3605, 2147483648
    %v3659 = vmul.f32 %v3657, 1.442695
    %v3660 = vpow.pop %v3659
    %v3661 = vmul.f32 %v3658, 1.442695
    %v3662 = vpow.pop %v3661
    %v3663 = vadd.f32 %v3660, 1.0
    %v3664 = vadd.f32 %v3662, 1.0
    %v3665 = vrcp.pop %v3663
    %v3666 = vmul.f32 1.0, %v3665
    %v3667 = vrcp.pop %v3664
    %v3668 = vmul.f32 1.0, %v3667
    %v3669 = vxor.u32 %v3602, 2147483648
    %v3670 = vxor.u32 %v3606, 2147483648
    %v3671 = vmul.f32 %v3669, 1.442695
    %v3672 = vpow.pop %v3671
    %v3673 = vmul.f32 %v3670, 1.442695
    %v3674 = vpow.pop %v3673
    %v3675 = vadd.f32 %v3672, 1.0
    %v3676 = vadd.f32 %v3674, 1.0
    %v3677 = vrcp.pop %v3675
    %v3678 = vmul.f32 1.0, %v3677
    %v3679 = vrcp.pop %v3676
    %v3680 = vmul.f32 1.0, %v3679
    %v3681 = vtanh.pop %v3603
    %v3682 = vtanh.pop %v3607
    %v3683 = vxor.u32 %v3604, 2147483648
    %v3684 = vxor.u32 %v3608, 2147483648
    %v3685 = vmul.f32 %v3683, 1.442695
    %v3686 = vpow.pop %v3685
    %v3687 = vmul.f32 %v3684, 1.442695
    %v3688 = vpow.pop %v3687
    %v3689 = vadd.f32 %v3686, 1.0
    %v3690 = vadd.f32 %v3688, 1.0
    %v3691 = vrcp.pop %v3689
    %v3692 = vmul.f32 1.0, %v3691
    %v3693 = vrcp.pop %v3690
    %v3694 = vmul.f32 1.0, %v3693
    %v3695 = vmul.f32 %v3678, %v3393
    %v3696 = vmul.f32 %v3680, %v3394
    %v3697 = vmul.f32 %v3666, %v3681
    %v3698 = vmul.f32 %v3668, %v3682
    %v3699 = vadd.f32 %v3695, %v3697
    %v3700 = vadd.f32 %v3696, %v3698
    %v3701 = vtanh.pop %v3699
    %v3702 = vtanh.pop %v3700
    %v3703 = vmul.f32 %v3692, %v3701
    %v3704 = vmul.f32 %v3694, %v3702
    %v3705 = vsel %vm2037, %v3655, 0.0
    %v3706 = vsel %vm2038, %v3656, 0.0
    %v3707 = vpack.c.bf16 %v3706, %v3705
    %3708 = vst [vmem:[#allocation2 + $0x60] sm:$0xff] %v3707
    %v3709 = vsel %vm2023, %v3703, 0.0
    %v3710 = vsel %vm2024, %v3704, 0.0
    %v3711 = vpack.c.bf16 %v3710, %v3709
    %3712 = vst [vmem:[#allocation2 + $0x18] sm:$0xff] %v3711
    %v3713 = vsel %vm2037, %v3655, %v3387
    %v3714 = vsel %vm2038, %v3656, %v3388
    %v3715 = vsel %vm2037, %v3651, %v3389
    %v3716 = vsel %vm2038, %v3652, %v3390
    %v3717 = vsel %vm2023, %v3703, %v3391
    %v3718 = vsel %vm2024, %v3704, %v3392
    %v3719 = vsel %vm2023, %v3699, %v3393
    %v3720 = vsel %vm2024, %v3700, %v3394
    %v3721 = vld [vmem:[#allocation3 + $0xe0] sm:$0xff]
    %v3722 = vld [vmem:[#allocation3 + $0xe8] sm:$0xff]
    %v3723 = vld [vmem:[#allocation3 + $0xf0] sm:$0xff]
    %v3724 = vld [vmem:[#allocation3 + $0xf8] sm:$0xff]
    %v3725 = vunpack.c.l.bf16 %v3721
    %v3726 = vunpack.c.l.bf16 %v3722
    %v3727 = vunpack.c.l.bf16 %v3723
    %v3728 = vunpack.c.l.bf16 %v3724
    %v3729 = vunpack.c.h.bf16 %v3721
    %v3730 = vunpack.c.h.bf16 %v3722
    %v3731 = vunpack.c.h.bf16 %v3723
    %v3732 = vunpack.c.h.bf16 %v3724
    %v3733 = vpack.c.bf16 %v3714, %v3713
    %3734 = vmatprep.subr.bf16.mxu0 %v1156
    %3735 = vmatpush1.bf16.msra.mxu0 %v1155
    %3736 = vmatprep.subr.bf16.mxu0 %v1160
    %3737 = vmatpush1.bf16.msra.mxu0 %v1159
    %3738 = vmatprep.subr.bf16.mxu0 %v1164
    %3739 = vmatpush1.bf16.msra.mxu0 %v1163
    %3740 = vmatprep.subr.bf16.mxu0 %v1168
    %3741 = vmatpush1.bf16.msra.mxu0 %v1167
    %3742 = vmatprep.subr.bf16.mxu0 %v1172
    %3743 = vmatpush1.bf16.msra.mxu0 %v1171
    %3744 = vmatprep.subr.bf16.mxu0 %v1176
    %3745 = vmatpush1.bf16.msra.mxu0 %v1175
    %3746 = vmatprep.subr.bf16.mxu0 %v1180
    %3747 = vmatpush1.bf16.msra.mxu0 %v1179
    %3748 = vmatprep.subr.bf16.mxu0 %v1184
    %3749 = vmatpush1.bf16.msra.mxu0 %v1183
    %3750 = vmatprep.subr.bf16.mxu0 0
    %3751 = vmatpush1.bf16.msra.mxu0 0
    %3752 = vmatprep.subr.bf16.mxu0 0
    %3753 = vmatpush1.bf16.msra.mxu0 0
    %3754 = vmatprep.subr.bf16.mxu0 0
    %3755 = vmatpush1.bf16.msra.mxu0 0
    %3756 = vmatprep.subr.bf16.mxu0 0
    %3757 = vmatpush1.bf16.msra.mxu0 0
    %3758 = vmatprep.subr.bf16.mxu0 0
    %3759 = vmatpush1.bf16.msra.mxu0 0
    %3760 = vmatprep.subr.bf16.mxu0 0
    %3761 = vmatpush1.bf16.msra.mxu0 0
    %3762 = vmatprep.subr.bf16.mxu0 0
    %3763 = vmatpush1.bf16.msra.mxu0 0
    %3764 = vmatprep.subr.bf16.mxu0 0
    %3765 = vmatpush1.bf16.msra.mxu0 0
    %3766 = vmatprep.mubr.bf16.mxu0 0
    %3767 = vmatmul.mubr.bf16.gmra.mrb[0].mxu0 %v3733
    %v3768 = vpop.f32.mrb[0].mxu0
    %v3769 = vadd.f32 0.0, %v3768
    %v3770 = vpop.f32.mrb[0].mxu0
    %v3771 = vadd.f32 0.0, %v3770
    %v3772 = vpop.f32.mrb[0].mxu0
    %v3773 = vadd.f32 0.0, %v3772
    %v3774 = vpop.f32.mrb[0].mxu0
    %v3775 = vadd.f32 0.0, %v3774
    %3776 = vdwg.mxu0
    %3777 = vmatprep.subr.bf16.mxu0 %v1158
    %3778 = vmatpush1.bf16.msra.mxu0 %v1157
    %3779 = vmatprep.subr.bf16.mxu0 %v1162
    %3780 = vmatpush1.bf16.msra.mxu0 %v1161
    %3781 = vmatprep.subr.bf16.mxu0 %v1166
    %3782 = vmatpush1.bf16.msra.mxu0 %v1165
    %3783 = vmatprep.subr.bf16.mxu0 %v1170
    %3784 = vmatpush1.bf16.msra.mxu0 %v1169
    %3785 = vmatprep.subr.bf16.mxu0 %v1174
    %3786 = vmatpush1.bf16.msra.mxu0 %v1173
    %3787 = vmatprep.subr.bf16.mxu0 %v1178
    %3788 = vmatpush1.bf16.msra.mxu0 %v1177
    %3789 = vmatprep.subr.bf16.mxu0 %v1182
    %3790 = vmatpush1.bf16.msra.mxu0 %v1181
    %3791 = vmatprep.subr.bf16.mxu0 %v1186
    %3792 = vmatpush1.bf16.msra.mxu0 %v1185
    %3793 = vmatprep.subr.bf16.mxu0 0
    %3794 = vmatpush1.bf16.msra.mxu0 0
    %3795 = vmatprep.subr.bf16.mxu0 0
    %3796 = vmatpush1.bf16.msra.mxu0 0
    %3797 = vmatprep.subr.bf16.mxu0 0
    %3798 = vmatpush1.bf16.msra.mxu0 0
    %3799 = vmatprep.subr.bf16.mxu0 0
    %3800 = vmatpush1.bf16.msra.mxu0 0
    %3801 = vmatprep.subr.bf16.mxu0 0
    %3802 = vmatpush1.bf16.msra.mxu0 0
    %3803 = vmatprep.subr.bf16.mxu0 0
    %3804 = vmatpush1.bf16.msra.mxu0 0
    %3805 = vmatprep.subr.bf16.mxu0 0
    %3806 = vmatpush1.bf16.msra.mxu0 0
    %3807 = vmatprep.subr.bf16.mxu0 0
    %3808 = vmatpush1.bf16.msra.mxu0 0
    %3809 = vmatprep.mubr.bf16.mxu0 0
    %3810 = vmatmul.mubr.bf16.gmra.mrb[0].mxu0 %v3733
    %v3811 = vpop.f32.mrb[0].mxu0
    %v3812 = vadd.f32 0.0, %v3811
    %v3813 = vpop.f32.mrb[0].mxu0
    %v3814 = vadd.f32 0.0, %v3813
    %v3815 = vpop.f32.mrb[0].mxu0
    %v3816 = vadd.f32 0.0, %v3815
    %v3817 = vpop.f32.mrb[0].mxu0
    %v3818 = vadd.f32 0.0, %v3817
    %3819 = vdwg.mxu0
    %v3820 = vadd.f32 %v3725, %v3769
    %v3821 = vadd.f32 %v3726, %v3771
    %v3822 = vadd.f32 %v3727, %v3812
    %v3823 = vadd.f32 %v3728, %v3814
    %v3824 = vadd.f32 %v3729, %v3773
    %v3825 = vadd.f32 %v3730, %v3775
    %v3826 = vadd.f32 %v3731, %v3816
    %v3827 = vadd.f32 %v3732, %v3818
    %v3828 = vld [vmem:[#allocation4] sm:$0xff]
    %v3829 = vld [vmem:[#allocation4 + $0x8] sm:$0xff]
    %v3830 = vld [vmem:[#allocation4 + $0x10] sm:$0xff]
    %v3831 = vld [vmem:[#allocation4 + $0x18] sm:$0xff]
    %v3832 = vunpack.c.l.bf16 %v3828
    %v3833 = vunpack.c.l.bf16 %v3829
    %v3834 = vunpack.c.l.bf16 %v3830
    %v3835 = vunpack.c.l.bf16 %v3831
    %v3836 = vunpack.c.h.bf16 %v3828
    %v3837 = vunpack.c.h.bf16 %v3829
    %v3838 = vunpack.c.h.bf16 %v3830
    %v3839 = vunpack.c.h.bf16 %v3831
    %v3840 = vpack.c.bf16 %v3718, %v3717
    %3841 = vmatprep.subr.bf16.mxu0 %v1422
    %3842 = vmatpush1.bf16.msra.mxu0 %v1421
    %3843 = vmatprep.subr.bf16.mxu0 %v1426
    %3844 = vmatpush1.bf16.msra.mxu0 %v1425
    %3845 = vmatprep.subr.bf16.mxu0 %v1430
    %3846 = vmatpush1.bf16.msra.mxu0 %v1429
    %3847 = vmatprep.subr.bf16.mxu0 %v1434
    %3848 = vmatpush1.bf16.msra.mxu0 %v1433
    %3849 = vmatprep.subr.bf16.mxu0 %v1438
    %3850 = vmatpush1.bf16.msra.mxu0 %v1437
    %3851 = vmatprep.subr.bf16.mxu0 %v1442
    %3852 = vmatpush1.bf16.msra.mxu0 %v1441
    %3853 = vmatprep.subr.bf16.mxu0 %v1446
    %3854 = vmatpush1.bf16.msra.mxu0 %v1445
    %3855 = vmatprep.subr.bf16.mxu0 %v1450
    %3856 = vmatpush1.bf16.msra.mxu0 %v1449
    %3857 = vmatprep.subr.bf16.mxu0 0
    %3858 = vmatpush1.bf16.msra.mxu0 0
    %3859 = vmatprep.subr.bf16.mxu0 0
    %3860 = vmatpush1.bf16.msra.mxu0 0
    %3861 = vmatprep.subr.bf16.mxu0 0
    %3862 = vmatpush1.bf16.msra.mxu0 0
    %3863 = vmatprep.subr.bf16.mxu0 0
    %3864 = vmatpush1.bf16.msra.mxu0 0
    %3865 = vmatprep.subr.bf16.mxu0 0
    %3866 = vmatpush1.bf16.msra.mxu0 0
    %3867 = vmatprep.subr.bf16.mxu0 0
    %3868 = vmatpush1.bf16.msra.mxu0 0
    %3869 = vmatprep.subr.bf16.mxu0 0
    %3870 = vmatpush1.bf16.msra.mxu0 0
    %3871 = vmatprep.subr.bf16.mxu0 0
    %3872 = vmatpush1.bf16.msra.mxu0 0
    %3873 = vmatprep.mubr.bf16.mxu0 0
    %3874 = vmatmul.mubr.bf16.gmra.mrb[0].mxu0 %v3840
    %v3875 = vpop.f32.mrb[0].mxu0
    %v3876 = vadd.f32 0.0, %v3875
    %v3877 = vpop.f32.mrb[0].mxu0
    %v3878 = vadd.f32 0.0, %v3877
    %v3879 = vpop.f32.mrb[0].mxu0
    %v3880 = vadd.f32 0.0, %v3879
    %v3881 = vpop.f32.mrb[0].mxu0
    %v3882 = vadd.f32 0.0, %v3881
    %3883 = vdwg.mxu0
    %3884 = vmatprep.subr.bf16.mxu0 %v1424
    %3885 = vmatpush1.bf16.msra.mxu0 %v1423
    %3886 = vmatprep.subr.bf16.mxu0 %v1428
    %3887 = vmatpush1.bf16.msra.mxu0 %v1427
    %3888 = vmatprep.subr.bf16.mxu0 %v1432
    %3889 = vmatpush1.bf16.msra.mxu0 %v1431
    %3890 = vmatprep.subr.bf16.mxu0 %v1436
    %3891 = vmatpush1.bf16.msra.mxu0 %v1435
    %3892 = vmatprep.subr.bf16.mxu0 %v1440
    %3893 = vmatpush1.bf16.msra.mxu0 %v1439
    %3894 = vmatprep.subr.bf16.mxu0 %v1444
    %3895 = vmatpush1.bf16.msra.mxu0 %v1443
    %3896 = vmatprep.subr.bf16.mxu0 %v1448
    %3897 = vmatpush1.bf16.msra.mxu0 %v1447
    %3898 = vmatprep.subr.bf16.mxu0 %v1452
    %3899 = vmatpush1.bf16.msra.mxu0 %v1451
    %3900 = vmatprep.subr.bf16.mxu0 0
    %3901 = vmatpush1.bf16.msra.mxu0 0
    %3902 = vmatprep.subr.bf16.mxu0 0
    %3903 = vmatpush1.bf16.msra.mxu0 0
    %3904 = vmatprep.subr.bf16.mxu0 0
    %3905 = vmatpush1.bf16.msra.mxu0 0
    %3906 = vmatprep.subr.bf16.mxu0 0
    %3907 = vmatpush1.bf16.msra.mxu0 0
    %3908 = vmatprep.subr.bf16.mxu0 0
    %3909 = vmatpush1.bf16.msra.mxu0 0
    %3910 = vmatprep.subr.bf16.mxu0 0
    %3911 = vmatpush1.bf16.msra.mxu0 0
    %3912 = vmatprep.subr.bf16.mxu0 0
    %3913 = vmatpush1.bf16.msra.mxu0 0
    %3914 = vmatprep.subr.bf16.mxu0 0
    %3915 = vmatpush1.bf16.msra.mxu0 0
    %3916 = vmatprep.mubr.bf16.mxu0 0
    %3917 = vmatmul.mubr.bf16.gmra.mrb[0].mxu0 %v3840
    %v3918 = vpop.f32.mrb[0].mxu0
    %v3919 = vadd.f32 0.0, %v3918
    %v3920 = vpop.f32.mrb[0].mxu0
    %v3921 = vadd.f32 0.0, %v3920
    %v3922 = vpop.f32.mrb[0].mxu0
    %v3923 = vadd.f32 0.0, %v3922
    %v3924 = vpop.f32.mrb[0].mxu0
    %v3925 = vadd.f32 0.0, %v3924
    %3926 = vdwg.mxu0
    %v3927 = vadd.f32 %v3832, %v3876
    %v3928 = vadd.f32 %v3833, %v3878
    %v3929 = vadd.f32 %v3834, %v3919
    %v3930 = vadd.f32 %v3835, %v3921
    %v3931 = vadd.f32 %v3836, %v3880
    %v3932 = vadd.f32 %v3837, %v3882
    %v3933 = vadd.f32 %v3838, %v3923
    %v3934 = vadd.f32 %v3839, %v3925
    %v3935 = vxor.u32 %v3820, 2147483648
    %v3936 = vxor.u32 %v3824, 2147483648
    %v3937 = vmul.f32 %v3935, 1.442695
    %v3938 = vpow.pop %v3937
    %v3939 = vmul.f32 %v3936, 1.442695
    %v3940 = vpow.pop %v3939
    %v3941 = vadd.f32 %v3938, 1.0
    %v3942 = vadd.f32 %v3940, 1.0
    %v3943 = vrcp.pop %v3941
    %v3944 = vmul.f32 1.0, %v3943
    %v3945 = vrcp.pop %v3942
    %v3946 = vmul.f32 1.0, %v3945
    %v3947 = vxor.u32 %v3821, 2147483648
    %v3948 = vxor.u32 %v3825, 2147483648
    %v3949 = vmul.f32 %v3947, 1.442695
    %v3950 = vpow.pop %v3949
    %v3951 = vmul.f32 %v3948, 1.442695
    %v3952 = vpow.pop %v3951
    %v3953 = vadd.f32 %v3950, 1.0
    %v3954 = vadd.f32 %v3952, 1.0
    %v3955 = vrcp.pop %v3953
    %v3956 = vmul.f32 1.0, %v3955
    %v3957 = vrcp.pop %v3954
    %v3958 = vmul.f32 1.0, %v3957
    %v3959 = vtanh.pop %v3822
    %v3960 = vtanh.pop %v3826
    %v3961 = vxor.u32 %v3823, 2147483648
    %v3962 = vxor.u32 %v3827, 2147483648
    %v3963 = vmul.f32 %v3961, 1.442695
    %v3964 = vpow.pop %v3963
    %v3965 = vmul.f32 %v3962, 1.442695
    %v3966 = vpow.pop %v3965
    %v3967 = vadd.f32 %v3964, 1.0
    %v3968 = vadd.f32 %v3966, 1.0
    %v3969 = vrcp.pop %v3967
    %v3970 = vmul.f32 1.0, %v3969
    %v3971 = vrcp.pop %v3968
    %v3972 = vmul.f32 1.0, %v3971
    %v3973 = vmul.f32 %v3956, %v3715
    %v3974 = vmul.f32 %v3958, %v3716
    %v3975 = vmul.f32 %v3944, %v3959
    %v3976 = vmul.f32 %v3946, %v3960
    %v3977 = vadd.f32 %v3973, %v3975
    %v3978 = vadd.f32 %v3974, %v3976
    %v3979 = vtanh.pop %v3977
    %v3980 = vtanh.pop %v3978
    %v3981 = vmul.f32 %v3970, %v3979
    %v3982 = vmul.f32 %v3972, %v3980
    %v3983 = vxor.u32 %v3927, 2147483648
    %v3984 = vxor.u32 %v3931, 2147483648
    %v3985 = vmul.f32 %v3983, 1.442695
    %v3986 = vpow.pop %v3985
    %v3987 = vmul.f32 %v3984, 1.442695
    %v3988 = vpow.pop %v3987
    %v3989 = vadd.f32 %v3986, 1.0
    %v3990 = vadd.f32 %v3988, 1.0
    %v3991 = vrcp.pop %v3989
    %v3992 = vmul.f32 1.0, %v3991
    %v3993 = vrcp.pop %v3990
    %v3994 = vmul.f32 1.0, %v3993
    %v3995 = vxor.u32 %v3928, 2147483648
    %v3996 = vxor.u32 %v3932, 2147483648
    %v3997 = vmul.f32 %v3995, 1.442695
    %v3998 = vpow.pop %v3997
    %v3999 = vmul.f32 %v3996, 1.442695
    %v4000 = vpow.pop %v3999
    %v4001 = vadd.f32 %v3998, 1.0
    %v4002 = vadd.f32 %v4000, 1.0
    %v4003 = vrcp.pop %v4001
    %v4004 = vmul.f32 1.0, %v4003
    %v4005 = vrcp.pop %v4002
    %v4006 = vmul.f32 1.0, %v4005
    %v4007 = vtanh.pop %v3929
    %v4008 = vtanh.pop %v3933
    %v4009 = vxor.u32 %v3930, 2147483648
    %v4010 = vxor.u32 %v3934, 2147483648
    %v4011 = vmul.f32 %v4009, 1.442695
    %v4012 = vpow.pop %v4011
    %v4013 = vmul.f32 %v4010, 1.442695
    %v4014 = vpow.pop %v4013
    %v4015 = vadd.f32 %v4012, 1.0
    %v4016 = vadd.f32 %v4014, 1.0
    %v4017 = vrcp.pop %v4015
    %v4018 = vmul.f32 1.0, %v4017
    %v4019 = vrcp.pop %v4016
    %v4020 = vmul.f32 1.0, %v4019
    %v4021 = vmul.f32 %v4004, %v3719
    %v4022 = vmul.f32 %v4006, %v3720
    %v4023 = vmul.f32 %v3992, %v4007
    %v4024 = vmul.f32 %v3994, %v4008
    %v4025 = vadd.f32 %v4021, %v4023
    %v4026 = vadd.f32 %v4022, %v4024
    %v4027 = vtanh.pop %v4025
    %v4028 = vtanh.pop %v4026
    %v4029 = vmul.f32 %v4018, %v4027
    %v4030 = vmul.f32 %v4020, %v4028
    %v4031 = vsel %vm1697, %v3981, 0.0
    %v4032 = vsel %vm1698, %v3982, 0.0
    %v4033 = vpack.c.bf16 %v4032, %v4031
    %4034 = vst [vmem:[#allocation2 + $0x70] sm:$0xff] %v4033
    %v4035 = vsel %vm1683, %v4029, 0.0
    %v4036 = vsel %vm1684, %v4030, 0.0
    %v4037 = vpack.c.bf16 %v4036, %v4035
    %4038 = vst [vmem:[#allocation2 + $0x8] sm:$0xff] %v4037
    %v4039 = vld [vmem:[#allocation2] sm:$0xff]
    %v4040 = vld [vmem:[#allocation2 + $0x8] sm:$0xff]
    %v4041 = vld [vmem:[#allocation2 + $0x10] sm:$0xff]
    %v4042 = vld [vmem:[#allocation2 + $0x18] sm:$0xff]
    %v4043 = vld [vmem:[#allocation2 + $0x20] sm:$0xff]
    %v4044 = vld [vmem:[#allocation2 + $0x28] sm:$0xff]
    %v4045 = vld [vmem:[#allocation2 + $0x30] sm:$0xff]
    %v4046 = vld [vmem:[#allocation2 + $0x38] sm:$0xff]
    %v4047 = vld [vmem:[#allocation2 + $0x40] sm:$0xff]
    %v4048 = vld [vmem:[#allocation2 + $0x48] sm:$0xff]
    %v4049 = vld [vmem:[#allocation2 + $0x50] sm:$0xff]
    %v4050 = vld [vmem:[#allocation2 + $0x58] sm:$0xff]
    %v4051 = vld [vmem:[#allocation2 + $0x60] sm:$0xff]
    %v4052 = vld [vmem:[#allocation2 + $0x68] sm:$0xff]
    %v4053 = vld [vmem:[#allocation2 + $0x70] sm:$0xff]
    %v4054 = vld [vmem:[#allocation2 + $0x78] sm:$0xff]
    %v4055 = vld [vmem:[#allocation13] sm:$0xff]
    %v4056 = vld [vmem:[#allocation13 + $0x8] sm:$0xff]
    %v4057 = vld [vmem:[#allocation13 + $0x10] sm:$0xff]
    %v4058 = vld [vmem:[#allocation13 + $0x18] sm:$0xff]
    %v4059 = vld [vmem:[#allocation13 + $0x20] sm:$0xff]
    %v4060 = vld [vmem:[#allocation13 + $0x28] sm:$0xff]
    %v4061 = vld [vmem:[#allocation13 + $0x30] sm:$0xff]
    %v4062 = vld [vmem:[#allocation13 + $0x38] sm:$0xff]
    %v4063 = vld [vmem:[#allocation13 + $0x40] sm:$0xff]
    %v4064 = vld [vmem:[#allocation13 + $0x48] sm:$0xff]
    %v4065 = vld [vmem:[#allocation13 + $0x50] sm:$0xff]
    %v4066 = vld [vmem:[#allocation13 + $0x58] sm:$0xff]
    %v4067 = vld [vmem:[#allocation13 + $0x60] sm:$0xff]
    %v4068 = vld [vmem:[#allocation13 + $0x68] sm:$0xff]
    %v4069 = vld [vmem:[#allocation13 + $0x70] sm:$0xff]
    %v4070 = vld [vmem:[#allocation13 + $0x78] sm:$0xff]
    %v4071 = vld [vmem:[#allocation13 + $0x80] sm:$0xff]
    %v4072 = vld [vmem:[#allocation13 + $0x88] sm:$0xff]
    %v4073 = vld [vmem:[#allocation13 + $0x90] sm:$0xff]
    %v4074 = vld [vmem:[#allocation13 + $0x98] sm:$0xff]
    %v4075 = vld [vmem:[#allocation13 + $0xa0] sm:$0xff]
    %v4076 = vld [vmem:[#allocation13 + $0xa8] sm:$0xff]
    %v4077 = vld [vmem:[#allocation13 + $0xb0] sm:$0xff]
    %v4078 = vld [vmem:[#allocation13 + $0xb8] sm:$0xff]
    %v4079 = vld [vmem:[#allocation13 + $0xc0] sm:$0xff]
    %v4080 = vld [vmem:[#allocation13 + $0xc8] sm:$0xff]
    %v4081 = vld [vmem:[#allocation13 + $0xd0] sm:$0xff]
    %v4082 = vld [vmem:[#allocation13 + $0xd8] sm:$0xff]
    %v4083 = vld [vmem:[#allocation13 + $0xe0] sm:$0xff]
    %v4084 = vld [vmem:[#allocation13 + $0xe8] sm:$0xff]
    %v4085 = vld [vmem:[#allocation13 + $0xf0] sm:$0xff]
    %v4086 = vld [vmem:[#allocation13 + $0xf8] sm:$0xff]
    %v4087 = vld [vmem:[#allocation13 + $0x100] sm:$0xff]
    %v4088 = vld [vmem:[#allocation13 + $0x108] sm:$0xff]
    %v4089 = vld [vmem:[#allocation13 + $0x110] sm:$0xff]
    %v4090 = vld [vmem:[#allocation13 + $0x118] sm:$0xff]
    %v4091 = vld [vmem:[#allocation13 + $0x120] sm:$0xff]
    %v4092 = vld [vmem:[#allocation13 + $0x128] sm:$0xff]
    %v4093 = vld [vmem:[#allocation13 + $0x130] sm:$0xff]
    %v4094 = vld [vmem:[#allocation13 + $0x138] sm:$0xff]
    %v4095 = vld [vmem:[#allocation13 + $0x140] sm:$0xff]
    %v4096 = vld [vmem:[#allocation13 + $0x148] sm:$0xff]
    %v4097 = vld [vmem:[#allocation13 + $0x150] sm:$0xff]
    %v4098 = vld [vmem:[#allocation13 + $0x158] sm:$0xff]
    %v4099 = vld [vmem:[#allocation13 + $0x160] sm:$0xff]
    %v4100 = vld [vmem:[#allocation13 + $0x168] sm:$0xff]
    %v4101 = vld [vmem:[#allocation13 + $0x170] sm:$0xff]
    %v4102 = vld [vmem:[#allocation13 + $0x178] sm:$0xff]
    %v4103 = vld [vmem:[#allocation13 + $0x180] sm:$0xff]
    %v4104 = vld [vmem:[#allocation13 + $0x188] sm:$0xff]
    %v4105 = vld [vmem:[#allocation13 + $0x190] sm:$0xff]
    %v4106 = vld [vmem:[#allocation13 + $0x198] sm:$0xff]
    %v4107 = vld [vmem:[#allocation13 + $0x1a0] sm:$0xff]
    %v4108 = vld [vmem:[#allocation13 + $0x1a8] sm:$0xff]
    %v4109 = vld [vmem:[#allocation13 + $0x1b0] sm:$0xff]
    %v4110 = vld [vmem:[#allocation13 + $0x1b8] sm:$0xff]
    %v4111 = vld [vmem:[#allocation13 + $0x1c0] sm:$0xff]
    %v4112 = vld [vmem:[#allocation13 + $0x1c8] sm:$0xff]
    %v4113 = vld [vmem:[#allocation13 + $0x1d0] sm:$0xff]
    %v4114 = vld [vmem:[#allocation13 + $0x1d8] sm:$0xff]
    %v4115 = vld [vmem:[#allocation13 + $0x1e0] sm:$0xff]
    %v4116 = vld [vmem:[#allocation13 + $0x1e8] sm:$0xff]
    %v4117 = vld [vmem:[#allocation13 + $0x1f0] sm:$0xff]
    %v4118 = vld [vmem:[#allocation13 + $0x1f8] sm:$0xff]
    %v4119 = vld [vmem:[%s12] sm:$0xf]
    %v4121 = vlaneseq
    %v4122 = vshrl.u32 %v4121, 7
    %v4123 = vsub.s32 0, %v4122
    %v4124 = vrot.slane %v4119, %v4123
    %v4125 = vlaneseq
    %v4126 = vshrl.u32 %v4125, 7
    %v4127 = vsub.s32 1, %v4126
    %v4128 = vrot.slane %v4119, %v4127
    %v4129 = vlaneseq
    %v4130 = vshrl.u32 %v4129, 7
    %v4131 = vsub.s32 2, %v4130
    %v4132 = vrot.slane %v4119, %v4131
    %v4133 = vlaneseq
    %v4134 = vshrl.u32 %v4133, 7
    %v4135 = vsub.s32 3, %v4134
    %v4136 = vrot.slane %v4119, %v4135
    %v4205 = vunpack.c.l.b16 %v4055
    %v4206 = vunpack.c.h.b16 %v4055
    %v4207 = vunpack.c.l.b16 %v4056
    %v4208 = vunpack.c.h.b16 %v4056
    %v4209 = vunpack.c.l.b16 %v4057
    %v4210 = vunpack.c.h.b16 %v4057
    %v4211 = vunpack.c.l.b16 %v4058
    %v4212 = vunpack.c.h.b16 %v4058
    %v4213 = vunpack.c.l.b16 %v4059
    %v4214 = vunpack.c.h.b16 %v4059
    %v4215 = vunpack.c.l.b16 %v4060
    %v4216 = vunpack.c.h.b16 %v4060
    %v4217 = vunpack.c.l.b16 %v4061
    %v4218 = vunpack.c.h.b16 %v4061
    %v4219 = vunpack.c.l.b16 %v4062
    %v4220 = vunpack.c.h.b16 %v4062
    %v4221 = vunpack.c.l.b16 %v4063
    %v4222 = vunpack.c.h.b16 %v4063
    %v4223 = vunpack.c.l.b16 %v4064
    %v4224 = vunpack.c.h.b16 %v4064
    %v4225 = vunpack.c.l.b16 %v4065
    %v4226 = vunpack.c.h.b16 %v4065
    %v4227 = vunpack.c.l.b16 %v4066
    %v4228 = vunpack.c.h.b16 %v4066
    %v4229 = vunpack.c.l.b16 %v4067
    %v4230 = vunpack.c.h.b16 %v4067
    %v4231 = vunpack.c.l.b16 %v4068
    %v4232 = vunpack.c.h.b16 %v4068
    %v4233 = vunpack.c.l.b16 %v4069
    %v4234 = vunpack.c.h.b16 %v4069
    %v4235 = vunpack.c.l.b16 %v4070
    %v4236 = vunpack.c.h.b16 %v4070
    %v4237 = vunpack.c.l.b16 %v4071
    %v4238 = vunpack.c.h.b16 %v4071
    %v4239 = vunpack.c.l.b16 %v4072
    %v4240 = vunpack.c.h.b16 %v4072
    %v4241 = vunpack.c.l.b16 %v4073
    %v4242 = vunpack.c.h.b16 %v4073
    %v4243 = vunpack.c.l.b16 %v4074
    %v4244 = vunpack.c.h.b16 %v4074
    %v4245 = vunpack.c.l.b16 %v4075
    %v4246 = vunpack.c.h.b16 %v4075
    %v4247 = vunpack.c.l.b16 %v4076
    %v4248 = vunpack.c.h.b16 %v4076
    %v4249 = vunpack.c.l.b16 %v4077
    %v4250 = vunpack.c.h.b16 %v4077
    %v4251 = vunpack.c.l.b16 %v4078
    %v4252 = vunpack.c.h.b16 %v4078
    %v4253 = vunpack.c.l.b16 %v4079
    %v4254 = vunpack.c.h.b16 %v4079
    %v4255 = vunpack.c.l.b16 %v4080
    %v4256 = vunpack.c.h.b16 %v4080
    %v4257 = vunpack.c.l.b16 %v4081
    %v4258 = vunpack.c.h.b16 %v4081
    %v4259 = vunpack.c.l.b16 %v4082
    %v4260 = vunpack.c.h.b16 %v4082
    %v4261 = vunpack.c.l.b16 %v4083
    %v4262 = vunpack.c.h.b16 %v4083
    %v4263 = vunpack.c.l.b16 %v4084
    %v4264 = vunpack.c.h.b16 %v4084
    %v4265 = vunpack.c.l.b16 %v4085
    %v4266 = vunpack.c.h.b16 %v4085
    %v4267 = vunpack.c.l.b16 %v4086
    %v4268 = vunpack.c.h.b16 %v4086
    %v4269 = vunpack.c.l.b16 %v4087
    %v4270 = vunpack.c.h.b16 %v4087
    %v4271 = vunpack.c.l.b16 %v4088
    %v4272 = vunpack.c.h.b16 %v4088
    %v4273 = vunpack.c.l.b16 %v4089
    %v4274 = vunpack.c.h.b16 %v4089
    %v4275 = vunpack.c.l.b16 %v4090
    %v4276 = vunpack.c.h.b16 %v4090
    %v4277 = vunpack.c.l.b16 %v4091
    %v4278 = vunpack.c.h.b16 %v4091
    %v4279 = vunpack.c.l.b16 %v4092
    %v4280 = vunpack.c.h.b16 %v4092
    %v4281 = vunpack.c.l.b16 %v4093
    %v4282 = vunpack.c.h.b16 %v4093
    %v4283 = vunpack.c.l.b16 %v4094
    %v4284 = vunpack.c.h.b16 %v4094
    %v4285 = vunpack.c.l.b16 %v4095
    %v4286 = vunpack.c.h.b16 %v4095
    %v4287 = vunpack.c.l.b16 %v4096
    %v4288 = vunpack.c.h.b16 %v4096
    %v4289 = vunpack.c.l.b16 %v4097
    %v4290 = vunpack.c.h.b16 %v4097
    %v4291 = vunpack.c.l.b16 %v4098
    %v4292 = vunpack.c.h.b16 %v4098
    %v4293 = vunpack.c.l.b16 %v4099
    %v4294 = vunpack.c.h.b16 %v4099
    %v4295 = vunpack.c.l.b16 %v4100
    %v4296 = vunpack.c.h.b16 %v4100
    %v4297 = vunpack.c.l.b16 %v4101
    %v4298 = vunpack.c.h.b16 %v4101
    %v4299 = vunpack.c.l.b16 %v4102
    %v4300 = vunpack.c.h.b16 %v4102
    %v4301 = vunpack.c.l.b16 %v4103
    %v4302 = vunpack.c.h.b16 %v4103
    %v4303 = vunpack.c.l.b16 %v4104
    %v4304 = vunpack.c.h.b16 %v4104
    %v4305 = vunpack.c.l.b16 %v4105
    %v4306 = vunpack.c.h.b16 %v4105
    %v4307 = vunpack.c.l.b16 %v4106
    %v4308 = vunpack.c.h.b16 %v4106
    %v4309 = vunpack.c.l.b16 %v4107
    %v4310 = vunpack.c.h.b16 %v4107
    %v4311 = vunpack.c.l.b16 %v4108
    %v4312 = vunpack.c.h.b16 %v4108
    %v4313 = vunpack.c.l.b16 %v4109
    %v4314 = vunpack.c.h.b16 %v4109
    %v4315 = vunpack.c.l.b16 %v4110
    %v4316 = vunpack.c.h.b16 %v4110
    %v4317 = vunpack.c.l.b16 %v4111
    %v4318 = vunpack.c.h.b16 %v4111
    %v4319 = vunpack.c.l.b16 %v4112
    %v4320 = vunpack.c.h.b16 %v4112
    %v4321 = vunpack.c.l.b16 %v4113
    %v4322 = vunpack.c.h.b16 %v4113
    %v4323 = vunpack.c.l.b16 %v4114
    %v4324 = vunpack.c.h.b16 %v4114
    %v4325 = vunpack.c.l.b16 %v4115
    %v4326 = vunpack.c.h.b16 %v4115
    %v4327 = vunpack.c.l.b16 %v4116
    %v4328 = vunpack.c.h.b16 %v4116
    %v4329 = vunpack.c.l.b16 %v4117
    %v4330 = vunpack.c.h.b16 %v4117
    %v4331 = vunpack.c.l.b16 %v4118
    %v4332 = vunpack.c.h.b16 %v4118
    %v4333 = vpack.c.b16 %v4209, %v4205
    %v4334 = vpack.c.b16 %v4210, %v4206
    %v4335 = vpack.c.b16 %v4211, %v4207
    %v4336 = vpack.c.b16 %v4212, %v4208
    %v4337 = vpack.c.b16 %v4217, %v4213
    %v4338 = vpack.c.b16 %v4218, %v4214
    %v4339 = vpack.c.b16 %v4219, %v4215
    %v4340 = vpack.c.b16 %v4220, %v4216
    %v4341 = vpack.c.b16 %v4225, %v4221
    %v4342 = vpack.c.b16 %v4226, %v4222
    %v4343 = vpack.c.b16 %v4227, %v4223
    %v4344 = vpack.c.b16 %v4228, %v4224
    %v4345 = vpack.c.b16 %v4233, %v4229
    %v4346 = vpack.c.b16 %v4234, %v4230
    %v4347 = vpack.c.b16 %v4235, %v4231
    %v4348 = vpack.c.b16 %v4236, %v4232
    %v4349 = vpack.c.b16 %v4241, %v4237
    %v4350 = vpack.c.b16 %v4242, %v4238
    %v4351 = vpack.c.b16 %v4243, %v4239
    %v4352 = vpack.c.b16 %v4244, %v4240
    %v4353 = vpack.c.b16 %v4249, %v4245
    %v4354 = vpack.c.b16 %v4250, %v4246
    %v4355 = vpack.c.b16 %v4251, %v4247
    %v4356 = vpack.c.b16 %v4252, %v4248
    %v4357 = vpack.c.b16 %v4257, %v4253
    %v4358 = vpack.c.b16 %v4258, %v4254
    %v4359 = vpack.c.b16 %v4259, %v4255
    %v4360 = vpack.c.b16 %v4260, %v4256
    %v4361 = vpack.c.b16 %v4265, %v4261
    %v4362 = vpack.c.b16 %v4266, %v4262
    %v4363 = vpack.c.b16 %v4267, %v4263
    %v4364 = vpack.c.b16 %v4268, %v4264
    %v4365 = vpack.c.b16 %v4273, %v4269
    %v4366 = vpack.c.b16 %v4274, %v4270
    %v4367 = vpack.c.b16 %v4275, %v4271
    %v4368 = vpack.c.b16 %v4276, %v4272
    %v4369 = vpack.c.b16 %v4281, %v4277
    %v4370 = vpack.c.b16 %v4282, %v4278
    %v4371 = vpack.c.b16 %v4283, %v4279
    %v4372 = vpack.c.b16 %v4284, %v4280
    %v4373 = vpack.c.b16 %v4289, %v4285
    %v4374 = vpack.c.b16 %v4290, %v4286
    %v4375 = vpack.c.b16 %v4291, %v4287
    %v4376 = vpack.c.b16 %v4292, %v4288
    %v4377 = vpack.c.b16 %v4297, %v4293
    %v4378 = vpack.c.b16 %v4298, %v4294
    %v4379 = vpack.c.b16 %v4299, %v4295
    %v4380 = vpack.c.b16 %v4300, %v4296
    %v4381 = vpack.c.b16 %v4305, %v4301
    %v4382 = vpack.c.b16 %v4306, %v4302
    %v4383 = vpack.c.b16 %v4307, %v4303
    %v4384 = vpack.c.b16 %v4308, %v4304
    %v4385 = vpack.c.b16 %v4313, %v4309
    %v4386 = vpack.c.b16 %v4314, %v4310
    %v4387 = vpack.c.b16 %v4315, %v4311
    %v4388 = vpack.c.b16 %v4316, %v4312
    %v4389 = vpack.c.b16 %v4321, %v4317
    %v4390 = vpack.c.b16 %v4322, %v4318
    %v4391 = vpack.c.b16 %v4323, %v4319
    %v4392 = vpack.c.b16 %v4324, %v4320
    %v4393 = vpack.c.b16 %v4329, %v4325
    %v4394 = vpack.c.b16 %v4330, %v4326
    %v4395 = vpack.c.b16 %v4331, %v4327
    %v4396 = vpack.c.b16 %v4332, %v4328
    %4461 = vmatprep.subr.bf16.mxu0 %v4334
    %4462 = vmatpush1.bf16.msra.mxu0 %v4333
    %4463 = vmatprep.subr.bf16.mxu0 %v4338
    %4464 = vmatpush1.bf16.msra.mxu0 %v4337
    %4465 = vmatprep.subr.bf16.mxu0 %v4342
    %4466 = vmatpush1.bf16.msra.mxu0 %v4341
    %4467 = vmatprep.subr.bf16.mxu0 %v4346
    %4468 = vmatpush1.bf16.msra.mxu0 %v4345
    %4469 = vmatprep.subr.bf16.mxu0 %v4350
    %4470 = vmatpush1.bf16.msra.mxu0 %v4349
    %4471 = vmatprep.subr.bf16.mxu0 %v4354
    %4472 = vmatpush1.bf16.msra.mxu0 %v4353
    %4473 = vmatprep.subr.bf16.mxu0 %v4358
    %4474 = vmatpush1.bf16.msra.mxu0 %v4357
    %4475 = vmatprep.subr.bf16.mxu0 %v4362
    %4476 = vmatpush1.bf16.msra.mxu0 %v4361
    %4477 = vmatprep.subr.bf16.mxu0 %v4366
    %4478 = vmatpush1.bf16.msra.mxu0 %v4365
    %4479 = vmatprep.subr.bf16.mxu0 %v4370
    %4480 = vmatpush1.bf16.msra.mxu0 %v4369
    %4481 = vmatprep.subr.bf16.mxu0 %v4374
    %4482 = vmatpush1.bf16.msra.mxu0 %v4373
    %4483 = vmatprep.subr.bf16.mxu0 %v4378
    %4484 = vmatpush1.bf16.msra.mxu0 %v4377
    %4485 = vmatprep.subr.bf16.mxu0 %v4382
    %4486 = vmatpush1.bf16.msra.mxu0 %v4381
    %4487 = vmatprep.subr.bf16.mxu0 %v4386
    %4488 = vmatpush1.bf16.msra.mxu0 %v4385
    %4489 = vmatprep.subr.bf16.mxu0 %v4390
    %4490 = vmatpush1.bf16.msra.mxu0 %v4389
    %4491 = vmatprep.subr.bf16.mxu0 %v4394
    %4492 = vmatpush1.bf16.msra.mxu0 %v4393
    %4493 = vmatprep.mubr.bf16.mxu0 %v4040
    %4494 = vmatmul.mubr.bf16.gmra.mrb[0].mxu0 %v4039
    %v4495 = vpop.f32.mrb[0].mxu0
    %v4496 = vadd.f32 %v4124, %v4495
    %v4497 = vpop.f32.mrb[0].mxu0
    %v4498 = vadd.f32 %v4128, %v4497
    %v4499 = vpop.f32.mrb[0].mxu0
    %v4500 = vadd.f32 %v4124, %v4499
    %v4501 = vpop.f32.mrb[0].mxu0
    %v4502 = vadd.f32 %v4128, %v4501
    %4503 = vmatprep.mubr.bf16.mxu0 %v4042
    %4504 = vmatmul.mubr.bf16.gmra.mrb[0].mxu0 %v4041
    %v4505 = vpop.f32.mrb[0].mxu0
    %v4506 = vadd.f32 %v4124, %v4505
    %v4507 = vpop.f32.mrb[0].mxu0
    %v4508 = vadd.f32 %v4128, %v4507
    %v4509 = vpop.f32.mrb[0].mxu0
    %v4510 = vadd.f32 %v4124, %v4509
    %v4511 = vpop.f32.mrb[0].mxu0
    %v4512 = vadd.f32 %v4128, %v4511
    %4513 = vmatprep.mubr.bf16.mxu0 %v4044
    %4514 = vmatmul.mubr.bf16.gmra.mrb[0].mxu0 %v4043
    %v4515 = vpop.f32.mrb[0].mxu0
    %v4516 = vadd.f32 %v4124, %v4515
    %v4517 = vpop.f32.mrb[0].mxu0
    %v4518 = vadd.f32 %v4128, %v4517
    %v4519 = vpop.f32.mrb[0].mxu0
    %v4520 = vadd.f32 %v4124, %v4519
    %v4521 = vpop.f32.mrb[0].mxu0
    %v4522 = vadd.f32 %v4128, %v4521
    %4523 = vmatprep.mubr.bf16.mxu0 %v4046
    %4524 = vmatmul.mubr.bf16.gmra.mrb[0].mxu0 %v4045
    %v4525 = vpop.f32.mrb[0].mxu0
    %v4526 = vadd.f32 %v4124, %v4525
    %v4527 = vpop.f32.mrb[0].mxu0
    %v4528 = vadd.f32 %v4128, %v4527
    %v4529 = vpop.f32.mrb[0].mxu0
    %v4530 = vadd.f32 %v4124, %v4529
    %v4531 = vpop.f32.mrb[0].mxu0
    %v4532 = vadd.f32 %v4128, %v4531
    %4533 = vmatprep.mubr.bf16.mxu0 %v4048
    %4534 = vmatmul.mubr.bf16.gmra.mrb[0].mxu0 %v4047
    %v4535 = vpop.f32.mrb[0].mxu0
    %v4536 = vadd.f32 %v4124, %v4535
    %v4537 = vpop.f32.mrb[0].mxu0
    %v4538 = vadd.f32 %v4128, %v4537
    %v4539 = vpop.f32.mrb[0].mxu0
    %v4540 = vadd.f32 %v4124, %v4539
    %v4541 = vpop.f32.mrb[0].mxu0
    %v4542 = vadd.f32 %v4128, %v4541
    %4543 = vmatprep.mubr.bf16.mxu0 %v4050
    %4544 = vmatmul.mubr.bf16.gmra.mrb[0].mxu0 %v4049
    %v4545 = vpop.f32.mrb[0].mxu0
    %v4546 = vadd.f32 %v4124, %v4545
    %v4547 = vpop.f32.mrb[0].mxu0
    %v4548 = vadd.f32 %v4128, %v4547
    %v4549 = vpop.f32.mrb[0].mxu0
    %v4550 = vadd.f32 %v4124, %v4549
    %v4551 = vpop.f32.mrb[0].mxu0
    %v4552 = vadd.f32 %v4128, %v4551
    %4553 = vmatprep.mubr.bf16.mxu0 %v4052
    %4554 = vmatmul.mubr.bf16.gmra.mrb[0].mxu0 %v4051
    %v4555 = vpop.f32.mrb[0].mxu0
    %v4556 = vadd.f32 %v4124, %v4555
    %v4557 = vpop.f32.mrb[0].mxu0
    %v4558 = vadd.f32 %v4128, %v4557
    %v4559 = vpop.f32.mrb[0].mxu0
    %v4560 = vadd.f32 %v4124, %v4559
    %v4561 = vpop.f32.mrb[0].mxu0
    %v4562 = vadd.f32 %v4128, %v4561
    %4563 = vmatprep.mubr.bf16.mxu0 %v4054
    %4564 = vmatmul.mubr.bf16.gmra.mrb[0].mxu0 %v4053
    %v4565 = vpop.f32.mrb[0].mxu0
    %v4566 = vadd.f32 %v4124, %v4565
    %v4567 = vpop.f32.mrb[0].mxu0
    %v4568 = vadd.f32 %v4128, %v4567
    %v4569 = vpop.f32.mrb[0].mxu0
    %v4570 = vadd.f32 %v4124, %v4569
    %v4571 = vpop.f32.mrb[0].mxu0
    %v4572 = vadd.f32 %v4128, %v4571
    %4573 = vdwg.mxu0
    %4574 = vmatprep.subr.bf16.mxu0 %v4336
    %4575 = vmatpush1.bf16.msra.mxu0 %v4335
    %4576 = vmatprep.subr.bf16.mxu0 %v4340
    %4577 = vmatpush1.bf16.msra.mxu0 %v4339
    %4578 = vmatprep.subr.bf16.mxu0 %v4344
    %4579 = vmatpush1.bf16.msra.mxu0 %v4343
    %4580 = vmatprep.subr.bf16.mxu0 %v4348
    %4581 = vmatpush1.bf16.msra.mxu0 %v4347
    %4582 = vmatprep.subr.bf16.mxu0 %v4352
    %4583 = vmatpush1.bf16.msra.mxu0 %v4351
    %4584 = vmatprep.subr.bf16.mxu0 %v4356
    %4585 = vmatpush1.bf16.msra.mxu0 %v4355
    %4586 = vmatprep.subr.bf16.mxu0 %v4360
    %4587 = vmatpush1.bf16.msra.mxu0 %v4359
    %4588 = vmatprep.subr.bf16.mxu0 %v4364
    %4589 = vmatpush1.bf16.msra.mxu0 %v4363
    %4590 = vmatprep.subr.bf16.mxu0 %v4368
    %4591 = vmatpush1.bf16.msra.mxu0 %v4367
    %4592 = vmatprep.subr.bf16.mxu0 %v4372
    %4593 = vmatpush1.bf16.msra.mxu0 %v4371
    %4594 = vmatprep.subr.bf16.mxu0 %v4376
    %4595 = vmatpush1.bf16.msra.mxu0 %v4375
    %4596 = vmatprep.subr.bf16.mxu0 %v4380
    %4597 = vmatpush1.bf16.msra.mxu0 %v4379
    %4598 = vmatprep.subr.bf16.mxu0 %v4384
    %4599 = vmatpush1.bf16.msra.mxu0 %v4383
    %4600 = vmatprep.subr.bf16.mxu0 %v4388
    %4601 = vmatpush1.bf16.msra.mxu0 %v4387
    %4602 = vmatprep.subr.bf16.mxu0 %v4392
    %4603 = vmatpush1.bf16.msra.mxu0 %v4391
    %4604 = vmatprep.subr.bf16.mxu0 %v4396
    %4605 = vmatpush1.bf16.msra.mxu0 %v4395
    %4606 = vmatprep.mubr.bf16.mxu0 %v4040
    %4607 = vmatmul.mubr.bf16.gmra.mrb[0].mxu0 %v4039
    %v4608 = vpop.f32.mrb[0].mxu0
    %v4609 = vadd.f32 %v4132, %v4608
    %v4610 = vpop.f32.mrb[0].mxu0
    %v4611 = vadd.f32 %v4136, %v4610
    %v4612 = vpop.f32.mrb[0].mxu0
    %v4613 = vadd.f32 %v4132, %v4612
    %v4614 = vpop.f32.mrb[0].mxu0
    %v4615 = vadd.f32 %v4136, %v4614
    %4616 = vmatprep.mubr.bf16.mxu0 %v4042
    %4617 = vmatmul.mubr.bf16.gmra.mrb[0].mxu0 %v4041
    %v4618 = vpop.f32.mrb[0].mxu0
    %v4619 = vadd.f32 %v4132, %v4618
    %v4620 = vpop.f32.mrb[0].mxu0
    %v4621 = vadd.f32 %v4136, %v4620
    %v4622 = vpop.f32.mrb[0].mxu0
    %v4623 = vadd.f32 %v4132, %v4622
    %v4624 = vpop.f32.mrb[0].mxu0
    %v4625 = vadd.f32 %v4136, %v4624
    %4626 = vmatprep.mubr.bf16.mxu0 %v4044
    %4627 = vmatmul.mubr.bf16.gmra.mrb[0].mxu0 %v4043
    %v4628 = vpop.f32.mrb[0].mxu0
    %v4629 = vadd.f32 %v4132, %v4628
    %v4630 = vpop.f32.mrb[0].mxu0
    %v4631 = vadd.f32 %v4136, %v4630
    %v4632 = vpop.f32.mrb[0].mxu0
    %v4633 = vadd.f32 %v4132, %v4632
    %v4634 = vpop.f32.mrb[0].mxu0
    %v4635 = vadd.f32 %v4136, %v4634
    %4636 = vmatprep.mubr.bf16.mxu0 %v4046
    %4637 = vmatmul.mubr.bf16.gmra.mrb[0].mxu0 %v4045
    %v4638 = vpop.f32.mrb[0].mxu0
    %v4639 = vadd.f32 %v4132, %v4638
    %v4640 = vpop.f32.mrb[0].mxu0
    %v4641 = vadd.f32 %v4136, %v4640
    %v4642 = vpop.f32.mrb[0].mxu0
    %v4643 = vadd.f32 %v4132, %v4642
    %v4644 = vpop.f32.mrb[0].mxu0
    %v4645 = vadd.f32 %v4136, %v4644
    %4646 = vmatprep.mubr.bf16.mxu0 %v4048
    %4647 = vmatmul.mubr.bf16.gmra.mrb[0].mxu0 %v4047
    %v4648 = vpop.f32.mrb[0].mxu0
    %v4649 = vadd.f32 %v4132, %v4648
    %v4650 = vpop.f32.mrb[0].mxu0
    %v4651 = vadd.f32 %v4136, %v4650
    %v4652 = vpop.f32.mrb[0].mxu0
    %v4653 = vadd.f32 %v4132, %v4652
    %v4654 = vpop.f32.mrb[0].mxu0
    %v4655 = vadd.f32 %v4136, %v4654
    %4656 = vmatprep.mubr.bf16.mxu0 %v4050
    %4657 = vmatmul.mubr.bf16.gmra.mrb[0].mxu0 %v4049
    %v4658 = vpop.f32.mrb[0].mxu0
    %v4659 = vadd.f32 %v4132, %v4658
    %v4660 = vpop.f32.mrb[0].mxu0
    %v4661 = vadd.f32 %v4136, %v4660
    %v4662 = vpop.f32.mrb[0].mxu0
    %v4663 = vadd.f32 %v4132, %v4662
    %v4664 = vpop.f32.mrb[0].mxu0
    %v4665 = vadd.f32 %v4136, %v4664
    %4666 = vmatprep.mubr.bf16.mxu0 %v4052
    %4667 = vmatmul.mubr.bf16.gmra.mrb[0].mxu0 %v4051
    %v4668 = vpop.f32.mrb[0].mxu0
    %v4669 = vadd.f32 %v4132, %v4668
    %v4670 = vpop.f32.mrb[0].mxu0
    %v4671 = vadd.f32 %v4136, %v4670
    %v4672 = vpop.f32.mrb[0].mxu0
    %v4673 = vadd.f32 %v4132, %v4672
    %v4674 = vpop.f32.mrb[0].mxu0
    %v4675 = vadd.f32 %v4136, %v4674
    %4676 = vmatprep.mubr.bf16.mxu0 %v4054
    %4677 = vmatmul.mubr.bf16.gmra.mrb[0].mxu0 %v4053
    %v4678 = vpop.f32.mrb[0].mxu0
    %v4679 = vadd.f32 %v4132, %v4678
    %v4680 = vpop.f32.mrb[0].mxu0
    %v4681 = vadd.f32 %v4136, %v4680
    %v4682 = vpop.f32.mrb[0].mxu0
    %v4683 = vadd.f32 %v4132, %v4682
    %v4684 = vpop.f32.mrb[0].mxu0
    %v4685 = vadd.f32 %v4136, %v4684
    %4686 = vdwg.mxu0
    %v4687 = vld [vmem:[#allocation14] sm:$0xff]
    %v4688 = vld [vmem:[#allocation14 + $0x8] sm:$0xff]
    %v4689 = vld [vmem:[#allocation14 + $0x10] sm:$0xff]
    %v4690 = vld [vmem:[#allocation14 + $0x18] sm:$0xff]
    %v4691 = vld [vmem:[#allocation14 + $0x20] sm:$0xff]
    %v4692 = vld [vmem:[#allocation14 + $0x28] sm:$0xff]
    %v4693 = vld [vmem:[#allocation14 + $0x30] sm:$0xff]
    %v4694 = vld [vmem:[#allocation14 + $0x38] sm:$0xff]
    %v4695 = vld [vmem:[#allocation14 + $0x40] sm:$0xff]
    %v4696 = vld [vmem:[#allocation14 + $0x48] sm:$0xff]
    %v4697 = vld [vmem:[#allocation14 + $0x50] sm:$0xff]
    %v4698 = vld [vmem:[#allocation14 + $0x58] sm:$0xff]
    %v4699 = vld [vmem:[#allocation14 + $0x60] sm:$0xff]
    %v4700 = vld [vmem:[#allocation14 + $0x68] sm:$0xff]
    %v4701 = vld [vmem:[#allocation14 + $0x70] sm:$0xff]
    %v4702 = vld [vmem:[#allocation14 + $0x78] sm:$0xff]
    %v4703 = vld [vmem:[#allocation14 + $0x80] sm:$0xff]
    %v4704 = vld [vmem:[#allocation14 + $0x88] sm:$0xff]
    %v4705 = vld [vmem:[#allocation14 + $0x90] sm:$0xff]
    %v4706 = vld [vmem:[#allocation14 + $0x98] sm:$0xff]
    %v4707 = vld [vmem:[#allocation14 + $0xa0] sm:$0xff]
    %v4708 = vld [vmem:[#allocation14 + $0xa8] sm:$0xff]
    %v4709 = vld [vmem:[#allocation14 + $0xb0] sm:$0xff]
    %v4710 = vld [vmem:[#allocation14 + $0xb8] sm:$0xff]
    %v4711 = vld [vmem:[#allocation14 + $0xc0] sm:$0xff]
    %v4712 = vld [vmem:[#allocation14 + $0xc8] sm:$0xff]
    %v4713 = vld [vmem:[#allocation14 + $0xd0] sm:$0xff]
    %v4714 = vld [vmem:[#allocation14 + $0xd8] sm:$0xff]
    %v4715 = vld [vmem:[#allocation14 + $0xe0] sm:$0xff]
    %v4716 = vld [vmem:[#allocation14 + $0xe8] sm:$0xff]
    %v4717 = vld [vmem:[#allocation14 + $0xf0] sm:$0xff]
    %v4718 = vld [vmem:[#allocation14 + $0xf8] sm:$0xff]
    %v4719 = vld [vmem:[#allocation14 + $0x100] sm:$0xff]
    %v4720 = vld [vmem:[#allocation14 + $0x108] sm:$0xff]
    %v4721 = vld [vmem:[#allocation14 + $0x110] sm:$0xff]
    %v4722 = vld [vmem:[#allocation14 + $0x118] sm:$0xff]
    %v4723 = vld [vmem:[#allocation14 + $0x120] sm:$0xff]
    %v4724 = vld [vmem:[#allocation14 + $0x128] sm:$0xff]
    %v4725 = vld [vmem:[#allocation14 + $0x130] sm:$0xff]
    %v4726 = vld [vmem:[#allocation14 + $0x138] sm:$0xff]
    %v4727 = vld [vmem:[#allocation14 + $0x140] sm:$0xff]
    %v4728 = vld [vmem:[#allocation14 + $0x148] sm:$0xff]
    %v4729 = vld [vmem:[#allocation14 + $0x150] sm:$0xff]
    %v4730 = vld [vmem:[#allocation14 + $0x158] sm:$0xff]
    %v4731 = vld [vmem:[#allocation14 + $0x160] sm:$0xff]
    %v4732 = vld [vmem:[#allocation14 + $0x168] sm:$0xff]
    %v4733 = vld [vmem:[#allocation14 + $0x170] sm:$0xff]
    %v4734 = vld [vmem:[#allocation14 + $0x178] sm:$0xff]
    %v4735 = vld [vmem:[#allocation14 + $0x180] sm:$0xff]
    %v4736 = vld [vmem:[#allocation14 + $0x188] sm:$0xff]
    %v4737 = vld [vmem:[#allocation14 + $0x190] sm:$0xff]
    %v4738 = vld [vmem:[#allocation14 + $0x198] sm:$0xff]
    %v4739 = vld [vmem:[#allocation14 + $0x1a0] sm:$0xff]
    %v4740 = vld [vmem:[#allocation14 + $0x1a8] sm:$0xff]
    %v4741 = vld [vmem:[#allocation14 + $0x1b0] sm:$0xff]
    %v4742 = vld [vmem:[#allocation14 + $0x1b8] sm:$0xff]
    %v4743 = vld [vmem:[#allocation14 + $0x1c0] sm:$0xff]
    %v4744 = vld [vmem:[#allocation14 + $0x1c8] sm:$0xff]
    %v4745 = vld [vmem:[#allocation14 + $0x1d0] sm:$0xff]
    %v4746 = vld [vmem:[#allocation14 + $0x1d8] sm:$0xff]
    %v4747 = vld [vmem:[#allocation14 + $0x1e0] sm:$0xff]
    %v4748 = vld [vmem:[#allocation14 + $0x1e8] sm:$0xff]
    %v4749 = vld [vmem:[#allocation14 + $0x1f0] sm:$0xff]
    %v4750 = vld [vmem:[#allocation14 + $0x1f8] sm:$0xff]
    %v4751 = vld [vmem:[%s13] sm:$0xf]
    %v4753 = vlaneseq
    %v4754 = vshrl.u32 %v4753, 7
    %v4755 = vsub.s32 0, %v4754
    %v4756 = vrot.slane %v4751, %v4755
    %v4757 = vlaneseq
    %v4758 = vshrl.u32 %v4757, 7
    %v4759 = vsub.s32 1, %v4758
    %v4760 = vrot.slane %v4751, %v4759
    %v4761 = vlaneseq
    %v4762 = vshrl.u32 %v4761, 7
    %v4763 = vsub.s32 2, %v4762
    %v4764 = vrot.slane %v4751, %v4763
    %v4765 = vlaneseq
    %v4766 = vshrl.u32 %v4765, 7
    %v4767 = vsub.s32 3, %v4766
    %v4768 = vrot.slane %v4751, %v4767
    %v4837 = vunpack.c.l.b16 %v4687
    %v4838 = vunpack.c.h.b16 %v4687
    %v4839 = vunpack.c.l.b16 %v4688
    %v4840 = vunpack.c.h.b16 %v4688
    %v4841 = vunpack.c.l.b16 %v4689
    %v4842 = vunpack.c.h.b16 %v4689
    %v4843 = vunpack.c.l.b16 %v4690
    %v4844 = vunpack.c.h.b16 %v4690
    %v4845 = vunpack.c.l.b16 %v4691
    %v4846 = vunpack.c.h.b16 %v4691
    %v4847 = vunpack.c.l.b16 %v4692
    %v4848 = vunpack.c.h.b16 %v4692
    %v4849 = vunpack.c.l.b16 %v4693
    %v4850 = vunpack.c.h.b16 %v4693
    %v4851 = vunpack.c.l.b16 %v4694
    %v4852 = vunpack.c.h.b16 %v4694
    %v4853 = vunpack.c.l.b16 %v4695
    %v4854 = vunpack.c.h.b16 %v4695
    %v4855 = vunpack.c.l.b16 %v4696
    %v4856 = vunpack.c.h.b16 %v4696
    %v4857 = vunpack.c.l.b16 %v4697
    %v4858 = vunpack.c.h.b16 %v4697
    %v4859 = vunpack.c.l.b16 %v4698
    %v4860 = vunpack.c.h.b16 %v4698
    %v4861 = vunpack.c.l.b16 %v4699
    %v4862 = vunpack.c.h.b16 %v4699
    %v4863 = vunpack.c.l.b16 %v4700
    %v4864 = vunpack.c.h.b16 %v4700
    %v4865 = vunpack.c.l.b16 %v4701
    %v4866 = vunpack.c.h.b16 %v4701
    %v4867 = vunpack.c.l.b16 %v4702
    %v4868 = vunpack.c.h.b16 %v4702
    %v4869 = vunpack.c.l.b16 %v4703
    %v4870 = vunpack.c.h.b16 %v4703
    %v4871 = vunpack.c.l.b16 %v4704
    %v4872 = vunpack.c.h.b16 %v4704
    %v4873 = vunpack.c.l.b16 %v4705
    %v4874 = vunpack.c.h.b16 %v4705
    %v4875 = vunpack.c.l.b16 %v4706
    %v4876 = vunpack.c.h.b16 %v4706
    %v4877 = vunpack.c.l.b16 %v4707
    %v4878 = vunpack.c.h.b16 %v4707
    %v4879 = vunpack.c.l.b16 %v4708
    %v4880 = vunpack.c.h.b16 %v4708
    %v4881 = vunpack.c.l.b16 %v4709
    %v4882 = vunpack.c.h.b16 %v4709
    %v4883 = vunpack.c.l.b16 %v4710
    %v4884 = vunpack.c.h.b16 %v4710
    %v4885 = vunpack.c.l.b16 %v4711
    %v4886 = vunpack.c.h.b16 %v4711
    %v4887 = vunpack.c.l.b16 %v4712
    %v4888 = vunpack.c.h.b16 %v4712
    %v4889 = vunpack.c.l.b16 %v4713
    %v4890 = vunpack.c.h.b16 %v4713
    %v4891 = vunpack.c.l.b16 %v4714
    %v4892 = vunpack.c.h.b16 %v4714
    %v4893 = vunpack.c.l.b16 %v4715
    %v4894 = vunpack.c.h.b16 %v4715
    %v4895 = vunpack.c.l.b16 %v4716
    %v4896 = vunpack.c.h.b16 %v4716
    %v4897 = vunpack.c.l.b16 %v4717
    %v4898 = vunpack.c.h.b16 %v4717
    %v4899 = vunpack.c.l.b16 %v4718
    %v4900 = vunpack.c.h.b16 %v4718
    %v4901 = vunpack.c.l.b16 %v4719
    %v4902 = vunpack.c.h.b16 %v4719
    %v4903 = vunpack.c.l.b16 %v4720
    %v4904 = vunpack.c.h.b16 %v4720
    %v4905 = vunpack.c.l.b16 %v4721
    %v4906 = vunpack.c.h.b16 %v4721
    %v4907 = vunpack.c.l.b16 %v4722
    %v4908 = vunpack.c.h.b16 %v4722
    %v4909 = vunpack.c.l.b16 %v4723
    %v4910 = vunpack.c.h.b16 %v4723
    %v4911 = vunpack.c.l.b16 %v4724
    %v4912 = vunpack.c.h.b16 %v4724
    %v4913 = vunpack.c.l.b16 %v4725
    %v4914 = vunpack.c.h.b16 %v4725
    %v4915 = vunpack.c.l.b16 %v4726
    %v4916 = vunpack.c.h.b16 %v4726
    %v4917 = vunpack.c.l.b16 %v4727
    %v4918 = vunpack.c.h.b16 %v4727
    %v4919 = vunpack.c.l.b16 %v4728
    %v4920 = vunpack.c.h.b16 %v4728
    %v4921 = vunpack.c.l.b16 %v4729
    %v4922 = vunpack.c.h.b16 %v4729
    %v4923 = vunpack.c.l.b16 %v4730
    %v4924 = vunpack.c.h.b16 %v4730
    %v4925 = vunpack.c.l.b16 %v4731
    %v4926 = vunpack.c.h.b16 %v4731
    %v4927 = vunpack.c.l.b16 %v4732
    %v4928 = vunpack.c.h.b16 %v4732
    %v4929 = vunpack.c.l.b16 %v4733
    %v4930 = vunpack.c.h.b16 %v4733
    %v4931 = vunpack.c.l.b16 %v4734
    %v4932 = vunpack.c.h.b16 %v4734
    %v4933 = vunpack.c.l.b16 %v4735
    %v4934 = vunpack.c.h.b16 %v4735
    %v4935 = vunpack.c.l.b16 %v4736
    %v4936 = vunpack.c.h.b16 %v4736
    %v4937 = vunpack.c.l.b16 %v4737
    %v4938 = vunpack.c.h.b16 %v4737
    %v4939 = vunpack.c.l.b16 %v4738
    %v4940 = vunpack.c.h.b16 %v4738
    %v4941 = vunpack.c.l.b16 %v4739
    %v4942 = vunpack.c.h.b16 %v4739
    %v4943 = vunpack.c.l.b16 %v4740
    %v4944 = vunpack.c.h.b16 %v4740
    %v4945 = vunpack.c.l.b16 %v4741
    %v4946 = vunpack.c.h.b16 %v4741
    %v4947 = vunpack.c.l.b16 %v4742
    %v4948 = vunpack.c.h.b16 %v4742
    %v4949 = vunpack.c.l.b16 %v4743
    %v4950 = vunpack.c.h.b16 %v4743
    %v4951 = vunpack.c.l.b16 %v4744
    %v4952 = vunpack.c.h.b16 %v4744
    %v4953 = vunpack.c.l.b16 %v4745
    %v4954 = vunpack.c.h.b16 %v4745
    %v4955 = vunpack.c.l.b16 %v4746
    %v4956 = vunpack.c.h.b16 %v4746
    %v4957 = vunpack.c.l.b16 %v4747
    %v4958 = vunpack.c.h.b16 %v4747
    %v4959 = vunpack.c.l.b16 %v4748
    %v4960 = vunpack.c.h.b16 %v4748
    %v4961 = vunpack.c.l.b16 %v4749
    %v4962 = vunpack.c.h.b16 %v4749
    %v4963 = vunpack.c.l.b16 %v4750
    %v4964 = vunpack.c.h.b16 %v4750
    %v4965 = vpack.c.b16 %v4841, %v4837
    %v4966 = vpack.c.b16 %v4842, %v4838
    %v4967 = vpack.c.b16 %v4843, %v4839
    %v4968 = vpack.c.b16 %v4844, %v4840
    %v4969 = vpack.c.b16 %v4849, %v4845
    %v4970 = vpack.c.b16 %v4850, %v4846
    %v4971 = vpack.c.b16 %v4851, %v4847
    %v4972 = vpack.c.b16 %v4852, %v4848
    %v4973 = vpack.c.b16 %v4857, %v4853
    %v4974 = vpack.c.b16 %v4858, %v4854
    %v4975 = vpack.c.b16 %v4859, %v4855
    %v4976 = vpack.c.b16 %v4860, %v4856
    %v4977 = vpack.c.b16 %v4865, %v4861
    %v4978 = vpack.c.b16 %v4866, %v4862
    %v4979 = vpack.c.b16 %v4867, %v4863
    %v4980 = vpack.c.b16 %v4868, %v4864
    %v4981 = vpack.c.b16 %v4873, %v4869
    %v4982 = vpack.c.b16 %v4874, %v4870
    %v4983 = vpack.c.b16 %v4875, %v4871
    %v4984 = vpack.c.b16 %v4876, %v4872
    %v4985 = vpack.c.b16 %v4881, %v4877
    %v4986 = vpack.c.b16 %v4882, %v4878
    %v4987 = vpack.c.b16 %v4883, %v4879
    %v4988 = vpack.c.b16 %v4884, %v4880
    %v4989 = vpack.c.b16 %v4889, %v4885
    %v4990 = vpack.c.b16 %v4890, %v4886
    %v4991 = vpack.c.b16 %v4891, %v4887
    %v4992 = vpack.c.b16 %v4892, %v4888
    %v4993 = vpack.c.b16 %v4897, %v4893
    %v4994 = vpack.c.b16 %v4898, %v4894
    %v4995 = vpack.c.b16 %v4899, %v4895
    %v4996 = vpack.c.b16 %v4900, %v4896
    %v4997 = vpack.c.b16 %v4905, %v4901
    %v4998 = vpack.c.b16 %v4906, %v4902
    %v4999 = vpack.c.b16 %v4907, %v4903
    %v5000 = vpack.c.b16 %v4908, %v4904
    %v5001 = vpack.c.b16 %v4913, %v4909
    %v5002 = vpack.c.b16 %v4914, %v4910
    %v5003 = vpack.c.b16 %v4915, %v4911
    %v5004 = vpack.c.b16 %v4916, %v4912
    %v5005 = vpack.c.b16 %v4921, %v4917
    %v5006 = vpack.c.b16 %v4922, %v4918
    %v5007 = vpack.c.b16 %v4923, %v4919
    %v5008 = vpack.c.b16 %v4924, %v4920
    %v5009 = vpack.c.b16 %v4929, %v4925
    %v5010 = vpack.c.b16 %v4930, %v4926
    %v5011 = vpack.c.b16 %v4931, %v4927
    %v5012 = vpack.c.b16 %v4932, %v4928
    %v5013 = vpack.c.b16 %v4937, %v4933
    %v5014 = vpack.c.b16 %v4938, %v4934
    %v5015 = vpack.c.b16 %v4939, %v4935
    %v5016 = vpack.c.b16 %v4940, %v4936
    %v5017 = vpack.c.b16 %v4945, %v4941
    %v5018 = vpack.c.b16 %v4946, %v4942
    %v5019 = vpack.c.b16 %v4947, %v4943
    %v5020 = vpack.c.b16 %v4948, %v4944
    %v5021 = vpack.c.b16 %v4953, %v4949
    %v5022 = vpack.c.b16 %v4954, %v4950
    %v5023 = vpack.c.b16 %v4955, %v4951
    %v5024 = vpack.c.b16 %v4956, %v4952
    %v5025 = vpack.c.b16 %v4961, %v4957
    %v5026 = vpack.c.b16 %v4962, %v4958
    %v5027 = vpack.c.b16 %v4963, %v4959
    %v5028 = vpack.c.b16 %v4964, %v4960
    %5093 = vmatprep.subr.bf16.mxu0 %v4966
    %5094 = vmatpush1.bf16.msra.mxu0 %v4965
    %5095 = vmatprep.subr.bf16.mxu0 %v4970
    %5096 = vmatpush1.bf16.msra.mxu0 %v4969
    %5097 = vmatprep.subr.bf16.mxu0 %v4974
    %5098 = vmatpush1.bf16.msra.mxu0 %v4973
    %5099 = vmatprep.subr.bf16.mxu0 %v4978
    %5100 = vmatpush1.bf16.msra.mxu0 %v4977
    %5101 = vmatprep.subr.bf16.mxu0 %v4982
    %5102 = vmatpush1.bf16.msra.mxu0 %v4981
    %5103 = vmatprep.subr.bf16.mxu0 %v4986
    %5104 = vmatpush1.bf16.msra.mxu0 %v4985
    %5105 = vmatprep.subr.bf16.mxu0 %v4990
    %5106 = vmatpush1.bf16.msra.mxu0 %v4989
    %5107 = vmatprep.subr.bf16.mxu0 %v4994
    %5108 = vmatpush1.bf16.msra.mxu0 %v4993
    %5109 = vmatprep.subr.bf16.mxu0 %v4998
    %5110 = vmatpush1.bf16.msra.mxu0 %v4997
    %5111 = vmatprep.subr.bf16.mxu0 %v5002
    %5112 = vmatpush1.bf16.msra.mxu0 %v5001
    %5113 = vmatprep.subr.bf16.mxu0 %v5006
    %5114 = vmatpush1.bf16.msra.mxu0 %v5005
    %5115 = vmatprep.subr.bf16.mxu0 %v5010
    %5116 = vmatpush1.bf16.msra.mxu0 %v5009
    %5117 = vmatprep.subr.bf16.mxu0 %v5014
    %5118 = vmatpush1.bf16.msra.mxu0 %v5013
    %5119 = vmatprep.subr.bf16.mxu0 %v5018
    %5120 = vmatpush1.bf16.msra.mxu0 %v5017
    %5121 = vmatprep.subr.bf16.mxu0 %v5022
    %5122 = vmatpush1.bf16.msra.mxu0 %v5021
    %5123 = vmatprep.subr.bf16.mxu0 %v5026
    %5124 = vmatpush1.bf16.msra.mxu0 %v5025
    %5125 = vmatprep.mubr.bf16.mxu0 %v4040
    %5126 = vmatmul.mubr.bf16.gmra.mrb[0].mxu0 %v4039
    %v5127 = vpop.f32.mrb[0].mxu0
    %v5128 = vadd.f32 %v4756, %v5127
    %v5129 = vpop.f32.mrb[0].mxu0
    %v5130 = vadd.f32 %v4760, %v5129
    %v5131 = vpop.f32.mrb[0].mxu0
    %v5132 = vadd.f32 %v4756, %v5131
    %v5133 = vpop.f32.mrb[0].mxu0
    %v5134 = vadd.f32 %v4760, %v5133
    %5135 = vmatprep.mubr.bf16.mxu0 %v4042
    %5136 = vmatmul.mubr.bf16.gmra.mrb[0].mxu0 %v4041
    %v5137 = vpop.f32.mrb[0].mxu0
    %v5138 = vadd.f32 %v4756, %v5137
    %v5139 = vpop.f32.mrb[0].mxu0
    %v5140 = vadd.f32 %v4760, %v5139
    %v5141 = vpop.f32.mrb[0].mxu0
    %v5142 = vadd.f32 %v4756, %v5141
    %v5143 = vpop.f32.mrb[0].mxu0
    %v5144 = vadd.f32 %v4760, %v5143
    %5145 = vmatprep.mubr.bf16.mxu0 %v4044
    %5146 = vmatmul.mubr.bf16.gmra.mrb[0].mxu0 %v4043
    %v5147 = vpop.f32.mrb[0].mxu0
    %v5148 = vadd.f32 %v4756, %v5147
    %v5149 = vpop.f32.mrb[0].mxu0
    %v5150 = vadd.f32 %v4760, %v5149
    %v5151 = vpop.f32.mrb[0].mxu0
    %v5152 = vadd.f32 %v4756, %v5151
    %v5153 = vpop.f32.mrb[0].mxu0
    %v5154 = vadd.f32 %v4760, %v5153
    %5155 = vmatprep.mubr.bf16.mxu0 %v4046
    %5156 = vmatmul.mubr.bf16.gmra.mrb[0].mxu0 %v4045
    %v5157 = vpop.f32.mrb[0].mxu0
    %v5158 = vadd.f32 %v4756, %v5157
    %v5159 = vpop.f32.mrb[0].mxu0
    %v5160 = vadd.f32 %v4760, %v5159
    %v5161 = vpop.f32.mrb[0].mxu0
    %v5162 = vadd.f32 %v4756, %v5161
    %v5163 = vpop.f32.mrb[0].mxu0
    %v5164 = vadd.f32 %v4760, %v5163
    %5165 = vmatprep.mubr.bf16.mxu0 %v4048
    %5166 = vmatmul.mubr.bf16.gmra.mrb[0].mxu0 %v4047
    %v5167 = vpop.f32.mrb[0].mxu0
    %v5168 = vadd.f32 %v4756, %v5167
    %v5169 = vpop.f32.mrb[0].mxu0
    %v5170 = vadd.f32 %v4760, %v5169
    %v5171 = vpop.f32.mrb[0].mxu0
    %v5172 = vadd.f32 %v4756, %v5171
    %v5173 = vpop.f32.mrb[0].mxu0
    %v5174 = vadd.f32 %v4760, %v5173
    %5175 = vmatprep.mubr.bf16.mxu0 %v4050
    %5176 = vmatmul.mubr.bf16.gmra.mrb[0].mxu0 %v4049
    %v5177 = vpop.f32.mrb[0].mxu0
    %v5178 = vadd.f32 %v4756, %v5177
    %v5179 = vpop.f32.mrb[0].mxu0
    %v5180 = vadd.f32 %v4760, %v5179
    %v5181 = vpop.f32.mrb[0].mxu0
    %v5182 = vadd.f32 %v4756, %v5181
    %v5183 = vpop.f32.mrb[0].mxu0
    %v5184 = vadd.f32 %v4760, %v5183
    %5185 = vmatprep.mubr.bf16.mxu0 %v4052
    %5186 = vmatmul.mubr.bf16.gmra.mrb[0].mxu0 %v4051
    %v5187 = vpop.f32.mrb[0].mxu0
    %v5188 = vadd.f32 %v4756, %v5187
    %v5189 = vpop.f32.mrb[0].mxu0
    %v5190 = vadd.f32 %v4760, %v5189
    %v5191 = vpop.f32.mrb[0].mxu0
    %v5192 = vadd.f32 %v4756, %v5191
    %v5193 = vpop.f32.mrb[0].mxu0
    %v5194 = vadd.f32 %v4760, %v5193
    %5195 = vmatprep.mubr.bf16.mxu0 %v4054
    %5196 = vmatmul.mubr.bf16.gmra.mrb[0].mxu0 %v4053
    %v5197 = vpop.f32.mrb[0].mxu0
    %v5198 = vadd.f32 %v4756, %v5197
    %v5199 = vpop.f32.mrb[0].mxu0
    %v5200 = vadd.f32 %v4760, %v5199
    %v5201 = vpop.f32.mrb[0].mxu0
    %v5202 = vadd.f32 %v4756, %v5201
    %v5203 = vpop.f32.mrb[0].mxu0
    %v5204 = vadd.f32 %v4760, %v5203
    %5205 = vdwg.mxu0
    %5206 = vmatprep.subr.bf16.mxu0 %v4968
    %5207 = vmatpush1.bf16.msra.mxu0 %v4967
    %5208 = vmatprep.subr.bf16.mxu0 %v4972
    %5209 = vmatpush1.bf16.msra.mxu0 %v4971
    %5210 = vmatprep.subr.bf16.mxu0 %v4976
    %5211 = vmatpush1.bf16.msra.mxu0 %v4975
    %5212 = vmatprep.subr.bf16.mxu0 %v4980
    %5213 = vmatpush1.bf16.msra.mxu0 %v4979
    %5214 = vmatprep.subr.bf16.mxu0 %v4984
    %5215 = vmatpush1.bf16.msra.mxu0 %v4983
    %5216 = vmatprep.subr.bf16.mxu0 %v4988
    %5217 = vmatpush1.bf16.msra.mxu0 %v4987
    %5218 = vmatprep.subr.bf16.mxu0 %v4992
    %5219 = vmatpush1.bf16.msra.mxu0 %v4991
    %5220 = vmatprep.subr.bf16.mxu0 %v4996
    %5221 = vmatpush1.bf16.msra.mxu0 %v4995
    %5222 = vmatprep.subr.bf16.mxu0 %v5000
    %5223 = vmatpush1.bf16.msra.mxu0 %v4999
    %5224 = vmatprep.subr.bf16.mxu0 %v5004
    %5225 = vmatpush1.bf16.msra.mxu0 %v5003
    %5226 = vmatprep.subr.bf16.mxu0 %v5008
    %5227 = vmatpush1.bf16.msra.mxu0 %v5007
    %5228 = vmatprep.subr.bf16.mxu0 %v5012
    %5229 = vmatpush1.bf16.msra.mxu0 %v5011
    %5230 = vmatprep.subr.bf16.mxu0 %v5016
    %5231 = vmatpush1.bf16.msra.mxu0 %v5015
    %5232 = vmatprep.subr.bf16.mxu0 %v5020
    %5233 = vmatpush1.bf16.msra.mxu0 %v5019
    %5234 = vmatprep.subr.bf16.mxu0 %v5024
    %5235 = vmatpush1.bf16.msra.mxu0 %v5023
    %5236 = vmatprep.subr.bf16.mxu0 %v5028
    %5237 = vmatpush1.bf16.msra.mxu0 %v5027
    %5238 = vmatprep.mubr.bf16.mxu0 %v4040
    %5239 = vmatmul.mubr.bf16.gmra.mrb[0].mxu0 %v4039
    %v5240 = vpop.f32.mrb[0].mxu0
    %v5241 = vadd.f32 %v4764, %v5240
    %v5242 = vpop.f32.mrb[0].mxu0
    %v5243 = vadd.f32 %v4768, %v5242
    %v5244 = vpop.f32.mrb[0].mxu0
    %v5245 = vadd.f32 %v4764, %v5244
    %v5246 = vpop.f32.mrb[0].mxu0
    %v5247 = vadd.f32 %v4768, %v5246
    %5248 = vmatprep.mubr.bf16.mxu0 %v4042
    %5249 = vmatmul.mubr.bf16.gmra.mrb[0].mxu0 %v4041
    %v5250 = vpop.f32.mrb[0].mxu0
    %v5251 = vadd.f32 %v4764, %v5250
    %v5252 = vpop.f32.mrb[0].mxu0
    %v5253 = vadd.f32 %v4768, %v5252
    %v5254 = vpop.f32.mrb[0].mxu0
    %v5255 = vadd.f32 %v4764, %v5254
    %v5256 = vpop.f32.mrb[0].mxu0
    %v5257 = vadd.f32 %v4768, %v5256
    %5258 = vmatprep.mubr.bf16.mxu0 %v4044
    %5259 = vmatmul.mubr.bf16.gmra.mrb[0].mxu0 %v4043
    %v5260 = vpop.f32.mrb[0].mxu0
    %v5261 = vadd.f32 %v4764, %v5260
    %v5262 = vpop.f32.mrb[0].mxu0
    %v5263 = vadd.f32 %v4768, %v5262
    %v5264 = vpop.f32.mrb[0].mxu0
    %v5265 = vadd.f32 %v4764, %v5264
    %v5266 = vpop.f32.mrb[0].mxu0
    %v5267 = vadd.f32 %v4768, %v5266
    %5268 = vmatprep.mubr.bf16.mxu0 %v4046
    %5269 = vmatmul.mubr.bf16.gmra.mrb[0].mxu0 %v4045
    %v5270 = vpop.f32.mrb[0].mxu0
    %v5271 = vadd.f32 %v4764, %v5270
    %v5272 = vpop.f32.mrb[0].mxu0
    %v5273 = vadd.f32 %v4768, %v5272
    %v5274 = vpop.f32.mrb[0].mxu0
    %v5275 = vadd.f32 %v4764, %v5274
    %v5276 = vpop.f32.mrb[0].mxu0
    %v5277 = vadd.f32 %v4768, %v5276
    %5278 = vmatprep.mubr.bf16.mxu0 %v4048
    %5279 = vmatmul.mubr.bf16.gmra.mrb[0].mxu0 %v4047
    %v5280 = vpop.f32.mrb[0].mxu0
    %v5281 = vadd.f32 %v4764, %v5280
    %v5282 = vpop.f32.mrb[0].mxu0
    %v5283 = vadd.f32 %v4768, %v5282
    %v5284 = vpop.f32.mrb[0].mxu0
    %v5285 = vadd.f32 %v4764, %v5284
    %v5286 = vpop.f32.mrb[0].mxu0
    %v5287 = vadd.f32 %v4768, %v5286
    %5288 = vmatprep.mubr.bf16.mxu0 %v4050
    %5289 = vmatmul.mubr.bf16.gmra.mrb[0].mxu0 %v4049
    %v5290 = vpop.f32.mrb[0].mxu0
    %v5291 = vadd.f32 %v4764, %v5290
    %v5292 = vpop.f32.mrb[0].mxu0
    %v5293 = vadd.f32 %v4768, %v5292
    %v5294 = vpop.f32.mrb[0].mxu0
    %v5295 = vadd.f32 %v4764, %v5294
    %v5296 = vpop.f32.mrb[0].mxu0
    %v5297 = vadd.f32 %v4768, %v5296
    %5298 = vmatprep.mubr.bf16.mxu0 %v4052
    %5299 = vmatmul.mubr.bf16.gmra.mrb[0].mxu0 %v4051
    %v5300 = vpop.f32.mrb[0].mxu0
    %v5301 = vadd.f32 %v4764, %v5300
    %v5302 = vpop.f32.mrb[0].mxu0
    %v5303 = vadd.f32 %v4768, %v5302
    %v5304 = vpop.f32.mrb[0].mxu0
    %v5305 = vadd.f32 %v4764, %v5304
    %v5306 = vpop.f32.mrb[0].mxu0
    %v5307 = vadd.f32 %v4768, %v5306
    %5308 = vmatprep.mubr.bf16.mxu0 %v4054
    %5309 = vmatmul.mubr.bf16.gmra.mrb[0].mxu0 %v4053
    %v5310 = vpop.f32.mrb[0].mxu0
    %v5311 = vadd.f32 %v4764, %v5310
    %v5312 = vpop.f32.mrb[0].mxu0
    %v5313 = vadd.f32 %v4768, %v5312
    %v5314 = vpop.f32.mrb[0].mxu0
    %v5315 = vadd.f32 %v4764, %v5314
    %v5316 = vpop.f32.mrb[0].mxu0
    %v5317 = vadd.f32 %v4768, %v5316
    %5318 = vdwg.mxu0
    %v5319 = vpack.c.bf16 %v4500, %v4496
    %v5320 = vpack.c.bf16 %v4502, %v4498
    %v5321 = vpack.c.bf16 %v4613, %v4609
    %v5322 = vpack.c.bf16 %v4615, %v4611
    %v5323 = vpack.c.bf16 %v4510, %v4506
    %v5324 = vpack.c.bf16 %v4512, %v4508
    %v5325 = vpack.c.bf16 %v4623, %v4619
    %v5326 = vpack.c.bf16 %v4625, %v4621
    %v5327 = vpack.c.bf16 %v4520, %v4516
    %v5328 = vpack.c.bf16 %v4522, %v4518
    %v5329 = vpack.c.bf16 %v4633, %v4629
    %v5330 = vpack.c.bf16 %v4635, %v4631
    %v5331 = vpack.c.bf16 %v4530, %v4526
    %v5332 = vpack.c.bf16 %v4532, %v4528
    %v5333 = vpack.c.bf16 %v4643, %v4639
    %v5334 = vpack.c.bf16 %v4645, %v4641
    %v5335 = vpack.c.bf16 %v4540, %v4536
    %v5336 = vpack.c.bf16 %v4542, %v4538
    %v5337 = vpack.c.bf16 %v4653, %v4649
    %v5338 = vpack.c.bf16 %v4655, %v4651
    %v5339 = vpack.c.bf16 %v4550, %v4546
    %v5340 = vpack.c.bf16 %v4552, %v4548
    %v5341 = vpack.c.bf16 %v4663, %v4659
    %v5342 = vpack.c.bf16 %v4665, %v4661
    %v5343 = vpack.c.bf16 %v4560, %v4556
    %v5344 = vpack.c.bf16 %v4562, %v4558
    %v5345 = vpack.c.bf16 %v4673, %v4669
    %v5346 = vpack.c.bf16 %v4675, %v4671
    %v5347 = vpack.c.bf16 %v4570, %v4566
    %v5348 = vpack.c.bf16 %v4572, %v4568
    %v5349 = vpack.c.bf16 %v4683, %v4679
    %v5350 = vpack.c.bf16 %v4685, %v4681
    %5351 = vst [vmem:[#allocation3] sm:$0xff] %v5319
    %5352 = vst [vmem:[#allocation3 + $0x8] sm:$0xff] %v5320
    %5353 = vst [vmem:[#allocation3 + $0x10] sm:$0xff] %v5321
    %5354 = vst [vmem:[#allocation3 + $0x18] sm:$0xff] %v5322
    %5355 = vst [vmem:[#allocation3 + $0x20] sm:$0xff] %v5323
    %5356 = vst [vmem:[#allocation3 + $0x28] sm:$0xff] %v5324
    %5357 = vst [vmem:[#allocation3 + $0x30] sm:$0xff] %v5325
    %5358 = vst [vmem:[#allocation3 + $0x38] sm:$0xff] %v5326
    %5359 = vst [vmem:[#allocation3 + $0x40] sm:$0xff] %v5327
    %5360 = vst [vmem:[#allocation3 + $0x48] sm:$0xff] %v5328
    %5361 = vst [vmem:[#allocation3 + $0x50] sm:$0xff] %v5329
    %5362 = vst [vmem:[#allocation3 + $0x58] sm:$0xff] %v5330
    %5363 = vst [vmem:[#allocation3 + $0x60] sm:$0xff] %v5331
    %5364 = vst [vmem:[#allocation3 + $0x68] sm:$0xff] %v5332
    %5365 = vst [vmem:[#allocation3 + $0x70] sm:$0xff] %v5333
    %5366 = vst [vmem:[#allocation3 + $0x78] sm:$0xff] %v5334
    %5367 = vst [vmem:[#allocation3 + $0x80] sm:$0xff] %v5335
    %5368 = vst [vmem:[#allocation3 + $0x88] sm:$0xff] %v5336
    %5369 = vst [vmem:[#allocation3 + $0x90] sm:$0xff] %v5337
    %5370 = vst [vmem:[#allocation3 + $0x98] sm:$0xff] %v5338
    %5371 = vst [vmem:[#allocation3 + $0xa0] sm:$0xff] %v5339
    %5372 = vst [vmem:[#allocation3 + $0xa8] sm:$0xff] %v5340
    %5373 = vst [vmem:[#allocation3 + $0xb0] sm:$0xff] %v5341
    %5374 = vst [vmem:[#allocation3 + $0xb8] sm:$0xff] %v5342
    %5375 = vst [vmem:[#allocation3 + $0xc0] sm:$0xff] %v5343
    %5376 = vst [vmem:[#allocation3 + $0xc8] sm:$0xff] %v5344
    %5377 = vst [vmem:[#allocation3 + $0xd0] sm:$0xff] %v5345
    %5378 = vst [vmem:[#allocation3 + $0xd8] sm:$0xff] %v5346
    %5379 = vst [vmem:[#allocation3 + $0xe0] sm:$0xff] %v5347
    %5380 = vst [vmem:[#allocation3 + $0xe8] sm:$0xff] %v5348
    %5381 = vst [vmem:[#allocation3 + $0xf0] sm:$0xff] %v5349
    %5382 = vst [vmem:[#allocation3 + $0xf8] sm:$0xff] %v5350
    %v5383 = vpack.c.bf16 %v5132, %v5128
    %v5384 = vpack.c.bf16 %v5134, %v5130
    %v5385 = vpack.c.bf16 %v5245, %v5241
    %v5386 = vpack.c.bf16 %v5247, %v5243
    %v5387 = vpack.c.bf16 %v5142, %v5138
    %v5388 = vpack.c.bf16 %v5144, %v5140
    %v5389 = vpack.c.bf16 %v5255, %v5251
    %v5390 = vpack.c.bf16 %v5257, %v5253
    %v5391 = vpack.c.bf16 %v5152, %v5148
    %v5392 = vpack.c.bf16 %v5154, %v5150
    %v5393 = vpack.c.bf16 %v5265, %v5261
    %v5394 = vpack.c.bf16 %v5267, %v5263
    %v5395 = vpack.c.bf16 %v5162, %v5158
    %v5396 = vpack.c.bf16 %v5164, %v5160
    %v5397 = vpack.c.bf16 %v5275, %v5271
    %v5398 = vpack.c.bf16 %v5277, %v5273
    %v5399 = vpack.c.bf16 %v5172, %v5168
    %v5400 = vpack.c.bf16 %v5174, %v5170
    %v5401 = vpack.c.bf16 %v5285, %v5281
    %v5402 = vpack.c.bf16 %v5287, %v5283
    %v5403 = vpack.c.bf16 %v5182, %v5178
    %v5404 = vpack.c.bf16 %v5184, %v5180
    %v5405 = vpack.c.bf16 %v5295, %v5291
    %v5406 = vpack.c.bf16 %v5297, %v5293
    %v5407 = vpack.c.bf16 %v5192, %v5188
    %v5408 = vpack.c.bf16 %v5194, %v5190
    %v5409 = vpack.c.bf16 %v5305, %v5301
    %v5410 = vpack.c.bf16 %v5307, %v5303
    %v5411 = vpack.c.bf16 %v5202, %v5198
    %v5412 = vpack.c.bf16 %v5204, %v5200
    %v5413 = vpack.c.bf16 %v5315, %v5311
    %v5414 = vpack.c.bf16 %v5317, %v5313
    %5415 = vst [vmem:[#allocation4] sm:$0xff] %v5383
    %5416 = vst [vmem:[#allocation4 + $0x8] sm:$0xff] %v5384
    %5417 = vst [vmem:[#allocation4 + $0x10] sm:$0xff] %v5385
    %5418 = vst [vmem:[#allocation4 + $0x18] sm:$0xff] %v5386
    %5419 = vst [vmem:[#allocation4 + $0x20] sm:$0xff] %v5387
    %5420 = vst [vmem:[#allocation4 + $0x28] sm:$0xff] %v5388
    %5421 = vst [vmem:[#allocation4 + $0x30] sm:$0xff] %v5389
    %5422 = vst [vmem:[#allocation4 + $0x38] sm:$0xff] %v5390
    %5423 = vst [vmem:[#allocation4 + $0x40] sm:$0xff] %v5391
    %5424 = vst [vmem:[#allocation4 + $0x48] sm:$0xff] %v5392
    %5425 = vst [vmem:[#allocation4 + $0x50] sm:$0xff] %v5393
    %5426 = vst [vmem:[#allocation4 + $0x58] sm:$0xff] %v5394
    %5427 = vst [vmem:[#allocation4 + $0x60] sm:$0xff] %v5395
    %5428 = vst [vmem:[#allocation4 + $0x68] sm:$0xff] %v5396
    %5429 = vst [vmem:[#allocation4 + $0x70] sm:$0xff] %v5397
    %5430 = vst [vmem:[#allocation4 + $0x78] sm:$0xff] %v5398
    %5431 = vst [vmem:[#allocation4 + $0x80] sm:$0xff] %v5399
    %5432 = vst [vmem:[#allocation4 + $0x88] sm:$0xff] %v5400
    %5433 = vst [vmem:[#allocation4 + $0x90] sm:$0xff] %v5401
    %5434 = vst [vmem:[#allocation4 + $0x98] sm:$0xff] %v5402
    %5435 = vst [vmem:[#allocation4 + $0xa0] sm:$0xff] %v5403
    %5436 = vst [vmem:[#allocation4 + $0xa8] sm:$0xff] %v5404
    %5437 = vst [vmem:[#allocation4 + $0xb0] sm:$0xff] %v5405
    %5438 = vst [vmem:[#allocation4 + $0xb8] sm:$0xff] %v5406
    %5439 = vst [vmem:[#allocation4 + $0xc0] sm:$0xff] %v5407
    %5440 = vst [vmem:[#allocation4 + $0xc8] sm:$0xff] %v5408
    %5441 = vst [vmem:[#allocation4 + $0xd0] sm:$0xff] %v5409
    %5442 = vst [vmem:[#allocation4 + $0xd8] sm:$0xff] %v5410
    %5443 = vst [vmem:[#allocation4 + $0xe0] sm:$0xff] %v5411
    %5444 = vst [vmem:[#allocation4 + $0xe8] sm:$0xff] %v5412
    %5445 = vst [vmem:[#allocation4 + $0xf0] sm:$0xff] %v5413
    %5446 = vst [vmem:[#allocation4 + $0xf8] sm:$0xff] %v5414
    %v5447 = vld [vmem:[#allocation16] sm:$0xff]
    %v5448 = vld [vmem:[#allocation16 + $0x8] sm:$0xff]
    %v5449 = vld [vmem:[#allocation16 + $0x10] sm:$0xff]
    %v5450 = vld [vmem:[#allocation16 + $0x18] sm:$0xff]
    %v5451 = vld [vmem:[#allocation16 + $0x20] sm:$0xff]
    %v5452 = vld [vmem:[#allocation16 + $0x28] sm:$0xff]
    %v5453 = vld [vmem:[#allocation16 + $0x30] sm:$0xff]
    %v5454 = vld [vmem:[#allocation16 + $0x38] sm:$0xff]
    %v5455 = vld [vmem:[#allocation16 + $0x40] sm:$0xff]
    %v5456 = vld [vmem:[#allocation16 + $0x48] sm:$0xff]
    %v5457 = vld [vmem:[#allocation16 + $0x50] sm:$0xff]
    %v5458 = vld [vmem:[#allocation16 + $0x58] sm:$0xff]
    %v5459 = vld [vmem:[#allocation16 + $0x60] sm:$0xff]
    %v5460 = vld [vmem:[#allocation16 + $0x68] sm:$0xff]
    %v5461 = vld [vmem:[#allocation16 + $0x70] sm:$0xff]
    %v5462 = vld [vmem:[#allocation16 + $0x78] sm:$0xff]
    %v5463 = vld [vmem:[#allocation16 + $0x80] sm:$0xff]
    %v5464 = vld [vmem:[#allocation16 + $0x88] sm:$0xff]
    %v5465 = vld [vmem:[#allocation16 + $0x90] sm:$0xff]
    %v5466 = vld [vmem:[#allocation16 + $0x98] sm:$0xff]
    %v5467 = vld [vmem:[#allocation16 + $0xa0] sm:$0xff]
    %v5468 = vld [vmem:[#allocation16 + $0xa8] sm:$0xff]
    %v5469 = vld [vmem:[#allocation16 + $0xb0] sm:$0xff]
    %v5470 = vld [vmem:[#allocation16 + $0xb8] sm:$0xff]
    %v5471 = vld [vmem:[#allocation16 + $0xc0] sm:$0xff]
    %v5472 = vld [vmem:[#allocation16 + $0xc8] sm:$0xff]
    %v5473 = vld [vmem:[#allocation16 + $0xd0] sm:$0xff]
    %v5474 = vld [vmem:[#allocation16 + $0xd8] sm:$0xff]
    %v5475 = vld [vmem:[#allocation16 + $0xe0] sm:$0xff]
    %v5476 = vld [vmem:[#allocation16 + $0xe8] sm:$0xff]
    %v5477 = vld [vmem:[#allocation16 + $0xf0] sm:$0xff]
    %v5478 = vld [vmem:[#allocation16 + $0xf8] sm:$0xff]
    %v5479 = vld [vmem:[#allocation3] sm:$0xff]
    %v5480 = vld [vmem:[#allocation3 + $0x8] sm:$0xff]
    %v5481 = vld [vmem:[#allocation3 + $0x10] sm:$0xff]
    %v5482 = vld [vmem:[#allocation3 + $0x18] sm:$0xff]
    %v5483 = vunpack.c.l.bf16 %v5479
    %v5484 = vunpack.c.l.bf16 %v5480
    %v5485 = vunpack.c.l.bf16 %v5481
    %v5486 = vunpack.c.l.bf16 %v5482
    %v5487 = vunpack.c.h.bf16 %v5479
    %v5488 = vunpack.c.h.bf16 %v5480
    %v5489 = vunpack.c.h.bf16 %v5481
    %v5490 = vunpack.c.h.bf16 %v5482
    %v5523 = vunpack.c.l.b16 %v5447
    %v5524 = vunpack.c.h.b16 %v5447
    %v5525 = vunpack.c.l.b16 %v5448
    %v5526 = vunpack.c.h.b16 %v5448
    %v5527 = vunpack.c.l.b16 %v5449
    %v5528 = vunpack.c.h.b16 %v5449
    %v5529 = vunpack.c.l.b16 %v5450
    %v5530 = vunpack.c.h.b16 %v5450
    %v5531 = vunpack.c.l.b16 %v5451
    %v5532 = vunpack.c.h.b16 %v5451
    %v5533 = vunpack.c.l.b16 %v5452
    %v5534 = vunpack.c.h.b16 %v5452
    %v5535 = vunpack.c.l.b16 %v5453
    %v5536 = vunpack.c.h.b16 %v5453
    %v5537 = vunpack.c.l.b16 %v5454
    %v5538 = vunpack.c.h.b16 %v5454
    %v5539 = vunpack.c.l.b16 %v5455
    %v5540 = vunpack.c.h.b16 %v5455
    %v5541 = vunpack.c.l.b16 %v5456
    %v5542 = vunpack.c.h.b16 %v5456
    %v5543 = vunpack.c.l.b16 %v5457
    %v5544 = vunpack.c.h.b16 %v5457
    %v5545 = vunpack.c.l.b16 %v5458
    %v5546 = vunpack.c.h.b16 %v5458
    %v5547 = vunpack.c.l.b16 %v5459
    %v5548 = vunpack.c.h.b16 %v5459
    %v5549 = vunpack.c.l.b16 %v5460
    %v5550 = vunpack.c.h.b16 %v5460
    %v5551 = vunpack.c.l.b16 %v5461
    %v5552 = vunpack.c.h.b16 %v5461
    %v5553 = vunpack.c.l.b16 %v5462
    %v5554 = vunpack.c.h.b16 %v5462
    %v5555 = vunpack.c.l.b16 %v5463
    %v5556 = vunpack.c.h.b16 %v5463
    %v5557 = vunpack.c.l.b16 %v5464
    %v5558 = vunpack.c.h.b16 %v5464
    %v5559 = vunpack.c.l.b16 %v5465
    %v5560 = vunpack.c.h.b16 %v5465
    %v5561 = vunpack.c.l.b16 %v5466
    %v5562 = vunpack.c.h.b16 %v5466
    %v5563 = vunpack.c.l.b16 %v5467
    %v5564 = vunpack.c.h.b16 %v5467
    %v5565 = vunpack.c.l.b16 %v5468
    %v5566 = vunpack.c.h.b16 %v5468
    %v5567 = vunpack.c.l.b16 %v5469
    %v5568 = vunpack.c.h.b16 %v5469
    %v5569 = vunpack.c.l.b16 %v5470
    %v5570 = vunpack.c.h.b16 %v5470
    %v5571 = vunpack.c.l.b16 %v5471
    %v5572 = vunpack.c.h.b16 %v5471
    %v5573 = vunpack.c.l.b16 %v5472
    %v5574 = vunpack.c.h.b16 %v5472
    %v5575 = vunpack.c.l.b16 %v5473
    %v5576 = vunpack.c.h.b16 %v5473
    %v5577 = vunpack.c.l.b16 %v5474
    %v5578 = vunpack.c.h.b16 %v5474
    %v5579 = vunpack.c.l.b16 %v5475
    %v5580 = vunpack.c.h.b16 %v5475
    %v5581 = vunpack.c.l.b16 %v5476
    %v5582 = vunpack.c.h.b16 %v5476
    %v5583 = vunpack.c.l.b16 %v5477
    %v5584 = vunpack.c.h.b16 %v5477
    %v5585 = vunpack.c.l.b16 %v5478
    %v5586 = vunpack.c.h.b16 %v5478
    %v5587 = vpack.c.b16 %v5527, %v5523
    %v5588 = vpack.c.b16 %v5528, %v5524
    %v5589 = vpack.c.b16 %v5529, %v5525
    %v5590 = vpack.c.b16 %v5530, %v5526
    %v5591 = vpack.c.b16 %v5535, %v5531
    %v5592 = vpack.c.b16 %v5536, %v5532
    %v5593 = vpack.c.b16 %v5537, %v5533
    %v5594 = vpack.c.b16 %v5538, %v5534
    %v5595 = vpack.c.b16 %v5543, %v5539
    %v5596 = vpack.c.b16 %v5544, %v5540
    %v5597 = vpack.c.b16 %v5545, %v5541
    %v5598 = vpack.c.b16 %v5546, %v5542
    %v5599 = vpack.c.b16 %v5551, %v5547
    %v5600 = vpack.c.b16 %v5552, %v5548
    %v5601 = vpack.c.b16 %v5553, %v5549
    %v5602 = vpack.c.b16 %v5554, %v5550
    %v5603 = vpack.c.b16 %v5559, %v5555
    %v5604 = vpack.c.b16 %v5560, %v5556
    %v5605 = vpack.c.b16 %v5561, %v5557
    %v5606 = vpack.c.b16 %v5562, %v5558
    %v5607 = vpack.c.b16 %v5567, %v5563
    %v5608 = vpack.c.b16 %v5568, %v5564
    %v5609 = vpack.c.b16 %v5569, %v5565
    %v5610 = vpack.c.b16 %v5570, %v5566
    %v5611 = vpack.c.b16 %v5575, %v5571
    %v5612 = vpack.c.b16 %v5576, %v5572
    %v5613 = vpack.c.b16 %v5577, %v5573
    %v5614 = vpack.c.b16 %v5578, %v5574
    %v5615 = vpack.c.b16 %v5583, %v5579
    %v5616 = vpack.c.b16 %v5584, %v5580
    %v5617 = vpack.c.b16 %v5585, %v5581
    %v5618 = vpack.c.b16 %v5586, %v5582
    %5651 = vmatprep.subr.bf16.mxu0 %v5588
    %5652 = vmatpush1.bf16.msra.mxu0 %v5587
    %5653 = vmatprep.subr.bf16.mxu0 %v5592
    %5654 = vmatpush1.bf16.msra.mxu0 %v5591
    %5655 = vmatprep.subr.bf16.mxu0 %v5596
    %5656 = vmatpush1.bf16.msra.mxu0 %v5595
    %5657 = vmatprep.subr.bf16.mxu0 %v5600
    %5658 = vmatpush1.bf16.msra.mxu0 %v5599
    %5659 = vmatprep.subr.bf16.mxu0 %v5604
    %5660 = vmatpush1.bf16.msra.mxu0 %v5603
    %5661 = vmatprep.subr.bf16.mxu0 %v5608
    %5662 = vmatpush1.bf16.msra.mxu0 %v5607
    %5663 = vmatprep.subr.bf16.mxu0 %v5612
    %5664 = vmatpush1.bf16.msra.mxu0 %v5611
    %5665 = vmatprep.subr.bf16.mxu0 %v5616
    %5666 = vmatpush1.bf16.msra.mxu0 %v5615
    %5667 = vmatprep.subr.bf16.mxu0 0
    %5668 = vmatpush1.bf16.msra.mxu0 0
    %5669 = vmatprep.subr.bf16.mxu0 0
    %5670 = vmatpush1.bf16.msra.mxu0 0
    %5671 = vmatprep.subr.bf16.mxu0 0
    %5672 = vmatpush1.bf16.msra.mxu0 0
    %5673 = vmatprep.subr.bf16.mxu0 0
    %5674 = vmatpush1.bf16.msra.mxu0 0
    %5675 = vmatprep.subr.bf16.mxu0 0
    %5676 = vmatpush1.bf16.msra.mxu0 0
    %5677 = vmatprep.subr.bf16.mxu0 0
    %5678 = vmatpush1.bf16.msra.mxu0 0
    %5679 = vmatprep.subr.bf16.mxu0 0
    %5680 = vmatpush1.bf16.msra.mxu0 0
    %5681 = vmatprep.subr.bf16.mxu0 0
    %5682 = vmatpush1.bf16.msra.mxu0 0
    %5683 = vmatprep.mubr.bf16.mxu0 0
    %5684 = vmatmul.mubr.bf16.gmra.mrb[0].mxu0 0
    %v5685 = vpop.f32.mrb[0].mxu0
    %v5686 = vadd.f32 0.0, %v5685
    %v5687 = vpop.f32.mrb[0].mxu0
    %v5688 = vadd.f32 0.0, %v5687
    %v5689 = vpop.f32.mrb[0].mxu0
    %v5690 = vadd.f32 0.0, %v5689
    %v5691 = vpop.f32.mrb[0].mxu0
    %v5692 = vadd.f32 0.0, %v5691
    %5693 = vdwg.mxu0
    %5694 = vmatprep.subr.bf16.mxu0 %v5590
    %5695 = vmatpush1.bf16.msra.mxu0 %v5589
    %5696 = vmatprep.subr.bf16.mxu0 %v5594
    %5697 = vmatpush1.bf16.msra.mxu0 %v5593
    %5698 = vmatprep.subr.bf16.mxu0 %v5598
    %5699 = vmatpush1.bf16.msra.mxu0 %v5597
    %5700 = vmatprep.subr.bf16.mxu0 %v5602
    %5701 = vmatpush1.bf16.msra.mxu0 %v5601
    %5702 = vmatprep.subr.bf16.mxu0 %v5606
    %5703 = vmatpush1.bf16.msra.mxu0 %v5605
    %5704 = vmatprep.subr.bf16.mxu0 %v5610
    %5705 = vmatpush1.bf16.msra.mxu0 %v5609
    %5706 = vmatprep.subr.bf16.mxu0 %v5614
    %5707 = vmatpush1.bf16.msra.mxu0 %v5613
    %5708 = vmatprep.subr.bf16.mxu0 %v5618
    %5709 = vmatpush1.bf16.msra.mxu0 %v5617
    %5710 = vmatprep.subr.bf16.mxu0 0
    %5711 = vmatpush1.bf16.msra.mxu0 0
    %5712 = vmatprep.subr.bf16.mxu0 0
    %5713 = vmatpush1.bf16.msra.mxu0 0
    %5714 = vmatprep.subr.bf16.mxu0 0
    %5715 = vmatpush1.bf16.msra.mxu0 0
    %5716 = vmatprep.subr.bf16.mxu0 0
    %5717 = vmatpush1.bf16.msra.mxu0 0
    %5718 = vmatprep.subr.bf16.mxu0 0
    %5719 = vmatpush1.bf16.msra.mxu0 0
    %5720 = vmatprep.subr.bf16.mxu0 0
    %5721 = vmatpush1.bf16.msra.mxu0 0
    %5722 = vmatprep.subr.bf16.mxu0 0
    %5723 = vmatpush1.bf16.msra.mxu0 0
    %5724 = vmatprep.subr.bf16.mxu0 0
    %5725 = vmatpush1.bf16.msra.mxu0 0
    %5726 = vmatprep.mubr.bf16.mxu0 0
    %5727 = vmatmul.mubr.bf16.gmra.mrb[0].mxu0 0
    %v5728 = vpop.f32.mrb[0].mxu0
    %v5729 = vadd.f32 0.0, %v5728
    %v5730 = vpop.f32.mrb[0].mxu0
    %v5731 = vadd.f32 0.0, %v5730
    %v5732 = vpop.f32.mrb[0].mxu0
    %v5733 = vadd.f32 0.0, %v5732
    %v5734 = vpop.f32.mrb[0].mxu0
    %v5735 = vadd.f32 0.0, %v5734
    %5736 = vdwg.mxu0
    %v5737 = vadd.f32 %v5483, %v5686
    %v5738 = vadd.f32 %v5484, %v5688
    %v5739 = vadd.f32 %v5485, %v5729
    %v5740 = vadd.f32 %v5486, %v5731
    %v5741 = vadd.f32 %v5487, %v5690
    %v5742 = vadd.f32 %v5488, %v5692
    %v5743 = vadd.f32 %v5489, %v5733
    %v5744 = vadd.f32 %v5490, %v5735
    %v5745 = vxor.u32 %v5737, 2147483648
    %v5746 = vxor.u32 %v5741, 2147483648
    %v5747 = vmul.f32 %v5745, 1.442695
    %v5748 = vpow.pop %v5747
    %v5749 = vmul.f32 %v5746, 1.442695
    %v5750 = vpow.pop %v5749
    %v5751 = vadd.f32 %v5748, 1.0
    %v5752 = vadd.f32 %v5750, 1.0
    %v5753 = vrcp.pop %v5751
    %v5754 = vmul.f32 1.0, %v5753
    %v5755 = vrcp.pop %v5752
    %v5756 = vmul.f32 1.0, %v5755
    %v5757 = vxor.u32 %v5738, 2147483648
    %v5758 = vxor.u32 %v5742, 2147483648
    %v5759 = vmul.f32 %v5757, 1.442695
    %v5760 = vpow.pop %v5759
    %v5761 = vmul.f32 %v5758, 1.442695
    %v5762 = vpow.pop %v5761
    %v5763 = vadd.f32 %v5760, 1.0
    %v5764 = vadd.f32 %v5762, 1.0
    %v5765 = vrcp.pop %v5763
    %v5766 = vmul.f32 1.0, %v5765
    %v5767 = vrcp.pop %v5764
    %v5768 = vmul.f32 1.0, %v5767
    %v5769 = vtanh.pop %v5739
    %v5770 = vtanh.pop %v5743
    %v5771 = vxor.u32 %v5740, 2147483648
    %v5772 = vxor.u32 %v5744, 2147483648
    %v5773 = vmul.f32 %v5771, 1.442695
    %v5774 = vpow.pop %v5773
    %v5775 = vmul.f32 %v5772, 1.442695
    %v5776 = vpow.pop %v5775
    %v5777 = vadd.f32 %v5774, 1.0
    %v5778 = vadd.f32 %v5776, 1.0
    %v5779 = vrcp.pop %v5777
    %v5780 = vmul.f32 1.0, %v5779
    %v5781 = vrcp.pop %v5778
    %v5782 = vmul.f32 1.0, %v5781
    %v5783 = vmul.f32 %v5766, 0.0
    %v5784 = vmul.f32 %v5768, 0.0
    %v5785 = vmul.f32 %v5754, %v5769
    %v5786 = vmul.f32 %v5756, %v5770
    %v5787 = vadd.f32 %v5783, %v5785
    %v5788 = vadd.f32 %v5784, %v5786
    %v5789 = vtanh.pop %v5787
    %v5790 = vtanh.pop %v5788
    %v5791 = vmul.f32 %v5780, %v5789
    %v5792 = vmul.f32 %v5782, %v5790
    %v5793 = vsel %vm1683, %v5791, 0.0
    %v5794 = vsel %vm1684, %v5792, 0.0
    %v5795 = vsel %vm1683, %v5787, 0.0
    %v5796 = vsel %vm1684, %v5788, 0.0
    %v5797 = vld [vmem:[#allocation3 + $0x20] sm:$0xff]
    %v5798 = vld [vmem:[#allocation3 + $0x28] sm:$0xff]
    %v5799 = vld [vmem:[#allocation3 + $0x30] sm:$0xff]
    %v5800 = vld [vmem:[#allocation3 + $0x38] sm:$0xff]
    %v5801 = vunpack.c.l.bf16 %v5797
    %v5802 = vunpack.c.l.bf16 %v5798
    %v5803 = vunpack.c.l.bf16 %v5799
    %v5804 = vunpack.c.l.bf16 %v5800
    %v5805 = vunpack.c.h.bf16 %v5797
    %v5806 = vunpack.c.h.bf16 %v5798
    %v5807 = vunpack.c.h.bf16 %v5799
    %v5808 = vunpack.c.h.bf16 %v5800
    %v5809 = vpack.c.bf16 %v5794, %v5793
    %5810 = vmatprep.subr.bf16.mxu0 %v5588
    %5811 = vmatpush1.bf16.msra.mxu0 %v5587
    %5812 = vmatprep.subr.bf16.mxu0 %v5592
    %5813 = vmatpush1.bf16.msra.mxu0 %v5591
    %5814 = vmatprep.subr.bf16.mxu0 %v5596
    %5815 = vmatpush1.bf16.msra.mxu0 %v5595
    %5816 = vmatprep.subr.bf16.mxu0 %v5600
    %5817 = vmatpush1.bf16.msra.mxu0 %v5599
    %5818 = vmatprep.subr.bf16.mxu0 %v5604
    %5819 = vmatpush1.bf16.msra.mxu0 %v5603
    %5820 = vmatprep.subr.bf16.mxu0 %v5608
    %5821 = vmatpush1.bf16.msra.mxu0 %v5607
    %5822 = vmatprep.subr.bf16.mxu0 %v5612
    %5823 = vmatpush1.bf16.msra.mxu0 %v5611
    %5824 = vmatprep.subr.bf16.mxu0 %v5616
    %5825 = vmatpush1.bf16.msra.mxu0 %v5615
    %5826 = vmatprep.subr.bf16.mxu0 0
    %5827 = vmatpush1.bf16.msra.mxu0 0
    %5828 = vmatprep.subr.bf16.mxu0 0
    %5829 = vmatpush1.bf16.msra.mxu0 0
    %5830 = vmatprep.subr.bf16.mxu0 0
    %5831 = vmatpush1.bf16.msra.mxu0 0
    %5832 = vmatprep.subr.bf16.mxu0 0
    %5833 = vmatpush1.bf16.msra.mxu0 0
    %5834 = vmatprep.subr.bf16.mxu0 0
    %5835 = vmatpush1.bf16.msra.mxu0 0
    %5836 = vmatprep.subr.bf16.mxu0 0
    %5837 = vmatpush1.bf16.msra.mxu0 0
    %5838 = vmatprep.subr.bf16.mxu0 0
    %5839 = vmatpush1.bf16.msra.mxu0 0
    %5840 = vmatprep.subr.bf16.mxu0 0
    %5841 = vmatpush1.bf16.msra.mxu0 0
    %5842 = vmatprep.mubr.bf16.mxu0 0
    %5843 = vmatmul.mubr.bf16.gmra.mrb[0].mxu0 %v5809
    %v5844 = vpop.f32.mrb[0].mxu0
    %v5845 = vadd.f32 0.0, %v5844
    %v5846 = vpop.f32.mrb[0].mxu0
    %v5847 = vadd.f32 0.0, %v5846
    %v5848 = vpop.f32.mrb[0].mxu0
    %v5849 = vadd.f32 0.0, %v5848
    %v5850 = vpop.f32.mrb[0].mxu0
    %v5851 = vadd.f32 0.0, %v5850
    %5852 = vdwg.mxu0
    %5853 = vmatprep.subr.bf16.mxu0 %v5590
    %5854 = vmatpush1.bf16.msra.mxu0 %v5589
    %5855 = vmatprep.subr.bf16.mxu0 %v5594
    %5856 = vmatpush1.bf16.msra.mxu0 %v5593
    %5857 = vmatprep.subr.bf16.mxu0 %v5598
    %5858 = vmatpush1.bf16.msra.mxu0 %v5597
    %5859 = vmatprep.subr.bf16.mxu0 %v5602
    %5860 = vmatpush1.bf16.msra.mxu0 %v5601
    %5861 = vmatprep.subr.bf16.mxu0 %v5606
    %5862 = vmatpush1.bf16.msra.mxu0 %v5605
    %5863 = vmatprep.subr.bf16.mxu0 %v5610
    %5864 = vmatpush1.bf16.msra.mxu0 %v5609
    %5865 = vmatprep.subr.bf16.mxu0 %v5614
    %5866 = vmatpush1.bf16.msra.mxu0 %v5613
    %5867 = vmatprep.subr.bf16.mxu0 %v5618
    %5868 = vmatpush1.bf16.msra.mxu0 %v5617
    %5869 = vmatprep.subr.bf16.mxu0 0
    %5870 = vmatpush1.bf16.msra.mxu0 0
    %5871 = vmatprep.subr.bf16.mxu0 0
    %5872 = vmatpush1.bf16.msra.mxu0 0
    %5873 = vmatprep.subr.bf16.mxu0 0
    %5874 = vmatpush1.bf16.msra.mxu0 0
    %5875 = vmatprep.subr.bf16.mxu0 0
    %5876 = vmatpush1.bf16.msra.mxu0 0
    %5877 = vmatprep.subr.bf16.mxu0 0
    %5878 = vmatpush1.bf16.msra.mxu0 0
    %5879 = vmatprep.subr.bf16.mxu0 0
    %5880 = vmatpush1.bf16.msra.mxu0 0
    %5881 = vmatprep.subr.bf16.mxu0 0
    %5882 = vmatpush1.bf16.msra.mxu0 0
    %5883 = vmatprep.subr.bf16.mxu0 0
    %5884 = vmatpush1.bf16.msra.mxu0 0
    %5885 = vmatprep.mubr.bf16.mxu0 0
    %5886 = vmatmul.mubr.bf16.gmra.mrb[0].mxu0 %v5809
    %v5887 = vpop.f32.mrb[0].mxu0
    %v5888 = vadd.f32 0.0, %v5887
    %v5889 = vpop.f32.mrb[0].mxu0
    %v5890 = vadd.f32 0.0, %v5889
    %v5891 = vpop.f32.mrb[0].mxu0
    %v5892 = vadd.f32 0.0, %v5891
    %v5893 = vpop.f32.mrb[0].mxu0
    %v5894 = vadd.f32 0.0, %v5893
    %5895 = vdwg.mxu0
    %v5896 = vadd.f32 %v5801, %v5845
    %v5897 = vadd.f32 %v5802, %v5847
    %v5898 = vadd.f32 %v5803, %v5888
    %v5899 = vadd.f32 %v5804, %v5890
    %v5900 = vadd.f32 %v5805, %v5849
    %v5901 = vadd.f32 %v5806, %v5851
    %v5902 = vadd.f32 %v5807, %v5892
    %v5903 = vadd.f32 %v5808, %v5894
    %v5904 = vxor.u32 %v5896, 2147483648
    %v5905 = vxor.u32 %v5900, 2147483648
    %v5906 = vmul.f32 %v5904, 1.442695
    %v5907 = vpow.pop %v5906
    %v5908 = vmul.f32 %v5905, 1.442695
    %v5909 = vpow.pop %v5908
    %v5910 = vadd.f32 %v5907, 1.0
    %v5911 = vadd.f32 %v5909, 1.0
    %v5912 = vrcp.pop %v5910
    %v5913 = vmul.f32 1.0, %v5912
    %v5914 = vrcp.pop %v5911
    %v5915 = vmul.f32 1.0, %v5914
    %v5916 = vxor.u32 %v5897, 2147483648
    %v5917 = vxor.u32 %v5901, 2147483648
    %v5918 = vmul.f32 %v5916, 1.442695
    %v5919 = vpow.pop %v5918
    %v5920 = vmul.f32 %v5917, 1.442695
    %v5921 = vpow.pop %v5920
    %v5922 = vadd.f32 %v5919, 1.0
    %v5923 = vadd.f32 %v5921, 1.0
    %v5924 = vrcp.pop %v5922
    %v5925 = vmul.f32 1.0, %v5924
    %v5926 = vrcp.pop %v5923
    %v5927 = vmul.f32 1.0, %v5926
    %v5928 = vtanh.pop %v5898
    %v5929 = vtanh.pop %v5902
    %v5930 = vxor.u32 %v5899, 2147483648
    %v5931 = vxor.u32 %v5903, 2147483648
    %v5932 = vmul.f32 %v5930, 1.442695
    %v5933 = vpow.pop %v5932
    %v5934 = vmul.f32 %v5931, 1.442695
    %v5935 = vpow.pop %v5934
    %v5936 = vadd.f32 %v5933, 1.0
    %v5937 = vadd.f32 %v5935, 1.0
    %v5938 = vrcp.pop %v5936
    %v5939 = vmul.f32 1.0, %v5938
    %v5940 = vrcp.pop %v5937
    %v5941 = vmul.f32 1.0, %v5940
    %v5942 = vmul.f32 %v5925, %v5795
    %v5943 = vmul.f32 %v5927, %v5796
    %v5944 = vmul.f32 %v5913, %v5928
    %v5945 = vmul.f32 %v5915, %v5929
    %v5946 = vadd.f32 %v5942, %v5944
    %v5947 = vadd.f32 %v5943, %v5945
    %v5948 = vtanh.pop %v5946
    %v5949 = vtanh.pop %v5947
    %v5950 = vmul.f32 %v5939, %v5948
    %v5951 = vmul.f32 %v5941, %v5949
    %v5952 = vsel %vm2023, %v5950, %v5793
    %v5953 = vsel %vm2024, %v5951, %v5794
    %v5954 = vsel %vm2023, %v5946, %v5795
    %v5955 = vsel %vm2024, %v5947, %v5796
    %v5956 = vld [vmem:[#allocation3 + $0x40] sm:$0xff]
    %v5957 = vld [vmem:[#allocation3 + $0x48] sm:$0xff]
    %v5958 = vld [vmem:[#allocation3 + $0x50] sm:$0xff]
    %v5959 = vld [vmem:[#allocation3 + $0x58] sm:$0xff]
    %v5960 = vunpack.c.l.bf16 %v5956
    %v5961 = vunpack.c.l.bf16 %v5957
    %v5962 = vunpack.c.l.bf16 %v5958
    %v5963 = vunpack.c.l.bf16 %v5959
    %v5964 = vunpack.c.h.bf16 %v5956
    %v5965 = vunpack.c.h.bf16 %v5957
    %v5966 = vunpack.c.h.bf16 %v5958
    %v5967 = vunpack.c.h.bf16 %v5959
    %v5968 = vpack.c.bf16 %v5953, %v5952
    %5969 = vmatprep.subr.bf16.mxu0 %v5588
    %5970 = vmatpush1.bf16.msra.mxu0 %v5587
    %5971 = vmatprep.subr.bf16.mxu0 %v5592
    %5972 = vmatpush1.bf16.msra.mxu0 %v5591
    %5973 = vmatprep.subr.bf16.mxu0 %v5596
    %5974 = vmatpush1.bf16.msra.mxu0 %v5595
    %5975 = vmatprep.subr.bf16.mxu0 %v5600
    %5976 = vmatpush1.bf16.msra.mxu0 %v5599
    %5977 = vmatprep.subr.bf16.mxu0 %v5604
    %5978 = vmatpush1.bf16.msra.mxu0 %v5603
    %5979 = vmatprep.subr.bf16.mxu0 %v5608
    %5980 = vmatpush1.bf16.msra.mxu0 %v5607
    %5981 = vmatprep.subr.bf16.mxu0 %v5612
    %5982 = vmatpush1.bf16.msra.mxu0 %v5611
    %5983 = vmatprep.subr.bf16.mxu0 %v5616
    %5984 = vmatpush1.bf16.msra.mxu0 %v5615
    %5985 = vmatprep.subr.bf16.mxu0 0
    %5986 = vmatpush1.bf16.msra.mxu0 0
    %5987 = vmatprep.subr.bf16.mxu0 0
    %5988 = vmatpush1.bf16.msra.mxu0 0
    %5989 = vmatprep.subr.bf16.mxu0 0
    %5990 = vmatpush1.bf16.msra.mxu0 0
    %5991 = vmatprep.subr.bf16.mxu0 0
    %5992 = vmatpush1.bf16.msra.mxu0 0
    %5993 = vmatprep.subr.bf16.mxu0 0
    %5994 = vmatpush1.bf16.msra.mxu0 0
    %5995 = vmatprep.subr.bf16.mxu0 0
    %5996 = vmatpush1.bf16.msra.mxu0 0
    %5997 = vmatprep.subr.bf16.mxu0 0
    %5998 = vmatpush1.bf16.msra.mxu0 0
    %5999 = vmatprep.subr.bf16.mxu0 0
    %6000 = vmatpush1.bf16.msra.mxu0 0
    %6001 = vmatprep.mubr.bf16.mxu0 0
    %6002 = vmatmul.mubr.bf16.gmra.mrb[0].mxu0 %v5968
    %v6003 = vpop.f32.mrb[0].mxu0
    %v6004 = vadd.f32 0.0, %v6003
    %v6005 = vpop.f32.mrb[0].mxu0
    %v6006 = vadd.f32 0.0, %v6005
    %v6007 = vpop.f32.mrb[0].mxu0
    %v6008 = vadd.f32 0.0, %v6007
    %v6009 = vpop.f32.mrb[0].mxu0
    %v6010 = vadd.f32 0.0, %v6009
    %6011 = vdwg.mxu0
    %6012 = vmatprep.subr.bf16.mxu0 %v5590
    %6013 = vmatpush1.bf16.msra.mxu0 %v5589
    %6014 = vmatprep.subr.bf16.mxu0 %v5594
    %6015 = vmatpush1.bf16.msra.mxu0 %v5593
    %6016 = vmatprep.subr.bf16.mxu0 %v5598
    %6017 = vmatpush1.bf16.msra.mxu0 %v5597
    %6018 = vmatprep.subr.bf16.mxu0 %v5602
    %6019 = vmatpush1.bf16.msra.mxu0 %v5601
    %6020 = vmatprep.subr.bf16.mxu0 %v5606
    %6021 = vmatpush1.bf16.msra.mxu0 %v5605
    %6022 = vmatprep.subr.bf16.mxu0 %v5610
    %6023 = vmatpush1.bf16.msra.mxu0 %v5609
    %6024 = vmatprep.subr.bf16.mxu0 %v5614
    %6025 = vmatpush1.bf16.msra.mxu0 %v5613
    %6026 = vmatprep.subr.bf16.mxu0 %v5618
    %6027 = vmatpush1.bf16.msra.mxu0 %v5617
    %6028 = vmatprep.subr.bf16.mxu0 0
    %6029 = vmatpush1.bf16.msra.mxu0 0
    %6030 = vmatprep.subr.bf16.mxu0 0
    %6031 = vmatpush1.bf16.msra.mxu0 0
    %6032 = vmatprep.subr.bf16.mxu0 0
    %6033 = vmatpush1.bf16.msra.mxu0 0
    %6034 = vmatprep.subr.bf16.mxu0 0
    %6035 = vmatpush1.bf16.msra.mxu0 0
    %6036 = vmatprep.subr.bf16.mxu0 0
    %6037 = vmatpush1.bf16.msra.mxu0 0
    %6038 = vmatprep.subr.bf16.mxu0 0
    %6039 = vmatpush1.bf16.msra.mxu0 0
    %6040 = vmatprep.subr.bf16.mxu0 0
    %6041 = vmatpush1.bf16.msra.mxu0 0
    %6042 = vmatprep.subr.bf16.mxu0 0
    %6043 = vmatpush1.bf16.msra.mxu0 0
    %6044 = vmatprep.mubr.bf16.mxu0 0
    %6045 = vmatmul.mubr.bf16.gmra.mrb[0].mxu0 %v5968
    %v6046 = vpop.f32.mrb[0].mxu0
    %v6047 = vadd.f32 0.0, %v6046
    %v6048 = vpop.f32.mrb[0].mxu0
    %v6049 = vadd.f32 0.0, %v6048
    %v6050 = vpop.f32.mrb[0].mxu0
    %v6051 = vadd.f32 0.0, %v6050
    %v6052 = vpop.f32.mrb[0].mxu0
    %v6053 = vadd.f32 0.0, %v6052
    %6054 = vdwg.mxu0
    %v6055 = vadd.f32 %v5960, %v6004
    %v6056 = vadd.f32 %v5961, %v6006
    %v6057 = vadd.f32 %v5962, %v6047
    %v6058 = vadd.f32 %v5963, %v6049
    %v6059 = vadd.f32 %v5964, %v6008
    %v6060 = vadd.f32 %v5965, %v6010
    %v6061 = vadd.f32 %v5966, %v6051
    %v6062 = vadd.f32 %v5967, %v6053
    %v6063 = vxor.u32 %v6055, 2147483648
    %v6064 = vxor.u32 %v6059, 2147483648
    %v6065 = vmul.f32 %v6063, 1.442695
    %v6066 = vpow.pop %v6065
    %v6067 = vmul.f32 %v6064, 1.442695
    %v6068 = vpow.pop %v6067
    %v6069 = vadd.f32 %v6066, 1.0
    %v6070 = vadd.f32 %v6068, 1.0
    %v6071 = vrcp.pop %v6069
    %v6072 = vmul.f32 1.0, %v6071
    %v6073 = vrcp.pop %v6070
    %v6074 = vmul.f32 1.0, %v6073
    %v6075 = vxor.u32 %v6056, 2147483648
    %v6076 = vxor.u32 %v6060, 2147483648
    %v6077 = vmul.f32 %v6075, 1.442695
    %v6078 = vpow.pop %v6077
    %v6079 = vmul.f32 %v6076, 1.442695
    %v6080 = vpow.pop %v6079
    %v6081 = vadd.f32 %v6078, 1.0
    %v6082 = vadd.f32 %v6080, 1.0
    %v6083 = vrcp.pop %v6081
    %v6084 = vmul.f32 1.0, %v6083
    %v6085 = vrcp.pop %v6082
    %v6086 = vmul.f32 1.0, %v6085
    %v6087 = vtanh.pop %v6057
    %v6088 = vtanh.pop %v6061
    %v6089 = vxor.u32 %v6058, 2147483648
    %v6090 = vxor.u32 %v6062, 2147483648
    %v6091 = vmul.f32 %v6089, 1.442695
    %v6092 = vpow.pop %v6091
    %v6093 = vmul.f32 %v6090, 1.442695
    %v6094 = vpow.pop %v6093
    %v6095 = vadd.f32 %v6092, 1.0
    %v6096 = vadd.f32 %v6094, 1.0
    %v6097 = vrcp.pop %v6095
    %v6098 = vmul.f32 1.0, %v6097
    %v6099 = vrcp.pop %v6096
    %v6100 = vmul.f32 1.0, %v6099
    %v6101 = vmul.f32 %v6084, %v5954
    %v6102 = vmul.f32 %v6086, %v5955
    %v6103 = vmul.f32 %v6072, %v6087
    %v6104 = vmul.f32 %v6074, %v6088
    %v6105 = vadd.f32 %v6101, %v6103
    %v6106 = vadd.f32 %v6102, %v6104
    %v6107 = vtanh.pop %v6105
    %v6108 = vtanh.pop %v6106
    %v6109 = vmul.f32 %v6098, %v6107
    %v6110 = vmul.f32 %v6100, %v6108
    %v6111 = vsel %vm2369, %v6109, %v5952
    %v6112 = vsel %vm2370, %v6110, %v5953
    %v6113 = vsel %vm2369, %v6105, %v5954
    %v6114 = vsel %vm2370, %v6106, %v5955
    %v6115 = vld [vmem:[#allocation3 + $0x60] sm:$0xff]
    %v6116 = vld [vmem:[#allocation3 + $0x68] sm:$0xff]
    %v6117 = vld [vmem:[#allocation3 + $0x70] sm:$0xff]
    %v6118 = vld [vmem:[#allocation3 + $0x78] sm:$0xff]
    %v6119 = vunpack.c.l.bf16 %v6115
    %v6120 = vunpack.c.l.bf16 %v6116
    %v6121 = vunpack.c.l.bf16 %v6117
    %v6122 = vunpack.c.l.bf16 %v6118
    %v6123 = vunpack.c.h.bf16 %v6115
    %v6124 = vunpack.c.h.bf16 %v6116
    %v6125 = vunpack.c.h.bf16 %v6117
    %v6126 = vunpack.c.h.bf16 %v6118
    %v6127 = vpack.c.bf16 %v6112, %v6111
    %6128 = vmatprep.subr.bf16.mxu0 %v5588
    %6129 = vmatpush1.bf16.msra.mxu0 %v5587
    %6130 = vmatprep.subr.bf16.mxu0 %v5592
    %6131 = vmatpush1.bf16.msra.mxu0 %v5591
    %6132 = vmatprep.subr.bf16.mxu0 %v5596
    %6133 = vmatpush1.bf16.msra.mxu0 %v5595
    %6134 = vmatprep.subr.bf16.mxu0 %v5600
    %6135 = vmatpush1.bf16.msra.mxu0 %v5599
    %6136 = vmatprep.subr.bf16.mxu0 %v5604
    %6137 = vmatpush1.bf16.msra.mxu0 %v5603
    %6138 = vmatprep.subr.bf16.mxu0 %v5608
    %6139 = vmatpush1.bf16.msra.mxu0 %v5607
    %6140 = vmatprep.subr.bf16.mxu0 %v5612
    %6141 = vmatpush1.bf16.msra.mxu0 %v5611
    %6142 = vmatprep.subr.bf16.mxu0 %v5616
    %6143 = vmatpush1.bf16.msra.mxu0 %v5615
    %6144 = vmatprep.subr.bf16.mxu0 0
    %6145 = vmatpush1.bf16.msra.mxu0 0
    %6146 = vmatprep.subr.bf16.mxu0 0
    %6147 = vmatpush1.bf16.msra.mxu0 0
    %6148 = vmatprep.subr.bf16.mxu0 0
    %6149 = vmatpush1.bf16.msra.mxu0 0
    %6150 = vmatprep.subr.bf16.mxu0 0
    %6151 = vmatpush1.bf16.msra.mxu0 0
    %6152 = vmatprep.subr.bf16.mxu0 0
    %6153 = vmatpush1.bf16.msra.mxu0 0
    %6154 = vmatprep.subr.bf16.mxu0 0
    %6155 = vmatpush1.bf16.msra.mxu0 0
    %6156 = vmatprep.subr.bf16.mxu0 0
    %6157 = vmatpush1.bf16.msra.mxu0 0
    %6158 = vmatprep.subr.bf16.mxu0 0
    %6159 = vmatpush1.bf16.msra.mxu0 0
    %6160 = vmatprep.mubr.bf16.mxu0 0
    %6161 = vmatmul.mubr.bf16.gmra.mrb[0].mxu0 %v6127
    %v6162 = vpop.f32.mrb[0].mxu0
    %v6163 = vadd.f32 0.0, %v6162
    %v6164 = vpop.f32.mrb[0].mxu0
    %v6165 = vadd.f32 0.0, %v6164
    %v6166 = vpop.f32.mrb[0].mxu0
    %v6167 = vadd.f32 0.0, %v6166
    %v6168 = vpop.f32.mrb[0].mxu0
    %v6169 = vadd.f32 0.0, %v6168
    %6170 = vdwg.mxu0
    %6171 = vmatprep.subr.bf16.mxu0 %v5590
    %6172 = vmatpush1.bf16.msra.mxu0 %v5589
    %6173 = vmatprep.subr.bf16.mxu0 %v5594
    %6174 = vmatpush1.bf16.msra.mxu0 %v5593
    %6175 = vmatprep.subr.bf16.mxu0 %v5598
    %6176 = vmatpush1.bf16.msra.mxu0 %v5597
    %6177 = vmatprep.subr.bf16.mxu0 %v5602
    %6178 = vmatpush1.bf16.msra.mxu0 %v5601
    %6179 = vmatprep.subr.bf16.mxu0 %v5606
    %6180 = vmatpush1.bf16.msra.mxu0 %v5605
    %6181 = vmatprep.subr.bf16.mxu0 %v5610
    %6182 = vmatpush1.bf16.msra.mxu0 %v5609
    %6183 = vmatprep.subr.bf16.mxu0 %v5614
    %6184 = vmatpush1.bf16.msra.mxu0 %v5613
    %6185 = vmatprep.subr.bf16.mxu0 %v5618
    %6186 = vmatpush1.bf16.msra.mxu0 %v5617
    %6187 = vmatprep.subr.bf16.mxu0 0
    %6188 = vmatpush1.bf16.msra.mxu0 0
    %6189 = vmatprep.subr.bf16.mxu0 0
    %6190 = vmatpush1.bf16.msra.mxu0 0
    %6191 = vmatprep.subr.bf16.mxu0 0
    %6192 = vmatpush1.bf16.msra.mxu0 0
    %6193 = vmatprep.subr.bf16.mxu0 0
    %6194 = vmatpush1.bf16.msra.mxu0 0
    %6195 = vmatprep.subr.bf16.mxu0 0
    %6196 = vmatpush1.bf16.msra.mxu0 0
    %6197 = vmatprep.subr.bf16.mxu0 0
    %6198 = vmatpush1.bf16.msra.mxu0 0
    %6199 = vmatprep.subr.bf16.mxu0 0
    %6200 = vmatpush1.bf16.msra.mxu0 0
    %6201 = vmatprep.subr.bf16.mxu0 0
    %6202 = vmatpush1.bf16.msra.mxu0 0
    %6203 = vmatprep.mubr.bf16.mxu0 0
    %6204 = vmatmul.mubr.bf16.gmra.mrb[0].mxu0 %v6127
    %v6205 = vpop.f32.mrb[0].mxu0
    %v6206 = vadd.f32 0.0, %v6205
    %v6207 = vpop.f32.mrb[0].mxu0
    %v6208 = vadd.f32 0.0, %v6207
    %v6209 = vpop.f32.mrb[0].mxu0
    %v6210 = vadd.f32 0.0, %v6209
    %v6211 = vpop.f32.mrb[0].mxu0
    %v6212 = vadd.f32 0.0, %v6211
    %6213 = vdwg.mxu0
    %v6214 = vadd.f32 %v6119, %v6163
    %v6215 = vadd.f32 %v6120, %v6165
    %v6216 = vadd.f32 %v6121, %v6206
    %v6217 = vadd.f32 %v6122, %v6208
    %v6218 = vadd.f32 %v6123, %v6167
    %v6219 = vadd.f32 %v6124, %v6169
    %v6220 = vadd.f32 %v6125, %v6210
    %v6221 = vadd.f32 %v6126, %v6212
    %v6222 = vxor.u32 %v6214, 2147483648
    %v6223 = vxor.u32 %v6218, 2147483648
    %v6224 = vmul.f32 %v6222, 1.442695
    %v6225 = vpow.pop %v6224
    %v6226 = vmul.f32 %v6223, 1.442695
    %v6227 = vpow.pop %v6226
    %v6228 = vadd.f32 %v6225, 1.0
    %v6229 = vadd.f32 %v6227, 1.0
    %v6230 = vrcp.pop %v6228
    %v6231 = vmul.f32 1.0, %v6230
    %v6232 = vrcp.pop %v6229
    %v6233 = vmul.f32 1.0, %v6232
    %v6234 = vxor.u32 %v6215, 2147483648
    %v6235 = vxor.u32 %v6219, 2147483648
    %v6236 = vmul.f32 %v6234, 1.442695
    %v6237 = vpow.pop %v6236
    %v6238 = vmul.f32 %v6235, 1.442695
    %v6239 = vpow.pop %v6238
    %v6240 = vadd.f32 %v6237, 1.0
    %v6241 = vadd.f32 %v6239, 1.0
    %v6242 = vrcp.pop %v6240
    %v6243 = vmul.f32 1.0, %v6242
    %v6244 = vrcp.pop %v6241
    %v6245 = vmul.f32 1.0, %v6244
    %v6246 = vtanh.pop %v6216
    %v6247 = vtanh.pop %v6220
    %v6248 = vxor.u32 %v6217, 2147483648
    %v6249 = vxor.u32 %v6221, 2147483648
    %v6250 = vmul.f32 %v6248, 1.442695
    %v6251 = vpow.pop %v6250
    %v6252 = vmul.f32 %v6249, 1.442695
    %v6253 = vpow.pop %v6252
    %v6254 = vadd.f32 %v6251, 1.0
    %v6255 = vadd.f32 %v6253, 1.0
    %v6256 = vrcp.pop %v6254
    %v6257 = vmul.f32 1.0, %v6256
    %v6258 = vrcp.pop %v6255
    %v6259 = vmul.f32 1.0, %v6258
    %v6260 = vmul.f32 %v6243, %v6113
    %v6261 = vmul.f32 %v6245, %v6114
    %v6262 = vmul.f32 %v6231, %v6246
    %v6263 = vmul.f32 %v6233, %v6247
    %v6264 = vadd.f32 %v6260, %v6262
    %v6265 = vadd.f32 %v6261, %v6263
    %v6266 = vtanh.pop %v6264
    %v6267 = vtanh.pop %v6265
    %v6268 = vmul.f32 %v6257, %v6266
    %v6269 = vmul.f32 %v6259, %v6267
    %v6270 = vsel %vm2715, %v6268, %v6111
    %v6271 = vsel %vm2716, %v6269, %v6112
    %v6272 = vsel %vm2715, %v6264, %v6113
    %v6273 = vsel %vm2716, %v6265, %v6114
    %v6274 = vld [vmem:[#allocation3 + $0x80] sm:$0xff]
    %v6275 = vld [vmem:[#allocation3 + $0x88] sm:$0xff]
    %v6276 = vld [vmem:[#allocation3 + $0x90] sm:$0xff]
    %v6277 = vld [vmem:[#allocation3 + $0x98] sm:$0xff]
    %v6278 = vunpack.c.l.bf16 %v6274
    %v6279 = vunpack.c.l.bf16 %v6275
    %v6280 = vunpack.c.l.bf16 %v6276
    %v6281 = vunpack.c.l.bf16 %v6277
    %v6282 = vunpack.c.h.bf16 %v6274
    %v6283 = vunpack.c.h.bf16 %v6275
    %v6284 = vunpack.c.h.bf16 %v6276
    %v6285 = vunpack.c.h.bf16 %v6277
    %v6286 = vpack.c.bf16 %v6271, %v6270
    %6287 = vmatprep.subr.bf16.mxu0 %v5588
    %6288 = vmatpush1.bf16.msra.mxu0 %v5587
    %6289 = vmatprep.subr.bf16.mxu0 %v5592
    %6290 = vmatpush1.bf16.msra.mxu0 %v5591
    %6291 = vmatprep.subr.bf16.mxu0 %v5596
    %6292 = vmatpush1.bf16.msra.mxu0 %v5595
    %6293 = vmatprep.subr.bf16.mxu0 %v5600
    %6294 = vmatpush1.bf16.msra.mxu0 %v5599
    %6295 = vmatprep.subr.bf16.mxu0 %v5604
    %6296 = vmatpush1.bf16.msra.mxu0 %v5603
    %6297 = vmatprep.subr.bf16.mxu0 %v5608
    %6298 = vmatpush1.bf16.msra.mxu0 %v5607
    %6299 = vmatprep.subr.bf16.mxu0 %v5612
    %6300 = vmatpush1.bf16.msra.mxu0 %v5611
    %6301 = vmatprep.subr.bf16.mxu0 %v5616
    %6302 = vmatpush1.bf16.msra.mxu0 %v5615
    %6303 = vmatprep.subr.bf16.mxu0 0
    %6304 = vmatpush1.bf16.msra.mxu0 0
    %6305 = vmatprep.subr.bf16.mxu0 0
    %6306 = vmatpush1.bf16.msra.mxu0 0
    %6307 = vmatprep.subr.bf16.mxu0 0
    %6308 = vmatpush1.bf16.msra.mxu0 0
    %6309 = vmatprep.subr.bf16.mxu0 0
    %6310 = vmatpush1.bf16.msra.mxu0 0
    %6311 = vmatprep.subr.bf16.mxu0 0
    %6312 = vmatpush1.bf16.msra.mxu0 0
    %6313 = vmatprep.subr.bf16.mxu0 0
    %6314 = vmatpush1.bf16.msra.mxu0 0
    %6315 = vmatprep.subr.bf16.mxu0 0
    %6316 = vmatpush1.bf16.msra.mxu0 0
    %6317 = vmatprep.subr.bf16.mxu0 0
    %6318 = vmatpush1.bf16.msra.mxu0 0
    %6319 = vmatprep.mubr.bf16.mxu0 0
    %6320 = vmatmul.mubr.bf16.gmra.mrb[0].mxu0 %v6286
    %v6321 = vpop.f32.mrb[0].mxu0
    %v6322 = vadd.f32 0.0, %v6321
    %v6323 = vpop.f32.mrb[0].mxu0
    %v6324 = vadd.f32 0.0, %v6323
    %v6325 = vpop.f32.mrb[0].mxu0
    %v6326 = vadd.f32 0.0, %v6325
    %v6327 = vpop.f32.mrb[0].mxu0
    %v6328 = vadd.f32 0.0, %v6327
    %6329 = vdwg.mxu0
    %6330 = vmatprep.subr.bf16.mxu0 %v5590
    %6331 = vmatpush1.bf16.msra.mxu0 %v5589
    %6332 = vmatprep.subr.bf16.mxu0 %v5594
    %6333 = vmatpush1.bf16.msra.mxu0 %v5593
    %6334 = vmatprep.subr.bf16.mxu0 %v5598
    %6335 = vmatpush1.bf16.msra.mxu0 %v5597
    %6336 = vmatprep.subr.bf16.mxu0 %v5602
    %6337 = vmatpush1.bf16.msra.mxu0 %v5601
    %6338 = vmatprep.subr.bf16.mxu0 %v5606
    %6339 = vmatpush1.bf16.msra.mxu0 %v5605
    %6340 = vmatprep.subr.bf16.mxu0 %v5610
    %6341 = vmatpush1.bf16.msra.mxu0 %v5609
    %6342 = vmatprep.subr.bf16.mxu0 %v5614
    %6343 = vmatpush1.bf16.msra.mxu0 %v5613
    %6344 = vmatprep.subr.bf16.mxu0 %v5618
    %6345 = vmatpush1.bf16.msra.mxu0 %v5617
    %6346 = vmatprep.subr.bf16.mxu0 0
    %6347 = vmatpush1.bf16.msra.mxu0 0
    %6348 = vmatprep.subr.bf16.mxu0 0
    %6349 = vmatpush1.bf16.msra.mxu0 0
    %6350 = vmatprep.subr.bf16.mxu0 0
    %6351 = vmatpush1.bf16.msra.mxu0 0
    %6352 = vmatprep.subr.bf16.mxu0 0
    %6353 = vmatpush1.bf16.msra.mxu0 0
    %6354 = vmatprep.subr.bf16.mxu0 0
    %6355 = vmatpush1.bf16.msra.mxu0 0
    %6356 = vmatprep.subr.bf16.mxu0 0
    %6357 = vmatpush1.bf16.msra.mxu0 0
    %6358 = vmatprep.subr.bf16.mxu0 0
    %6359 = vmatpush1.bf16.msra.mxu0 0
    %6360 = vmatprep.subr.bf16.mxu0 0
    %6361 = vmatpush1.bf16.msra.mxu0 0
    %6362 = vmatprep.mubr.bf16.mxu0 0
    %6363 = vmatmul.mubr.bf16.gmra.mrb[0].mxu0 %v6286
    %v6364 = vpop.f32.mrb[0].mxu0
    %v6365 = vadd.f32 0.0, %v6364
    %v6366 = vpop.f32.mrb[0].mxu0
    %v6367 = vadd.f32 0.0, %v6366
    %v6368 = vpop.f32.mrb[0].mxu0
    %v6369 = vadd.f32 0.0, %v6368
    %v6370 = vpop.f32.mrb[0].mxu0
    %v6371 = vadd.f32 0.0, %v6370
    %6372 = vdwg.mxu0
    %v6373 = vadd.f32 %v6278, %v6322
    %v6374 = vadd.f32 %v6279, %v6324
    %v6375 = vadd.f32 %v6280, %v6365
    %v6376 = vadd.f32 %v6281, %v6367
    %v6377 = vadd.f32 %v6282, %v6326
    %v6378 = vadd.f32 %v6283, %v6328
    %v6379 = vadd.f32 %v6284, %v6369
    %v6380 = vadd.f32 %v6285, %v6371
    %v6381 = vxor.u32 %v6373, 2147483648
    %v6382 = vxor.u32 %v6377, 2147483648
    %v6383 = vmul.f32 %v6381, 1.442695
    %v6384 = vpow.pop %v6383
    %v6385 = vmul.f32 %v6382, 1.442695
    %v6386 = vpow.pop %v6385
    %v6387 = vadd.f32 %v6384, 1.0
    %v6388 = vadd.f32 %v6386, 1.0
    %v6389 = vrcp.pop %v6387
    %v6390 = vmul.f32 1.0, %v6389
    %v6391 = vrcp.pop %v6388
    %v6392 = vmul.f32 1.0, %v6391
    %v6393 = vxor.u32 %v6374, 2147483648
    %v6394 = vxor.u32 %v6378, 2147483648
    %v6395 = vmul.f32 %v6393, 1.442695
    %v6396 = vpow.pop %v6395
    %v6397 = vmul.f32 %v6394, 1.442695
    %v6398 = vpow.pop %v6397
    %v6399 = vadd.f32 %v6396, 1.0
    %v6400 = vadd.f32 %v6398, 1.0
    %v6401 = vrcp.pop %v6399
    %v6402 = vmul.f32 1.0, %v6401
    %v6403 = vrcp.pop %v6400
    %v6404 = vmul.f32 1.0, %v6403
    %v6405 = vtanh.pop %v6375
    %v6406 = vtanh.pop %v6379
    %v6407 = vxor.u32 %v6376, 2147483648
    %v6408 = vxor.u32 %v6380, 2147483648
    %v6409 = vmul.f32 %v6407, 1.442695
    %v6410 = vpow.pop %v6409
    %v6411 = vmul.f32 %v6408, 1.442695
    %v6412 = vpow.pop %v6411
    %v6413 = vadd.f32 %v6410, 1.0
    %v6414 = vadd.f32 %v6412, 1.0
    %v6415 = vrcp.pop %v6413
    %v6416 = vmul.f32 1.0, %v6415
    %v6417 = vrcp.pop %v6414
    %v6418 = vmul.f32 1.0, %v6417
    %v6419 = vmul.f32 %v6402, %v6272
    %v6420 = vmul.f32 %v6404, %v6273
    %v6421 = vmul.f32 %v6390, %v6405
    %v6422 = vmul.f32 %v6392, %v6406
    %v6423 = vadd.f32 %v6419, %v6421
    %v6424 = vadd.f32 %v6420, %v6422
    %v6425 = vtanh.pop %v6423
    %v6426 = vtanh.pop %v6424
    %v6427 = vmul.f32 %v6416, %v6425
    %v6428 = vmul.f32 %v6418, %v6426
    %v6429 = vsel %vm2729, %v6427, %v6270
    %v6430 = vsel %vm2730, %v6428, %v6271
    %v6431 = vsel %vm2729, %v6423, %v6272
    %v6432 = vsel %vm2730, %v6424, %v6273
    %v6433 = vld [vmem:[#allocation3 + $0xa0] sm:$0xff]
    %v6434 = vld [vmem:[#allocation3 + $0xa8] sm:$0xff]
    %v6435 = vld [vmem:[#allocation3 + $0xb0] sm:$0xff]
    %v6436 = vld [vmem:[#allocation3 + $0xb8] sm:$0xff]
    %v6437 = vunpack.c.l.bf16 %v6433
    %v6438 = vunpack.c.l.bf16 %v6434
    %v6439 = vunpack.c.l.bf16 %v6435
    %v6440 = vunpack.c.l.bf16 %v6436
    %v6441 = vunpack.c.h.bf16 %v6433
    %v6442 = vunpack.c.h.bf16 %v6434
    %v6443 = vunpack.c.h.bf16 %v6435
    %v6444 = vunpack.c.h.bf16 %v6436
    %v6445 = vpack.c.bf16 %v6430, %v6429
    %6446 = vmatprep.subr.bf16.mxu0 %v5588
    %6447 = vmatpush1.bf16.msra.mxu0 %v5587
    %6448 = vmatprep.subr.bf16.mxu0 %v5592
    %6449 = vmatpush1.bf16.msra.mxu0 %v5591
    %6450 = vmatprep.subr.bf16.mxu0 %v5596
    %6451 = vmatpush1.bf16.msra.mxu0 %v5595
    %6452 = vmatprep.subr.bf16.mxu0 %v5600
    %6453 = vmatpush1.bf16.msra.mxu0 %v5599
    %6454 = vmatprep.subr.bf16.mxu0 %v5604
    %6455 = vmatpush1.bf16.msra.mxu0 %v5603
    %6456 = vmatprep.subr.bf16.mxu0 %v5608
    %6457 = vmatpush1.bf16.msra.mxu0 %v5607
    %6458 = vmatprep.subr.bf16.mxu0 %v5612
    %6459 = vmatpush1.bf16.msra.mxu0 %v5611
    %6460 = vmatprep.subr.bf16.mxu0 %v5616
    %6461 = vmatpush1.bf16.msra.mxu0 %v5615
    %6462 = vmatprep.subr.bf16.mxu0 0
    %6463 = vmatpush1.bf16.msra.mxu0 0
    %6464 = vmatprep.subr.bf16.mxu0 0
    %6465 = vmatpush1.bf16.msra.mxu0 0
    %6466 = vmatprep.subr.bf16.mxu0 0
    %6467 = vmatpush1.bf16.msra.mxu0 0
    %6468 = vmatprep.subr.bf16.mxu0 0
    %6469 = vmatpush1.bf16.msra.mxu0 0
    %6470 = vmatprep.subr.bf16.mxu0 0
    %6471 = vmatpush1.bf16.msra.mxu0 0
    %6472 = vmatprep.subr.bf16.mxu0 0
    %6473 = vmatpush1.bf16.msra.mxu0 0
    %6474 = vmatprep.subr.bf16.mxu0 0
    %6475 = vmatpush1.bf16.msra.mxu0 0
    %6476 = vmatprep.subr.bf16.mxu0 0
    %6477 = vmatpush1.bf16.msra.mxu0 0
    %6478 = vmatprep.mubr.bf16.mxu0 0
    %6479 = vmatmul.mubr.bf16.gmra.mrb[0].mxu0 %v6445
    %v6480 = vpop.f32.mrb[0].mxu0
    %v6481 = vadd.f32 0.0, %v6480
    %v6482 = vpop.f32.mrb[0].mxu0
    %v6483 = vadd.f32 0.0, %v6482
    %v6484 = vpop.f32.mrb[0].mxu0
    %v6485 = vadd.f32 0.0, %v6484
    %v6486 = vpop.f32.mrb[0].mxu0
    %v6487 = vadd.f32 0.0, %v6486
    %6488 = vdwg.mxu0
    %6489 = vmatprep.subr.bf16.mxu0 %v5590
    %6490 = vmatpush1.bf16.msra.mxu0 %v5589
    %6491 = vmatprep.subr.bf16.mxu0 %v5594
    %6492 = vmatpush1.bf16.msra.mxu0 %v5593
    %6493 = vmatprep.subr.bf16.mxu0 %v5598
    %6494 = vmatpush1.bf16.msra.mxu0 %v5597
    %6495 = vmatprep.subr.bf16.mxu0 %v5602
    %6496 = vmatpush1.bf16.msra.mxu0 %v5601
    %6497 = vmatprep.subr.bf16.mxu0 %v5606
    %6498 = vmatpush1.bf16.msra.mxu0 %v5605
    %6499 = vmatprep.subr.bf16.mxu0 %v5610
    %6500 = vmatpush1.bf16.msra.mxu0 %v5609
    %6501 = vmatprep.subr.bf16.mxu0 %v5614
    %6502 = vmatpush1.bf16.msra.mxu0 %v5613
    %6503 = vmatprep.subr.bf16.mxu0 %v5618
    %6504 = vmatpush1.bf16.msra.mxu0 %v5617
    %6505 = vmatprep.subr.bf16.mxu0 0
    %6506 = vmatpush1.bf16.msra.mxu0 0
    %6507 = vmatprep.subr.bf16.mxu0 0
    %6508 = vmatpush1.bf16.msra.mxu0 0
    %6509 = vmatprep.subr.bf16.mxu0 0
    %6510 = vmatpush1.bf16.msra.mxu0 0
    %6511 = vmatprep.subr.bf16.mxu0 0
    %6512 = vmatpush1.bf16.msra.mxu0 0
    %6513 = vmatprep.subr.bf16.mxu0 0
    %6514 = vmatpush1.bf16.msra.mxu0 0
    %6515 = vmatprep.subr.bf16.mxu0 0
    %6516 = vmatpush1.bf16.msra.mxu0 0
    %6517 = vmatprep.subr.bf16.mxu0 0
    %6518 = vmatpush1.bf16.msra.mxu0 0
    %6519 = vmatprep.subr.bf16.mxu0 0
    %6520 = vmatpush1.bf16.msra.mxu0 0
    %6521 = vmatprep.mubr.bf16.mxu0 0
    %6522 = vmatmul.mubr.bf16.gmra.mrb[0].mxu0 %v6445
    %v6523 = vpop.f32.mrb[0].mxu0
    %v6524 = vadd.f32 0.0, %v6523
    %v6525 = vpop.f32.mrb[0].mxu0
    %v6526 = vadd.f32 0.0, %v6525
    %v6527 = vpop.f32.mrb[0].mxu0
    %v6528 = vadd.f32 0.0, %v6527
    %v6529 = vpop.f32.mrb[0].mxu0
    %v6530 = vadd.f32 0.0, %v6529
    %6531 = vdwg.mxu0
    %v6532 = vadd.f32 %v6437, %v6481
    %v6533 = vadd.f32 %v6438, %v6483
    %v6534 = vadd.f32 %v6439, %v6524
    %v6535 = vadd.f32 %v6440, %v6526
    %v6536 = vadd.f32 %v6441, %v6485
    %v6537 = vadd.f32 %v6442, %v6487
    %v6538 = vadd.f32 %v6443, %v6528
    %v6539 = vadd.f32 %v6444, %v6530
    %v6540 = vxor.u32 %v6532, 2147483648
    %v6541 = vxor.u32 %v6536, 2147483648
    %v6542 = vmul.f32 %v6540, 1.442695
    %v6543 = vpow.pop %v6542
    %v6544 = vmul.f32 %v6541, 1.442695
    %v6545 = vpow.pop %v6544
    %v6546 = vadd.f32 %v6543, 1.0
    %v6547 = vadd.f32 %v6545, 1.0
    %v6548 = vrcp.pop %v6546
    %v6549 = vmul.f32 1.0, %v6548
    %v6550 = vrcp.pop %v6547
    %v6551 = vmul.f32 1.0, %v6550
    %v6552 = vxor.u32 %v6533, 2147483648
    %v6553 = vxor.u32 %v6537, 2147483648
    %v6554 = vmul.f32 %v6552, 1.442695
    %v6555 = vpow.pop %v6554
    %v6556 = vmul.f32 %v6553, 1.442695
    %v6557 = vpow.pop %v6556
    %v6558 = vadd.f32 %v6555, 1.0
    %v6559 = vadd.f32 %v6557, 1.0
    %v6560 = vrcp.pop %v6558
    %v6561 = vmul.f32 1.0, %v6560
    %v6562 = vrcp.pop %v6559
    %v6563 = vmul.f32 1.0, %v6562
    %v6564 = vtanh.pop %v6534
    %v6565 = vtanh.pop %v6538
    %v6566 = vxor.u32 %v6535, 2147483648
    %v6567 = vxor.u32 %v6539, 2147483648
    %v6568 = vmul.f32 %v6566, 1.442695
    %v6569 = vpow.pop %v6568
    %v6570 = vmul.f32 %v6567, 1.442695
    %v6571 = vpow.pop %v6570
    %v6572 = vadd.f32 %v6569, 1.0
    %v6573 = vadd.f32 %v6571, 1.0
    %v6574 = vrcp.pop %v6572
    %v6575 = vmul.f32 1.0, %v6574
    %v6576 = vrcp.pop %v6573
    %v6577 = vmul.f32 1.0, %v6576
    %v6578 = vmul.f32 %v6561, %v6431
    %v6579 = vmul.f32 %v6563, %v6432
    %v6580 = vmul.f32 %v6549, %v6564
    %v6581 = vmul.f32 %v6551, %v6565
    %v6582 = vadd.f32 %v6578, %v6580
    %v6583 = vadd.f32 %v6579, %v6581
    %v6584 = vtanh.pop %v6582
    %v6585 = vtanh.pop %v6583
    %v6586 = vmul.f32 %v6575, %v6584
    %v6587 = vmul.f32 %v6577, %v6585
    %v6588 = vsel %vm2383, %v6586, %v6429
    %v6589 = vsel %vm2384, %v6587, %v6430
    %v6590 = vsel %vm2383, %v6582, %v6431
    %v6591 = vsel %vm2384, %v6583, %v6432
    %v6592 = vld [vmem:[#allocation3 + $0xc0] sm:$0xff]
    %v6593 = vld [vmem:[#allocation3 + $0xc8] sm:$0xff]
    %v6594 = vld [vmem:[#allocation3 + $0xd0] sm:$0xff]
    %v6595 = vld [vmem:[#allocation3 + $0xd8] sm:$0xff]
    %v6596 = vunpack.c.l.bf16 %v6592
    %v6597 = vunpack.c.l.bf16 %v6593
    %v6598 = vunpack.c.l.bf16 %v6594
    %v6599 = vunpack.c.l.bf16 %v6595
    %v6600 = vunpack.c.h.bf16 %v6592
    %v6601 = vunpack.c.h.bf16 %v6593
    %v6602 = vunpack.c.h.bf16 %v6594
    %v6603 = vunpack.c.h.bf16 %v6595
    %v6604 = vpack.c.bf16 %v6589, %v6588
    %6605 = vmatprep.subr.bf16.mxu0 %v5588
    %6606 = vmatpush1.bf16.msra.mxu0 %v5587
    %6607 = vmatprep.subr.bf16.mxu0 %v5592
    %6608 = vmatpush1.bf16.msra.mxu0 %v5591
    %6609 = vmatprep.subr.bf16.mxu0 %v5596
    %6610 = vmatpush1.bf16.msra.mxu0 %v5595
    %6611 = vmatprep.subr.bf16.mxu0 %v5600
    %6612 = vmatpush1.bf16.msra.mxu0 %v5599
    %6613 = vmatprep.subr.bf16.mxu0 %v5604
    %6614 = vmatpush1.bf16.msra.mxu0 %v5603
    %6615 = vmatprep.subr.bf16.mxu0 %v5608
    %6616 = vmatpush1.bf16.msra.mxu0 %v5607
    %6617 = vmatprep.subr.bf16.mxu0 %v5612
    %6618 = vmatpush1.bf16.msra.mxu0 %v5611
    %6619 = vmatprep.subr.bf16.mxu0 %v5616
    %6620 = vmatpush1.bf16.msra.mxu0 %v5615
    %6621 = vmatprep.subr.bf16.mxu0 0
    %6622 = vmatpush1.bf16.msra.mxu0 0
    %6623 = vmatprep.subr.bf16.mxu0 0
    %6624 = vmatpush1.bf16.msra.mxu0 0
    %6625 = vmatprep.subr.bf16.mxu0 0
    %6626 = vmatpush1.bf16.msra.mxu0 0
    %6627 = vmatprep.subr.bf16.mxu0 0
    %6628 = vmatpush1.bf16.msra.mxu0 0
    %6629 = vmatprep.subr.bf16.mxu0 0
    %6630 = vmatpush1.bf16.msra.mxu0 0
    %6631 = vmatprep.subr.bf16.mxu0 0
    %6632 = vmatpush1.bf16.msra.mxu0 0
    %6633 = vmatprep.subr.bf16.mxu0 0
    %6634 = vmatpush1.bf16.msra.mxu0 0
    %6635 = vmatprep.subr.bf16.mxu0 0
    %6636 = vmatpush1.bf16.msra.mxu0 0
    %6637 = vmatprep.mubr.bf16.mxu0 0
    %6638 = vmatmul.mubr.bf16.gmra.mrb[0].mxu0 %v6604
    %v6639 = vpop.f32.mrb[0].mxu0
    %v6640 = vadd.f32 0.0, %v6639
    %v6641 = vpop.f32.mrb[0].mxu0
    %v6642 = vadd.f32 0.0, %v6641
    %v6643 = vpop.f32.mrb[0].mxu0
    %v6644 = vadd.f32 0.0, %v6643
    %v6645 = vpop.f32.mrb[0].mxu0
    %v6646 = vadd.f32 0.0, %v6645
    %6647 = vdwg.mxu0
    %6648 = vmatprep.subr.bf16.mxu0 %v5590
    %6649 = vmatpush1.bf16.msra.mxu0 %v5589
    %6650 = vmatprep.subr.bf16.mxu0 %v5594
    %6651 = vmatpush1.bf16.msra.mxu0 %v5593
    %6652 = vmatprep.subr.bf16.mxu0 %v5598
    %6653 = vmatpush1.bf16.msra.mxu0 %v5597
    %6654 = vmatprep.subr.bf16.mxu0 %v5602
    %6655 = vmatpush1.bf16.msra.mxu0 %v5601
    %6656 = vmatprep.subr.bf16.mxu0 %v5606
    %6657 = vmatpush1.bf16.msra.mxu0 %v5605
    %6658 = vmatprep.subr.bf16.mxu0 %v5610
    %6659 = vmatpush1.bf16.msra.mxu0 %v5609
    %6660 = vmatprep.subr.bf16.mxu0 %v5614
    %6661 = vmatpush1.bf16.msra.mxu0 %v5613
    %6662 = vmatprep.subr.bf16.mxu0 %v5618
    %6663 = vmatpush1.bf16.msra.mxu0 %v5617
    %6664 = vmatprep.subr.bf16.mxu0 0
    %6665 = vmatpush1.bf16.msra.mxu0 0
    %6666 = vmatprep.subr.bf16.mxu0 0
    %6667 = vmatpush1.bf16.msra.mxu0 0
    %6668 = vmatprep.subr.bf16.mxu0 0
    %6669 = vmatpush1.bf16.msra.mxu0 0
    %6670 = vmatprep.subr.bf16.mxu0 0
    %6671 = vmatpush1.bf16.msra.mxu0 0
    %6672 = vmatprep.subr.bf16.mxu0 0
    %6673 = vmatpush1.bf16.msra.mxu0 0
    %6674 = vmatprep.subr.bf16.mxu0 0
    %6675 = vmatpush1.bf16.msra.mxu0 0
    %6676 = vmatprep.subr.bf16.mxu0 0
    %6677 = vmatpush1.bf16.msra.mxu0 0
    %6678 = vmatprep.subr.bf16.mxu0 0
    %6679 = vmatpush1.bf16.msra.mxu0 0
    %6680 = vmatprep.mubr.bf16.mxu0 0
    %6681 = vmatmul.mubr.bf16.gmra.mrb[0].mxu0 %v6604
    %v6682 = vpop.f32.mrb[0].mxu0
    %v6683 = vadd.f32 0.0, %v6682
    %v6684 = vpop.f32.mrb[0].mxu0
    %v6685 = vadd.f32 0.0, %v6684
    %v6686 = vpop.f32.mrb[0].mxu0
    %v6687 = vadd.f32 0.0, %v6686
    %v6688 = vpop.f32.mrb[0].mxu0
    %v6689 = vadd.f32 0.0, %v6688
    %6690 = vdwg.mxu0
    %v6691 = vadd.f32 %v6596, %v6640
    %v6692 = vadd.f32 %v6597, %v6642
    %v6693 = vadd.f32 %v6598, %v6683
    %v6694 = vadd.f32 %v6599, %v6685
    %v6695 = vadd.f32 %v6600, %v6644
    %v6696 = vadd.f32 %v6601, %v6646
    %v6697 = vadd.f32 %v6602, %v6687
    %v6698 = vadd.f32 %v6603, %v6689
    %v6699 = vxor.u32 %v6691, 2147483648
    %v6700 = vxor.u32 %v6695, 2147483648
    %v6701 = vmul.f32 %v6699, 1.442695
    %v6702 = vpow.pop %v6701
    %v6703 = vmul.f32 %v6700, 1.442695
    %v6704 = vpow.pop %v6703
    %v6705 = vadd.f32 %v6702, 1.0
    %v6706 = vadd.f32 %v6704, 1.0
    %v6707 = vrcp.pop %v6705
    %v6708 = vmul.f32 1.0, %v6707
    %v6709 = vrcp.pop %v6706
    %v6710 = vmul.f32 1.0, %v6709
    %v6711 = vxor.u32 %v6692, 2147483648
    %v6712 = vxor.u32 %v6696, 2147483648
    %v6713 = vmul.f32 %v6711, 1.442695
    %v6714 = vpow.pop %v6713
    %v6715 = vmul.f32 %v6712, 1.442695
    %v6716 = vpow.pop %v6715
    %v6717 = vadd.f32 %v6714, 1.0
    %v6718 = vadd.f32 %v6716, 1.0
    %v6719 = vrcp.pop %v6717
    %v6720 = vmul.f32 1.0, %v6719
    %v6721 = vrcp.pop %v6718
    %v6722 = vmul.f32 1.0, %v6721
    %v6723 = vtanh.pop %v6693
    %v6724 = vtanh.pop %v6697
    %v6725 = vxor.u32 %v6694, 2147483648
    %v6726 = vxor.u32 %v6698, 2147483648
    %v6727 = vmul.f32 %v6725, 1.442695
    %v6728 = vpow.pop %v6727
    %v6729 = vmul.f32 %v6726, 1.442695
    %v6730 = vpow.pop %v6729
    %v6731 = vadd.f32 %v6728, 1.0
    %v6732 = vadd.f32 %v6730, 1.0
    %v6733 = vrcp.pop %v6731
    %v6734 = vmul.f32 1.0, %v6733
    %v6735 = vrcp.pop %v6732
    %v6736 = vmul.f32 1.0, %v6735
    %v6737 = vmul.f32 %v6720, %v6590
    %v6738 = vmul.f32 %v6722, %v6591
    %v6739 = vmul.f32 %v6708, %v6723
    %v6740 = vmul.f32 %v6710, %v6724
    %v6741 = vadd.f32 %v6737, %v6739
    %v6742 = vadd.f32 %v6738, %v6740
    %v6743 = vtanh.pop %v6741
    %v6744 = vtanh.pop %v6742
    %v6745 = vmul.f32 %v6734, %v6743
    %v6746 = vmul.f32 %v6736, %v6744
    %v6747 = vsel %vm2037, %v6745, %v6588
    %v6748 = vsel %vm2038, %v6746, %v6589
    %v6749 = vsel %vm2037, %v6741, %v6590
    %v6750 = vsel %vm2038, %v6742, %v6591
    %v6751 = vld [vmem:[#allocation3 + $0xe0] sm:$0xff]
    %v6752 = vld [vmem:[#allocation3 + $0xe8] sm:$0xff]
    %v6753 = vld [vmem:[#allocation3 + $0xf0] sm:$0xff]
    %v6754 = vld [vmem:[#allocation3 + $0xf8] sm:$0xff]
    %v6755 = vunpack.c.l.bf16 %v6751
    %v6756 = vunpack.c.l.bf16 %v6752
    %v6757 = vunpack.c.l.bf16 %v6753
    %v6758 = vunpack.c.l.bf16 %v6754
    %v6759 = vunpack.c.h.bf16 %v6751
    %v6760 = vunpack.c.h.bf16 %v6752
    %v6761 = vunpack.c.h.bf16 %v6753
    %v6762 = vunpack.c.h.bf16 %v6754
    %v6763 = vpack.c.bf16 %v6748, %v6747
    %6764 = vmatprep.subr.bf16.mxu0 %v5588
    %6765 = vmatpush1.bf16.msra.mxu0 %v5587
    %6766 = vmatprep.subr.bf16.mxu0 %v5592
    %6767 = vmatpush1.bf16.msra.mxu0 %v5591
    %6768 = vmatprep.subr.bf16.mxu0 %v5596
    %6769 = vmatpush1.bf16.msra.mxu0 %v5595
    %6770 = vmatprep.subr.bf16.mxu0 %v5600
    %6771 = vmatpush1.bf16.msra.mxu0 %v5599
    %6772 = vmatprep.subr.bf16.mxu0 %v5604
    %6773 = vmatpush1.bf16.msra.mxu0 %v5603
    %6774 = vmatprep.subr.bf16.mxu0 %v5608
    %6775 = vmatpush1.bf16.msra.mxu0 %v5607
    %6776 = vmatprep.subr.bf16.mxu0 %v5612
    %6777 = vmatpush1.bf16.msra.mxu0 %v5611
    %6778 = vmatprep.subr.bf16.mxu0 %v5616
    %6779 = vmatpush1.bf16.msra.mxu0 %v5615
    %6780 = vmatprep.subr.bf16.mxu0 0
    %6781 = vmatpush1.bf16.msra.mxu0 0
    %6782 = vmatprep.subr.bf16.mxu0 0
    %6783 = vmatpush1.bf16.msra.mxu0 0
    %6784 = vmatprep.subr.bf16.mxu0 0
    %6785 = vmatpush1.bf16.msra.mxu0 0
    %6786 = vmatprep.subr.bf16.mxu0 0
    %6787 = vmatpush1.bf16.msra.mxu0 0
    %6788 = vmatprep.subr.bf16.mxu0 0
    %6789 = vmatpush1.bf16.msra.mxu0 0
    %6790 = vmatprep.subr.bf16.mxu0 0
    %6791 = vmatpush1.bf16.msra.mxu0 0
    %6792 = vmatprep.subr.bf16.mxu0 0
    %6793 = vmatpush1.bf16.msra.mxu0 0
    %6794 = vmatprep.subr.bf16.mxu0 0
    %6795 = vmatpush1.bf16.msra.mxu0 0
    %6796 = vmatprep.mubr.bf16.mxu0 0
    %6797 = vmatmul.mubr.bf16.gmra.mrb[0].mxu0 %v6763
    %v6798 = vpop.f32.mrb[0].mxu0
    %v6799 = vadd.f32 0.0, %v6798
    %v6800 = vpop.f32.mrb[0].mxu0
    %v6801 = vadd.f32 0.0, %v6800
    %v6802 = vpop.f32.mrb[0].mxu0
    %v6803 = vadd.f32 0.0, %v6802
    %v6804 = vpop.f32.mrb[0].mxu0
    %v6805 = vadd.f32 0.0, %v6804
    %6806 = vdwg.mxu0
    %6807 = vmatprep.subr.bf16.mxu0 %v5590
    %6808 = vmatpush1.bf16.msra.mxu0 %v5589
    %6809 = vmatprep.subr.bf16.mxu0 %v5594
    %6810 = vmatpush1.bf16.msra.mxu0 %v5593
    %6811 = vmatprep.subr.bf16.mxu0 %v5598
    %6812 = vmatpush1.bf16.msra.mxu0 %v5597
    %6813 = vmatprep.subr.bf16.mxu0 %v5602
    %6814 = vmatpush1.bf16.msra.mxu0 %v5601
    %6815 = vmatprep.subr.bf16.mxu0 %v5606
    %6816 = vmatpush1.bf16.msra.mxu0 %v5605
    %6817 = vmatprep.subr.bf16.mxu0 %v5610
    %6818 = vmatpush1.bf16.msra.mxu0 %v5609
    %6819 = vmatprep.subr.bf16.mxu0 %v5614
    %6820 = vmatpush1.bf16.msra.mxu0 %v5613
    %6821 = vmatprep.subr.bf16.mxu0 %v5618
    %6822 = vmatpush1.bf16.msra.mxu0 %v5617
    %6823 = vmatprep.subr.bf16.mxu0 0
    %6824 = vmatpush1.bf16.msra.mxu0 0
    %6825 = vmatprep.subr.bf16.mxu0 0
    %6826 = vmatpush1.bf16.msra.mxu0 0
    %6827 = vmatprep.subr.bf16.mxu0 0
    %6828 = vmatpush1.bf16.msra.mxu0 0
    %6829 = vmatprep.subr.bf16.mxu0 0
    %6830 = vmatpush1.bf16.msra.mxu0 0
    %6831 = vmatprep.subr.bf16.mxu0 0
    %6832 = vmatpush1.bf16.msra.mxu0 0
    %6833 = vmatprep.subr.bf16.mxu0 0
    %6834 = vmatpush1.bf16.msra.mxu0 0
    %6835 = vmatprep.subr.bf16.mxu0 0
    %6836 = vmatpush1.bf16.msra.mxu0 0
    %6837 = vmatprep.subr.bf16.mxu0 0
    %6838 = vmatpush1.bf16.msra.mxu0 0
    %6839 = vmatprep.mubr.bf16.mxu0 0
    %6840 = vmatmul.mubr.bf16.gmra.mrb[0].mxu0 %v6763
    %v6841 = vpop.f32.mrb[0].mxu0
    %v6842 = vadd.f32 0.0, %v6841
    %v6843 = vpop.f32.mrb[0].mxu0
    %v6844 = vadd.f32 0.0, %v6843
    %v6845 = vpop.f32.mrb[0].mxu0
    %v6846 = vadd.f32 0.0, %v6845
    %v6847 = vpop.f32.mrb[0].mxu0
    %v6848 = vadd.f32 0.0, %v6847
    %6849 = vdwg.mxu0
    %v6850 = vadd.f32 %v6755, %v6799
    %v6851 = vadd.f32 %v6756, %v6801
    %v6852 = vadd.f32 %v6757, %v6842
    %v6853 = vadd.f32 %v6758, %v6844
    %v6854 = vadd.f32 %v6759, %v6803
    %v6855 = vadd.f32 %v6760, %v6805
    %v6856 = vadd.f32 %v6761, %v6846
    %v6857 = vadd.f32 %v6762, %v6848
    %v6858 = vxor.u32 %v6850, 2147483648
    %v6859 = vxor.u32 %v6854, 2147483648
    %v6860 = vmul.f32 %v6858, 1.442695
    %v6861 = vpow.pop %v6860
    %v6862 = vmul.f32 %v6859, 1.442695
    %v6863 = vpow.pop %v6862
    %v6864 = vadd.f32 %v6861, 1.0
    %v6865 = vadd.f32 %v6863, 1.0
    %v6866 = vrcp.pop %v6864
    %v6867 = vmul.f32 1.0, %v6866
    %v6868 = vrcp.pop %v6865
    %v6869 = vmul.f32 1.0, %v6868
    %v6870 = vxor.u32 %v6851, 2147483648
    %v6871 = vxor.u32 %v6855, 2147483648
    %v6872 = vmul.f32 %v6870, 1.442695
    %v6873 = vpow.pop %v6872
    %v6874 = vmul.f32 %v6871, 1.442695
    %v6875 = vpow.pop %v6874
    %v6876 = vadd.f32 %v6873, 1.0
    %v6877 = vadd.f32 %v6875, 1.0
    %v6878 = vrcp.pop %v6876
    %v6879 = vmul.f32 1.0, %v6878
    %v6880 = vrcp.pop %v6877
    %v6881 = vmul.f32 1.0, %v6880
    %v6882 = vtanh.pop %v6852
    %v6883 = vtanh.pop %v6856
    %v6884 = vxor.u32 %v6853, 2147483648
    %v6885 = vxor.u32 %v6857, 2147483648
    %v6886 = vmul.f32 %v6884, 1.442695
    %v6887 = vpow.pop %v6886
    %v6888 = vmul.f32 %v6885, 1.442695
    %v6889 = vpow.pop %v6888
    %v6890 = vadd.f32 %v6887, 1.0
    %v6891 = vadd.f32 %v6889, 1.0
    %v6892 = vrcp.pop %v6890
    %v6893 = vmul.f32 1.0, %v6892
    %v6894 = vrcp.pop %v6891
    %v6895 = vmul.f32 1.0, %v6894
    %v6896 = vmul.f32 %v6879, %v6749
    %v6897 = vmul.f32 %v6881, %v6750
    %v6898 = vmul.f32 %v6867, %v6882
    %v6899 = vmul.f32 %v6869, %v6883
    %v6900 = vadd.f32 %v6896, %v6898
    %v6901 = vadd.f32 %v6897, %v6899
    %v6902 = vtanh.pop %v6900
    %v6903 = vtanh.pop %v6901
    %v6904 = vmul.f32 %v6893, %v6902
    %v6905 = vmul.f32 %v6895, %v6903
    %v6906 = vsel %vm1697, %v6904, 0.0
    %v6907 = vsel %vm1698, %v6905, 0.0
    %v6908 = vld [vmem:[#allocation4 + $0xe0] sm:$0xff]
    %v6909 = vld [vmem:[#allocation4 + $0xe8] sm:$0xff]
    %v6910 = vld [vmem:[#allocation4 + $0xf0] sm:$0xff]
    %v6911 = vld [vmem:[#allocation4 + $0xf8] sm:$0xff]
    %v6912 = vunpack.c.l.bf16 %v6908
    %v6913 = vunpack.c.l.bf16 %v6909
    %v6914 = vunpack.c.l.bf16 %v6910
    %v6915 = vunpack.c.l.bf16 %v6911
    %v6916 = vunpack.c.h.bf16 %v6908
    %v6917 = vunpack.c.h.bf16 %v6909
    %v6918 = vunpack.c.h.bf16 %v6910
    %v6919 = vunpack.c.h.bf16 %v6911
    %v6920 = vxor.u32 %v6912, 2147483648
    %v6921 = vxor.u32 %v6916, 2147483648
    %v6922 = vmul.f32 %v6920, 1.442695
    %v6923 = vpow.pop %v6922
    %v6924 = vmul.f32 %v6921, 1.442695
    %v6925 = vpow.pop %v6924
    %v6926 = vadd.f32 %v6923, 1.0
    %v6927 = vadd.f32 %v6925, 1.0
    %v6928 = vrcp.pop %v6926
    %v6929 = vmul.f32 1.0, %v6928
    %v6930 = vrcp.pop %v6927
    %v6931 = vmul.f32 1.0, %v6930
    %v6932 = vxor.u32 %v6913, 2147483648
    %v6933 = vxor.u32 %v6917, 2147483648
    %v6934 = vmul.f32 %v6932, 1.442695
    %v6935 = vpow.pop %v6934
    %v6936 = vmul.f32 %v6933, 1.442695
    %v6937 = vpow.pop %v6936
    %v6938 = vadd.f32 %v6935, 1.0
    %v6939 = vadd.f32 %v6937, 1.0
    %v6940 = vrcp.pop %v6938
    %v6941 = vmul.f32 1.0, %v6940
    %v6942 = vrcp.pop %v6939
    %v6943 = vmul.f32 1.0, %v6942
    %v6944 = vtanh.pop %v6914
    %v6945 = vtanh.pop %v6918
    %v6946 = vxor.u32 %v6915, 2147483648
    %v6947 = vxor.u32 %v6919, 2147483648
    %v6948 = vmul.f32 %v6946, 1.442695
    %v6949 = vpow.pop %v6948
    %v6950 = vmul.f32 %v6947, 1.442695
    %v6951 = vpow.pop %v6950
    %v6952 = vadd.f32 %v6949, 1.0
    %v6953 = vadd.f32 %v6951, 1.0
    %v6954 = vrcp.pop %v6952
    %v6955 = vmul.f32 1.0, %v6954
    %v6956 = vrcp.pop %v6953
    %v6957 = vmul.f32 1.0, %v6956
    %v6958 = vmul.f32 %v6941, 0.0
    %v6959 = vmul.f32 %v6943, 0.0
    %v6960 = vmul.f32 %v6929, %v6944
    %v6961 = vmul.f32 %v6931, %v6945
    %v6962 = vadd.f32 %v6958, %v6960
    %v6963 = vadd.f32 %v6959, %v6961
    %v6964 = vtanh.pop %v6962
    %v6965 = vtanh.pop %v6963
    %v6966 = vmul.f32 %v6955, %v6964
    %v6967 = vmul.f32 %v6957, %v6965
    %v6968 = vsel %vm1697, %v6966, 0.0
    %v6969 = vsel %vm1698, %v6967, 0.0
    %v6970 = vmax.f32 %v6906, 0.0
    %v6971 = vmax.f32 %v6907, 0.0
    %v6972 = vpack.c.bf16 %v6971, %v6970
    %v6973 = vmax.f32 %v6968, 0.0
    %v6974 = vmax.f32 %v6969, 0.0
    %v6975 = vpack.c.bf16 %v6974, %v6973
    %v6976 = vld [vmem:[%s14] sm:$0xf]
    %v6977 = vld [vmem:[%s14 + $0x4] sm:$0xf]
    %v6978 = vld [vmem:[%s14 + $0x8] sm:$0xf]
    %v6979 = vld [vmem:[%s14 + $0xc] sm:$0xf]
    %v6980 = vld [vmem:[%s14 + $0x10] sm:$0xf]
    %v6981 = vld [vmem:[%s14 + $0x14] sm:$0xf]
    %v6982 = vld [vmem:[%s14 + $0x18] sm:$0xf]
    %v6983 = vld [vmem:[%s14 + $0x1c] sm:$0xf]
    %v6984 = vld [vmem:[%s14 + $0x20] sm:$0xf]
    %v6985 = vld [vmem:[%s14 + $0x24] sm:$0xf]
    %v6986 = vld [vmem:[%s14 + $0x28] sm:$0xf]
    %v6987 = vld [vmem:[%s14 + $0x2c] sm:$0xf]
    %v6988 = vld [vmem:[%s14 + $0x30] sm:$0xf]
    %v6989 = vld [vmem:[%s14 + $0x34] sm:$0xf]
    %v6990 = vld [vmem:[%s14 + $0x38] sm:$0xf]
    %v6991 = vld [vmem:[%s14 + $0x3c] sm:$0xf]
    %v6992 = vld [vmem:[%s14 + $0x40] sm:$0xf]
    %v6993 = vld [vmem:[%s14 + $0x44] sm:$0xf]
    %v6994 = vld [vmem:[%s14 + $0x48] sm:$0xf]
    %v6995 = vld [vmem:[%s14 + $0x4c] sm:$0xf]
    %v6996 = vld [vmem:[%s14 + $0x50] sm:$0xf]
    %v6997 = vld [vmem:[%s14 + $0x54] sm:$0xf]
    %v6998 = vld [vmem:[%s14 + $0x58] sm:$0xf]
    %v6999 = vld [vmem:[%s14 + $0x5c] sm:$0xf]
    %v7000 = vld [vmem:[%s14 + $0x60] sm:$0xf]
    %v7001 = vld [vmem:[%s14 + $0x64] sm:$0xf]
    %v7002 = vld [vmem:[%s14 + $0x68] sm:$0xf]
    %v7003 = vld [vmem:[%s14 + $0x6c] sm:$0xf]
    %v7004 = vld [vmem:[%s14 + $0x70] sm:$0xf]
    %v7005 = vld [vmem:[%s14 + $0x74] sm:$0xf]
    %v7006 = vld [vmem:[%s14 + $0x78] sm:$0xf]
    %v7007 = vld [vmem:[%s14 + $0x7c] sm:$0xf]
    %v7024 = vunpack.c.l.b16 %v6992
    %v7025 = vunpack.c.l.b16 %v6993
    %v7026 = vunpack.c.l.b16 %v6994
    %v7027 = vunpack.c.l.b16 %v6995
    %v7028 = vunpack.c.l.b16 %v6996
    %v7029 = vunpack.c.l.b16 %v6997
    %v7030 = vunpack.c.l.b16 %v6998
    %v7031 = vunpack.c.l.b16 %v6999
    %v7032 = vunpack.c.l.b16 %v7000
    %v7033 = vunpack.c.l.b16 %v7001
    %v7034 = vunpack.c.l.b16 %v7002
    %v7035 = vunpack.c.l.b16 %v7003
    %v7036 = vunpack.c.l.b16 %v7004
    %v7037 = vunpack.c.l.b16 %v7005
    %v7038 = vunpack.c.l.b16 %v7006
    %v7039 = vunpack.c.l.b16 %v7007
    %v7040 = vpack.c.b16 %v7025, %v7024
    %v7041 = vpack.c.b16 %v7027, %v7026
    %v7042 = vpack.c.b16 %v7029, %v7028
    %v7043 = vpack.c.b16 %v7031, %v7030
    %v7044 = vpack.c.b16 %v7033, %v7032
    %v7045 = vpack.c.b16 %v7035, %v7034
    %v7046 = vpack.c.b16 %v7037, %v7036
    %v7047 = vpack.c.b16 %v7039, %v7038
    %7056 = vmatprep.subr.bf16.mxu0 0
    %7057 = vmatpush1.bf16.msra.mxu0 %v7040
    %7058 = vmatprep.subr.bf16.mxu0 0
    %7059 = vmatpush1.bf16.msra.mxu0 %v7041
    %7060 = vmatprep.subr.bf16.mxu0 0
    %7061 = vmatpush1.bf16.msra.mxu0 %v7042
    %7062 = vmatprep.subr.bf16.mxu0 0
    %7063 = vmatpush1.bf16.msra.mxu0 %v7043
    %7064 = vmatprep.subr.bf16.mxu0 0
    %7065 = vmatpush1.bf16.msra.mxu0 %v7044
    %7066 = vmatprep.subr.bf16.mxu0 0
    %7067 = vmatpush1.bf16.msra.mxu0 %v7045
    %7068 = vmatprep.subr.bf16.mxu0 0
    %7069 = vmatpush1.bf16.msra.mxu0 %v7046
    %7070 = vmatprep.subr.bf16.mxu0 0
    %7071 = vmatpush1.bf16.msra.mxu0 %v7047
    %7072 = vmatprep.subr.bf16.mxu0 0
    %7073 = vmatpush1.bf16.msra.mxu0 0
    %7074 = vmatprep.subr.bf16.mxu0 0
    %7075 = vmatpush1.bf16.msra.mxu0 0
    %7076 = vmatprep.subr.bf16.mxu0 0
    %7077 = vmatpush1.bf16.msra.mxu0 0
    %7078 = vmatprep.subr.bf16.mxu0 0
    %7079 = vmatpush1.bf16.msra.mxu0 0
    %7080 = vmatprep.subr.bf16.mxu0 0
    %7081 = vmatpush1.bf16.msra.mxu0 0
    %7082 = vmatprep.subr.bf16.mxu0 0
    %7083 = vmatpush1.bf16.msra.mxu0 0
    %7084 = vmatprep.subr.bf16.mxu0 0
    %7085 = vmatpush1.bf16.msra.mxu0 0
    %7086 = vmatprep.subr.bf16.mxu0 0
    %7087 = vmatpush1.bf16.msra.mxu0 0
    %7088 = vmatprep.mubr.bf16.mxu0 0
    %7089 = vmatmul.mubr.bf16.gmra.mrb[0].mxu0 %v6975
    %v7090 = vpop.f32.mrb[0].mxu0
    %v7091 = vadd.f32 0.0, %v7090
    %v7092 = vpop.f32.mrb[0].mxu0
    %v7093 = vpop.f32.mrb[0].mxu0
    %v7094 = vadd.f32 0.0, %v7093
    %v7095 = vpop.f32.mrb[0].mxu0
    %7096 = vdwg.mxu0
    %v7113 = vunpack.c.l.b16 %v6976
    %v7114 = vunpack.c.l.b16 %v6977
    %v7115 = vunpack.c.l.b16 %v6978
    %v7116 = vunpack.c.l.b16 %v6979
    %v7117 = vunpack.c.l.b16 %v6980
    %v7118 = vunpack.c.l.b16 %v6981
    %v7119 = vunpack.c.l.b16 %v6982
    %v7120 = vunpack.c.l.b16 %v6983
    %v7121 = vunpack.c.l.b16 %v6984
    %v7122 = vunpack.c.l.b16 %v6985
    %v7123 = vunpack.c.l.b16 %v6986
    %v7124 = vunpack.c.l.b16 %v6987
    %v7125 = vunpack.c.l.b16 %v6988
    %v7126 = vunpack.c.l.b16 %v6989
    %v7127 = vunpack.c.l.b16 %v6990
    %v7128 = vunpack.c.l.b16 %v6991
    %v7129 = vpack.c.b16 %v7114, %v7113
    %v7130 = vpack.c.b16 %v7116, %v7115
    %v7131 = vpack.c.b16 %v7118, %v7117
    %v7132 = vpack.c.b16 %v7120, %v7119
    %v7133 = vpack.c.b16 %v7122, %v7121
    %v7134 = vpack.c.b16 %v7124, %v7123
    %v7135 = vpack.c.b16 %v7126, %v7125
    %v7136 = vpack.c.b16 %v7128, %v7127
    %7145 = vmatprep.subr.bf16.mxu0 0
    %7146 = vmatpush1.bf16.msra.mxu0 %v7129
    %7147 = vmatprep.subr.bf16.mxu0 0
    %7148 = vmatpush1.bf16.msra.mxu0 %v7130
    %7149 = vmatprep.subr.bf16.mxu0 0
    %7150 = vmatpush1.bf16.msra.mxu0 %v7131
    %7151 = vmatprep.subr.bf16.mxu0 0
    %7152 = vmatpush1.bf16.msra.mxu0 %v7132
    %7153 = vmatprep.subr.bf16.mxu0 0
    %7154 = vmatpush1.bf16.msra.mxu0 %v7133
    %7155 = vmatprep.subr.bf16.mxu0 0
    %7156 = vmatpush1.bf16.msra.mxu0 %v7134
    %7157 = vmatprep.subr.bf16.mxu0 0
    %7158 = vmatpush1.bf16.msra.mxu0 %v7135
    %7159 = vmatprep.subr.bf16.mxu0 0
    %7160 = vmatpush1.bf16.msra.mxu0 %v7136
    %7161 = vmatprep.subr.bf16.mxu0 0
    %7162 = vmatpush1.bf16.msra.mxu0 0
    %7163 = vmatprep.subr.bf16.mxu0 0
    %7164 = vmatpush1.bf16.msra.mxu0 0
    %7165 = vmatprep.subr.bf16.mxu0 0
    %7166 = vmatpush1.bf16.msra.mxu0 0
    %7167 = vmatprep.subr.bf16.mxu0 0
    %7168 = vmatpush1.bf16.msra.mxu0 0
    %7169 = vmatprep.subr.bf16.mxu0 0
    %7170 = vmatpush1.bf16.msra.mxu0 0
    %7171 = vmatprep.subr.bf16.mxu0 0
    %7172 = vmatpush1.bf16.msra.mxu0 0
    %7173 = vmatprep.subr.bf16.mxu0 0
    %7174 = vmatpush1.bf16.msra.mxu0 0
    %7175 = vmatprep.subr.bf16.mxu0 0
    %7176 = vmatpush1.bf16.msra.mxu0 0
    %7177 = vmatprep.mubr.bf16.mxu0 0
    %7178 = vmatmul.mubr.bf16.gmra.mrb[0].mxu0 %v6972
    %v7179 = vpop.f32.mrb[0].mxu0
    %v7180 = vadd.f32 %v7091, %v7179
    %v7181 = vpop.f32.mrb[0].mxu0
    %v7182 = vpop.f32.mrb[0].mxu0
    %v7183 = vadd.f32 %v7094, %v7182
    %v7184 = vpop.f32.mrb[0].mxu0
    %7185 = vdwg.mxu0
    %v7186 = vld [vmem:[%s15] sm:$0x1]
    %v7188 = vlaneseq
    %v7189 = vshrl.u32 %v7188, 7
    %v7190 = vsub.s32 0, %v7189
    %v7191 = vrot.slane %v7186, %v7190
    %v7193 = vadd.f32 %v7180, %v7191
    %v7194 = vadd.f32 %v7183, %v7191
    %7195 = vst [vmem:[#allocation19] sm:$0xff] %v7193
    %7196 = vst [vmem:[#allocation19 + $0x8] sm:$0xff] %v7194
    // Predicated region
    $region98: #{tpu_custom_call.1} parent=1 // pred_check
      _
    $region99: #{tpu_custom_call.1} parent=1 // pred_check_branch
      %7198 = sbr.rel (0) target = $region101
    $region100: #{tpu_custom_call.1} parent=1 // pred_region
      %s7200 = ssub.s32 256, 256
      %7201 = vsyncadd [#allocation7], %s7200
      %s7202 = sshll.u32 [#allocation19], 4
      %s7203 = int_to_ptr.vmem [resolvable:$true] %s7202
      %7208 = dma.vmem_to_hbm [thread:$0]  %s7203, 256, %s16, [#allocation7], 128, 128, 8
    $region101: #{tpu_custom_call.1} parent=1 // pred_fallthru
      _
    // Predicated region
    $region102: #{tpu_custom_call.1} parent=1 // pred_check
      _
    $region103: #{tpu_custom_call.1} parent=1 // pred_check_branch
      %7210 = sbr.rel (0) target = $region105
    $region104: #{tpu_custom_call.1} parent=1 // pred_region
      %7211 = dma.done [#allocation7], 256
    $region105: #{tpu_custom_call.1} parent=1 // pred_fallthru
      _
    %7212 = vsyncpa [#allocation6], 1
    %7213 = vsyncpa [#allocation9], 1
    %7214 = vsyncpa [#allocation12], 1
    %7215 = vsyncpa [#allocation15], 1
    %7216 = vsyncpa [#allocation18], 1
    %7217 = vsyncpa [#allocation7], 1

</llo_original>
